<compile_context>
chip_gen: v5e
topology: v5e:2x2
jax: 0.10.0
libtpu: 0.0.40
codegen_flags: <defaults>
</compile_context>

<pallas_src>
import jax
import jax.numpy as jnp
from jax import lax
from jax.experimental import pallas as pl
from jax.experimental.pallas import tpu as pltpu


# ---------------------------------------------------------------------------
# Fused BasicBlock kernel: one (batch, row-tile) per grid step
# ---------------------------------------------------------------------------
def basic_block_kernel(x_ref, w1_ref, w2_ref, s1_ref, b1_ref, s2_ref, b2_ref,
                       out_ref, xpad_ref, col_ref):
    # x_ref    : (1, H, W, Cp)  f32   full-height input block of this batch elem
    # w*_ref   : (9*Cp, Cp)     bf16  im2col-flattened HWIO weights
    # s*/b*    : (1, Cp)        f32   folded BN scale / bias
    # out_ref  : (1, TH, W, Cp)       output row tile
    # xpad_ref : VMEM (TH+4, W+2, Cp)  bf16  SAME-padded activation window
    # col_ref  : VMEM ((TH+2)*W, 9*Cp) bf16  im2col staging
    _, H, W, Cp = x_ref.shape
    TH = out_ref.shape[1]
    bf = jnp.bfloat16

    h = pl.program_id(1)
    nH = pl.num_programs(1)
    r0 = pl.multiple_of(h * TH, TH)          # first output row of this tile

    # Left/right zero-padding columns.  Cheap (2 columns), rewritten every step
    # since the per-core scratch is uninitialized on that core's first step;
    # the interior is always fully overwritten below.
    zc = jnp.zeros((TH + 4, 1, Cp), bf)
    xpad_ref[:, 0:1, :] = zc
    xpad_ref[:, W + 1:W + 2, :] = zc

    # ---- stage 1 input: image rows [r0-2, r0+TH+2), zero rows at the edges --
    xpad_ref[2:TH + 2, 1:W + 1, :] = x_ref[0, pl.ds(r0, TH), :, :].astype(bf)

    @pl.when(h > 0)
    def _():
        xpad_ref[0:2, 1:W + 1, :] = x_ref[0, pl.ds(r0 - 2, 2), :, :].astype(bf)

    @pl.when(h == 0)
    def _():
        xpad_ref[0:2, 1:W + 1, :] = jnp.zeros((2, W, Cp), bf)

    @pl.when(h < nH - 1)
    def _():
        xpad_ref[TH + 2:TH + 4, 1:W + 1, :] = (
            x_ref[0, pl.ds(r0 + TH, 2), :, :].astype(bf))

    @pl.when(h == nH - 1)
    def _():
        xpad_ref[TH + 2:TH + 4, 1:W + 1, :] = jnp.zeros((2, W, Cp), bf)

    def conv3x3(w_ref, rows):
        # im2col (already bf16, no per-tap cast) + ONE MXU matmul with K=9*Cp.
        for dy in range(3):
            for dx in range(3):
                tap = dy * 3 + dx
                patch = xpad_ref[dy:dy + rows, dx:dx + W, :]
                col_ref[0:rows * W, tap * Cp:(tap + 1) * Cp] = (
                    patch.reshape(rows * W, Cp))
        return jnp.dot(col_ref[0:rows * W, :], w_ref[...],
                       preferred_element_type=jnp.float32)

    # conv1 -> BN1 -> ReLU over TH+2 rows (the extra top/bottom row feed
    # conv2's vertical halo); the intermediate never leaves VMEM.
    y = conv3x3(w1_ref, TH + 2)
    y = jnp.maximum(y * s1_ref[...] + b1_ref[...], 0.0)

    # y (bf16) becomes the SAME-padded input of conv2; rows that fall outside
    # the image must be zero padding, not conv1-of-padding.
    xpad_ref[0:TH + 2, 1:W + 1, :] = y.astype(bf).reshape(TH + 2, W, Cp)

    @pl.when(h == 0)
    def _():
        xpad_ref[0:1, 1:W + 1, :] = jnp.zeros((1, W, Cp), bf)

    @pl.when(h == nH - 1)
    def _():
        xpad_ref[TH + 1:TH + 2, 1:W + 1, :] = jnp.zeros((1, W, Cp), bf)

    # conv2 -> BN2 -> + identity -> ReLU   (post-matmul math kept in f32).
    z = conv3x3(w2_ref, TH)
    z = z * s2_ref[...] + b2_ref[...]
    z = z + x_ref[0, pl.ds(r0, TH), :, :].reshape(TH * W, Cp)
    out_ref[...] = jnp.maximum(z, 0.0).reshape(1, TH, W, Cp).astype(out_ref.dtype)


# ---------------------------------------------------------------------------
# Helpers
# ---------------------------------------------------------------------------
def _round_up(x, m):
    return (x + m - 1) // m * m


def _pad_axis(a, size, axis):
    pad = [(0, 0)] * a.ndim
    pad[axis] = (0, size - a.shape[axis])
    return jnp.pad(a, pad)


_SINGLE_BUFFER_OK = None


def _single_buffer_constants_supported():
    """Probe (once) whether BlockSpec(pipeline_mode=pl.Buffered(1)) lowers on
    this jax/libtpu, so grid-constant weight blocks are not double-buffered."""
    global _SINGLE_BUFFER_OK
    if _SINGLE_BUFFER_OK is not None:
        return _SINGLE_BUFFER_OK
    try:
        def _copy(a_ref, o_ref):
            o_ref[...] = a_ref[...]
        f = pl.pallas_call(
            _copy,
            out_shape=jax.ShapeDtypeStruct((8, 128), jnp.float32),
            grid=(1,),
            in_specs=[pl.BlockSpec((8, 128), lambda i: (0, 0),
                                   pipeline_mode=pl.Buffered(1))],
            out_specs=pl.BlockSpec((8, 128), lambda i: (0, 0)))
        jax.block_until_ready(f(jnp.zeros((8, 128), jnp.float32)))
        _SINGLE_BUFFER_OK = True
    except Exception:
        _SINGLE_BUFFER_OK = False
    return _SINGLE_BUFFER_OK


def _const_spec(shape, single_buffer):
    idx = lambda n, h: (0,) * len(shape)
    if single_buffer:
        return pl.BlockSpec(shape, idx, pipeline_mode=pl.Buffered(1))
    return pl.BlockSpec(shape, idx)


def _pick_row_tile(H, W, Cp, target_col_bytes=4 << 20):
    """Largest divisor TH >= 2 of H whose im2col scratch fits the target."""
    for th in range(H, 1, -1):
        if H % th == 0 and (th + 2) * W * 9 * Cp * 2 <= target_col_bytes:
            return th
    return H


# ---------------------------------------------------------------------------
# One-time parameter prep (hoisted out of the forward pass)
# ---------------------------------------------------------------------------
def prepare_params(params):
    """Pad channels to a lane-dense multiple of 128, flatten HWIO weights to
    the im2col (9*Cp, Cp) bf16 layout, keep folded BN scale/bias in f32."""
    C = params["w1"].shape[3]
    assert params["w1"].shape[2] == C, "downsample=None requires inplanes == planes"
    Cp = _round_up(max(C, 128), 128)

    def prep_w(w):                            # (3,3,Cin,Cout) -> (9*Cp, Cp) bf16
        w = _pad_axis(_pad_axis(w.astype(jnp.float32), Cp, 2), Cp, 3)
        return w.reshape(9 * Cp, Cp).astype(jnp.bfloat16)

    def prep_v(v):                            # (Cout,) -> (1, Cp) f32
        return _pad_axis(v.astype(jnp.float32), Cp, 0).reshape(1, Cp)

    return dict(C=C, Cp=Cp,
                w1=prep_w(params["w1"]), w2=prep_w(params["w2"]),
                s1=prep_v(params["s1"]), b1=prep_v(params["b1"]),
                s2=prep_v(params["s2"]), b2=prep_v(params["b2"]))


# ---------------------------------------------------------------------------
# Wrapper
# ---------------------------------------------------------------------------
def basic_block_forward(x_nhwc, prepped, *, row_tile=None, out_dtype=None,
                        keep_padded_channels=False):
    """Fused BasicBlock.forward (stride=1, downsample=None).

    x_nhwc: (N, H, W, C) f32, or an already channel-padded (N, H, W, Cp)
    activation from a previous block.  Returns (N, H, W, C) unless
    keep_padded_channels=True (then Cp-wide, avoiding the extra HBM slice
    when chaining blocks)."""
    N, H, W, Cin = x_nhwc.shape
    C, Cp = prepped["C"], prepped["Cp"]
    out_dtype = jnp.dtype(out_dtype if out_dtype is not None else x_nhwc.dtype)

    if Cin == Cp:
        xp = x_nhwc.astype(jnp.float32)
    elif Cin == C:
        # Only needed for narrow-C inputs; chained blocks should pass Cp-wide
        # activations (keep_padded_channels=True) to skip this HBM pass.
        xp = _pad_axis(x_nhwc.astype(jnp.float32), Cp, axis=3)
    else:
        raise ValueError(f"expected {C} or {Cp} channels, got {Cin}")

    TH = row_tile if row_tile is not None else _pick_row_tile(H, W, Cp)
    assert H % TH == 0 and (TH >= 2 or TH == H), (H, TH)
    nH = H // TH

    single_buffer = _single_buffer_constants_supported()

    # Scoped-VMEM limit sized to the footprint (v5e default is only 16 MiB).
    w_bytes = 9 * Cp * Cp * 2
    const_bytes = (1 if single_buffer else 2) * (2 * w_bytes + 4 * Cp * 4)
    est = (2 * H * W * Cp * 4                        # double-buffered input blk
           + 2 * TH * W * Cp * out_dtype.itemsize    # double-buffered output blk
           + const_bytes
           + (TH + 4) * (W + 2) * Cp * 2             # xpad scratch (bf16)
           + (TH + 2) * W * 9 * Cp * 2)              # im2col scratch (bf16)
    vmem_limit = int(min(max(2 * est, 32 << 20), 48 << 20))

    out = pl.pallas_call(
        basic_block_kernel,
        out_shape=jax.ShapeDtypeStruct((N, H, W, Cp), out_dtype),
        grid=(N, nH),
        in_specs=[
            pl.BlockSpec((1, H, W, Cp), lambda n, h: (n, 0, 0, 0)),
            _const_spec((9 * Cp, Cp), single_buffer),
            _const_spec((9 * Cp, Cp), single_buffer),
            _const_spec((1, Cp), single_buffer),
            _const_spec((1, Cp), single_buffer),
            _const_spec((1, Cp), single_buffer),
            _const_spec((1, Cp), single_buffer),
        ],
        out_specs=pl.BlockSpec((1, TH, W, Cp), lambda n, h: (n, h, 0, 0)),
        scratch_shapes=[
            pltpu.VMEM((TH + 4, W + 2, Cp), jnp.bfloat16),     # padded activation
            pltpu.VMEM(((TH + 2) * W, 9 * Cp), jnp.bfloat16),  # im2col tile
        ],
        compiler_params=pltpu.CompilerParams(
            dimension_semantics=("parallel", "parallel"),   # megacore split
            vmem_limit_bytes=vmem_limit),
    )(xp, prepped["w1"], prepped["w2"], prepped["s1"], prepped["b1"],
      prepped["s2"], prepped["b2"])

    if keep_padded_channels or Cp == C:
        return out
    return out[..., :C]


# ---------------------------------------------------------------------------
# Deterministic parameter init (folds eval-mode BN into scale/bias)
# ---------------------------------------------------------------------------
def init_params(key, inplanes, planes, eps=1e-5):
    ks = jax.random.split(key, 10)
    w1 = 0.1 * jax.random.normal(ks[0], (3, 3, inplanes, planes), jnp.float32)
    w2 = 0.1 * jax.random.normal(ks[1], (3, 3, planes, planes), jnp.float32)

    def bn(kg, kb, km, kv):
        gamma = 1.0 + 0.1 * jax.random.normal(kg, (planes,), jnp.float32)
        beta = 0.1 * jax.random.normal(kb, (planes,), jnp.float32)
        mean = 0.1 * jax.random.normal(km, (planes,), jnp.float32)
        var = jnp.abs(jax.random.normal(kv, (planes,), jnp.float32)) + 0.5
        scale = gamma / jnp.sqrt(var + eps)
        bias = beta - mean * scale
        return scale, bias

    s1, b1 = bn(ks[2], ks[3], ks[4], ks[5])
    s2, b2 = bn(ks[6], ks[7], ks[8], ks[9])
    return {"w1": w1, "w2": w2, "s1": s1, "b1": b1, "s2": s2, "b2": b2}


# ---------------------------------------------------------------------------
# Pure-JAX reference (mirrors the kernel's bf16 matmul operands)
# ---------------------------------------------------------------------------
def ref_forward(x, p):
    bf = lambda a: a.astype(jnp.bfloat16).astype(jnp.float32)
    dn = lax.conv_dimension_numbers(x.shape, p["w1"].shape,
                                    ("NHWC", "HWIO", "NHWC"))
    out = lax.conv_general_dilated(bf(x), bf(p["w1"]), (1, 1), "SAME",
                                   dimension_numbers=dn,
                                   precision=lax.Precision.HIGHEST)
    out = jnp.maximum(out * p["s1"] + p["b1"], 0.0)
    out = lax.conv_general_dilated(bf(out), bf(p["w2"]), (1, 1), "SAME",
                                   dimension_numbers=dn,
                                   precision=lax.Precision.HIGHEST)
    out = out * p["s2"] + p["b2"] + x
    return jnp.maximum(out, 0.0)


# ---------------------------------------------------------------------------
if __name__ == "__main__":
    key = jax.random.PRNGKey(0)
    kx, kp = jax.random.split(key)

    # Small shapes: batch=2, inplanes=planes=8, spatial=16x16 (NCHW in torch).
    N, C, H, W = 2, 8, 16, 16
    x_nchw = jax.random.normal(kx, (N, C, H, W), jnp.float32)
    x_nhwc = jnp.transpose(x_nchw, (0, 2, 3, 1))   # glue: NCHW -> NHWC

    params = init_params(kp, inplanes=C, planes=C)
    prepped = prepare_params(params)               # one-time weight/BN prep

    ref = jax.block_until_ready(ref_forward(x_nhwc, params))

    # row_tile=8 exercises the H-tiled path (2 tiles, halo handling at both
    # image edges); row_tile=None auto-picks (full height here, 1 tile).
    for rt in (8, None):
        out = jax.block_until_ready(
            basic_block_forward(x_nhwc, prepped, row_tile=rt))
        assert out.shape == (N, H, W, C)
        max_err = float(jnp.max(jnp.abs(out - ref)))
        assert jnp.allclose(out, ref, atol=5e-3, rtol=5e-3), (
            f"row_tile={rt}: mismatch vs reference, max abs err = {max_err:e}")

    print("KERNEL_OK")
</pallas_src>

<mosaic_0001>
module attributes {stable_mosaic.version = 11 : i64} {
  func.func @_copy(%arg0: i32, %arg1: memref<8x128xf32, #tpu.memory_space<vmem>>, %arg2: memref<8x128xf32, #tpu.memory_space<vmem>>) attributes {dimension_semantics = [#tpu.dimension_semantics<arbitrary>], iteration_bounds = array<i64: 1>, scalar_prefetch = 0 : i64, scratch_operands = 0 : i64, tpu.core_type = #tpu.core_type<tc>, window_params = [{pipeline_mode = #tpu.pipeline_mode<synchronous>, transform_indices = @transform_0, window_bounds = array<i64: 8, 128>}, {pipeline_mode = #tpu.pipeline_mode<synchronous>, transform_indices = @transform_1, window_bounds = array<i64: 8, 128>}]} {
    %c0 = arith.constant 0 : index
    %c0_0 = arith.constant 0 : index
    %0 = vector.load %arg1[%c0, %c0_0] : memref<8x128xf32, #tpu.memory_space<vmem>>, vector<8x128xf32>
    %c0_1 = arith.constant 0 : index
    %c0_2 = arith.constant 0 : index
    %1 = vector.load %arg2[%c0_1, %c0_2] : memref<8x128xf32, #tpu.memory_space<vmem>>, vector<8x128xf32>
    tpu.vector_store %arg2[%c0_1, %c0_2], %0 {strides = array<i32>} : memref<8x128xf32, #tpu.memory_space<vmem>>, vector<8x128xf32>,
    return
  }
  func.func @transform_0(%arg0: i32) -> (i32, i32) {
    %c0_i32 = arith.constant 0 : i32
    %c0_i32_0 = arith.constant 0 : i32
    %c0_i32_1 = arith.constant 0 : i32
    return %c0_i32, %c0_i32_0 : i32, i32
  }
  func.func @transform_1(%arg0: i32) -> (i32, i32) {
    %c0_i32 = arith.constant 0 : i32
    %c0_i32_0 = arith.constant 0 : i32
    %c0_i32_1 = arith.constant 0 : i32
    return %c0_i32, %c0_i32_0 : i32, i32
  }
}

module attributes {stable_mosaic.version = 11 : i64} {
  func.func @basic_block_kernel(%arg0: i32, %arg1: i32, %arg2: memref<1x16x16x128xf32, #tpu.memory_space<vmem>>, %arg3: memref<1152x128xbf16, #tpu.memory_space<vmem>>, %arg4: memref<1152x128xbf16, #tpu.memory_space<vmem>>, %arg5: memref<1x128xf32, #tpu.memory_space<vmem>>, %arg6: memref<1x128xf32, #tpu.memory_space<vmem>>, %arg7: memref<1x128xf32, #tpu.memory_space<vmem>>, %arg8: memref<1x128xf32, #tpu.memory_space<vmem>>, %arg9: memref<1x8x16x128xf32, #tpu.memory_space<vmem>>, %arg10: memref<12x18x128xbf16, #tpu.memory_space<vmem>>, %arg11: memref<160x1152xbf16, #tpu.memory_space<vmem>>) attributes {dimension_semantics = [#tpu.dimension_semantics<parallel>, #tpu.dimension_semantics<parallel>], iteration_bounds = array<i64: 2, 2>, scalar_prefetch = 0 : i64, scratch_operands = 2 : i64, tpu.core_type = #tpu.core_type<tc>, window_params = [{transform_indices = @transform_0, window_bounds = array<i64: 1, 16, 16, 128>}, {pipeline_mode = #tpu.pipeline_mode<synchronous>, transform_indices = @transform_1, window_bounds = array<i64: 1152, 128>}, {pipeline_mode = #tpu.pipeline_mode<synchronous>, transform_indices = @transform_2, window_bounds = array<i64: 1152, 128>}, {pipeline_mode = #tpu.pipeline_mode<synchronous>, transform_indices = @transform_3, window_bounds = array<i64: 1, 128>}, {pipeline_mode = #tpu.pipeline_mode<synchronous>, transform_indices = @transform_4, window_bounds = array<i64: 1, 128>}, {pipeline_mode = #tpu.pipeline_mode<synchronous>, transform_indices = @transform_5, window_bounds = array<i64: 1, 128>}, {pipeline_mode = #tpu.pipeline_mode<synchronous>, transform_indices = @transform_6, window_bounds = array<i64: 1, 128>}, {transform_indices = @transform_7, window_bounds = array<i64: 1, 8, 16, 128>}]} {
    %c8_i32 = arith.constant 8 : i32
    %0 = arith.muli %arg1, %c8_i32 : i32
    %1 = tpu.assume_multiple %0, 8 : i32
    %cst = arith.constant 0.000000e+00 : bf16
    %2 = vector.broadcast %cst : bf16 to vector<12x1x128xbf16>
    %c0 = arith.constant 0 : index
    %c0_0 = arith.constant 0 : index
    %c0_1 = arith.constant 0 : index
    %3 = vector.load %arg10[%c0, %c0_0, %c0_1] : memref<12x18x128xbf16, #tpu.memory_space<vmem>>, vector<12x1x128xbf16>
    tpu.vector_store %arg10[%c0, %c0_0, %c0_1], %2 {strides = array<i32>} : memref<12x18x128xbf16, #tpu.memory_space<vmem>>, vector<12x1x128xbf16>,
    %c0_2 = arith.constant 0 : index
    %c17 = arith.constant 17 : index
    %c0_3 = arith.constant 0 : index
    %4 = vector.load %arg10[%c0_2, %c17, %c0_3] : memref<12x18x128xbf16, #tpu.memory_space<vmem>>, vector<12x1x128xbf16>
    tpu.vector_store %arg10[%c0_2, %c17, %c0_3], %2 {strides = array<i32>} : memref<12x18x128xbf16, #tpu.memory_space<vmem>>, vector<12x1x128xbf16>,
    %c0_4 = arith.constant 0 : index
    %5 = arith.index_cast %1 : i32 to index
    %c0_5 = arith.constant 0 : index
    %c0_6 = arith.constant 0 : index
    %6 = vector.load %arg2[%c0_4, %5, %c0_5, %c0_6] : memref<1x16x16x128xf32, #tpu.memory_space<vmem>>, vector<1x8x16x128xf32>
    %7 = vector.shape_cast %6 : vector<1x8x16x128xf32> to vector<8x16x128xf32>
    %8 = arith.truncf %7 : vector<8x16x128xf32> to vector<8x16x128xbf16>
    %c2 = arith.constant 2 : index
    %c1 = arith.constant 1 : index
    %c0_7 = arith.constant 0 : index
    %9 = vector.load %arg10[%c2, %c1, %c0_7] : memref<12x18x128xbf16, #tpu.memory_space<vmem>>, vector<8x16x128xbf16>
    tpu.vector_store %arg10[%c2, %c1, %c0_7], %8 {strides = array<i32>} : memref<12x18x128xbf16, #tpu.memory_space<vmem>>, vector<8x16x128xbf16>,
    %c0_i32 = arith.constant 0 : i32
    %10 = arith.cmpi sgt, %arg1, %c0_i32 : i32
    %11 = arith.extui %10 : i1 to i32
    %c0_i32_8 = arith.constant 0 : i32
    %12 = arith.cmpi ne, %11, %c0_i32_8 : i32
    scf.if %12 {
      %c2_i32 = arith.constant 2 : i32
      %114 = arith.subi %1, %c2_i32 : i32
      %c0_130 = arith.constant 0 : index
      %115 = arith.index_cast %114 : i32 to index
      %c0_131 = arith.constant 0 : index
      %c0_132 = arith.constant 0 : index
      %116 = vector.load %arg2[%c0_130, %115, %c0_131, %c0_132] : memref<1x16x16x128xf32, #tpu.memory_space<vmem>>, vector<1x2x16x128xf32>
      %117 = vector.shape_cast %116 : vector<1x2x16x128xf32> to vector<2x16x128xf32>
      %118 = arith.truncf %117 : vector<2x16x128xf32> to vector<2x16x128xbf16>
      %c0_133 = arith.constant 0 : index
      %c1_134 = arith.constant 1 : index
      %c0_135 = arith.constant 0 : index
      %119 = vector.load %arg10[%c0_133, %c1_134, %c0_135] : memref<12x18x128xbf16, #tpu.memory_space<vmem>>, vector<2x16x128xbf16>
      tpu.vector_store %arg10[%c0_133, %c1_134, %c0_135], %118 {strides = array<i32>} : memref<12x18x128xbf16, #tpu.memory_space<vmem>>, vector<2x16x128xbf16>,
    } else {
    }
    %c0_i32_9 = arith.constant 0 : i32
    %13 = arith.cmpi eq, %arg1, %c0_i32_9 : i32
    %14 = arith.extui %13 : i1 to i32
    %c0_i32_10 = arith.constant 0 : i32
    %15 = arith.cmpi ne, %14, %c0_i32_10 : i32
    scf.if %15 {
      %cst_130 = arith.constant 0.000000e+00 : bf16
      %114 = vector.broadcast %cst_130 : bf16 to vector<2x16x128xbf16>
      %c0_131 = arith.constant 0 : index
      %c1_132 = arith.constant 1 : index
      %c0_133 = arith.constant 0 : index
      %115 = vector.load %arg10[%c0_131, %c1_132, %c0_133] : memref<12x18x128xbf16, #tpu.memory_space<vmem>>, vector<2x16x128xbf16>
      tpu.vector_store %arg10[%c0_131, %c1_132, %c0_133], %114 {strides = array<i32>} : memref<12x18x128xbf16, #tpu.memory_space<vmem>>, vector<2x16x128xbf16>,
    } else {
    }
    %c1_i32 = arith.constant 1 : i32
    %16 = arith.cmpi slt, %arg1, %c1_i32 : i32
    %17 = arith.extui %16 : i1 to i32
    %c0_i32_11 = arith.constant 0 : i32
    %18 = arith.cmpi ne, %17, %c0_i32_11 : i32
    scf.if %18 {
      %c8_i32_130 = arith.constant 8 : i32
      %114 = arith.addi %1, %c8_i32_130 : i32
      %c0_131 = arith.constant 0 : index
      %115 = arith.index_cast %114 : i32 to index
      %c0_132 = arith.constant 0 : index
      %c0_133 = arith.constant 0 : index
      %116 = vector.load %arg2[%c0_131, %115, %c0_132, %c0_133] : memref<1x16x16x128xf32, #tpu.memory_space<vmem>>, vector<1x2x16x128xf32>
      %117 = vector.shape_cast %116 : vector<1x2x16x128xf32> to vector<2x16x128xf32>
      %118 = arith.truncf %117 : vector<2x16x128xf32> to vector<2x16x128xbf16>
      %c10 = arith.constant 10 : index
      %c1_134 = arith.constant 1 : index
      %c0_135 = arith.constant 0 : index
      %119 = vector.load %arg10[%c10, %c1_134, %c0_135] : memref<12x18x128xbf16, #tpu.memory_space<vmem>>, vector<2x16x128xbf16>
      tpu.vector_store %arg10[%c10, %c1_134, %c0_135], %118 {strides = array<i32>} : memref<12x18x128xbf16, #tpu.memory_space<vmem>>, vector<2x16x128xbf16>,
    } else {
    }
    %c1_i32_12 = arith.constant 1 : i32
    %19 = arith.cmpi eq, %arg1, %c1_i32_12 : i32
    %20 = arith.extui %19 : i1 to i32
    %c0_i32_13 = arith.constant 0 : i32
    %21 = arith.cmpi ne, %20, %c0_i32_13 : i32
    scf.if %21 {
      %cst_130 = arith.constant 0.000000e+00 : bf16
      %114 = vector.broadcast %cst_130 : bf16 to vector<2x16x128xbf16>
      %c10 = arith.constant 10 : index
      %c1_131 = arith.constant 1 : index
      %c0_132 = arith.constant 0 : index
      %115 = vector.load %arg10[%c10, %c1_131, %c0_132] : memref<12x18x128xbf16, #tpu.memory_space<vmem>>, vector<2x16x128xbf16>
      tpu.vector_store %arg10[%c10, %c1_131, %c0_132], %114 {strides = array<i32>} : memref<12x18x128xbf16, #tpu.memory_space<vmem>>, vector<2x16x128xbf16>,
    } else {
    }
    %c0_14 = arith.constant 0 : index
    %c0_15 = arith.constant 0 : index
    %c0_16 = arith.constant 0 : index
    %22 = vector.load %arg10[%c0_14, %c0_15, %c0_16] : memref<12x18x128xbf16, #tpu.memory_space<vmem>>, vector<10x16x128xbf16>
    %23 = vector.shape_cast %22 : vector<10x16x128xbf16> to vector<160x128xbf16>
    %c0_17 = arith.constant 0 : index
    %c0_18 = arith.constant 0 : index
    %24 = vector.load %arg11[%c0_17, %c0_18] : memref<160x1152xbf16, #tpu.memory_space<vmem>>, vector<160x128xbf16>
    tpu.vector_store %arg11[%c0_17, %c0_18], %23 {strides = array<i32>} : memref<160x1152xbf16, #tpu.memory_space<vmem>>, vector<160x128xbf16>,
    %c0_19 = arith.constant 0 : index
    %c1_20 = arith.constant 1 : index
    %c0_21 = arith.constant 0 : index
    %25 = vector.load %arg10[%c0_19, %c1_20, %c0_21] : memref<12x18x128xbf16, #tpu.memory_space<vmem>>, vector<10x16x128xbf16>
    %26 = vector.shape_cast %25 : vector<10x16x128xbf16> to vector<160x128xbf16>
    %c0_22 = arith.constant 0 : index
    %c128 = arith.constant 128 : index
    %27 = vector.load %arg11[%c0_22, %c128] : memref<160x1152xbf16, #tpu.memory_space<vmem>>, vector<160x128xbf16>
    tpu.vector_store %arg11[%c0_22, %c128], %26 {strides = array<i32>} : memref<160x1152xbf16, #tpu.memory_space<vmem>>, vector<160x128xbf16>,
    %c0_23 = arith.constant 0 : index
    %c2_24 = arith.constant 2 : index
    %c0_25 = arith.constant 0 : index
    %28 = vector.load %arg10[%c0_23, %c2_24, %c0_25] : memref<12x18x128xbf16, #tpu.memory_space<vmem>>, vector<10x16x128xbf16>
    %29 = vector.shape_cast %28 : vector<10x16x128xbf16> to vector<160x128xbf16>
    %c0_26 = arith.constant 0 : index
    %c256 = arith.constant 256 : index
    %30 = vector.load %arg11[%c0_26, %c256] : memref<160x1152xbf16, #tpu.memory_space<vmem>>, vector<160x128xbf16>
    tpu.vector_store %arg11[%c0_26, %c256], %29 {strides = array<i32>} : memref<160x1152xbf16, #tpu.memory_space<vmem>>, vector<160x128xbf16>,
    %c1_27 = arith.constant 1 : index
    %c0_28 = arith.constant 0 : index
    %c0_29 = arith.constant 0 : index
    %31 = vector.load %arg10[%c1_27, %c0_28, %c0_29] : memref<12x18x128xbf16, #tpu.memory_space<vmem>>, vector<10x16x128xbf16>
    %32 = vector.shape_cast %31 : vector<10x16x128xbf16> to vector<160x128xbf16>
    %c0_30 = arith.constant 0 : index
    %c384 = arith.constant 384 : index
    %33 = vector.load %arg11[%c0_30, %c384] : memref<160x1152xbf16, #tpu.memory_space<vmem>>, vector<160x128xbf16>
    tpu.vector_store %arg11[%c0_30, %c384], %32 {strides = array<i32>} : memref<160x1152xbf16, #tpu.memory_space<vmem>>, vector<160x128xbf16>,
    %c1_31 = arith.constant 1 : index
    %c1_32 = arith.constant 1 : index
    %c0_33 = arith.constant 0 : index
    %34 = vector.load %arg10[%c1_31, %c1_32, %c0_33] : memref<12x18x128xbf16, #tpu.memory_space<vmem>>, vector<10x16x128xbf16>
    %35 = vector.shape_cast %34 : vector<10x16x128xbf16> to vector<160x128xbf16>
    %c0_34 = arith.constant 0 : index
    %c512 = arith.constant 512 : index
    %36 = vector.load %arg11[%c0_34, %c512] : memref<160x1152xbf16, #tpu.memory_space<vmem>>, vector<160x128xbf16>
    tpu.vector_store %arg11[%c0_34, %c512], %35 {strides = array<i32>} : memref<160x1152xbf16, #tpu.memory_space<vmem>>, vector<160x128xbf16>,
    %c1_35 = arith.constant 1 : index
    %c2_36 = arith.constant 2 : index
    %c0_37 = arith.constant 0 : index
    %37 = vector.load %arg10[%c1_35, %c2_36, %c0_37] : memref<12x18x128xbf16, #tpu.memory_space<vmem>>, vector<10x16x128xbf16>
    %38 = vector.shape_cast %37 : vector<10x16x128xbf16> to vector<160x128xbf16>
    %c0_38 = arith.constant 0 : index
    %c640 = arith.constant 640 : index
    %39 = vector.load %arg11[%c0_38, %c640] : memref<160x1152xbf16, #tpu.memory_space<vmem>>, vector<160x128xbf16>
    tpu.vector_store %arg11[%c0_38, %c640], %38 {strides = array<i32>} : memref<160x1152xbf16, #tpu.memory_space<vmem>>, vector<160x128xbf16>,
    %c2_39 = arith.constant 2 : index
    %c0_40 = arith.constant 0 : index
    %c0_41 = arith.constant 0 : index
    %40 = vector.load %arg10[%c2_39, %c0_40, %c0_41] : memref<12x18x128xbf16, #tpu.memory_space<vmem>>, vector<10x16x128xbf16>
    %41 = vector.shape_cast %40 : vector<10x16x128xbf16> to vector<160x128xbf16>
    %c0_42 = arith.constant 0 : index
    %c768 = arith.constant 768 : index
    %42 = vector.load %arg11[%c0_42, %c768] : memref<160x1152xbf16, #tpu.memory_space<vmem>>, vector<160x128xbf16>
    tpu.vector_store %arg11[%c0_42, %c768], %41 {strides = array<i32>} : memref<160x1152xbf16, #tpu.memory_space<vmem>>, vector<160x128xbf16>,
    %c2_43 = arith.constant 2 : index
    %c1_44 = arith.constant 1 : index
    %c0_45 = arith.constant 0 : index
    %43 = vector.load %arg10[%c2_43, %c1_44, %c0_45] : memref<12x18x128xbf16, #tpu.memory_space<vmem>>, vector<10x16x128xbf16>
    %44 = vector.shape_cast %43 : vector<10x16x128xbf16> to vector<160x128xbf16>
    %c0_46 = arith.constant 0 : index
    %c896 = arith.constant 896 : index
    %45 = vector.load %arg11[%c0_46, %c896] : memref<160x1152xbf16, #tpu.memory_space<vmem>>, vector<160x128xbf16>
    tpu.vector_store %arg11[%c0_46, %c896], %44 {strides = array<i32>} : memref<160x1152xbf16, #tpu.memory_space<vmem>>, vector<160x128xbf16>,
    %c2_47 = arith.constant 2 : index
    %c2_48 = arith.constant 2 : index
    %c0_49 = arith.constant 0 : index
    %46 = vector.load %arg10[%c2_47, %c2_48, %c0_49] : memref<12x18x128xbf16, #tpu.memory_space<vmem>>, vector<10x16x128xbf16>
    %47 = vector.shape_cast %46 : vector<10x16x128xbf16> to vector<160x128xbf16>
    %c0_50 = arith.constant 0 : index
    %c1024 = arith.constant 1024 : index
    %48 = vector.load %arg11[%c0_50, %c1024] : memref<160x1152xbf16, #tpu.memory_space<vmem>>, vector<160x128xbf16>
    tpu.vector_store %arg11[%c0_50, %c1024], %47 {strides = array<i32>} : memref<160x1152xbf16, #tpu.memory_space<vmem>>, vector<160x128xbf16>,
    %c0_51 = arith.constant 0 : index
    %c0_52 = arith.constant 0 : index
    %49 = vector.load %arg11[%c0_51, %c0_52] : memref<160x1152xbf16, #tpu.memory_space<vmem>>, vector<160x1152xbf16>
    %c0_53 = arith.constant 0 : index
    %c0_54 = arith.constant 0 : index
    %50 = vector.load %arg3[%c0_53, %c0_54] : memref<1152x128xbf16, #tpu.memory_space<vmem>>, vector<1152x128xbf16>
    %cst_55 = arith.constant dense<0.000000e+00> : vector<160x128xf32>
    %51 = tpu.matmul %49, %50, %cst_55 {dimension_numbers = #tpu.dot_dimension_numbers<[1], [0], [0], [1], [0, 0, 1, 1], [], []>} : vector<160x1152xbf16>, vector<1152x128xbf16>, vector<160x128xf32> -> vector<160x128xf32>
    %c0_56 = arith.constant 0 : index
    %c0_57 = arith.constant 0 : index
    %52 = vector.load %arg5[%c0_56, %c0_57] : memref<1x128xf32, #tpu.memory_space<vmem>>, vector<1x128xf32>
    %53 = vector.broadcast %52 : vector<1x128xf32> to vector<160x128xf32>
    %54 = arith.mulf %51, %53 : vector<160x128xf32>
    %c0_58 = arith.constant 0 : index
    %c0_59 = arith.constant 0 : index
    %55 = vector.load %arg6[%c0_58, %c0_59] : memref<1x128xf32, #tpu.memory_space<vmem>>, vector<1x128xf32>
    %56 = vector.broadcast %55 : vector<1x128xf32> to vector<160x128xf32>
    %57 = arith.addf %54, %56 : vector<160x128xf32>
    %cst_60 = arith.constant 0.000000e+00 : f32
    %58 = vector.broadcast %cst_60 : f32 to vector<160x128xf32>
    %59 = arith.maximumf %57, %58 : vector<160x128xf32>
    %60 = arith.truncf %59 : vector<160x128xf32> to vector<160x128xbf16>
    %61 = vector.shape_cast %60 : vector<160x128xbf16> to vector<10x16x128xbf16>
    %c0_61 = arith.constant 0 : index
    %c1_62 = arith.constant 1 : index
    %c0_63 = arith.constant 0 : index
    %62 = vector.load %arg10[%c0_61, %c1_62, %c0_63] : memref<12x18x128xbf16, #tpu.memory_space<vmem>>, vector<10x16x128xbf16>
    tpu.vector_store %arg10[%c0_61, %c1_62, %c0_63], %61 {strides = array<i32>} : memref<12x18x128xbf16, #tpu.memory_space<vmem>>, vector<10x16x128xbf16>,
    %c0_i32_64 = arith.constant 0 : i32
    %63 = arith.cmpi eq, %arg1, %c0_i32_64 : i32
    %64 = arith.extui %63 : i1 to i32
    %c0_i32_65 = arith.constant 0 : i32
    %65 = arith.cmpi ne, %64, %c0_i32_65 : i32
    scf.if %65 {
      %cst_130 = arith.constant 0.000000e+00 : bf16
      %114 = vector.broadcast %cst_130 : bf16 to vector<1x16x128xbf16>
      %c0_131 = arith.constant 0 : index
      %c1_132 = arith.constant 1 : index
      %c0_133 = arith.constant 0 : index
      %115 = vector.load %arg10[%c0_131, %c1_132, %c0_133] : memref<12x18x128xbf16, #tpu.memory_space<vmem>>, vector<1x16x128xbf16>
      tpu.vector_store %arg10[%c0_131, %c1_132, %c0_133], %114 {strides = array<i32>} : memref<12x18x128xbf16, #tpu.memory_space<vmem>>, vector<1x16x128xbf16>,
    } else {
    }
    %c1_i32_66 = arith.constant 1 : i32
    %66 = arith.cmpi eq, %arg1, %c1_i32_66 : i32
    %67 = arith.extui %66 : i1 to i32
    %c0_i32_67 = arith.constant 0 : i32
    %68 = arith.cmpi ne, %67, %c0_i32_67 : i32
    scf.if %68 {
      %cst_130 = arith.constant 0.000000e+00 : bf16
      %114 = vector.broadcast %cst_130 : bf16 to vector<1x16x128xbf16>
      %c9 = arith.constant 9 : index
      %c1_131 = arith.constant 1 : index
      %c0_132 = arith.constant 0 : index
      %115 = vector.load %arg10[%c9, %c1_131, %c0_132] : memref<12x18x128xbf16, #tpu.memory_space<vmem>>, vector<1x16x128xbf16>
      tpu.vector_store %arg10[%c9, %c1_131, %c0_132], %114 {strides = array<i32>} : memref<12x18x128xbf16, #tpu.memory_space<vmem>>, vector<1x16x128xbf16>,
    } else {
    }
    %c0_68 = arith.constant 0 : index
    %c0_69 = arith.constant 0 : index
    %c0_70 = arith.constant 0 : index
    %69 = vector.load %arg10[%c0_68, %c0_69, %c0_70] : memref<12x18x128xbf16, #tpu.memory_space<vmem>>, vector<8x16x128xbf16>
    %70 = vector.shape_cast %69 : vector<8x16x128xbf16> to vector<128x128xbf16>
    %c0_71 = arith.constant 0 : index
    %c0_72 = arith.constant 0 : index
    %71 = vector.load %arg11[%c0_71, %c0_72] : memref<160x1152xbf16, #tpu.memory_space<vmem>>, vector<128x128xbf16>
    tpu.vector_store %arg11[%c0_71, %c0_72], %70 {strides = array<i32>} : memref<160x1152xbf16, #tpu.memory_space<vmem>>, vector<128x128xbf16>,
    %c0_73 = arith.constant 0 : index
    %c1_74 = arith.constant 1 : index
    %c0_75 = arith.constant 0 : index
    %72 = vector.load %arg10[%c0_73, %c1_74, %c0_75] : memref<12x18x128xbf16, #tpu.memory_space<vmem>>, vector<8x16x128xbf16>
    %73 = vector.shape_cast %72 : vector<8x16x128xbf16> to vector<128x128xbf16>
    %c0_76 = arith.constant 0 : index
    %c128_77 = arith.constant 128 : index
    %74 = vector.load %arg11[%c0_76, %c128_77] : memref<160x1152xbf16, #tpu.memory_space<vmem>>, vector<128x128xbf16>
    tpu.vector_store %arg11[%c0_76, %c128_77], %73 {strides = array<i32>} : memref<160x1152xbf16, #tpu.memory_space<vmem>>, vector<128x128xbf16>,
    %c0_78 = arith.constant 0 : index
    %c2_79 = arith.constant 2 : index
    %c0_80 = arith.constant 0 : index
    %75 = vector.load %arg10[%c0_78, %c2_79, %c0_80] : memref<12x18x128xbf16, #tpu.memory_space<vmem>>, vector<8x16x128xbf16>
    %76 = vector.shape_cast %75 : vector<8x16x128xbf16> to vector<128x128xbf16>
    %c0_81 = arith.constant 0 : index
    %c256_82 = arith.constant 256 : index
    %77 = vector.load %arg11[%c0_81, %c256_82] : memref<160x1152xbf16, #tpu.memory_space<vmem>>, vector<128x128xbf16>
    tpu.vector_store %arg11[%c0_81, %c256_82], %76 {strides = array<i32>} : memref<160x1152xbf16, #tpu.memory_space<vmem>>, vector<128x128xbf16>,
    %c1_83 = arith.constant 1 : index
    %c0_84 = arith.constant 0 : index
    %c0_85 = arith.constant 0 : index
    %78 = vector.load %arg10[%c1_83, %c0_84, %c0_85] : memref<12x18x128xbf16, #tpu.memory_space<vmem>>, vector<8x16x128xbf16>
    %79 = vector.shape_cast %78 : vector<8x16x128xbf16> to vector<128x128xbf16>
    %c0_86 = arith.constant 0 : index
    %c384_87 = arith.constant 384 : index
    %80 = vector.load %arg11[%c0_86, %c384_87] : memref<160x1152xbf16, #tpu.memory_space<vmem>>, vector<128x128xbf16>
    tpu.vector_store %arg11[%c0_86, %c384_87], %79 {strides = array<i32>} : memref<160x1152xbf16, #tpu.memory_space<vmem>>, vector<128x128xbf16>,
    %c1_88 = arith.constant 1 : index
    %c1_89 = arith.constant 1 : index
    %c0_90 = arith.constant 0 : index
    %81 = vector.load %arg10[%c1_88, %c1_89, %c0_90] : memref<12x18x128xbf16, #tpu.memory_space<vmem>>, vector<8x16x128xbf16>
    %82 = vector.shape_cast %81 : vector<8x16x128xbf16> to vector<128x128xbf16>
    %c0_91 = arith.constant 0 : index
    %c512_92 = arith.constant 512 : index
    %83 = vector.load %arg11[%c0_91, %c512_92] : memref<160x1152xbf16, #tpu.memory_space<vmem>>, vector<128x128xbf16>
    tpu.vector_store %arg11[%c0_91, %c512_92], %82 {strides = array<i32>} : memref<160x1152xbf16, #tpu.memory_space<vmem>>, vector<128x128xbf16>,
    %c1_93 = arith.constant 1 : index
    %c2_94 = arith.constant 2 : index
    %c0_95 = arith.constant 0 : index
    %84 = vector.load %arg10[%c1_93, %c2_94, %c0_95] : memref<12x18x128xbf16, #tpu.memory_space<vmem>>, vector<8x16x128xbf16>
    %85 = vector.shape_cast %84 : vector<8x16x128xbf16> to vector<128x128xbf16>
    %c0_96 = arith.constant 0 : index
    %c640_97 = arith.constant 640 : index
    %86 = vector.load %arg11[%c0_96, %c640_97] : memref<160x1152xbf16, #tpu.memory_space<vmem>>, vector<128x128xbf16>
    tpu.vector_store %arg11[%c0_96, %c640_97], %85 {strides = array<i32>} : memref<160x1152xbf16, #tpu.memory_space<vmem>>, vector<128x128xbf16>,
    %c2_98 = arith.constant 2 : index
    %c0_99 = arith.constant 0 : index
    %c0_100 = arith.constant 0 : index
    %87 = vector.load %arg10[%c2_98, %c0_99, %c0_100] : memref<12x18x128xbf16, #tpu.memory_space<vmem>>, vector<8x16x128xbf16>
    %88 = vector.shape_cast %87 : vector<8x16x128xbf16> to vector<128x128xbf16>
    %c0_101 = arith.constant 0 : index
    %c768_102 = arith.constant 768 : index
    %89 = vector.load %arg11[%c0_101, %c768_102] : memref<160x1152xbf16, #tpu.memory_space<vmem>>, vector<128x128xbf16>
    tpu.vector_store %arg11[%c0_101, %c768_102], %88 {strides = array<i32>} : memref<160x1152xbf16, #tpu.memory_space<vmem>>, vector<128x128xbf16>,
    %c2_103 = arith.constant 2 : index
    %c1_104 = arith.constant 1 : index
    %c0_105 = arith.constant 0 : index
    %90 = vector.load %arg10[%c2_103, %c1_104, %c0_105] : memref<12x18x128xbf16, #tpu.memory_space<vmem>>, vector<8x16x128xbf16>
    %91 = vector.shape_cast %90 : vector<8x16x128xbf16> to vector<128x128xbf16>
    %c0_106 = arith.constant 0 : index
    %c896_107 = arith.constant 896 : index
    %92 = vector.load %arg11[%c0_106, %c896_107] : memref<160x1152xbf16, #tpu.memory_space<vmem>>, vector<128x128xbf16>
    tpu.vector_store %arg11[%c0_106, %c896_107], %91 {strides = array<i32>} : memref<160x1152xbf16, #tpu.memory_space<vmem>>, vector<128x128xbf16>,
    %c2_108 = arith.constant 2 : index
    %c2_109 = arith.constant 2 : index
    %c0_110 = arith.constant 0 : index
    %93 = vector.load %arg10[%c2_108, %c2_109, %c0_110] : memref<12x18x128xbf16, #tpu.memory_space<vmem>>, vector<8x16x128xbf16>
    %94 = vector.shape_cast %93 : vector<8x16x128xbf16> to vector<128x128xbf16>
    %c0_111 = arith.constant 0 : index
    %c1024_112 = arith.constant 1024 : index
    %95 = vector.load %arg11[%c0_111, %c1024_112] : memref<160x1152xbf16, #tpu.memory_space<vmem>>, vector<128x128xbf16>
    tpu.vector_store %arg11[%c0_111, %c1024_112], %94 {strides = array<i32>} : memref<160x1152xbf16, #tpu.memory_space<vmem>>, vector<128x128xbf16>,
    %c0_113 = arith.constant 0 : index
    %c0_114 = arith.constant 0 : index
    %96 = vector.load %arg11[%c0_113, %c0_114] : memref<160x1152xbf16, #tpu.memory_space<vmem>>, vector<128x1152xbf16>
    %c0_115 = arith.constant 0 : index
    %c0_116 = arith.constant 0 : index
    %97 = vector.load %arg4[%c0_115, %c0_116] : memref<1152x128xbf16, #tpu.memory_space<vmem>>, vector<1152x128xbf16>
    %cst_117 = arith.constant dense<0.000000e+00> : vector<128x128xf32>
    %98 = tpu.matmul %96, %97, %cst_117 {dimension_numbers = #tpu.dot_dimension_numbers<[1], [0], [0], [1], [0, 0, 1, 1], [], []>} : vector<128x1152xbf16>, vector<1152x128xbf16>, vector<128x128xf32> -> vector<128x128xf32>
    %c0_118 = arith.constant 0 : index
    %c0_119 = arith.constant 0 : index
    %99 = vector.load %arg7[%c0_118, %c0_119] : memref<1x128xf32, #tpu.memory_space<vmem>>, vector<1x128xf32>
    %100 = vector.broadcast %99 : vector<1x128xf32> to vector<128x128xf32>
    %101 = arith.mulf %98, %100 : vector<128x128xf32>
    %c0_120 = arith.constant 0 : index
    %c0_121 = arith.constant 0 : index
    %102 = vector.load %arg8[%c0_120, %c0_121] : memref<1x128xf32, #tpu.memory_space<vmem>>, vector<1x128xf32>
    %103 = vector.broadcast %102 : vector<1x128xf32> to vector<128x128xf32>
    %104 = arith.addf %101, %103 : vector<128x128xf32>
    %c0_122 = arith.constant 0 : index
    %105 = arith.index_cast %1 : i32 to index
    %c0_123 = arith.constant 0 : index
    %c0_124 = arith.constant 0 : index
    %106 = vector.load %arg2[%c0_122, %105, %c0_123, %c0_124] : memref<1x16x16x128xf32, #tpu.memory_space<vmem>>, vector<1x8x16x128xf32>
    %107 = vector.shape_cast %106 : vector<1x8x16x128xf32> to vector<8x16x128xf32>
    %108 = vector.shape_cast %107 : vector<8x16x128xf32> to vector<128x128xf32>
    %109 = arith.addf %104, %108 : vector<128x128xf32>
    %cst_125 = arith.constant 0.000000e+00 : f32
    %110 = vector.broadcast %cst_125 : f32 to vector<128x128xf32>
    %111 = arith.maximumf %109, %110 : vector<128x128xf32>
    %112 = vector.shape_cast %111 : vector<128x128xf32> to vector<1x8x16x128xf32>
    %c0_126 = arith.constant 0 : index
    %c0_127 = arith.constant 0 : index
    %c0_128 = arith.constant 0 : index
    %c0_129 = arith.constant 0 : index
    %113 = vector.load %arg9[%c0_126, %c0_127, %c0_128, %c0_129] : memref<1x8x16x128xf32, #tpu.memory_space<vmem>>, vector<1x8x16x128xf32>
    tpu.vector_store %arg9[%c0_126, %c0_127, %c0_128, %c0_129], %112 {strides = array<i32>} : memref<1x8x16x128xf32, #tpu.memory_space<vmem>>, vector<1x8x16x128xf32>,
    return
  }
  func.func @transform_0(%arg0: i32, %arg1: i32) -> (i32, i32, i32, i32) {
    %c0_i32 = arith.constant 0 : i32
    %c0_i32_0 = arith.constant 0 : i32
    %c0_i32_1 = arith.constant 0 : i32
    %c0_i32_2 = arith.constant 0 : i32
    return %arg0, %c0_i32, %c0_i32_0, %c0_i32_1 : i32, i32, i32, i32
  }
  func.func @transform_1(%arg0: i32, %arg1: i32) -> (i32, i32) {
    %c0_i32 = arith.constant 0 : i32
    %c0_i32_0 = arith.constant 0 : i32
    %c0_i32_1 = arith.constant 0 : i32
    return %c0_i32, %c0_i32_0 : i32, i32
  }
  func.func @transform_2(%arg0: i32, %arg1: i32) -> (i32, i32) {
    %c0_i32 = arith.constant 0 : i32
    %c0_i32_0 = arith.constant 0 : i32
    %c0_i32_1 = arith.constant 0 : i32
    return %c0_i32, %c0_i32_0 : i32, i32
  }
  func.func @transform_3(%arg0: i32, %arg1: i32) -> (i32, i32) {
    %c0_i32 = arith.constant 0 : i32
    %c0_i32_0 = arith.constant 0 : i32
    %c0_i32_1 = arith.constant 0 : i32
    return %c0_i32, %c0_i32_0 : i32, i32
  }
  func.func @transform_4(%arg0: i32, %arg1: i32) -> (i32, i32) {
    %c0_i32 = arith.constant 0 : i32
    %c0_i32_0 = arith.constant 0 : i32
    %c0_i32_1 = arith.constant 0 : i32
    return %c0_i32, %c0_i32_0 : i32, i32
  }
  func.func @transform_5(%arg0: i32, %arg1: i32) -> (i32, i32) {
    %c0_i32 = arith.constant 0 : i32
    %c0_i32_0 = arith.constant 0 : i32
    %c0_i32_1 = arith.constant 0 : i32
    return %c0_i32, %c0_i32_0 : i32, i32
  }
  func.func @transform_6(%arg0: i32, %arg1: i32) -> (i32, i32) {
    %c0_i32 = arith.constant 0 : i32
    %c0_i32_0 = arith.constant 0 : i32
    %c0_i32_1 = arith.constant 0 : i32
    return %c0_i32, %c0_i32_0 : i32, i32
  }
  func.func @transform_7(%arg0: i32, %arg1: i32) -> (i32, i32, i32, i32) {
    %c0_i32 = arith.constant 0 : i32
    %c0_i32_0 = arith.constant 0 : i32
    %c0_i32_1 = arith.constant 0 : i32
    return %arg0, %arg1, %c0_i32, %c0_i32_0 : i32, i32, i32, i32
  }
}

</mosaic_0001>

<llo_original>
// kernel: tpu_custom_call.1
$region0: #{tpu_custom_call.1}
  #allocation0 [shape = 'u32[]', space=smem, size = 0x4, offset = 0x4, fixed_abs, tag = 'smem constant byte address 0x4 - core index']
  #allocation1 [shape = 'u32[72,128]{1,0:T(1,128)}', space=vmem, size = 0x9000, scoped, tag = 'internal scratch']
  %s0 = inlined_call_operand.hbm [shape: f32[8,128], index: 0, kind: input, shape index: {}]
  %s1 = inlined_call_operand.hbm [shape: f32[8,128], index: 1, kind: output, shape index: {}]
  %s2 = sld [smem:[#allocation0]]
  $region18: #{tpu_custom_call.1} parent=0
    _
  %s4 = ssub.s32 1, %s2
  %s5 = scalar_select 0, %s4, %s2
  $region1: #{tpu_custom_call.1} parent=0
    #allocation2 [shape = 'u8[4096]{0}', space=vmem, size = 0x1000, scoped, tag = 'input window, operand 0, single buffered']
    #allocation3 [shape = 's32[1]{0}', space=sflag, size = 0x4, scoped, tag = 'scoped memory for tpu_custom_call.1']
    #allocation4 [shape = 's32[1]{0}', space=sflag, size = 0x4, scoped, tag = 'scoped memory for tpu_custom_call.1']
    #allocation5 [shape = 'u8[4096]{0}', space=vmem, size = 0x1000, scoped, tag = 'output window, operand 0, single buffered']
    %6 = vsyncpa [#allocation3], 0
    %7 = vsyncpa [#allocation4], 0
    // Predicated region
    $region2: #{tpu_custom_call.1} parent=1 // pred_check
      _
    $region3: #{tpu_custom_call.1} parent=1 // pred_check_branch
      %9 = sbr.rel (0) target = $region5
    $region4: #{tpu_custom_call.1} parent=1 // pred_region
      %11 = vsyncadd [#allocation3], 0
      %s13 = sshll.u32 %s0, 4
      %s14 = int_to_ptr.hbm [resolvable:$true] %s13
      %s15 = sshll.u32 [#allocation2], 4
      %s16 = int_to_ptr.vmem [resolvable:$true] %s15
      %18 = dma.hbm_to_vmem [thread:$0]  %s14, 128, %s16, [#allocation3]
    $region5: #{tpu_custom_call.1} parent=1 // pred_fallthru
      _
    // Predicated region
    $region6: #{tpu_custom_call.1} parent=1 // pred_check
      _
    $region7: #{tpu_custom_call.1} parent=1 // pred_check_branch
      %20 = sbr.rel (0) target = $region9
    $region8: #{tpu_custom_call.1} parent=1 // pred_region
      %22 = dma.done [#allocation3], 128
    $region9: #{tpu_custom_call.1} parent=1 // pred_fallthru
      _
    %v23 = vld [vmem:[#allocation2] sm:$0xff]
    %24 = vst [vmem:[#allocation5] sm:$0xff] %v23
    // Predicated region
    $region10: #{tpu_custom_call.1} parent=1 // pred_check
      _
    $region11: #{tpu_custom_call.1} parent=1 // pred_check_branch
      %26 = sbr.rel (0) target = $region13
    $region12: #{tpu_custom_call.1} parent=1 // pred_region
      %28 = vsyncadd [#allocation4], 0
      %s30 = sshll.u32 [#allocation5], 4
      %s31 = int_to_ptr.vmem [resolvable:$true] %s30
      %s32 = sshll.u32 %s1, 4
      %s33 = int_to_ptr.hbm [resolvable:$true] %s32
      %35 = dma.vmem_to_hbm [thread:$0]  %s31, 128, %s33, [#allocation4]
    $region13: #{tpu_custom_call.1} parent=1 // pred_fallthru
      _
    // Predicated region
    $region14: #{tpu_custom_call.1} parent=1 // pred_check
      _
    $region15: #{tpu_custom_call.1} parent=1 // pred_check_branch
      %37 = sbr.rel (0) target = $region17
    $region16: #{tpu_custom_call.1} parent=1 // pred_region
      %39 = dma.done [#allocation4], 128
    $region17: #{tpu_custom_call.1} parent=1 // pred_fallthru
      _
    %40 = vsyncpa [#allocation3], 1
    %41 = vsyncpa [#allocation4], 1

// kernel: tpu_custom_call.1
$region0: #{tpu_custom_call.1}
  #allocation0 [shape = 'u32[]', space=smem, size = 0x4, offset = 0x4, fixed_abs, tag = 'smem constant byte address 0x4 - core index']
  #allocation1 [shape = 'u32[72,128]{1,0:T(1,128)}', space=vmem, size = 0x9000, scoped, tag = 'internal scratch']
  #allocation2 [shape = 'bf16[12,18,128]{2,1,0:T(8,128)(2,1)}', space=vmem, size = 0x12000, scoped, tag = 'scratch operand']
  #allocation3 [shape = 'bf16[160,1152]{1,0:T(8,128)(2,1)}', space=vmem, size = 0x5a000, scoped, tag = 'scratch operand']
  %s0 = inlined_call_operand.hbm [shape: f32[2,16,16,128], index: 0, kind: input, shape index: {}]
  %s1 = inlined_call_operand.hbm [shape: bf16[1152,128], index: 1, kind: input, shape index: {}]
  %s2 = inlined_call_operand.hbm [shape: bf16[1152,128], index: 2, kind: input, shape index: {}]
  %s3 = inlined_call_operand.vmem [shape: f32[1,128], index: 3, kind: input, shape index: {}]
  %s4 = inlined_call_operand.vmem [shape: f32[1,128], index: 4, kind: input, shape index: {}]
  %s5 = inlined_call_operand.vmem [shape: f32[1,128], index: 5, kind: input, shape index: {}]
  %s6 = inlined_call_operand.vmem [shape: f32[1,128], index: 6, kind: input, shape index: {}]
  %s7 = inlined_call_operand.hbm [shape: f32[2,16,16,128], index: 7, kind: output, shape index: {}]
  %s8 = sld [smem:[#allocation0]]
  $region97: #{tpu_custom_call.1} parent=0
    _
  %s10 = ssub.s32 1, %s8
  %s11 = scalar_select 0, %s10, %s8
  $region1: #{tpu_custom_call.1} parent=0
    #allocation4 [shape = 'u8[262144]{0}', space=vmem, size = 0x40000, scoped, tag = 'input window, operand 0']
    #allocation5 [shape = 's32[2]{0}', space=sflag, size = 0x8, scoped, tag = 'scoped memory for tpu_custom_call.1']
    #allocation6 [shape = 's32[2]{0}', space=sflag, size = 0x8, scoped, tag = 'scoped memory for tpu_custom_call.1']
    #allocation7 [shape = 'u8[294912]{0}', space=vmem, size = 0x48000, scoped, tag = 'input window, operand 1, single buffered']
    #allocation8 [shape = 's32[1]{0}', space=sflag, size = 0x4, scoped, tag = 'scoped memory for tpu_custom_call.1']
    #allocation9 [shape = 'u8[294912]{0}', space=vmem, size = 0x48000, scoped, tag = 'input window, operand 2, single buffered']
    #allocation10 [shape = 'u8[131072]{0}', space=vmem, size = 0x20000, scoped, tag = 'output window, operand 0']
    %12 = vsyncpa [#allocation5], 0
    %s13 = scalar_lea.sflag [#allocation5], 1
    %14 = vsyncpa %s13, 0
    %15 = vsyncpa [#allocation8], 0
    %16 = vsyncpa [#allocation6], 0
    %s17 = scalar_lea.sflag [#allocation6], 1
    %18 = vsyncpa %s17, 0
    loop: start=0, step=1, limit=6
    $region2: #{tpu_custom_call.1} parent=1 // loop_pre_header
      _
    $region3: #{tpu_custom_call.1} parent=1 // loop_header
      %s20 = sphi 0, %s24
      %p21 = scmp.ge.s32.totalorder %s20, 6
      %s27 = sphi 0, %s39
      %s28 = sphi 0, %s35
      %s29 = sphi 0, %s27
      %s30 = sphi 0, %s28
      %s31 = sphi 0, %s29
      %s32 = sphi 0, %s30
      %s42 = sphi 0, %s44
      %s45 = sphi 0, %s42
      %s46 = sphi 0, %s45
      %s62 = sphi 0, %s46
      %s66 = sphi 0, %s66
      %s68 = sphi 0, %s66
      %s69 = sphi 0, %s68
      %s83 = sphi 0, %s69
      %s87 = sphi 0, %s87
      %s89 = sphi 0, %s87
      %s90 = sphi 0, %s89
      %s104 = sphi 0, %s90
      %s108 = sphi 0, %s108
      %s110 = sphi 0, %s108
      %s111 = sphi 0, %s110
      %s125 = sphi 0, %s111
      %s129 = sphi 0, %s129
      %s131 = sphi 0, %s129
      %s132 = sphi 0, %s131
      %s146 = sphi 0, %s132
      %s150 = sphi 0, %s150
      %s152 = sphi 0, %s150
      %s153 = sphi 0, %s152
      %s167 = sphi 0, %s153
      %s171 = sphi 0, %s171
      %s173 = sphi 0, %s171
      %s174 = sphi 0, %s173
      %s188 = sphi 0, %s174
      %s196 = sphi 0, %s198
      %s199 = sphi 0, %s196
      %s200 = sphi 0, %s199
      %s216 = sphi 0, %s200
    $region4: #{tpu_custom_call.1} parent=1 // loop_header_branch
      %23 = sbr.rel (%p21) target = $region8
    $region5: #{tpu_custom_call.1} parent=1 // loop_body
      %s25 = ssub.s32 %s20, 1
      %s26 = ssub.s32 %s20, 2
      %s33 = sadd.s32 1, %s28
      %p34 = scmp.ge.s32.totalorder %s33, 2
      %s35 = scalar_select %p34, 0, %s33
      %s36 = sadd.s32 1, %s27
      %s37 = scalar_select %p34, %s36, %s27
      %p38 = scmp.ge.s32.totalorder %s37, 2
      %s39 = scalar_select %p38, 0, %s37
      %s40 = ssub.s32 %s27, %s39
      %p41 = scmp.eq.s32.totalorder %s40, 0
      %s43 = sadd.s32 %s42, 1
      %s44 = scalar_select %p41, %s42, %s43
      %p47 = pneg %p41
      %p48 = scmp.eq.s32.totalorder %s20, 3
      %p49 = por %p47, %p48
      %p50 = scmp.ne.s32.totalorder %s42, %s45
      %p51 = scmp.eq.s32.totalorder %s20, 0
      %p52 = por %p50, %p51
      %p53 = scmp.ne.s32.totalorder %s42, %s45
      %p54 = scmp.eq.s32.totalorder %s25, 3
      %p55 = por %p53, %p54
      %p56 = scmp.ne.s32.totalorder %s45, %s46
      %p57 = scmp.eq.s32.totalorder %s25, 0
      %p58 = por %p56, %p57
      %p59 = scmp.ne.s32.totalorder %s45, %s46
      %p60 = scmp.eq.s32.totalorder %s26, 3
      %p61 = por %p59, %p60
      %p63 = scmp.ne.s32.totalorder %s46, %s62
      %p64 = scmp.eq.s32.totalorder %s26, 0
      %p65 = por %p63, %p64
      %s67 = sadd.s32 %s66, 1
      %p70 = scmp.eq.s32.totalorder %s20, 3
      %p71 = scmp.ne.s32.totalorder %s66, %s68
      %p72 = scmp.eq.s32.totalorder %s20, 0
      %p73 = por %p71, %p72
      %p74 = scmp.ne.s32.totalorder %s66, %s68
      %p75 = scmp.eq.s32.totalorder %s25, 3
      %p76 = por %p74, %p75
      %p77 = scmp.ne.s32.totalorder %s68, %s69
      %p78 = scmp.eq.s32.totalorder %s25, 0
      %p79 = por %p77, %p78
      %p80 = scmp.ne.s32.totalorder %s68, %s69
      %p81 = scmp.eq.s32.totalorder %s26, 3
      %p82 = por %p80, %p81
      %p84 = scmp.ne.s32.totalorder %s69, %s83
      %p85 = scmp.eq.s32.totalorder %s26, 0
      %p86 = por %p84, %p85
      %s88 = sadd.s32 %s87, 1
      %p91 = scmp.eq.s32.totalorder %s20, 3
      %p92 = scmp.ne.s32.totalorder %s87, %s89
      %p93 = scmp.eq.s32.totalorder %s20, 0
      %p94 = por %p92, %p93
      %p95 = scmp.ne.s32.totalorder %s87, %s89
      %p96 = scmp.eq.s32.totalorder %s25, 3
      %p97 = por %p95, %p96
      %p98 = scmp.ne.s32.totalorder %s89, %s90
      %p99 = scmp.eq.s32.totalorder %s25, 0
      %p100 = por %p98, %p99
      %p101 = scmp.ne.s32.totalorder %s89, %s90
      %p102 = scmp.eq.s32.totalorder %s26, 3
      %p103 = por %p101, %p102
      %p105 = scmp.ne.s32.totalorder %s90, %s104
      %p106 = scmp.eq.s32.totalorder %s26, 0
      %p107 = por %p105, %p106
      %s109 = sadd.s32 %s108, 1
      %p112 = scmp.eq.s32.totalorder %s20, 3
      %p113 = scmp.ne.s32.totalorder %s108, %s110
      %p114 = scmp.eq.s32.totalorder %s20, 0
      %p115 = por %p113, %p114
      %p116 = scmp.ne.s32.totalorder %s108, %s110
      %p117 = scmp.eq.s32.totalorder %s25, 3
      %p118 = por %p116, %p117
      %p119 = scmp.ne.s32.totalorder %s110, %s111
      %p120 = scmp.eq.s32.totalorder %s25, 0
      %p121 = por %p119, %p120
      %p122 = scmp.ne.s32.totalorder %s110, %s111
      %p123 = scmp.eq.s32.totalorder %s26, 3
      %p124 = por %p122, %p123
      %p126 = scmp.ne.s32.totalorder %s111, %s125
      %p127 = scmp.eq.s32.totalorder %s26, 0
      %p128 = por %p126, %p127
      %s130 = sadd.s32 %s129, 1
      %p133 = scmp.eq.s32.totalorder %s20, 3
      %p134 = scmp.ne.s32.totalorder %s129, %s131
      %p135 = scmp.eq.s32.totalorder %s20, 0
      %p136 = por %p134, %p135
      %p137 = scmp.ne.s32.totalorder %s129, %s131
      %p138 = scmp.eq.s32.totalorder %s25, 3
      %p139 = por %p137, %p138
      %p140 = scmp.ne.s32.totalorder %s131, %s132
      %p141 = scmp.eq.s32.totalorder %s25, 0
      %p142 = por %p140, %p141
      %p143 = scmp.ne.s32.totalorder %s131, %s132
      %p144 = scmp.eq.s32.totalorder %s26, 3
      %p145 = por %p143, %p144
      %p147 = scmp.ne.s32.totalorder %s132, %s146
      %p148 = scmp.eq.s32.totalorder %s26, 0
      %p149 = por %p147, %p148
      %s151 = sadd.s32 %s150, 1
      %p154 = scmp.eq.s32.totalorder %s20, 3
      %p155 = scmp.ne.s32.totalorder %s150, %s152
      %p156 = scmp.eq.s32.totalorder %s20, 0
      %p157 = por %p155, %p156
      %p158 = scmp.ne.s32.totalorder %s150, %s152
      %p159 = scmp.eq.s32.totalorder %s25, 3
      %p160 = por %p158, %p159
      %p161 = scmp.ne.s32.totalorder %s152, %s153
      %p162 = scmp.eq.s32.totalorder %s25, 0
      %p163 = por %p161, %p162
      %p164 = scmp.ne.s32.totalorder %s152, %s153
      %p165 = scmp.eq.s32.totalorder %s26, 3
      %p166 = por %p164, %p165
      %p168 = scmp.ne.s32.totalorder %s153, %s167
      %p169 = scmp.eq.s32.totalorder %s26, 0
      %p170 = por %p168, %p169
      %s172 = sadd.s32 %s171, 1
      %p175 = scmp.eq.s32.totalorder %s20, 3
      %p176 = scmp.ne.s32.totalorder %s171, %s173
      %p177 = scmp.eq.s32.totalorder %s20, 0
      %p178 = por %p176, %p177
      %p179 = scmp.ne.s32.totalorder %s171, %s173
      %p180 = scmp.eq.s32.totalorder %s25, 3
      %p181 = por %p179, %p180
      %p182 = scmp.ne.s32.totalorder %s173, %s174
      %p183 = scmp.eq.s32.totalorder %s25, 0
      %p184 = por %p182, %p183
      %p185 = scmp.ne.s32.totalorder %s173, %s174
      %p186 = scmp.eq.s32.totalorder %s26, 3
      %p187 = por %p185, %p186
      %p189 = scmp.ne.s32.totalorder %s174, %s188
      %p190 = scmp.eq.s32.totalorder %s26, 0
      %p191 = por %p189, %p190
      %s192 = ssub.s32 %s27, %s39
      %s193 = ssub.s32 %s28, %s35
      %s194 = sor.u32 %s192, %s193
      %p195 = scmp.eq.s32.totalorder %s194, 0
      %s197 = sadd.s32 %s196, 1
      %s198 = scalar_select %p195, %s196, %s197
      %p201 = pneg %p195
      %p202 = scmp.eq.s32.totalorder %s20, 3
      %p203 = por %p201, %p202
      %p204 = scmp.ne.s32.totalorder %s196, %s199
      %p205 = scmp.eq.s32.totalorder %s20, 0
      %p206 = por %p204, %p205
      %p207 = scmp.ne.s32.totalorder %s196, %s199
      %p208 = scmp.eq.s32.totalorder %s25, 3
      %p209 = por %p207, %p208
      %p210 = scmp.ne.s32.totalorder %s199, %s200
      %p211 = scmp.eq.s32.totalorder %s25, 0
      %p212 = por %p210, %p211
      %p213 = scmp.ne.s32.totalorder %s199, %s200
      %p214 = scmp.eq.s32.totalorder %s26, 3
      %p215 = por %p213, %p214
      %p217 = scmp.ne.s32.totalorder %s200, %s216
      %p218 = scmp.eq.s32.totalorder %s26, 0
      %p219 = por %p217, %p218
      %p220 = scmp.le.s32.totalorder 1, %s20
      %p221 = scmp.lt.s32.totalorder %s20, 5
      %p222 = pnand %p220, %p221
      %p223 = pneg %p222
      // Predicated region
      $region9: #{tpu_custom_call.1} parent=5 // pred_check
        _
      $region10: #{tpu_custom_call.1} parent=5 // pred_check_branch
        %225 = sbr.rel (%p222) target = $region12
      $region11: #{tpu_custom_call.1} parent=5 // pred_region
        %s226 = ssub.s32 %s20, 1
        // Predicated region
        $region13: #{tpu_custom_call.1} parent=11 // pred_check
          %p227 = pneg %p79
        $region14: #{tpu_custom_call.1} parent=11 // pred_check_branch
          %229 = sbr.rel (%p227) target = $region16
        $region15: #{tpu_custom_call.1} parent=11 // pred_region
          %231 = vsyncadd [#allocation8], 0
          %s232 = sshll.u32 %s1, 4
          %s233 = int_to_ptr.hbm [resolvable:$true] %s232
          %s234 = sshll.u32 [#allocation7], 4
          %s235 = int_to_ptr.vmem [resolvable:$true] %s234
          %240 = dma.hbm_to_vmem [thread:$0]  %s233, 9216, %s235, [#allocation8], 64, 64, 4
        $region16: #{tpu_custom_call.1} parent=11 // pred_fallthru
          _
        // Predicated region
        $region17: #{tpu_custom_call.1} parent=11 // pred_check
          %p241 = pneg %p100
        $region18: #{tpu_custom_call.1} parent=11 // pred_check_branch
          %243 = sbr.rel (%p241) target = $region20
        $region19: #{tpu_custom_call.1} parent=11 // pred_region
          %245 = vsyncadd [#allocation8], 0
          %s246 = sshll.u32 %s2, 4
          %s247 = int_to_ptr.hbm [resolvable:$true] %s246
          %s248 = sshll.u32 [#allocation9], 4
          %s249 = int_to_ptr.vmem [resolvable:$true] %s248
          %254 = dma.hbm_to_vmem [thread:$0]  %s247, 9216, %s249, [#allocation8], 64, 64, 4
        $region20: #{tpu_custom_call.1} parent=11 // pred_fallthru
          _
        // Predicated region
        $region21: #{tpu_custom_call.1} parent=11 // pred_check
          %p255 = pneg %p121
        $region22: #{tpu_custom_call.1} parent=11 // pred_check_branch
          %257 = sbr.rel (%p255) target = $region24
        $region23: #{tpu_custom_call.1} parent=11 // pred_region
          _
        $region24: #{tpu_custom_call.1} parent=11 // pred_fallthru
          _
        // Predicated region
        $region25: #{tpu_custom_call.1} parent=11 // pred_check
          %p258 = pneg %p142
        $region26: #{tpu_custom_call.1} parent=11 // pred_check_branch
          %260 = sbr.rel (%p258) target = $region28
        $region27: #{tpu_custom_call.1} parent=11 // pred_region
          _
        $region28: #{tpu_custom_call.1} parent=11 // pred_fallthru
          _
        // Predicated region
        $region29: #{tpu_custom_call.1} parent=11 // pred_check
          %p261 = pneg %p163
        $region30: #{tpu_custom_call.1} parent=11 // pred_check_branch
          %263 = sbr.rel (%p261) target = $region32
        $region31: #{tpu_custom_call.1} parent=11 // pred_region
          _
        $region32: #{tpu_custom_call.1} parent=11 // pred_fallthru
          _
        // Predicated region
        $region33: #{tpu_custom_call.1} parent=11 // pred_check
          %p264 = pneg %p184
        $region34: #{tpu_custom_call.1} parent=11 // pred_check_branch
          %266 = sbr.rel (%p264) target = $region36
        $region35: #{tpu_custom_call.1} parent=11 // pred_region
          _
        $region36: #{tpu_custom_call.1} parent=11 // pred_fallthru
          _
      $region12: #{tpu_custom_call.1} parent=5 // pred_fallthru
        _
      %p267 = scmp.lt.s32.totalorder %s20, 4
      // Predicated region
      $region37: #{tpu_custom_call.1} parent=5 // pred_check
        %p268 = pneg %p267
      $region38: #{tpu_custom_call.1} parent=5 // pred_check_branch
        %270 = sbr.rel (%p268) target = $region40
      $region39: #{tpu_custom_call.1} parent=5 // pred_region
        // Predicated region
        $region41: #{tpu_custom_call.1} parent=39 // pred_check
          %p271 = pneg %p52
        $region42: #{tpu_custom_call.1} parent=39 // pred_check_branch
          %273 = sbr.rel (%p271) target = $region44
        $region43: #{tpu_custom_call.1} parent=39 // pred_region
          %s274 = sand.u32 %s42, 1
          %s275 = scalar_lea.sflag [#allocation5], %s274
          %s276 = sand.u32 %s42, 1
          %s277 = smul.addr %s276, 256
          %s278 = scalar_lea.vmem [#allocation4], %s277
          %280 = vsyncadd %s275, 0
          %s281 = smul.addr %s27, 32
          %s282 = smul.addr %s281, 8
          %s283 = scalar_lea.hbm %s0, %s282
          %s284 = sshll.u32 %s283, 4
          %s285 = int_to_ptr.hbm [resolvable:$true] %s284
          %s286 = sshll.u32 %s278, 4
          %s287 = int_to_ptr.vmem [resolvable:$true] %s286
          %292 = dma.hbm_to_vmem [thread:$0]  %s285, 4096, %s287, %s275, 128, 128, 8
        $region44: #{tpu_custom_call.1} parent=39 // pred_fallthru
          _
      $region40: #{tpu_custom_call.1} parent=5 // pred_fallthru
        _
      %p293 = scmp.le.s32.totalorder 1, %s20
      %p294 = scmp.lt.s32.totalorder %s20, 5
      %p295 = pnand %p293, %p294
      %p296 = pneg %p295
      // Predicated region
      $region45: #{tpu_custom_call.1} parent=5 // pred_check
        _
      $region46: #{tpu_custom_call.1} parent=5 // pred_check_branch
        %298 = sbr.rel (%p295) target = $region48
      $region47: #{tpu_custom_call.1} parent=5 // pred_region
        %s299 = ssub.s32 %s20, 1
        %s300 = sand.u32 %s45, 1
        %s301 = scalar_lea.sflag [#allocation5], %s300
        %s302 = sand.u32 %s45, 1
        %s303 = smul.addr %s302, 256
        %s304 = scalar_lea.vmem [#allocation4], %s303
        // Predicated region
        $region49: #{tpu_custom_call.1} parent=47 // pred_check
          %p305 = pneg %p58
        $region50: #{tpu_custom_call.1} parent=47 // pred_check_branch
          %307 = sbr.rel (%p305) target = $region52
        $region51: #{tpu_custom_call.1} parent=47 // pred_region
          %309 = dma.done %s301, 4096
        $region52: #{tpu_custom_call.1} parent=47 // pred_fallthru
          _
        // Predicated region
        $region53: #{tpu_custom_call.1} parent=47 // pred_check
          %p310 = pneg %p79
        $region54: #{tpu_custom_call.1} parent=47 // pred_check_branch
          %312 = sbr.rel (%p310) target = $region56
        $region55: #{tpu_custom_call.1} parent=47 // pred_region
          %314 = dma.done [#allocation8], 9216
        $region56: #{tpu_custom_call.1} parent=47 // pred_fallthru
          _
        // Predicated region
        $region57: #{tpu_custom_call.1} parent=47 // pred_check
          %p315 = pneg %p100
        $region58: #{tpu_custom_call.1} parent=47 // pred_check_branch
          %317 = sbr.rel (%p315) target = $region60
        $region59: #{tpu_custom_call.1} parent=47 // pred_region
          %319 = dma.done [#allocation8], 9216
        $region60: #{tpu_custom_call.1} parent=47 // pred_fallthru
          _
        %s320 = sand.u32 %s45, 1
        %s321 = scalar_lea.sflag [#allocation5], %s320
        %s322 = sand.u32 %s45, 1
        %s323 = smul.addr %s322, 256
        %s324 = scalar_lea.vmem [#allocation4], %s323
        %p325 = pneg %p58
        %p326 = pneg %p55
        %p327 = pneg %p79
        %p328 = pneg %p76
        %p329 = pneg %p100
        %p330 = pneg %p97
        %p331 = pneg %p121
        %p332 = pneg %p118
        %p333 = pneg %p142
        %p334 = pneg %p139
        %p335 = pneg %p163
        %p336 = pneg %p160
        %p337 = pneg %p184
        %p338 = pneg %p181
        %p339 = pneg %p212
        %p340 = pneg %p209
        %s341 = sand.u32 %s199, 1
        %s342 = scalar_lea.sflag [#allocation6], %s341
        %s343 = sand.u32 %s199, 1
        %s344 = smul.addr %s343, 128
        %s345 = scalar_lea.vmem [#allocation10], %s344
        %s346 = smul.u32 8, %s30
        %s348 = smul.u32 %s30, 8
        %vm349 = vcmask 1040384
        %vm350 = vsmask.f32 256
        %vm351 = vmand %vm349, %vm350
        %v352 = vld [vmem:[#allocation2] sm:$0x1]
        %v353 = vsel %vm351, 0, %v352
        %354 = vst [vmem:[#allocation2] sm:$0x1] %v353
        %v355 = vld [vmem:[#allocation2 + $0xc] sm:$0x1]
        %v356 = vsel %vm351, 0, %v355
        %357 = vst [vmem:[#allocation2 + $0xc] sm:$0x1] %v356
        %v358 = vld [vmem:[#allocation2 + $0x18] sm:$0x1]
        %v359 = vsel %vm351, 0, %v358
        %360 = vst [vmem:[#allocation2 + $0x18] sm:$0x1] %v359
        %v361 = vld [vmem:[#allocation2 + $0x24] sm:$0x1]
        %v362 = vsel %vm351, 0, %v361
        %363 = vst [vmem:[#allocation2 + $0x24] sm:$0x1] %v362
        %v364 = vld [vmem:[#allocation2 + $0x30] sm:$0x1]
        %v365 = vsel %vm351, 0, %v364
        %366 = vst [vmem:[#allocation2 + $0x30] sm:$0x1] %v365
        %v367 = vld [vmem:[#allocation2 + $0x3c] sm:$0x1]
        %v368 = vsel %vm351, 0, %v367
        %369 = vst [vmem:[#allocation2 + $0x3c] sm:$0x1] %v368
        %v370 = vld [vmem:[#allocation2 + $0x48] sm:$0x1]
        %v371 = vsel %vm351, 0, %v370
        %372 = vst [vmem:[#allocation2 + $0x48] sm:$0x1] %v371
        %v373 = vld [vmem:[#allocation2 + $0x54] sm:$0x1]
        %v374 = vsel %vm351, 0, %v373
        %375 = vst [vmem:[#allocation2 + $0x54] sm:$0x1] %v374
        %v376 = vld [vmem:[#allocation2 + $0x60] sm:$0x1]
        %v377 = vsel %vm351, 0, %v376
        %378 = vst [vmem:[#allocation2 + $0x60] sm:$0x1] %v377
        %v379 = vld [vmem:[#allocation2 + $0x6c] sm:$0x1]
        %v380 = vsel %vm351, 0, %v379
        %381 = vst [vmem:[#allocation2 + $0x6c] sm:$0x1] %v380
        %v382 = vld [vmem:[#allocation2 + $0x78] sm:$0x1]
        %v383 = vsel %vm351, 0, %v382
        %384 = vst [vmem:[#allocation2 + $0x78] sm:$0x1] %v383
        %v385 = vld [vmem:[#allocation2 + $0x84] sm:$0x1]
        %v386 = vsel %vm351, 0, %v385
        %387 = vst [vmem:[#allocation2 + $0x84] sm:$0x1] %v386
        %vm388 = vsmask.f32 7938
        %vm389 = vmand %vm349, %vm388
        %v390 = vld [vmem:[#allocation2 + $0x8] sm:$0x1]
        %v391 = vsel %vm389, 0, %v390
        %392 = vst [vmem:[#allocation2 + $0x8] sm:$0x1] %v391
        %v393 = vld [vmem:[#allocation2 + $0x14] sm:$0x1]
        %v394 = vsel %vm389, 0, %v393
        %395 = vst [vmem:[#allocation2 + $0x14] sm:$0x1] %v394
        %v396 = vld [vmem:[#allocation2 + $0x20] sm:$0x1]
        %v397 = vsel %vm389, 0, %v396
        %398 = vst [vmem:[#allocation2 + $0x20] sm:$0x1] %v397
        %v399 = vld [vmem:[#allocation2 + $0x2c] sm:$0x1]
        %v400 = vsel %vm389, 0, %v399
        %401 = vst [vmem:[#allocation2 + $0x2c] sm:$0x1] %v400
        %v402 = vld [vmem:[#allocation2 + $0x38] sm:$0x1]
        %v403 = vsel %vm389, 0, %v402
        %404 = vst [vmem:[#allocation2 + $0x38] sm:$0x1] %v403
        %v405 = vld [vmem:[#allocation2 + $0x44] sm:$0x1]
        %v406 = vsel %vm389, 0, %v405
        %407 = vst [vmem:[#allocation2 + $0x44] sm:$0x1] %v406
        %v408 = vld [vmem:[#allocation2 + $0x50] sm:$0x1]
        %v409 = vsel %vm389, 0, %v408
        %410 = vst [vmem:[#allocation2 + $0x50] sm:$0x1] %v409
        %v411 = vld [vmem:[#allocation2 + $0x5c] sm:$0x1]
        %v412 = vsel %vm389, 0, %v411
        %413 = vst [vmem:[#allocation2 + $0x5c] sm:$0x1] %v412
        %v414 = vld [vmem:[#allocation2 + $0x68] sm:$0x1]
        %v415 = vsel %vm389, 0, %v414
        %416 = vst [vmem:[#allocation2 + $0x68] sm:$0x1] %v415
        %v417 = vld [vmem:[#allocation2 + $0x74] sm:$0x1]
        %v418 = vsel %vm389, 0, %v417
        %419 = vst [vmem:[#allocation2 + $0x74] sm:$0x1] %v418
        %v420 = vld [vmem:[#allocation2 + $0x80] sm:$0x1]
        %v421 = vsel %vm389, 0, %v420
        %422 = vst [vmem:[#allocation2 + $0x80] sm:$0x1] %v421
        %v423 = vld [vmem:[#allocation2 + $0x8c] sm:$0x1]
        %v424 = vsel %vm389, 0, %v423
        %425 = vst [vmem:[#allocation2 + $0x8c] sm:$0x1] %v424
        %s426 = smul.u32 %s348, 16
        %s427 = scalar_lea.vmem %s304, %s426 [#allocation4]
        %v428 = vld [vmem:[%s427] sm:$0xff]
        %v429 = vld [vmem:[%s427 + $0x8] sm:$0xff]
        %v430 = vld [vmem:[%s427 + $0x10] sm:$0xff]
        %v431 = vld [vmem:[%s427 + $0x18] sm:$0xff]
        %v432 = vld [vmem:[%s427 + $0x20] sm:$0xff]
        %v433 = vld [vmem:[%s427 + $0x28] sm:$0xff]
        %v434 = vld [vmem:[%s427 + $0x30] sm:$0xff]
        %v435 = vld [vmem:[%s427 + $0x38] sm:$0xff]
        %v436 = vld [vmem:[%s427 + $0x40] sm:$0xff]
        %v437 = vld [vmem:[%s427 + $0x48] sm:$0xff]
        %v438 = vld [vmem:[%s427 + $0x50] sm:$0xff]
        %v439 = vld [vmem:[%s427 + $0x58] sm:$0xff]
        %v440 = vld [vmem:[%s427 + $0x60] sm:$0xff]
        %v441 = vld [vmem:[%s427 + $0x68] sm:$0xff]
        %v442 = vld [vmem:[%s427 + $0x70] sm:$0xff]
        %v443 = vld [vmem:[%s427 + $0x78] sm:$0xff]
        %v444 = vpack.c.bf16 %v428, %v428
        %v445 = vpack.c.bf16 %v429, %v429
        %v446 = vpack.c.bf16 %v430, %v430
        %v447 = vpack.c.bf16 %v431, %v431
        %v448 = vpack.c.bf16 %v432, %v432
        %v449 = vpack.c.bf16 %v433, %v433
        %v450 = vpack.c.bf16 %v434, %v434
        %v451 = vpack.c.bf16 %v435, %v435
        %v452 = vpack.c.bf16 %v436, %v436
        %v453 = vpack.c.bf16 %v437, %v437
        %v454 = vpack.c.bf16 %v438, %v438
        %v455 = vpack.c.bf16 %v439, %v439
        %v456 = vpack.c.bf16 %v440, %v440
        %v457 = vpack.c.bf16 %v441, %v441
        %v458 = vpack.c.bf16 %v442, %v442
        %v459 = vpack.c.bf16 %v443, %v443
        %vm460 = vsmask.f32 4368
        %vm461 = vmor %vm350, %vm460
        %v463 = vshrl.u32 %v444, 16
        %v465 = vrot.slane %v463, 7
        %v466 = vshll.u32 %v444, 16
        %v468 = vor.u32 %v465, %v466
        %v469 = vrot.slane %v465, 4
        %v471 = vshrl.u32 %v445, 16
        %v473 = vrot.slane %v471, 7
        %v474 = vshll.u32 %v445, 16
        %v476 = vor.u32 %v473, %v474
        %v477 = vsel %vm461, %v469, %v476
        %v478 = vrot.slane %v473, 4
        %v480 = vshrl.u32 %v446, 16
        %v482 = vrot.slane %v480, 7
        %v483 = vshll.u32 %v446, 16
        %v485 = vor.u32 %v482, %v483
        %v486 = vrot.slane %v482, 4
        %v488 = vshrl.u32 %v447, 16
        %v490 = vrot.slane %v488, 7
        %v491 = vshll.u32 %v447, 16
        %v493 = vor.u32 %v490, %v491
        %v494 = vsel %vm461, %v486, %v493
        %v495 = vrot.slane %v490, 4
        %v497 = vshrl.u32 %v448, 16
        %v499 = vrot.slane %v497, 7
        %v500 = vshll.u32 %v448, 16
        %v502 = vor.u32 %v499, %v500
        %v503 = vrot.slane %v499, 4
        %v505 = vshrl.u32 %v449, 16
        %v507 = vrot.slane %v505, 7
        %v508 = vshll.u32 %v449, 16
        %v510 = vor.u32 %v507, %v508
        %v511 = vsel %vm461, %v503, %v510
        %v512 = vrot.slane %v507, 4
        %v514 = vshrl.u32 %v450, 16
        %v516 = vrot.slane %v514, 7
        %v517 = vshll.u32 %v450, 16
        %v519 = vor.u32 %v516, %v517
        %v520 = vrot.slane %v516, 4
        %v522 = vshrl.u32 %v451, 16
        %v524 = vrot.slane %v522, 7
        %v525 = vshll.u32 %v451, 16
        %v527 = vor.u32 %v524, %v525
        %v528 = vsel %vm461, %v520, %v527
        %v529 = vrot.slane %v524, 4
        %v531 = vshrl.u32 %v452, 16
        %v533 = vrot.slane %v531, 7
        %v534 = vshll.u32 %v452, 16
        %v536 = vor.u32 %v533, %v534
        %v537 = vrot.slane %v533, 4
        %v539 = vshrl.u32 %v453, 16
        %v541 = vrot.slane %v539, 7
        %v542 = vshll.u32 %v453, 16
        %v544 = vor.u32 %v541, %v542
        %v545 = vsel %vm461, %v537, %v544
        %v546 = vrot.slane %v541, 4
        %v548 = vshrl.u32 %v454, 16
        %v550 = vrot.slane %v548, 7
        %v551 = vshll.u32 %v454, 16
        %v553 = vor.u32 %v550, %v551
        %v554 = vrot.slane %v550, 4
        %v556 = vshrl.u32 %v455, 16
        %v558 = vrot.slane %v556, 7
        %v559 = vshll.u32 %v455, 16
        %v561 = vor.u32 %v558, %v559
        %v562 = vsel %vm461, %v554, %v561
        %v563 = vrot.slane %v558, 4
        %v565 = vshrl.u32 %v456, 16
        %v567 = vrot.slane %v565, 7
        %v568 = vshll.u32 %v456, 16
        %v570 = vor.u32 %v567, %v568
        %v571 = vrot.slane %v567, 4
        %v573 = vshrl.u32 %v457, 16
        %v575 = vrot.slane %v573, 7
        %v576 = vshll.u32 %v457, 16
        %v578 = vor.u32 %v575, %v576
        %v579 = vsel %vm461, %v571, %v578
        %v580 = vrot.slane %v575, 4
        %v582 = vshrl.u32 %v458, 16
        %v584 = vrot.slane %v582, 7
        %v585 = vshll.u32 %v458, 16
        %v587 = vor.u32 %v584, %v585
        %v588 = vrot.slane %v584, 4
        %v590 = vshrl.u32 %v459, 16
        %v592 = vrot.slane %v590, 7
        %v593 = vshll.u32 %v459, 16
        %v595 = vor.u32 %v592, %v593
        %v596 = vsel %vm461, %v588, %v595
        %v597 = vrot.slane %v592, 4
        %s622 = scalar_lea.vmem [#allocation2], 24
        %vm623 = vcmask 1043456
        %vm624 = vmand %vm623, %vm388
        %v625 = vld [vmem:[%s622] sm:$0xf]
        %v626 = vsel %vm624, %v468, %v625
        %627 = vst [vmem:[%s622] sm:$0xf] %v626
        %628 = vst [vmem:[%s622 + $0x4] sm:$0xf] %v477
        %v629 = vld [vmem:[%s622 + $0x8] sm:$0x1]
        %v630 = vsel %vm351, %v478, %v629
        %631 = vst [vmem:[%s622 + $0x8] sm:$0x1] %v630
        %v632 = vld [vmem:[%s622 + $0xc] sm:$0xf]
        %v633 = vsel %vm624, %v485, %v632
        %634 = vst [vmem:[%s622 + $0xc] sm:$0xf] %v633
        %635 = vst [vmem:[%s622 + $0x10] sm:$0xf] %v494
        %v636 = vld [vmem:[%s622 + $0x14] sm:$0x1]
        %v637 = vsel %vm351, %v495, %v636
        %638 = vst [vmem:[%s622 + $0x14] sm:$0x1] %v637
        %v639 = vld [vmem:[%s622 + $0x18] sm:$0xf]
        %v640 = vsel %vm624, %v502, %v639
        %641 = vst [vmem:[%s622 + $0x18] sm:$0xf] %v640
        %642 = vst [vmem:[%s622 + $0x1c] sm:$0xf] %v511
        %v643 = vld [vmem:[%s622 + $0x20] sm:$0x1]
        %v644 = vsel %vm351, %v512, %v643
        %645 = vst [vmem:[%s622 + $0x20] sm:$0x1] %v644
        %v646 = vld [vmem:[%s622 + $0x24] sm:$0xf]
        %v647 = vsel %vm624, %v519, %v646
        %648 = vst [vmem:[%s622 + $0x24] sm:$0xf] %v647
        %649 = vst [vmem:[%s622 + $0x28] sm:$0xf] %v528
        %v650 = vld [vmem:[%s622 + $0x2c] sm:$0x1]
        %v651 = vsel %vm351, %v529, %v650
        %652 = vst [vmem:[%s622 + $0x2c] sm:$0x1] %v651
        %v653 = vld [vmem:[%s622 + $0x30] sm:$0xf]
        %v654 = vsel %vm624, %v536, %v653
        %655 = vst [vmem:[%s622 + $0x30] sm:$0xf] %v654
        %656 = vst [vmem:[%s622 + $0x34] sm:$0xf] %v545
        %v657 = vld [vmem:[%s622 + $0x38] sm:$0x1]
        %v658 = vsel %vm351, %v546, %v657
        %659 = vst [vmem:[%s622 + $0x38] sm:$0x1] %v658
        %v660 = vld [vmem:[%s622 + $0x3c] sm:$0xf]
        %v661 = vsel %vm624, %v553, %v660
        %662 = vst [vmem:[%s622 + $0x3c] sm:$0xf] %v661
        %663 = vst [vmem:[%s622 + $0x40] sm:$0xf] %v562
        %v664 = vld [vmem:[%s622 + $0x44] sm:$0x1]
        %v665 = vsel %vm351, %v563, %v664
        %666 = vst [vmem:[%s622 + $0x44] sm:$0x1] %v665
        %v667 = vld [vmem:[%s622 + $0x48] sm:$0xf]
        %v668 = vsel %vm624, %v570, %v667
        %669 = vst [vmem:[%s622 + $0x48] sm:$0xf] %v668
        %670 = vst [vmem:[%s622 + $0x4c] sm:$0xf] %v579
        %v671 = vld [vmem:[%s622 + $0x50] sm:$0x1]
        %v672 = vsel %vm351, %v580, %v671
        %673 = vst [vmem:[%s622 + $0x50] sm:$0x1] %v672
        %v674 = vld [vmem:[%s622 + $0x54] sm:$0xf]
        %v675 = vsel %vm624, %v587, %v674
        %676 = vst [vmem:[%s622 + $0x54] sm:$0xf] %v675
        %677 = vst [vmem:[%s622 + $0x58] sm:$0xf] %v596
        %v678 = vld [vmem:[%s622 + $0x5c] sm:$0x1]
        %v679 = vsel %vm351, %v597, %v678
        %680 = vst [vmem:[%s622 + $0x5c] sm:$0x1] %v679
        %p681 = scmp.gt.s32.totalorder %s30, 0
        // Predicated region
        $region61: #{tpu_custom_call.1} parent=47 // pred_check
          %p682 = pneg %p681
        $region62: #{tpu_custom_call.1} parent=47 // pred_check_branch
          %684 = sbr.rel (%p682) target = $region64
        $region63: #{tpu_custom_call.1} parent=47 // pred_region
          %s685 = ssub.s32 %s348, 2
          %s686 = smul.u32 %s685, 16
          %s687 = scalar_lea.vmem %s304, %s686 [#allocation4]
          %v688 = vld [vmem:[%s687] sm:$0xff]
          %v689 = vld [vmem:[%s687 + $0x8] sm:$0xff]
          %v690 = vld [vmem:[%s687 + $0x10] sm:$0xff]
          %v691 = vld [vmem:[%s687 + $0x18] sm:$0xff]
          %v692 = vpack.c.bf16 %v688, %v688
          %v693 = vpack.c.bf16 %v689, %v689
          %v694 = vpack.c.bf16 %v690, %v690
          %v695 = vpack.c.bf16 %v691, %v691
          %v697 = vshrl.u32 %v692, 16
          %v699 = vrot.slane %v697, 7
          %v700 = vshll.u32 %v692, 16
          %v702 = vor.u32 %v699, %v700
          %v703 = vrot.slane %v699, 4
          %v705 = vshrl.u32 %v693, 16
          %v707 = vrot.slane %v705, 7
          %v708 = vshll.u32 %v693, 16
          %v710 = vor.u32 %v707, %v708
          %v711 = vsel %vm461, %v703, %v710
          %v712 = vrot.slane %v707, 4
          %v714 = vshrl.u32 %v694, 16
          %v716 = vrot.slane %v714, 7
          %v717 = vshll.u32 %v694, 16
          %v719 = vor.u32 %v716, %v717
          %v720 = vrot.slane %v716, 4
          %v722 = vshrl.u32 %v695, 16
          %v724 = vrot.slane %v722, 7
          %v725 = vshll.u32 %v695, 16
          %v727 = vor.u32 %v724, %v725
          %v728 = vsel %vm461, %v720, %v727
          %v729 = vrot.slane %v724, 4
          %v736 = vld [vmem:[#allocation2] sm:$0xf]
          %v737 = vsel %vm624, %v702, %v736
          %738 = vst [vmem:[#allocation2] sm:$0xf] %v737
          %739 = vst [vmem:[#allocation2 + $0x4] sm:$0xf] %v711
          %v740 = vld [vmem:[#allocation2 + $0x8] sm:$0x1]
          %v741 = vsel %vm351, %v712, %v740
          %742 = vst [vmem:[#allocation2 + $0x8] sm:$0x1] %v741
          %v743 = vld [vmem:[#allocation2 + $0xc] sm:$0xf]
          %v744 = vsel %vm624, %v719, %v743
          %745 = vst [vmem:[#allocation2 + $0xc] sm:$0xf] %v744
          %746 = vst [vmem:[#allocation2 + $0x10] sm:$0xf] %v728
          %v747 = vld [vmem:[#allocation2 + $0x14] sm:$0x1]
          %v748 = vsel %vm351, %v729, %v747
          %749 = vst [vmem:[#allocation2 + $0x14] sm:$0x1] %v748
        $region64: #{tpu_custom_call.1} parent=47 // pred_fallthru
          _
        %p750 = scmp.eq.s32.totalorder %s30, 0
        // Predicated region
        $region65: #{tpu_custom_call.1} parent=47 // pred_check
          %p751 = pneg %p750
        $region66: #{tpu_custom_call.1} parent=47 // pred_check_branch
          %753 = sbr.rel (%p751) target = $region68
        $region67: #{tpu_custom_call.1} parent=47 // pred_region
          %v754 = vld [vmem:[#allocation2] sm:$0xf]
          %v755 = vsel %vm624, 0, %v754
          %756 = vst [vmem:[#allocation2] sm:$0xf] %v755
          %757 = vst [vmem:[#allocation2 + $0x4] sm:$0xf] 0
          %v758 = vld [vmem:[#allocation2 + $0x8] sm:$0x1]
          %v759 = vsel %vm351, 0, %v758
          %760 = vst [vmem:[#allocation2 + $0x8] sm:$0x1] %v759
          %v761 = vld [vmem:[#allocation2 + $0xc] sm:$0xf]
          %v762 = vsel %vm624, 0, %v761
          %763 = vst [vmem:[#allocation2 + $0xc] sm:$0xf] %v762
          %764 = vst [vmem:[#allocation2 + $0x10] sm:$0xf] 0
          %v765 = vld [vmem:[#allocation2 + $0x14] sm:$0x1]
          %v766 = vsel %vm351, 0, %v765
          %767 = vst [vmem:[#allocation2 + $0x14] sm:$0x1] %v766
        $region68: #{tpu_custom_call.1} parent=47 // pred_fallthru
          _
        %p768 = scmp.lt.s32.totalorder %s30, 1
        // Predicated region
        $region69: #{tpu_custom_call.1} parent=47 // pred_check
          %p769 = pneg %p768
        $region70: #{tpu_custom_call.1} parent=47 // pred_check_branch
          %771 = sbr.rel (%p769) target = $region72
        $region71: #{tpu_custom_call.1} parent=47 // pred_region
          %s772 = sadd.s32 %s348, 8
          %s773 = smul.u32 %s772, 16
          %s774 = scalar_lea.vmem %s304, %s773 [#allocation4]
          %v775 = vld [vmem:[%s774] sm:$0xff]
          %v776 = vld [vmem:[%s774 + $0x8] sm:$0xff]
          %v777 = vld [vmem:[%s774 + $0x10] sm:$0xff]
          %v778 = vld [vmem:[%s774 + $0x18] sm:$0xff]
          %v779 = vpack.c.bf16 %v775, %v775
          %v780 = vpack.c.bf16 %v776, %v776
          %v781 = vpack.c.bf16 %v777, %v777
          %v782 = vpack.c.bf16 %v778, %v778
          %v784 = vshrl.u32 %v779, 16
          %v786 = vrot.slane %v784, 7
          %v787 = vshll.u32 %v779, 16
          %v789 = vor.u32 %v786, %v787
          %v790 = vrot.slane %v786, 4
          %v792 = vshrl.u32 %v780, 16
          %v794 = vrot.slane %v792, 7
          %v795 = vshll.u32 %v780, 16
          %v797 = vor.u32 %v794, %v795
          %v798 = vsel %vm461, %v790, %v797
          %v799 = vrot.slane %v794, 4
          %v801 = vshrl.u32 %v781, 16
          %v803 = vrot.slane %v801, 7
          %v804 = vshll.u32 %v781, 16
          %v806 = vor.u32 %v803, %v804
          %v807 = vrot.slane %v803, 4
          %v809 = vshrl.u32 %v782, 16
          %v811 = vrot.slane %v809, 7
          %v812 = vshll.u32 %v782, 16
          %v814 = vor.u32 %v811, %v812
          %v815 = vsel %vm461, %v807, %v814
          %v816 = vrot.slane %v811, 4
          %s823 = scalar_lea.vmem [#allocation2], 120
          %v824 = vld [vmem:[%s823] sm:$0xf]
          %v825 = vsel %vm624, %v789, %v824
          %826 = vst [vmem:[%s823] sm:$0xf] %v825
          %827 = vst [vmem:[%s823 + $0x4] sm:$0xf] %v798
          %v828 = vld [vmem:[%s823 + $0x8] sm:$0x1]
          %v829 = vsel %vm351, %v799, %v828
          %830 = vst [vmem:[%s823 + $0x8] sm:$0x1] %v829
          %v831 = vld [vmem:[%s823 + $0xc] sm:$0xf]
          %v832 = vsel %vm624, %v806, %v831
          %833 = vst [vmem:[%s823 + $0xc] sm:$0xf] %v832
          %834 = vst [vmem:[%s823 + $0x10] sm:$0xf] %v815
          %v835 = vld [vmem:[%s823 + $0x14] sm:$0x1]
          %v836 = vsel %vm351, %v816, %v835
          %837 = vst [vmem:[%s823 + $0x14] sm:$0x1] %v836
        $region72: #{tpu_custom_call.1} parent=47 // pred_fallthru
          _
        %p838 = scmp.eq.s32.totalorder %s30, 1
        // Predicated region
        $region73: #{tpu_custom_call.1} parent=47 // pred_check
          %p839 = pneg %p838
        $region74: #{tpu_custom_call.1} parent=47 // pred_check_branch
          %841 = sbr.rel (%p839) target = $region76
        $region75: #{tpu_custom_call.1} parent=47 // pred_region
          %s842 = scalar_lea.vmem [#allocation2], 120
          %v843 = vld [vmem:[%s842] sm:$0xf]
          %v844 = vsel %vm624, 0, %v843
          %845 = vst [vmem:[%s842] sm:$0xf] %v844
          %846 = vst [vmem:[%s842 + $0x4] sm:$0xf] 0
          %v847 = vld [vmem:[%s842 + $0x8] sm:$0x1]
          %v848 = vsel %vm351, 0, %v847
          %849 = vst [vmem:[%s842 + $0x8] sm:$0x1] %v848
          %v850 = vld [vmem:[%s842 + $0xc] sm:$0xf]
          %v851 = vsel %vm624, 0, %v850
          %852 = vst [vmem:[%s842 + $0xc] sm:$0xf] %v851
          %853 = vst [vmem:[%s842 + $0x10] sm:$0xf] 0
          %v854 = vld [vmem:[%s842 + $0x14] sm:$0x1]
          %v855 = vsel %vm351, 0, %v854
          %856 = vst [vmem:[%s842 + $0x14] sm:$0x1] %v855
        $region76: #{tpu_custom_call.1} parent=47 // pred_fallthru
          _
        %v857 = vld [vmem:[#allocation2] sm:$0xf]
        %v858 = vld [vmem:[#allocation2 + $0x4] sm:$0xf]
        %v859 = vld [vmem:[#allocation2 + $0xc] sm:$0xf]
        %v860 = vld [vmem:[#allocation2 + $0x10] sm:$0xf]
        %v861 = vld [vmem:[#allocation2 + $0x18] sm:$0xf]
        %v862 = vld [vmem:[#allocation2 + $0x1c] sm:$0xf]
        %v863 = vld [vmem:[#allocation2 + $0x24] sm:$0xf]
        %v864 = vld [vmem:[#allocation2 + $0x28] sm:$0xf]
        %v865 = vld [vmem:[#allocation2 + $0x30] sm:$0xf]
        %v866 = vld [vmem:[#allocation2 + $0x34] sm:$0xf]
        %v867 = vld [vmem:[#allocation2 + $0x3c] sm:$0xf]
        %v868 = vld [vmem:[#allocation2 + $0x40] sm:$0xf]
        %v869 = vld [vmem:[#allocation2 + $0x48] sm:$0xf]
        %v870 = vld [vmem:[#allocation2 + $0x4c] sm:$0xf]
        %v871 = vld [vmem:[#allocation2 + $0x54] sm:$0xf]
        %v872 = vld [vmem:[#allocation2 + $0x58] sm:$0xf]
        %v873 = vld [vmem:[#allocation2 + $0x60] sm:$0xf]
        %v874 = vld [vmem:[#allocation2 + $0x64] sm:$0xf]
        %v875 = vld [vmem:[#allocation2 + $0x6c] sm:$0xf]
        %v876 = vld [vmem:[#allocation2 + $0x70] sm:$0xf]
        %877 = vst [vmem:[#allocation3] sm:$0xf] %v857
        %878 = vst [vmem:[#allocation3 + $0x24] sm:$0xf] %v858
        %879 = vst [vmem:[#allocation3 + $0x48] sm:$0xf] %v859
        %880 = vst [vmem:[#allocation3 + $0x6c] sm:$0xf] %v860
        %881 = vst [vmem:[#allocation3 + $0x90] sm:$0xf] %v861
        %882 = vst [vmem:[#allocation3 + $0xb4] sm:$0xf] %v862
        %883 = vst [vmem:[#allocation3 + $0xd8] sm:$0xf] %v863
        %884 = vst [vmem:[#allocation3 + $0xfc] sm:$0xf] %v864
        %885 = vst [vmem:[#allocation3 + $0x120] sm:$0xf] %v865
        %886 = vst [vmem:[#allocation3 + $0x144] sm:$0xf] %v866
        %887 = vst [vmem:[#allocation3 + $0x168] sm:$0xf] %v867
        %888 = vst [vmem:[#allocation3 + $0x18c] sm:$0xf] %v868
        %889 = vst [vmem:[#allocation3 + $0x1b0] sm:$0xf] %v869
        %890 = vst [vmem:[#allocation3 + $0x1d4] sm:$0xf] %v870
        %891 = vst [vmem:[#allocation3 + $0x1f8] sm:$0xf] %v871
        %892 = vst [vmem:[#allocation3 + $0x21c] sm:$0xf] %v872
        %893 = vst [vmem:[#allocation3 + $0x240] sm:$0xf] %v873
        %894 = vst [vmem:[#allocation3 + $0x264] sm:$0xf] %v874
        %895 = vst [vmem:[#allocation3 + $0x288] sm:$0xf] %v875
        %896 = vst [vmem:[#allocation3 + $0x2ac] sm:$0xf] %v876
        %v897 = vld [vmem:[#allocation2] sm:$0xf]
        %v898 = vld [vmem:[#allocation2 + $0x4] sm:$0xf]
        %v899 = vld [vmem:[#allocation2 + $0x8] sm:$0x1]
        %v900 = vld [vmem:[#allocation2 + $0xc] sm:$0xf]
        %v901 = vld [vmem:[#allocation2 + $0x10] sm:$0xf]
        %v902 = vld [vmem:[#allocation2 + $0x14] sm:$0x1]
        %v903 = vld [vmem:[#allocation2 + $0x18] sm:$0xf]
        %v904 = vld [vmem:[#allocation2 + $0x1c] sm:$0xf]
        %v905 = vld [vmem:[#allocation2 + $0x20] sm:$0x1]
        %v906 = vld [vmem:[#allocation2 + $0x24] sm:$0xf]
        %v907 = vld [vmem:[#allocation2 + $0x28] sm:$0xf]
        %v908 = vld [vmem:[#allocation2 + $0x2c] sm:$0x1]
        %v909 = vld [vmem:[#allocation2 + $0x30] sm:$0xf]
        %v910 = vld [vmem:[#allocation2 + $0x34] sm:$0xf]
        %v911 = vld [vmem:[#allocation2 + $0x38] sm:$0x1]
        %v912 = vld [vmem:[#allocation2 + $0x3c] sm:$0xf]
        %v913 = vld [vmem:[#allocation2 + $0x40] sm:$0xf]
        %v914 = vld [vmem:[#allocation2 + $0x44] sm:$0x1]
        %v915 = vld [vmem:[#allocation2 + $0x48] sm:$0xf]
        %v916 = vld [vmem:[#allocation2 + $0x4c] sm:$0xf]
        %v917 = vld [vmem:[#allocation2 + $0x50] sm:$0x1]
        %v918 = vld [vmem:[#allocation2 + $0x54] sm:$0xf]
        %v919 = vld [vmem:[#allocation2 + $0x58] sm:$0xf]
        %v920 = vld [vmem:[#allocation2 + $0x5c] sm:$0x1]
        %v921 = vld [vmem:[#allocation2 + $0x60] sm:$0xf]
        %v922 = vld [vmem:[#allocation2 + $0x64] sm:$0xf]
        %v923 = vld [vmem:[#allocation2 + $0x68] sm:$0x1]
        %v924 = vld [vmem:[#allocation2 + $0x6c] sm:$0xf]
        %v925 = vld [vmem:[#allocation2 + $0x70] sm:$0xf]
        %v926 = vld [vmem:[#allocation2 + $0x74] sm:$0x1]
        %vm927 = vsmask.f32 3328
        %vm928 = vsmask.f32 7440
        %vm929 = vmor %vm927, %vm928
        %v931 = vshrl.u32 %v897, 16
        %v933 = vrot.slane %v931, 4
        %v934 = vshll.u32 %v897, 16
        %v936 = vrot.slane %v934, 5
        %v937 = vor.u32 %v933, %v936
        %v938 = vrot.slane %v937, 4
        %v940 = vshll.u32 %v898, 16
        %v942 = vrot.slane %v940, 5
        %v943 = vsel %vm929, %v938, %v942
        %v944 = vshrl.u32 %v898, 16
        %v946 = vrot.slane %v944, 4
        %v947 = vor.u32 %v946, %v942
        %v948 = vrot.slane %v947, 4
        %v950 = vshll.u32 %v899, 16
        %v952 = vrot.slane %v950, 5
        %v953 = vsel %vm929, %v948, %v952
        %v955 = vshrl.u32 %v900, 16
        %v957 = vrot.slane %v955, 4
        %v958 = vshll.u32 %v900, 16
        %v960 = vrot.slane %v958, 5
        %v961 = vor.u32 %v957, %v960
        %v962 = vrot.slane %v961, 4
        %v964 = vshll.u32 %v901, 16
        %v966 = vrot.slane %v964, 5
        %v967 = vsel %vm929, %v962, %v966
        %v968 = vshrl.u32 %v901, 16
        %v970 = vrot.slane %v968, 4
        %v971 = vor.u32 %v970, %v966
        %v972 = vrot.slane %v971, 4
        %v974 = vshll.u32 %v902, 16
        %v976 = vrot.slane %v974, 5
        %v977 = vsel %vm929, %v972, %v976
        %v979 = vshrl.u32 %v903, 16
        %v981 = vrot.slane %v979, 4
        %v982 = vshll.u32 %v903, 16
        %v984 = vrot.slane %v982, 5
        %v985 = vor.u32 %v981, %v984
        %v986 = vrot.slane %v985, 4
        %v988 = vshll.u32 %v904, 16
        %v990 = vrot.slane %v988, 5
        %v991 = vsel %vm929, %v986, %v990
        %v992 = vshrl.u32 %v904, 16
        %v994 = vrot.slane %v992, 4
        %v995 = vor.u32 %v994, %v990
        %v996 = vrot.slane %v995, 4
        %v998 = vshll.u32 %v905, 16
        %v1000 = vrot.slane %v998, 5
        %v1001 = vsel %vm929, %v996, %v1000
        %v1003 = vshrl.u32 %v906, 16
        %v1005 = vrot.slane %v1003, 4
        %v1006 = vshll.u32 %v906, 16
        %v1008 = vrot.slane %v1006, 5
        %v1009 = vor.u32 %v1005, %v1008
        %v1010 = vrot.slane %v1009, 4
        %v1012 = vshll.u32 %v907, 16
        %v1014 = vrot.slane %v1012, 5
        %v1015 = vsel %vm929, %v1010, %v1014
        %v1016 = vshrl.u32 %v907, 16
        %v1018 = vrot.slane %v1016, 4
        %v1019 = vor.u32 %v1018, %v1014
        %v1020 = vrot.slane %v1019, 4
        %v1022 = vshll.u32 %v908, 16
        %v1024 = vrot.slane %v1022, 5
        %v1025 = vsel %vm929, %v1020, %v1024
        %v1027 = vshrl.u32 %v909, 16
        %v1029 = vrot.slane %v1027, 4
        %v1030 = vshll.u32 %v909, 16
        %v1032 = vrot.slane %v1030, 5
        %v1033 = vor.u32 %v1029, %v1032
        %v1034 = vrot.slane %v1033, 4
        %v1036 = vshll.u32 %v910, 16
        %v1038 = vrot.slane %v1036, 5
        %v1039 = vsel %vm929, %v1034, %v1038
        %v1040 = vshrl.u32 %v910, 16
        %v1042 = vrot.slane %v1040, 4
        %v1043 = vor.u32 %v1042, %v1038
        %v1044 = vrot.slane %v1043, 4
        %v1046 = vshll.u32 %v911, 16
        %v1048 = vrot.slane %v1046, 5
        %v1049 = vsel %vm929, %v1044, %v1048
        %v1051 = vshrl.u32 %v912, 16
        %v1053 = vrot.slane %v1051, 4
        %v1054 = vshll.u32 %v912, 16
        %v1056 = vrot.slane %v1054, 5
        %v1057 = vor.u32 %v1053, %v1056
        %v1058 = vrot.slane %v1057, 4
        %v1060 = vshll.u32 %v913, 16
        %v1062 = vrot.slane %v1060, 5
        %v1063 = vsel %vm929, %v1058, %v1062
        %v1064 = vshrl.u32 %v913, 16
        %v1066 = vrot.slane %v1064, 4
        %v1067 = vor.u32 %v1066, %v1062
        %v1068 = vrot.slane %v1067, 4
        %v1070 = vshll.u32 %v914, 16
        %v1072 = vrot.slane %v1070, 5
        %v1073 = vsel %vm929, %v1068, %v1072
        %v1075 = vshrl.u32 %v915, 16
        %v1077 = vrot.slane %v1075, 4
        %v1078 = vshll.u32 %v915, 16
        %v1080 = vrot.slane %v1078, 5
        %v1081 = vor.u32 %v1077, %v1080
        %v1082 = vrot.slane %v1081, 4
        %v1084 = vshll.u32 %v916, 16
        %v1086 = vrot.slane %v1084, 5
        %v1087 = vsel %vm929, %v1082, %v1086
        %v1088 = vshrl.u32 %v916, 16
        %v1090 = vrot.slane %v1088, 4
        %v1091 = vor.u32 %v1090, %v1086
        %v1092 = vrot.slane %v1091, 4
        %v1094 = vshll.u32 %v917, 16
        %v1096 = vrot.slane %v1094, 5
        %v1097 = vsel %vm929, %v1092, %v1096
        %v1099 = vshrl.u32 %v918, 16
        %v1101 = vrot.slane %v1099, 4
        %v1102 = vshll.u32 %v918, 16
        %v1104 = vrot.slane %v1102, 5
        %v1105 = vor.u32 %v1101, %v1104
        %v1106 = vrot.slane %v1105, 4
        %v1108 = vshll.u32 %v919, 16
        %v1110 = vrot.slane %v1108, 5
        %v1111 = vsel %vm929, %v1106, %v1110
        %v1112 = vshrl.u32 %v919, 16
        %v1114 = vrot.slane %v1112, 4
        %v1115 = vor.u32 %v1114, %v1110
        %v1116 = vrot.slane %v1115, 4
        %v1118 = vshll.u32 %v920, 16
        %v1120 = vrot.slane %v1118, 5
        %v1121 = vsel %vm929, %v1116, %v1120
        %v1123 = vshrl.u32 %v921, 16
        %v1125 = vrot.slane %v1123, 4
        %v1126 = vshll.u32 %v921, 16
        %v1128 = vrot.slane %v1126, 5
        %v1129 = vor.u32 %v1125, %v1128
        %v1130 = vrot.slane %v1129, 4
        %v1132 = vshll.u32 %v922, 16
        %v1134 = vrot.slane %v1132, 5
        %v1135 = vsel %vm929, %v1130, %v1134
        %v1136 = vshrl.u32 %v922, 16
        %v1138 = vrot.slane %v1136, 4
        %v1139 = vor.u32 %v1138, %v1134
        %v1140 = vrot.slane %v1139, 4
        %v1142 = vshll.u32 %v923, 16
        %v1144 = vrot.slane %v1142, 5
        %v1145 = vsel %vm929, %v1140, %v1144
        %v1147 = vshrl.u32 %v924, 16
        %v1149 = vrot.slane %v1147, 4
        %v1150 = vshll.u32 %v924, 16
        %v1152 = vrot.slane %v1150, 5
        %v1153 = vor.u32 %v1149, %v1152
        %v1154 = vrot.slane %v1153, 4
        %v1156 = vshll.u32 %v925, 16
        %v1158 = vrot.slane %v1156, 5
        %v1159 = vsel %vm929, %v1154, %v1158
        %v1160 = vshrl.u32 %v925, 16
        %v1162 = vrot.slane %v1160, 4
        %v1163 = vor.u32 %v1162, %v1158
        %v1164 = vrot.slane %v1163, 4
        %v1166 = vshll.u32 %v926, 16
        %v1168 = vrot.slane %v1166, 5
        %v1169 = vsel %vm929, %v1164, %v1168
        %1190 = vst [vmem:[#allocation3 + $0x4] sm:$0xf] %v943
        %1191 = vst [vmem:[#allocation3 + $0x28] sm:$0xf] %v953
        %1192 = vst [vmem:[#allocation3 + $0x4c] sm:$0xf] %v967
        %1193 = vst [vmem:[#allocation3 + $0x70] sm:$0xf] %v977
        %1194 = vst [vmem:[#allocation3 + $0x94] sm:$0xf] %v991
        %1195 = vst [vmem:[#allocation3 + $0xb8] sm:$0xf] %v1001
        %1196 = vst [vmem:[#allocation3 + $0xdc] sm:$0xf] %v1015
        %1197 = vst [vmem:[#allocation3 + $0x100] sm:$0xf] %v1025
        %1198 = vst [vmem:[#allocation3 + $0x124] sm:$0xf] %v1039
        %1199 = vst [vmem:[#allocation3 + $0x148] sm:$0xf] %v1049
        %1200 = vst [vmem:[#allocation3 + $0x16c] sm:$0xf] %v1063
        %1201 = vst [vmem:[#allocation3 + $0x190] sm:$0xf] %v1073
        %1202 = vst [vmem:[#allocation3 + $0x1b4] sm:$0xf] %v1087
        %1203 = vst [vmem:[#allocation3 + $0x1d8] sm:$0xf] %v1097
        %1204 = vst [vmem:[#allocation3 + $0x1fc] sm:$0xf] %v1111
        %1205 = vst [vmem:[#allocation3 + $0x220] sm:$0xf] %v1121
        %1206 = vst [vmem:[#allocation3 + $0x244] sm:$0xf] %v1135
        %1207 = vst [vmem:[#allocation3 + $0x268] sm:$0xf] %v1145
        %1208 = vst [vmem:[#allocation3 + $0x28c] sm:$0xf] %v1159
        %1209 = vst [vmem:[#allocation3 + $0x2b0] sm:$0xf] %v1169
        %v1210 = vld [vmem:[#allocation2] sm:$0xe]
        %v1211 = vld [vmem:[#allocation2 + $0x4] sm:$0xf]
        %v1212 = vld [vmem:[#allocation2 + $0x8] sm:$0x1]
        %v1213 = vld [vmem:[#allocation2 + $0xc] sm:$0xe]
        %v1214 = vld [vmem:[#allocation2 + $0x10] sm:$0xf]
        %v1215 = vld [vmem:[#allocation2 + $0x14] sm:$0x1]
        %v1216 = vld [vmem:[#allocation2 + $0x18] sm:$0xe]
        %v1217 = vld [vmem:[#allocation2 + $0x1c] sm:$0xf]
        %v1218 = vld [vmem:[#allocation2 + $0x20] sm:$0x1]
        %v1219 = vld [vmem:[#allocation2 + $0x24] sm:$0xe]
        %v1220 = vld [vmem:[#allocation2 + $0x28] sm:$0xf]
        %v1221 = vld [vmem:[#allocation2 + $0x2c] sm:$0x1]
        %v1222 = vld [vmem:[#allocation2 + $0x30] sm:$0xe]
        %v1223 = vld [vmem:[#allocation2 + $0x34] sm:$0xf]
        %v1224 = vld [vmem:[#allocation2 + $0x38] sm:$0x1]
        %v1225 = vld [vmem:[#allocation2 + $0x3c] sm:$0xe]
        %v1226 = vld [vmem:[#allocation2 + $0x40] sm:$0xf]
        %v1227 = vld [vmem:[#allocation2 + $0x44] sm:$0x1]
        %v1228 = vld [vmem:[#allocation2 + $0x48] sm:$0xe]
        %v1229 = vld [vmem:[#allocation2 + $0x4c] sm:$0xf]
        %v1230 = vld [vmem:[#allocation2 + $0x50] sm:$0x1]
        %v1231 = vld [vmem:[#allocation2 + $0x54] sm:$0xe]
        %v1232 = vld [vmem:[#allocation2 + $0x58] sm:$0xf]
        %v1233 = vld [vmem:[#allocation2 + $0x5c] sm:$0x1]
        %v1234 = vld [vmem:[#allocation2 + $0x60] sm:$0xe]
        %v1235 = vld [vmem:[#allocation2 + $0x64] sm:$0xf]
        %v1236 = vld [vmem:[#allocation2 + $0x68] sm:$0x1]
        %v1237 = vld [vmem:[#allocation2 + $0x6c] sm:$0xe]
        %v1238 = vld [vmem:[#allocation2 + $0x70] sm:$0xf]
        %v1239 = vld [vmem:[#allocation2 + $0x74] sm:$0x1]
        %vm1270 = vcmask 1042432
        %vm1271 = vcmask 1046532
        %vm1272 = vmor %vm1270, %vm1271
        %v1273 = vrot.slane %v1210, 5
        %v1274 = vrot.slane %v1273, 4
        %v1275 = vrot.slane %v1211, 5
        %v1276 = vsel %vm1272, %v1274, %v1275
        %v1277 = vrot.slane %v1275, 4
        %v1278 = vrot.slane %v1212, 5
        %v1279 = vsel %vm1272, %v1277, %v1278
        %v1280 = vrot.slane %v1213, 5
        %v1281 = vrot.slane %v1280, 4
        %v1282 = vrot.slane %v1214, 5
        %v1283 = vsel %vm1272, %v1281, %v1282
        %v1284 = vrot.slane %v1282, 4
        %v1285 = vrot.slane %v1215, 5
        %v1286 = vsel %vm1272, %v1284, %v1285
        %v1287 = vrot.slane %v1216, 5
        %v1288 = vrot.slane %v1287, 4
        %v1289 = vrot.slane %v1217, 5
        %v1290 = vsel %vm1272, %v1288, %v1289
        %v1291 = vrot.slane %v1289, 4
        %v1292 = vrot.slane %v1218, 5
        %v1293 = vsel %vm1272, %v1291, %v1292
        %v1294 = vrot.slane %v1219, 5
        %v1295 = vrot.slane %v1294, 4
        %v1296 = vrot.slane %v1220, 5
        %v1297 = vsel %vm1272, %v1295, %v1296
        %v1298 = vrot.slane %v1296, 4
        %v1299 = vrot.slane %v1221, 5
        %v1300 = vsel %vm1272, %v1298, %v1299
        %v1301 = vrot.slane %v1222, 5
        %v1302 = vrot.slane %v1301, 4
        %v1303 = vrot.slane %v1223, 5
        %v1304 = vsel %vm1272, %v1302, %v1303
        %v1305 = vrot.slane %v1303, 4
        %v1306 = vrot.slane %v1224, 5
        %v1307 = vsel %vm1272, %v1305, %v1306
        %v1308 = vrot.slane %v1225, 5
        %v1309 = vrot.slane %v1308, 4
        %v1310 = vrot.slane %v1226, 5
        %v1311 = vsel %vm1272, %v1309, %v1310
        %v1312 = vrot.slane %v1310, 4
        %v1313 = vrot.slane %v1227, 5
        %v1314 = vsel %vm1272, %v1312, %v1313
        %v1315 = vrot.slane %v1228, 5
        %v1316 = vrot.slane %v1315, 4
        %v1317 = vrot.slane %v1229, 5
        %v1318 = vsel %vm1272, %v1316, %v1317
        %v1319 = vrot.slane %v1317, 4
        %v1320 = vrot.slane %v1230, 5
        %v1321 = vsel %vm1272, %v1319, %v1320
        %v1322 = vrot.slane %v1231, 5
        %v1323 = vrot.slane %v1322, 4
        %v1324 = vrot.slane %v1232, 5
        %v1325 = vsel %vm1272, %v1323, %v1324
        %v1326 = vrot.slane %v1324, 4
        %v1327 = vrot.slane %v1233, 5
        %v1328 = vsel %vm1272, %v1326, %v1327
        %v1329 = vrot.slane %v1234, 5
        %v1330 = vrot.slane %v1329, 4
        %v1331 = vrot.slane %v1235, 5
        %v1332 = vsel %vm1272, %v1330, %v1331
        %v1333 = vrot.slane %v1331, 4
        %v1334 = vrot.slane %v1236, 5
        %v1335 = vsel %vm1272, %v1333, %v1334
        %v1336 = vrot.slane %v1237, 5
        %v1337 = vrot.slane %v1336, 4
        %v1338 = vrot.slane %v1238, 5
        %v1339 = vsel %vm1272, %v1337, %v1338
        %v1340 = vrot.slane %v1338, 4
        %v1341 = vrot.slane %v1239, 5
        %v1342 = vsel %vm1272, %v1340, %v1341
        %1363 = vst [vmem:[#allocation3 + $0x8] sm:$0xf] %v1276
        %1364 = vst [vmem:[#allocation3 + $0x2c] sm:$0xf] %v1279
        %1365 = vst [vmem:[#allocation3 + $0x50] sm:$0xf] %v1283
        %1366 = vst [vmem:[#allocation3 + $0x74] sm:$0xf] %v1286
        %1367 = vst [vmem:[#allocation3 + $0x98] sm:$0xf] %v1290
        %1368 = vst [vmem:[#allocation3 + $0xbc] sm:$0xf] %v1293
        %1369 = vst [vmem:[#allocation3 + $0xe0] sm:$0xf] %v1297
        %1370 = vst [vmem:[#allocation3 + $0x104] sm:$0xf] %v1300
        %1371 = vst [vmem:[#allocation3 + $0x128] sm:$0xf] %v1304
        %1372 = vst [vmem:[#allocation3 + $0x14c] sm:$0xf] %v1307
        %1373 = vst [vmem:[#allocation3 + $0x170] sm:$0xf] %v1311
        %1374 = vst [vmem:[#allocation3 + $0x194] sm:$0xf] %v1314
        %1375 = vst [vmem:[#allocation3 + $0x1b8] sm:$0xf] %v1318
        %1376 = vst [vmem:[#allocation3 + $0x1dc] sm:$0xf] %v1321
        %1377 = vst [vmem:[#allocation3 + $0x200] sm:$0xf] %v1325
        %1378 = vst [vmem:[#allocation3 + $0x224] sm:$0xf] %v1328
        %1379 = vst [vmem:[#allocation3 + $0x248] sm:$0xf] %v1332
        %1380 = vst [vmem:[#allocation3 + $0x26c] sm:$0xf] %v1335
        %1381 = vst [vmem:[#allocation3 + $0x290] sm:$0xf] %v1339
        %1382 = vst [vmem:[#allocation3 + $0x2b4] sm:$0xf] %v1342
        %s1383 = scalar_lea.vmem [#allocation2], 12
        %v1384 = vld [vmem:[%s1383] sm:$0xf]
        %v1385 = vld [vmem:[%s1383 + $0x4] sm:$0xf]
        %v1386 = vld [vmem:[%s1383 + $0xc] sm:$0xf]
        %v1387 = vld [vmem:[%s1383 + $0x10] sm:$0xf]
        %v1388 = vld [vmem:[%s1383 + $0x18] sm:$0xf]
        %v1389 = vld [vmem:[%s1383 + $0x1c] sm:$0xf]
        %v1390 = vld [vmem:[%s1383 + $0x24] sm:$0xf]
        %v1391 = vld [vmem:[%s1383 + $0x28] sm:$0xf]
        %v1392 = vld [vmem:[%s1383 + $0x30] sm:$0xf]
        %v1393 = vld [vmem:[%s1383 + $0x34] sm:$0xf]
        %v1394 = vld [vmem:[%s1383 + $0x3c] sm:$0xf]
        %v1395 = vld [vmem:[%s1383 + $0x40] sm:$0xf]
        %v1396 = vld [vmem:[%s1383 + $0x48] sm:$0xf]
        %v1397 = vld [vmem:[%s1383 + $0x4c] sm:$0xf]
        %v1398 = vld [vmem:[%s1383 + $0x54] sm:$0xf]
        %v1399 = vld [vmem:[%s1383 + $0x58] sm:$0xf]
        %v1400 = vld [vmem:[%s1383 + $0x60] sm:$0xf]
        %v1401 = vld [vmem:[%s1383 + $0x64] sm:$0xf]
        %v1402 = vld [vmem:[%s1383 + $0x6c] sm:$0xf]
        %v1403 = vld [vmem:[%s1383 + $0x70] sm:$0xf]
        %1404 = vst [vmem:[#allocation3 + $0xc] sm:$0xf] %v1384
        %1405 = vst [vmem:[#allocation3 + $0x30] sm:$0xf] %v1385
        %1406 = vst [vmem:[#allocation3 + $0x54] sm:$0xf] %v1386
        %1407 = vst [vmem:[#allocation3 + $0x78] sm:$0xf] %v1387
        %1408 = vst [vmem:[#allocation3 + $0x9c] sm:$0xf] %v1388
        %1409 = vst [vmem:[#allocation3 + $0xc0] sm:$0xf] %v1389
        %1410 = vst [vmem:[#allocation3 + $0xe4] sm:$0xf] %v1390
        %1411 = vst [vmem:[#allocation3 + $0x108] sm:$0xf] %v1391
        %1412 = vst [vmem:[#allocation3 + $0x12c] sm:$0xf] %v1392
        %1413 = vst [vmem:[#allocation3 + $0x150] sm:$0xf] %v1393
        %1414 = vst [vmem:[#allocation3 + $0x174] sm:$0xf] %v1394
        %1415 = vst [vmem:[#allocation3 + $0x198] sm:$0xf] %v1395
        %1416 = vst [vmem:[#allocation3 + $0x1bc] sm:$0xf] %v1396
        %1417 = vst [vmem:[#allocation3 + $0x1e0] sm:$0xf] %v1397
        %1418 = vst [vmem:[#allocation3 + $0x204] sm:$0xf] %v1398
        %1419 = vst [vmem:[#allocation3 + $0x228] sm:$0xf] %v1399
        %1420 = vst [vmem:[#allocation3 + $0x24c] sm:$0xf] %v1400
        %1421 = vst [vmem:[#allocation3 + $0x270] sm:$0xf] %v1401
        %1422 = vst [vmem:[#allocation3 + $0x294] sm:$0xf] %v1402
        %1423 = vst [vmem:[#allocation3 + $0x2b8] sm:$0xf] %v1403
        %v1424 = vld [vmem:[%s1383] sm:$0xf]
        %v1425 = vld [vmem:[%s1383 + $0x4] sm:$0xf]
        %v1426 = vld [vmem:[%s1383 + $0x8] sm:$0x1]
        %v1427 = vld [vmem:[%s1383 + $0xc] sm:$0xf]
        %v1428 = vld [vmem:[%s1383 + $0x10] sm:$0xf]
        %v1429 = vld [vmem:[%s1383 + $0x14] sm:$0x1]
        %v1430 = vld [vmem:[%s1383 + $0x18] sm:$0xf]
        %v1431 = vld [vmem:[%s1383 + $0x1c] sm:$0xf]
        %v1432 = vld [vmem:[%s1383 + $0x20] sm:$0x1]
        %v1433 = vld [vmem:[%s1383 + $0x24] sm:$0xf]
        %v1434 = vld [vmem:[%s1383 + $0x28] sm:$0xf]
        %v1435 = vld [vmem:[%s1383 + $0x2c] sm:$0x1]
        %v1436 = vld [vmem:[%s1383 + $0x30] sm:$0xf]
        %v1437 = vld [vmem:[%s1383 + $0x34] sm:$0xf]
        %v1438 = vld [vmem:[%s1383 + $0x38] sm:$0x1]
        %v1439 = vld [vmem:[%s1383 + $0x3c] sm:$0xf]
        %v1440 = vld [vmem:[%s1383 + $0x40] sm:$0xf]
        %v1441 = vld [vmem:[%s1383 + $0x44] sm:$0x1]
        %v1442 = vld [vmem:[%s1383 + $0x48] sm:$0xf]
        %v1443 = vld [vmem:[%s1383 + $0x4c] sm:$0xf]
        %v1444 = vld [vmem:[%s1383 + $0x50] sm:$0x1]
        %v1445 = vld [vmem:[%s1383 + $0x54] sm:$0xf]
        %v1446 = vld [vmem:[%s1383 + $0x58] sm:$0xf]
        %v1447 = vld [vmem:[%s1383 + $0x5c] sm:$0x1]
        %v1448 = vld [vmem:[%s1383 + $0x60] sm:$0xf]
        %v1449 = vld [vmem:[%s1383 + $0x64] sm:$0xf]
        %v1450 = vld [vmem:[%s1383 + $0x68] sm:$0x1]
        %v1451 = vld [vmem:[%s1383 + $0x6c] sm:$0xf]
        %v1452 = vld [vmem:[%s1383 + $0x70] sm:$0xf]
        %v1453 = vld [vmem:[%s1383 + $0x74] sm:$0x1]
        %v1455 = vshrl.u32 %v1424, 16
        %v1457 = vrot.slane %v1455, 4
        %v1458 = vshll.u32 %v1424, 16
        %v1460 = vrot.slane %v1458, 5
        %v1461 = vor.u32 %v1457, %v1460
        %v1462 = vrot.slane %v1461, 4
        %v1464 = vshll.u32 %v1425, 16
        %v1466 = vrot.slane %v1464, 5
        %v1467 = vsel %vm929, %v1462, %v1466
        %v1468 = vshrl.u32 %v1425, 16
        %v1470 = vrot.slane %v1468, 4
        %v1471 = vor.u32 %v1470, %v1466
        %v1472 = vrot.slane %v1471, 4
        %v1474 = vshll.u32 %v1426, 16
        %v1476 = vrot.slane %v1474, 5
        %v1477 = vsel %vm929, %v1472, %v1476
        %v1479 = vshrl.u32 %v1427, 16
        %v1481 = vrot.slane %v1479, 4
        %v1482 = vshll.u32 %v1427, 16
        %v1484 = vrot.slane %v1482, 5
        %v1485 = vor.u32 %v1481, %v1484
        %v1486 = vrot.slane %v1485, 4
        %v1488 = vshll.u32 %v1428, 16
        %v1490 = vrot.slane %v1488, 5
        %v1491 = vsel %vm929, %v1486, %v1490
        %v1492 = vshrl.u32 %v1428, 16
        %v1494 = vrot.slane %v1492, 4
        %v1495 = vor.u32 %v1494, %v1490
        %v1496 = vrot.slane %v1495, 4
        %v1498 = vshll.u32 %v1429, 16
        %v1500 = vrot.slane %v1498, 5
        %v1501 = vsel %vm929, %v1496, %v1500
        %v1503 = vshrl.u32 %v1430, 16
        %v1505 = vrot.slane %v1503, 4
        %v1506 = vshll.u32 %v1430, 16
        %v1508 = vrot.slane %v1506, 5
        %v1509 = vor.u32 %v1505, %v1508
        %v1510 = vrot.slane %v1509, 4
        %v1512 = vshll.u32 %v1431, 16
        %v1514 = vrot.slane %v1512, 5
        %v1515 = vsel %vm929, %v1510, %v1514
        %v1516 = vshrl.u32 %v1431, 16
        %v1518 = vrot.slane %v1516, 4
        %v1519 = vor.u32 %v1518, %v1514
        %v1520 = vrot.slane %v1519, 4
        %v1522 = vshll.u32 %v1432, 16
        %v1524 = vrot.slane %v1522, 5
        %v1525 = vsel %vm929, %v1520, %v1524
        %v1527 = vshrl.u32 %v1433, 16
        %v1529 = vrot.slane %v1527, 4
        %v1530 = vshll.u32 %v1433, 16
        %v1532 = vrot.slane %v1530, 5
        %v1533 = vor.u32 %v1529, %v1532
        %v1534 = vrot.slane %v1533, 4
        %v1536 = vshll.u32 %v1434, 16
        %v1538 = vrot.slane %v1536, 5
        %v1539 = vsel %vm929, %v1534, %v1538
        %v1540 = vshrl.u32 %v1434, 16
        %v1542 = vrot.slane %v1540, 4
        %v1543 = vor.u32 %v1542, %v1538
        %v1544 = vrot.slane %v1543, 4
        %v1546 = vshll.u32 %v1435, 16
        %v1548 = vrot.slane %v1546, 5
        %v1549 = vsel %vm929, %v1544, %v1548
        %v1551 = vshrl.u32 %v1436, 16
        %v1553 = vrot.slane %v1551, 4
        %v1554 = vshll.u32 %v1436, 16
        %v1556 = vrot.slane %v1554, 5
        %v1557 = vor.u32 %v1553, %v1556
        %v1558 = vrot.slane %v1557, 4
        %v1560 = vshll.u32 %v1437, 16
        %v1562 = vrot.slane %v1560, 5
        %v1563 = vsel %vm929, %v1558, %v1562
        %v1564 = vshrl.u32 %v1437, 16
        %v1566 = vrot.slane %v1564, 4
        %v1567 = vor.u32 %v1566, %v1562
        %v1568 = vrot.slane %v1567, 4
        %v1570 = vshll.u32 %v1438, 16
        %v1572 = vrot.slane %v1570, 5
        %v1573 = vsel %vm929, %v1568, %v1572
        %v1575 = vshrl.u32 %v1439, 16
        %v1577 = vrot.slane %v1575, 4
        %v1578 = vshll.u32 %v1439, 16
        %v1580 = vrot.slane %v1578, 5
        %v1581 = vor.u32 %v1577, %v1580
        %v1582 = vrot.slane %v1581, 4
        %v1584 = vshll.u32 %v1440, 16
        %v1586 = vrot.slane %v1584, 5
        %v1587 = vsel %vm929, %v1582, %v1586
        %v1588 = vshrl.u32 %v1440, 16
        %v1590 = vrot.slane %v1588, 4
        %v1591 = vor.u32 %v1590, %v1586
        %v1592 = vrot.slane %v1591, 4
        %v1594 = vshll.u32 %v1441, 16
        %v1596 = vrot.slane %v1594, 5
        %v1597 = vsel %vm929, %v1592, %v1596
        %v1599 = vshrl.u32 %v1442, 16
        %v1601 = vrot.slane %v1599, 4
        %v1602 = vshll.u32 %v1442, 16
        %v1604 = vrot.slane %v1602, 5
        %v1605 = vor.u32 %v1601, %v1604
        %v1606 = vrot.slane %v1605, 4
        %v1608 = vshll.u32 %v1443, 16
        %v1610 = vrot.slane %v1608, 5
        %v1611 = vsel %vm929, %v1606, %v1610
        %v1612 = vshrl.u32 %v1443, 16
        %v1614 = vrot.slane %v1612, 4
        %v1615 = vor.u32 %v1614, %v1610
        %v1616 = vrot.slane %v1615, 4
        %v1618 = vshll.u32 %v1444, 16
        %v1620 = vrot.slane %v1618, 5
        %v1621 = vsel %vm929, %v1616, %v1620
        %v1623 = vshrl.u32 %v1445, 16
        %v1625 = vrot.slane %v1623, 4
        %v1626 = vshll.u32 %v1445, 16
        %v1628 = vrot.slane %v1626, 5
        %v1629 = vor.u32 %v1625, %v1628
        %v1630 = vrot.slane %v1629, 4
        %v1632 = vshll.u32 %v1446, 16
        %v1634 = vrot.slane %v1632, 5
        %v1635 = vsel %vm929, %v1630, %v1634
        %v1636 = vshrl.u32 %v1446, 16
        %v1638 = vrot.slane %v1636, 4
        %v1639 = vor.u32 %v1638, %v1634
        %v1640 = vrot.slane %v1639, 4
        %v1642 = vshll.u32 %v1447, 16
        %v1644 = vrot.slane %v1642, 5
        %v1645 = vsel %vm929, %v1640, %v1644
        %v1647 = vshrl.u32 %v1448, 16
        %v1649 = vrot.slane %v1647, 4
        %v1650 = vshll.u32 %v1448, 16
        %v1652 = vrot.slane %v1650, 5
        %v1653 = vor.u32 %v1649, %v1652
        %v1654 = vrot.slane %v1653, 4
        %v1656 = vshll.u32 %v1449, 16
        %v1658 = vrot.slane %v1656, 5
        %v1659 = vsel %vm929, %v1654, %v1658
        %v1660 = vshrl.u32 %v1449, 16
        %v1662 = vrot.slane %v1660, 4
        %v1663 = vor.u32 %v1662, %v1658
        %v1664 = vrot.slane %v1663, 4
        %v1666 = vshll.u32 %v1450, 16
        %v1668 = vrot.slane %v1666, 5
        %v1669 = vsel %vm929, %v1664, %v1668
        %v1671 = vshrl.u32 %v1451, 16
        %v1673 = vrot.slane %v1671, 4
        %v1674 = vshll.u32 %v1451, 16
        %v1676 = vrot.slane %v1674, 5
        %v1677 = vor.u32 %v1673, %v1676
        %v1678 = vrot.slane %v1677, 4
        %v1680 = vshll.u32 %v1452, 16
        %v1682 = vrot.slane %v1680, 5
        %v1683 = vsel %vm929, %v1678, %v1682
        %v1684 = vshrl.u32 %v1452, 16
        %v1686 = vrot.slane %v1684, 4
        %v1687 = vor.u32 %v1686, %v1682
        %v1688 = vrot.slane %v1687, 4
        %v1690 = vshll.u32 %v1453, 16
        %v1692 = vrot.slane %v1690, 5
        %v1693 = vsel %vm929, %v1688, %v1692
        %1714 = vst [vmem:[#allocation3 + $0x10] sm:$0xf] %v1467
        %1715 = vst [vmem:[#allocation3 + $0x34] sm:$0xf] %v1477
        %1716 = vst [vmem:[#allocation3 + $0x58] sm:$0xf] %v1491
        %1717 = vst [vmem:[#allocation3 + $0x7c] sm:$0xf] %v1501
        %1718 = vst [vmem:[#allocation3 + $0xa0] sm:$0xf] %v1515
        %1719 = vst [vmem:[#allocation3 + $0xc4] sm:$0xf] %v1525
        %1720 = vst [vmem:[#allocation3 + $0xe8] sm:$0xf] %v1539
        %1721 = vst [vmem:[#allocation3 + $0x10c] sm:$0xf] %v1549
        %1722 = vst [vmem:[#allocation3 + $0x130] sm:$0xf] %v1563
        %1723 = vst [vmem:[#allocation3 + $0x154] sm:$0xf] %v1573
        %1724 = vst [vmem:[#allocation3 + $0x178] sm:$0xf] %v1587
        %1725 = vst [vmem:[#allocation3 + $0x19c] sm:$0xf] %v1597
        %1726 = vst [vmem:[#allocation3 + $0x1c0] sm:$0xf] %v1611
        %1727 = vst [vmem:[#allocation3 + $0x1e4] sm:$0xf] %v1621
        %1728 = vst [vmem:[#allocation3 + $0x208] sm:$0xf] %v1635
        %1729 = vst [vmem:[#allocation3 + $0x22c] sm:$0xf] %v1645
        %1730 = vst [vmem:[#allocation3 + $0x250] sm:$0xf] %v1659
        %1731 = vst [vmem:[#allocation3 + $0x274] sm:$0xf] %v1669
        %1732 = vst [vmem:[#allocation3 + $0x298] sm:$0xf] %v1683
        %1733 = vst [vmem:[#allocation3 + $0x2bc] sm:$0xf] %v1693
        %v1734 = vld [vmem:[%s1383] sm:$0xe]
        %v1735 = vld [vmem:[%s1383 + $0x4] sm:$0xf]
        %v1736 = vld [vmem:[%s1383 + $0x8] sm:$0x1]
        %v1737 = vld [vmem:[%s1383 + $0xc] sm:$0xe]
        %v1738 = vld [vmem:[%s1383 + $0x10] sm:$0xf]
        %v1739 = vld [vmem:[%s1383 + $0x14] sm:$0x1]
        %v1740 = vld [vmem:[%s1383 + $0x18] sm:$0xe]
        %v1741 = vld [vmem:[%s1383 + $0x1c] sm:$0xf]
        %v1742 = vld [vmem:[%s1383 + $0x20] sm:$0x1]
        %v1743 = vld [vmem:[%s1383 + $0x24] sm:$0xe]
        %v1744 = vld [vmem:[%s1383 + $0x28] sm:$0xf]
        %v1745 = vld [vmem:[%s1383 + $0x2c] sm:$0x1]
        %v1746 = vld [vmem:[%s1383 + $0x30] sm:$0xe]
        %v1747 = vld [vmem:[%s1383 + $0x34] sm:$0xf]
        %v1748 = vld [vmem:[%s1383 + $0x38] sm:$0x1]
        %v1749 = vld [vmem:[%s1383 + $0x3c] sm:$0xe]
        %v1750 = vld [vmem:[%s1383 + $0x40] sm:$0xf]
        %v1751 = vld [vmem:[%s1383 + $0x44] sm:$0x1]
        %v1752 = vld [vmem:[%s1383 + $0x48] sm:$0xe]
        %v1753 = vld [vmem:[%s1383 + $0x4c] sm:$0xf]
        %v1754 = vld [vmem:[%s1383 + $0x50] sm:$0x1]
        %v1755 = vld [vmem:[%s1383 + $0x54] sm:$0xe]
        %v1756 = vld [vmem:[%s1383 + $0x58] sm:$0xf]
        %v1757 = vld [vmem:[%s1383 + $0x5c] sm:$0x1]
        %v1758 = vld [vmem:[%s1383 + $0x60] sm:$0xe]
        %v1759 = vld [vmem:[%s1383 + $0x64] sm:$0xf]
        %v1760 = vld [vmem:[%s1383 + $0x68] sm:$0x1]
        %v1761 = vld [vmem:[%s1383 + $0x6c] sm:$0xe]
        %v1762 = vld [vmem:[%s1383 + $0x70] sm:$0xf]
        %v1763 = vld [vmem:[%s1383 + $0x74] sm:$0x1]
        %v1794 = vrot.slane %v1734, 5
        %v1795 = vrot.slane %v1794, 4
        %v1796 = vrot.slane %v1735, 5
        %v1797 = vsel %vm1272, %v1795, %v1796
        %v1798 = vrot.slane %v1796, 4
        %v1799 = vrot.slane %v1736, 5
        %v1800 = vsel %vm1272, %v1798, %v1799
        %v1801 = vrot.slane %v1737, 5
        %v1802 = vrot.slane %v1801, 4
        %v1803 = vrot.slane %v1738, 5
        %v1804 = vsel %vm1272, %v1802, %v1803
        %v1805 = vrot.slane %v1803, 4
        %v1806 = vrot.slane %v1739, 5
        %v1807 = vsel %vm1272, %v1805, %v1806
        %v1808 = vrot.slane %v1740, 5
        %v1809 = vrot.slane %v1808, 4
        %v1810 = vrot.slane %v1741, 5
        %v1811 = vsel %vm1272, %v1809, %v1810
        %v1812 = vrot.slane %v1810, 4
        %v1813 = vrot.slane %v1742, 5
        %v1814 = vsel %vm1272, %v1812, %v1813
        %v1815 = vrot.slane %v1743, 5
        %v1816 = vrot.slane %v1815, 4
        %v1817 = vrot.slane %v1744, 5
        %v1818 = vsel %vm1272, %v1816, %v1817
        %v1819 = vrot.slane %v1817, 4
        %v1820 = vrot.slane %v1745, 5
        %v1821 = vsel %vm1272, %v1819, %v1820
        %v1822 = vrot.slane %v1746, 5
        %v1823 = vrot.slane %v1822, 4
        %v1824 = vrot.slane %v1747, 5
        %v1825 = vsel %vm1272, %v1823, %v1824
        %v1826 = vrot.slane %v1824, 4
        %v1827 = vrot.slane %v1748, 5
        %v1828 = vsel %vm1272, %v1826, %v1827
        %v1829 = vrot.slane %v1749, 5
        %v1830 = vrot.slane %v1829, 4
        %v1831 = vrot.slane %v1750, 5
        %v1832 = vsel %vm1272, %v1830, %v1831
        %v1833 = vrot.slane %v1831, 4
        %v1834 = vrot.slane %v1751, 5
        %v1835 = vsel %vm1272, %v1833, %v1834
        %v1836 = vrot.slane %v1752, 5
        %v1837 = vrot.slane %v1836, 4
        %v1838 = vrot.slane %v1753, 5
        %v1839 = vsel %vm1272, %v1837, %v1838
        %v1840 = vrot.slane %v1838, 4
        %v1841 = vrot.slane %v1754, 5
        %v1842 = vsel %vm1272, %v1840, %v1841
        %v1843 = vrot.slane %v1755, 5
        %v1844 = vrot.slane %v1843, 4
        %v1845 = vrot.slane %v1756, 5
        %v1846 = vsel %vm1272, %v1844, %v1845
        %v1847 = vrot.slane %v1845, 4
        %v1848 = vrot.slane %v1757, 5
        %v1849 = vsel %vm1272, %v1847, %v1848
        %v1850 = vrot.slane %v1758, 5
        %v1851 = vrot.slane %v1850, 4
        %v1852 = vrot.slane %v1759, 5
        %v1853 = vsel %vm1272, %v1851, %v1852
        %v1854 = vrot.slane %v1852, 4
        %v1855 = vrot.slane %v1760, 5
        %v1856 = vsel %vm1272, %v1854, %v1855
        %v1857 = vrot.slane %v1761, 5
        %v1858 = vrot.slane %v1857, 4
        %v1859 = vrot.slane %v1762, 5
        %v1860 = vsel %vm1272, %v1858, %v1859
        %v1861 = vrot.slane %v1859, 4
        %v1862 = vrot.slane %v1763, 5
        %v1863 = vsel %vm1272, %v1861, %v1862
        %1884 = vst [vmem:[#allocation3 + $0x14] sm:$0xf] %v1797
        %1885 = vst [vmem:[#allocation3 + $0x38] sm:$0xf] %v1800
        %1886 = vst [vmem:[#allocation3 + $0x5c] sm:$0xf] %v1804
        %1887 = vst [vmem:[#allocation3 + $0x80] sm:$0xf] %v1807
        %1888 = vst [vmem:[#allocation3 + $0xa4] sm:$0xf] %v1811
        %1889 = vst [vmem:[#allocation3 + $0xc8] sm:$0xf] %v1814
        %1890 = vst [vmem:[#allocation3 + $0xec] sm:$0xf] %v1818
        %1891 = vst [vmem:[#allocation3 + $0x110] sm:$0xf] %v1821
        %1892 = vst [vmem:[#allocation3 + $0x134] sm:$0xf] %v1825
        %1893 = vst [vmem:[#allocation3 + $0x158] sm:$0xf] %v1828
        %1894 = vst [vmem:[#allocation3 + $0x17c] sm:$0xf] %v1832
        %1895 = vst [vmem:[#allocation3 + $0x1a0] sm:$0xf] %v1835
        %1896 = vst [vmem:[#allocation3 + $0x1c4] sm:$0xf] %v1839
        %1897 = vst [vmem:[#allocation3 + $0x1e8] sm:$0xf] %v1842
        %1898 = vst [vmem:[#allocation3 + $0x20c] sm:$0xf] %v1846
        %1899 = vst [vmem:[#allocation3 + $0x230] sm:$0xf] %v1849
        %1900 = vst [vmem:[#allocation3 + $0x254] sm:$0xf] %v1853
        %1901 = vst [vmem:[#allocation3 + $0x278] sm:$0xf] %v1856
        %1902 = vst [vmem:[#allocation3 + $0x29c] sm:$0xf] %v1860
        %1903 = vst [vmem:[#allocation3 + $0x2c0] sm:$0xf] %v1863
        %v1904 = vld [vmem:[%s622] sm:$0xf]
        %v1905 = vld [vmem:[%s622 + $0x4] sm:$0xf]
        %v1906 = vld [vmem:[%s622 + $0xc] sm:$0xf]
        %v1907 = vld [vmem:[%s622 + $0x10] sm:$0xf]
        %v1908 = vld [vmem:[%s622 + $0x18] sm:$0xf]
        %v1909 = vld [vmem:[%s622 + $0x1c] sm:$0xf]
        %v1910 = vld [vmem:[%s622 + $0x24] sm:$0xf]
        %v1911 = vld [vmem:[%s622 + $0x28] sm:$0xf]
        %v1912 = vld [vmem:[%s622 + $0x30] sm:$0xf]
        %v1913 = vld [vmem:[%s622 + $0x34] sm:$0xf]
        %v1914 = vld [vmem:[%s622 + $0x3c] sm:$0xf]
        %v1915 = vld [vmem:[%s622 + $0x40] sm:$0xf]
        %v1916 = vld [vmem:[%s622 + $0x48] sm:$0xf]
        %v1917 = vld [vmem:[%s622 + $0x4c] sm:$0xf]
        %v1918 = vld [vmem:[%s622 + $0x54] sm:$0xf]
        %v1919 = vld [vmem:[%s622 + $0x58] sm:$0xf]
        %v1920 = vld [vmem:[%s622 + $0x60] sm:$0xf]
        %v1921 = vld [vmem:[%s622 + $0x64] sm:$0xf]
        %v1922 = vld [vmem:[%s622 + $0x6c] sm:$0xf]
        %v1923 = vld [vmem:[%s622 + $0x70] sm:$0xf]
        %1924 = vst [vmem:[#allocation3 + $0x18] sm:$0xf] %v1904
        %1925 = vst [vmem:[#allocation3 + $0x3c] sm:$0xf] %v1905
        %1926 = vst [vmem:[#allocation3 + $0x60] sm:$0xf] %v1906
        %1927 = vst [vmem:[#allocation3 + $0x84] sm:$0xf] %v1907
        %1928 = vst [vmem:[#allocation3 + $0xa8] sm:$0xf] %v1908
        %1929 = vst [vmem:[#allocation3 + $0xcc] sm:$0xf] %v1909
        %1930 = vst [vmem:[#allocation3 + $0xf0] sm:$0xf] %v1910
        %1931 = vst [vmem:[#allocation3 + $0x114] sm:$0xf] %v1911
        %1932 = vst [vmem:[#allocation3 + $0x138] sm:$0xf] %v1912
        %1933 = vst [vmem:[#allocation3 + $0x15c] sm:$0xf] %v1913
        %1934 = vst [vmem:[#allocation3 + $0x180] sm:$0xf] %v1914
        %1935 = vst [vmem:[#allocation3 + $0x1a4] sm:$0xf] %v1915
        %1936 = vst [vmem:[#allocation3 + $0x1c8] sm:$0xf] %v1916
        %1937 = vst [vmem:[#allocation3 + $0x1ec] sm:$0xf] %v1917
        %1938 = vst [vmem:[#allocation3 + $0x210] sm:$0xf] %v1918
        %1939 = vst [vmem:[#allocation3 + $0x234] sm:$0xf] %v1919
        %1940 = vst [vmem:[#allocation3 + $0x258] sm:$0xf] %v1920
        %1941 = vst [vmem:[#allocation3 + $0x27c] sm:$0xf] %v1921
        %1942 = vst [vmem:[#allocation3 + $0x2a0] sm:$0xf] %v1922
        %1943 = vst [vmem:[#allocation3 + $0x2c4] sm:$0xf] %v1923
        %v1944 = vld [vmem:[%s622] sm:$0xf]
        %v1945 = vld [vmem:[%s622 + $0x4] sm:$0xf]
        %v1946 = vld [vmem:[%s622 + $0x8] sm:$0x1]
        %v1947 = vld [vmem:[%s622 + $0xc] sm:$0xf]
        %v1948 = vld [vmem:[%s622 + $0x10] sm:$0xf]
        %v1949 = vld [vmem:[%s622 + $0x14] sm:$0x1]
        %v1950 = vld [vmem:[%s622 + $0x18] sm:$0xf]
        %v1951 = vld [vmem:[%s622 + $0x1c] sm:$0xf]
        %v1952 = vld [vmem:[%s622 + $0x20] sm:$0x1]
        %v1953 = vld [vmem:[%s622 + $0x24] sm:$0xf]
        %v1954 = vld [vmem:[%s622 + $0x28] sm:$0xf]
        %v1955 = vld [vmem:[%s622 + $0x2c] sm:$0x1]
        %v1956 = vld [vmem:[%s622 + $0x30] sm:$0xf]
        %v1957 = vld [vmem:[%s622 + $0x34] sm:$0xf]
        %v1958 = vld [vmem:[%s622 + $0x38] sm:$0x1]
        %v1959 = vld [vmem:[%s622 + $0x3c] sm:$0xf]
        %v1960 = vld [vmem:[%s622 + $0x40] sm:$0xf]
        %v1961 = vld [vmem:[%s622 + $0x44] sm:$0x1]
        %v1962 = vld [vmem:[%s622 + $0x48] sm:$0xf]
        %v1963 = vld [vmem:[%s622 + $0x4c] sm:$0xf]
        %v1964 = vld [vmem:[%s622 + $0x50] sm:$0x1]
        %v1965 = vld [vmem:[%s622 + $0x54] sm:$0xf]
        %v1966 = vld [vmem:[%s622 + $0x58] sm:$0xf]
        %v1967 = vld [vmem:[%s622 + $0x5c] sm:$0x1]
        %v1968 = vld [vmem:[%s622 + $0x60] sm:$0xf]
        %v1969 = vld [vmem:[%s622 + $0x64] sm:$0xf]
        %v1970 = vld [vmem:[%s622 + $0x68] sm:$0x1]
        %v1971 = vld [vmem:[%s622 + $0x6c] sm:$0xf]
        %v1972 = vld [vmem:[%s622 + $0x70] sm:$0xf]
        %v1973 = vld [vmem:[%s622 + $0x74] sm:$0x1]
        %v1975 = vshrl.u32 %v1944, 16
        %v1977 = vrot.slane %v1975, 4
        %v1978 = vshll.u32 %v1944, 16
        %v1980 = vrot.slane %v1978, 5
        %v1981 = vor.u32 %v1977, %v1980
        %v1982 = vrot.slane %v1981, 4
        %v1984 = vshll.u32 %v1945, 16
        %v1986 = vrot.slane %v1984, 5
        %v1987 = vsel %vm929, %v1982, %v1986
        %v1988 = vshrl.u32 %v1945, 16
        %v1990 = vrot.slane %v1988, 4
        %v1991 = vor.u32 %v1990, %v1986
        %v1992 = vrot.slane %v1991, 4
        %v1994 = vshll.u32 %v1946, 16
        %v1996 = vrot.slane %v1994, 5
        %v1997 = vsel %vm929, %v1992, %v1996
        %v1999 = vshrl.u32 %v1947, 16
        %v2001 = vrot.slane %v1999, 4
        %v2002 = vshll.u32 %v1947, 16
        %v2004 = vrot.slane %v2002, 5
        %v2005 = vor.u32 %v2001, %v2004
        %v2006 = vrot.slane %v2005, 4
        %v2008 = vshll.u32 %v1948, 16
        %v2010 = vrot.slane %v2008, 5
        %v2011 = vsel %vm929, %v2006, %v2010
        %v2012 = vshrl.u32 %v1948, 16
        %v2014 = vrot.slane %v2012, 4
        %v2015 = vor.u32 %v2014, %v2010
        %v2016 = vrot.slane %v2015, 4
        %v2018 = vshll.u32 %v1949, 16
        %v2020 = vrot.slane %v2018, 5
        %v2021 = vsel %vm929, %v2016, %v2020
        %v2023 = vshrl.u32 %v1950, 16
        %v2025 = vrot.slane %v2023, 4
        %v2026 = vshll.u32 %v1950, 16
        %v2028 = vrot.slane %v2026, 5
        %v2029 = vor.u32 %v2025, %v2028
        %v2030 = vrot.slane %v2029, 4
        %v2032 = vshll.u32 %v1951, 16
        %v2034 = vrot.slane %v2032, 5
        %v2035 = vsel %vm929, %v2030, %v2034
        %v2036 = vshrl.u32 %v1951, 16
        %v2038 = vrot.slane %v2036, 4
        %v2039 = vor.u32 %v2038, %v2034
        %v2040 = vrot.slane %v2039, 4
        %v2042 = vshll.u32 %v1952, 16
        %v2044 = vrot.slane %v2042, 5
        %v2045 = vsel %vm929, %v2040, %v2044
        %v2047 = vshrl.u32 %v1953, 16
        %v2049 = vrot.slane %v2047, 4
        %v2050 = vshll.u32 %v1953, 16
        %v2052 = vrot.slane %v2050, 5
        %v2053 = vor.u32 %v2049, %v2052
        %v2054 = vrot.slane %v2053, 4
        %v2056 = vshll.u32 %v1954, 16
        %v2058 = vrot.slane %v2056, 5
        %v2059 = vsel %vm929, %v2054, %v2058
        %v2060 = vshrl.u32 %v1954, 16
        %v2062 = vrot.slane %v2060, 4
        %v2063 = vor.u32 %v2062, %v2058
        %v2064 = vrot.slane %v2063, 4
        %v2066 = vshll.u32 %v1955, 16
        %v2068 = vrot.slane %v2066, 5
        %v2069 = vsel %vm929, %v2064, %v2068
        %v2071 = vshrl.u32 %v1956, 16
        %v2073 = vrot.slane %v2071, 4
        %v2074 = vshll.u32 %v1956, 16
        %v2076 = vrot.slane %v2074, 5
        %v2077 = vor.u32 %v2073, %v2076
        %v2078 = vrot.slane %v2077, 4
        %v2080 = vshll.u32 %v1957, 16
        %v2082 = vrot.slane %v2080, 5
        %v2083 = vsel %vm929, %v2078, %v2082
        %v2084 = vshrl.u32 %v1957, 16
        %v2086 = vrot.slane %v2084, 4
        %v2087 = vor.u32 %v2086, %v2082
        %v2088 = vrot.slane %v2087, 4
        %v2090 = vshll.u32 %v1958, 16
        %v2092 = vrot.slane %v2090, 5
        %v2093 = vsel %vm929, %v2088, %v2092
        %v2095 = vshrl.u32 %v1959, 16
        %v2097 = vrot.slane %v2095, 4
        %v2098 = vshll.u32 %v1959, 16
        %v2100 = vrot.slane %v2098, 5
        %v2101 = vor.u32 %v2097, %v2100
        %v2102 = vrot.slane %v2101, 4
        %v2104 = vshll.u32 %v1960, 16
        %v2106 = vrot.slane %v2104, 5
        %v2107 = vsel %vm929, %v2102, %v2106
        %v2108 = vshrl.u32 %v1960, 16
        %v2110 = vrot.slane %v2108, 4
        %v2111 = vor.u32 %v2110, %v2106
        %v2112 = vrot.slane %v2111, 4
        %v2114 = vshll.u32 %v1961, 16
        %v2116 = vrot.slane %v2114, 5
        %v2117 = vsel %vm929, %v2112, %v2116
        %v2119 = vshrl.u32 %v1962, 16
        %v2121 = vrot.slane %v2119, 4
        %v2122 = vshll.u32 %v1962, 16
        %v2124 = vrot.slane %v2122, 5
        %v2125 = vor.u32 %v2121, %v2124
        %v2126 = vrot.slane %v2125, 4
        %v2128 = vshll.u32 %v1963, 16
        %v2130 = vrot.slane %v2128, 5
        %v2131 = vsel %vm929, %v2126, %v2130
        %v2132 = vshrl.u32 %v1963, 16
        %v2134 = vrot.slane %v2132, 4
        %v2135 = vor.u32 %v2134, %v2130
        %v2136 = vrot.slane %v2135, 4
        %v2138 = vshll.u32 %v1964, 16
        %v2140 = vrot.slane %v2138, 5
        %v2141 = vsel %vm929, %v2136, %v2140
        %v2143 = vshrl.u32 %v1965, 16
        %v2145 = vrot.slane %v2143, 4
        %v2146 = vshll.u32 %v1965, 16
        %v2148 = vrot.slane %v2146, 5
        %v2149 = vor.u32 %v2145, %v2148
        %v2150 = vrot.slane %v2149, 4
        %v2152 = vshll.u32 %v1966, 16
        %v2154 = vrot.slane %v2152, 5
        %v2155 = vsel %vm929, %v2150, %v2154
        %v2156 = vshrl.u32 %v1966, 16
        %v2158 = vrot.slane %v2156, 4
        %v2159 = vor.u32 %v2158, %v2154
        %v2160 = vrot.slane %v2159, 4
        %v2162 = vshll.u32 %v1967, 16
        %v2164 = vrot.slane %v2162, 5
        %v2165 = vsel %vm929, %v2160, %v2164
        %v2167 = vshrl.u32 %v1968, 16
        %v2169 = vrot.slane %v2167, 4
        %v2170 = vshll.u32 %v1968, 16
        %v2172 = vrot.slane %v2170, 5
        %v2173 = vor.u32 %v2169, %v2172
        %v2174 = vrot.slane %v2173, 4
        %v2176 = vshll.u32 %v1969, 16
        %v2178 = vrot.slane %v2176, 5
        %v2179 = vsel %vm929, %v2174, %v2178
        %v2180 = vshrl.u32 %v1969, 16
        %v2182 = vrot.slane %v2180, 4
        %v2183 = vor.u32 %v2182, %v2178
        %v2184 = vrot.slane %v2183, 4
        %v2186 = vshll.u32 %v1970, 16
        %v2188 = vrot.slane %v2186, 5
        %v2189 = vsel %vm929, %v2184, %v2188
        %v2191 = vshrl.u32 %v1971, 16
        %v2193 = vrot.slane %v2191, 4
        %v2194 = vshll.u32 %v1971, 16
        %v2196 = vrot.slane %v2194, 5
        %v2197 = vor.u32 %v2193, %v2196
        %v2198 = vrot.slane %v2197, 4
        %v2200 = vshll.u32 %v1972, 16
        %v2202 = vrot.slane %v2200, 5
        %v2203 = vsel %vm929, %v2198, %v2202
        %v2204 = vshrl.u32 %v1972, 16
        %v2206 = vrot.slane %v2204, 4
        %v2207 = vor.u32 %v2206, %v2202
        %v2208 = vrot.slane %v2207, 4
        %v2210 = vshll.u32 %v1973, 16
        %v2212 = vrot.slane %v2210, 5
        %v2213 = vsel %vm929, %v2208, %v2212
        %2234 = vst [vmem:[#allocation3 + $0x1c] sm:$0xf] %v1987
        %2235 = vst [vmem:[#allocation3 + $0x40] sm:$0xf] %v1997
        %2236 = vst [vmem:[#allocation3 + $0x64] sm:$0xf] %v2011
        %2237 = vst [vmem:[#allocation3 + $0x88] sm:$0xf] %v2021
        %2238 = vst [vmem:[#allocation3 + $0xac] sm:$0xf] %v2035
        %2239 = vst [vmem:[#allocation3 + $0xd0] sm:$0xf] %v2045
        %2240 = vst [vmem:[#allocation3 + $0xf4] sm:$0xf] %v2059
        %2241 = vst [vmem:[#allocation3 + $0x118] sm:$0xf] %v2069
        %2242 = vst [vmem:[#allocation3 + $0x13c] sm:$0xf] %v2083
        %2243 = vst [vmem:[#allocation3 + $0x160] sm:$0xf] %v2093
        %2244 = vst [vmem:[#allocation3 + $0x184] sm:$0xf] %v2107
        %2245 = vst [vmem:[#allocation3 + $0x1a8] sm:$0xf] %v2117
        %2246 = vst [vmem:[#allocation3 + $0x1cc] sm:$0xf] %v2131
        %2247 = vst [vmem:[#allocation3 + $0x1f0] sm:$0xf] %v2141
        %2248 = vst [vmem:[#allocation3 + $0x214] sm:$0xf] %v2155
        %2249 = vst [vmem:[#allocation3 + $0x238] sm:$0xf] %v2165
        %2250 = vst [vmem:[#allocation3 + $0x25c] sm:$0xf] %v2179
        %2251 = vst [vmem:[#allocation3 + $0x280] sm:$0xf] %v2189
        %2252 = vst [vmem:[#allocation3 + $0x2a4] sm:$0xf] %v2203
        %2253 = vst [vmem:[#allocation3 + $0x2c8] sm:$0xf] %v2213
        %v2254 = vld [vmem:[%s622] sm:$0xe]
        %v2255 = vld [vmem:[%s622 + $0x4] sm:$0xf]
        %v2256 = vld [vmem:[%s622 + $0x8] sm:$0x1]
        %v2257 = vld [vmem:[%s622 + $0xc] sm:$0xe]
        %v2258 = vld [vmem:[%s622 + $0x10] sm:$0xf]
        %v2259 = vld [vmem:[%s622 + $0x14] sm:$0x1]
        %v2260 = vld [vmem:[%s622 + $0x18] sm:$0xe]
        %v2261 = vld [vmem:[%s622 + $0x1c] sm:$0xf]
        %v2262 = vld [vmem:[%s622 + $0x20] sm:$0x1]
        %v2263 = vld [vmem:[%s622 + $0x24] sm:$0xe]
        %v2264 = vld [vmem:[%s622 + $0x28] sm:$0xf]
        %v2265 = vld [vmem:[%s622 + $0x2c] sm:$0x1]
        %v2266 = vld [vmem:[%s622 + $0x30] sm:$0xe]
        %v2267 = vld [vmem:[%s622 + $0x34] sm:$0xf]
        %v2268 = vld [vmem:[%s622 + $0x38] sm:$0x1]
        %v2269 = vld [vmem:[%s622 + $0x3c] sm:$0xe]
        %v2270 = vld [vmem:[%s622 + $0x40] sm:$0xf]
        %v2271 = vld [vmem:[%s622 + $0x44] sm:$0x1]
        %v2272 = vld [vmem:[%s622 + $0x48] sm:$0xe]
        %v2273 = vld [vmem:[%s622 + $0x4c] sm:$0xf]
        %v2274 = vld [vmem:[%s622 + $0x50] sm:$0x1]
        %v2275 = vld [vmem:[%s622 + $0x54] sm:$0xe]
        %v2276 = vld [vmem:[%s622 + $0x58] sm:$0xf]
        %v2277 = vld [vmem:[%s622 + $0x5c] sm:$0x1]
        %v2278 = vld [vmem:[%s622 + $0x60] sm:$0xe]
        %v2279 = vld [vmem:[%s622 + $0x64] sm:$0xf]
        %v2280 = vld [vmem:[%s622 + $0x68] sm:$0x1]
        %v2281 = vld [vmem:[%s622 + $0x6c] sm:$0xe]
        %v2282 = vld [vmem:[%s622 + $0x70] sm:$0xf]
        %v2283 = vld [vmem:[%s622 + $0x74] sm:$0x1]
        %v2314 = vrot.slane %v2254, 5
        %v2315 = vrot.slane %v2314, 4
        %v2316 = vrot.slane %v2255, 5
        %v2317 = vsel %vm1272, %v2315, %v2316
        %v2318 = vrot.slane %v2316, 4
        %v2319 = vrot.slane %v2256, 5
        %v2320 = vsel %vm1272, %v2318, %v2319
        %v2321 = vrot.slane %v2257, 5
        %v2322 = vrot.slane %v2321, 4
        %v2323 = vrot.slane %v2258, 5
        %v2324 = vsel %vm1272, %v2322, %v2323
        %v2325 = vrot.slane %v2323, 4
        %v2326 = vrot.slane %v2259, 5
        %v2327 = vsel %vm1272, %v2325, %v2326
        %v2328 = vrot.slane %v2260, 5
        %v2329 = vrot.slane %v2328, 4
        %v2330 = vrot.slane %v2261, 5
        %v2331 = vsel %vm1272, %v2329, %v2330
        %v2332 = vrot.slane %v2330, 4
        %v2333 = vrot.slane %v2262, 5
        %v2334 = vsel %vm1272, %v2332, %v2333
        %v2335 = vrot.slane %v2263, 5
        %v2336 = vrot.slane %v2335, 4
        %v2337 = vrot.slane %v2264, 5
        %v2338 = vsel %vm1272, %v2336, %v2337
        %v2339 = vrot.slane %v2337, 4
        %v2340 = vrot.slane %v2265, 5
        %v2341 = vsel %vm1272, %v2339, %v2340
        %v2342 = vrot.slane %v2266, 5
        %v2343 = vrot.slane %v2342, 4
        %v2344 = vrot.slane %v2267, 5
        %v2345 = vsel %vm1272, %v2343, %v2344
        %v2346 = vrot.slane %v2344, 4
        %v2347 = vrot.slane %v2268, 5
        %v2348 = vsel %vm1272, %v2346, %v2347
        %v2349 = vrot.slane %v2269, 5
        %v2350 = vrot.slane %v2349, 4
        %v2351 = vrot.slane %v2270, 5
        %v2352 = vsel %vm1272, %v2350, %v2351
        %v2353 = vrot.slane %v2351, 4
        %v2354 = vrot.slane %v2271, 5
        %v2355 = vsel %vm1272, %v2353, %v2354
        %v2356 = vrot.slane %v2272, 5
        %v2357 = vrot.slane %v2356, 4
        %v2358 = vrot.slane %v2273, 5
        %v2359 = vsel %vm1272, %v2357, %v2358
        %v2360 = vrot.slane %v2358, 4
        %v2361 = vrot.slane %v2274, 5
        %v2362 = vsel %vm1272, %v2360, %v2361
        %v2363 = vrot.slane %v2275, 5
        %v2364 = vrot.slane %v2363, 4
        %v2365 = vrot.slane %v2276, 5
        %v2366 = vsel %vm1272, %v2364, %v2365
        %v2367 = vrot.slane %v2365, 4
        %v2368 = vrot.slane %v2277, 5
        %v2369 = vsel %vm1272, %v2367, %v2368
        %v2370 = vrot.slane %v2278, 5
        %v2371 = vrot.slane %v2370, 4
        %v2372 = vrot.slane %v2279, 5
        %v2373 = vsel %vm1272, %v2371, %v2372
        %v2374 = vrot.slane %v2372, 4
        %v2375 = vrot.slane %v2280, 5
        %v2376 = vsel %vm1272, %v2374, %v2375
        %v2377 = vrot.slane %v2281, 5
        %v2378 = vrot.slane %v2377, 4
        %v2379 = vrot.slane %v2282, 5
        %v2380 = vsel %vm1272, %v2378, %v2379
        %v2381 = vrot.slane %v2379, 4
        %v2382 = vrot.slane %v2283, 5
        %v2383 = vsel %vm1272, %v2381, %v2382
        %2404 = vst [vmem:[#allocation3 + $0x20] sm:$0xf] %v2317
        %2405 = vst [vmem:[#allocation3 + $0x44] sm:$0xf] %v2320
        %2406 = vst [vmem:[#allocation3 + $0x68] sm:$0xf] %v2324
        %2407 = vst [vmem:[#allocation3 + $0x8c] sm:$0xf] %v2327
        %2408 = vst [vmem:[#allocation3 + $0xb0] sm:$0xf] %v2331
        %2409 = vst [vmem:[#allocation3 + $0xd4] sm:$0xf] %v2334
        %2410 = vst [vmem:[#allocation3 + $0xf8] sm:$0xf] %v2338
        %2411 = vst [vmem:[#allocation3 + $0x11c] sm:$0xf] %v2341
        %2412 = vst [vmem:[#allocation3 + $0x140] sm:$0xf] %v2345
        %2413 = vst [vmem:[#allocation3 + $0x164] sm:$0xf] %v2348
        %2414 = vst [vmem:[#allocation3 + $0x188] sm:$0xf] %v2352
        %2415 = vst [vmem:[#allocation3 + $0x1ac] sm:$0xf] %v2355
        %2416 = vst [vmem:[#allocation3 + $0x1d0] sm:$0xf] %v2359
        %2417 = vst [vmem:[#allocation3 + $0x1f4] sm:$0xf] %v2362
        %2418 = vst [vmem:[#allocation3 + $0x218] sm:$0xf] %v2366
        %2419 = vst [vmem:[#allocation3 + $0x23c] sm:$0xf] %v2369
        %2420 = vst [vmem:[#allocation3 + $0x260] sm:$0xf] %v2373
        %2421 = vst [vmem:[#allocation3 + $0x284] sm:$0xf] %v2376
        %2422 = vst [vmem:[#allocation3 + $0x2a8] sm:$0xf] %v2380
        %2423 = vst [vmem:[#allocation3 + $0x2cc] sm:$0xf] %v2383
        %v2424 = vld [vmem:[#allocation3] sm:$0xff]
        %v2425 = vld [vmem:[#allocation3 + $0x8] sm:$0xff]
        %v2426 = vld [vmem:[#allocation3 + $0x10] sm:$0xff]
        %v2427 = vld [vmem:[#allocation3 + $0x18] sm:$0xff]
        %v2428 = vld [vmem:[#allocation3 + $0x20] sm:$0xf]
        %v2429 = vld [vmem:[#allocation3 + $0x24] sm:$0xff]
        %v2430 = vld [vmem:[#allocation3 + $0x2c] sm:$0xff]
        %v2431 = vld [vmem:[#allocation3 + $0x34] sm:$0xff]
        %v2432 = vld [vmem:[#allocation3 + $0x3c] sm:$0xff]
        %v2433 = vld [vmem:[#allocation3 + $0x44] sm:$0xf]
        %v2434 = vld [vmem:[#allocation3 + $0x48] sm:$0xff]
        %v2435 = vld [vmem:[#allocation3 + $0x50] sm:$0xff]
        %v2436 = vld [vmem:[#allocation3 + $0x58] sm:$0xff]
        %v2437 = vld [vmem:[#allocation3 + $0x60] sm:$0xff]
        %v2438 = vld [vmem:[#allocation3 + $0x68] sm:$0xf]
        %v2439 = vld [vmem:[#allocation3 + $0x6c] sm:$0xff]
        %v2440 = vld [vmem:[#allocation3 + $0x74] sm:$0xff]
        %v2441 = vld [vmem:[#allocation3 + $0x7c] sm:$0xff]
        %v2442 = vld [vmem:[#allocation3 + $0x84] sm:$0xff]
        %v2443 = vld [vmem:[#allocation3 + $0x8c] sm:$0xf]
        %v2444 = vld [vmem:[#allocation3 + $0x90] sm:$0xff]
        %v2445 = vld [vmem:[#allocation3 + $0x98] sm:$0xff]
        %v2446 = vld [vmem:[#allocation3 + $0xa0] sm:$0xff]
        %v2447 = vld [vmem:[#allocation3 + $0xa8] sm:$0xff]
        %v2448 = vld [vmem:[#allocation3 + $0xb0] sm:$0xf]
        %v2449 = vld [vmem:[#allocation3 + $0xb4] sm:$0xff]
        %v2450 = vld [vmem:[#allocation3 + $0xbc] sm:$0xff]
        %v2451 = vld [vmem:[#allocation3 + $0xc4] sm:$0xff]
        %v2452 = vld [vmem:[#allocation3 + $0xcc] sm:$0xff]
        %v2453 = vld [vmem:[#allocation3 + $0xd4] sm:$0xf]
        %v2454 = vld [vmem:[#allocation3 + $0xd8] sm:$0xff]
        %v2455 = vld [vmem:[#allocation3 + $0xe0] sm:$0xff]
        %v2456 = vld [vmem:[#allocation3 + $0xe8] sm:$0xff]
        %v2457 = vld [vmem:[#allocation3 + $0xf0] sm:$0xff]
        %v2458 = vld [vmem:[#allocation3 + $0xf8] sm:$0xf]
        %v2459 = vld [vmem:[#allocation3 + $0xfc] sm:$0xff]
        %v2460 = vld [vmem:[#allocation3 + $0x104] sm:$0xff]
        %v2461 = vld [vmem:[#allocation3 + $0x10c] sm:$0xff]
        %v2462 = vld [vmem:[#allocation3 + $0x114] sm:$0xff]
        %v2463 = vld [vmem:[#allocation3 + $0x11c] sm:$0xf]
        %v2464 = vld [vmem:[#allocation3 + $0x120] sm:$0xff]
        %v2465 = vld [vmem:[#allocation3 + $0x128] sm:$0xff]
        %v2466 = vld [vmem:[#allocation3 + $0x130] sm:$0xff]
        %v2467 = vld [vmem:[#allocation3 + $0x138] sm:$0xff]
        %v2468 = vld [vmem:[#allocation3 + $0x140] sm:$0xf]
        %v2469 = vld [vmem:[#allocation3 + $0x144] sm:$0xff]
        %v2470 = vld [vmem:[#allocation3 + $0x14c] sm:$0xff]
        %v2471 = vld [vmem:[#allocation3 + $0x154] sm:$0xff]
        %v2472 = vld [vmem:[#allocation3 + $0x15c] sm:$0xff]
        %v2473 = vld [vmem:[#allocation3 + $0x164] sm:$0xf]
        %v2474 = vld [vmem:[#allocation3 + $0x168] sm:$0xff]
        %v2475 = vld [vmem:[#allocation3 + $0x170] sm:$0xff]
        %v2476 = vld [vmem:[#allocation3 + $0x178] sm:$0xff]
        %v2477 = vld [vmem:[#allocation3 + $0x180] sm:$0xff]
        %v2478 = vld [vmem:[#allocation3 + $0x188] sm:$0xf]
        %v2479 = vld [vmem:[#allocation3 + $0x18c] sm:$0xff]
        %v2480 = vld [vmem:[#allocation3 + $0x194] sm:$0xff]
        %v2481 = vld [vmem:[#allocation3 + $0x19c] sm:$0xff]
        %v2482 = vld [vmem:[#allocation3 + $0x1a4] sm:$0xff]
        %v2483 = vld [vmem:[#allocation3 + $0x1ac] sm:$0xf]
        %v2484 = vld [vmem:[#allocation3 + $0x1b0] sm:$0xff]
        %v2485 = vld [vmem:[#allocation3 + $0x1b8] sm:$0xff]
        %v2486 = vld [vmem:[#allocation3 + $0x1c0] sm:$0xff]
        %v2487 = vld [vmem:[#allocation3 + $0x1c8] sm:$0xff]
        %v2488 = vld [vmem:[#allocation3 + $0x1d0] sm:$0xf]
        %v2489 = vld [vmem:[#allocation3 + $0x1d4] sm:$0xff]
        %v2490 = vld [vmem:[#allocation3 + $0x1dc] sm:$0xff]
        %v2491 = vld [vmem:[#allocation3 + $0x1e4] sm:$0xff]
        %v2492 = vld [vmem:[#allocation3 + $0x1ec] sm:$0xff]
        %v2493 = vld [vmem:[#allocation3 + $0x1f4] sm:$0xf]
        %v2494 = vld [vmem:[#allocation3 + $0x1f8] sm:$0xff]
        %v2495 = vld [vmem:[#allocation3 + $0x200] sm:$0xff]
        %v2496 = vld [vmem:[#allocation3 + $0x208] sm:$0xff]
        %v2497 = vld [vmem:[#allocation3 + $0x210] sm:$0xff]
        %v2498 = vld [vmem:[#allocation3 + $0x218] sm:$0xf]
        %v2499 = vld [vmem:[#allocation3 + $0x21c] sm:$0xff]
        %v2500 = vld [vmem:[#allocation3 + $0x224] sm:$0xff]
        %v2501 = vld [vmem:[#allocation3 + $0x22c] sm:$0xff]
        %v2502 = vld [vmem:[#allocation3 + $0x234] sm:$0xff]
        %v2503 = vld [vmem:[#allocation3 + $0x23c] sm:$0xf]
        %v2504 = vld [vmem:[#allocation3 + $0x240] sm:$0xff]
        %v2505 = vld [vmem:[#allocation3 + $0x248] sm:$0xff]
        %v2506 = vld [vmem:[#allocation3 + $0x250] sm:$0xff]
        %v2507 = vld [vmem:[#allocation3 + $0x258] sm:$0xff]
        %v2508 = vld [vmem:[#allocation3 + $0x260] sm:$0xf]
        %v2509 = vld [vmem:[#allocation3 + $0x264] sm:$0xff]
        %v2510 = vld [vmem:[#allocation3 + $0x26c] sm:$0xff]
        %v2511 = vld [vmem:[#allocation3 + $0x274] sm:$0xff]
        %v2512 = vld [vmem:[#allocation3 + $0x27c] sm:$0xff]
        %v2513 = vld [vmem:[#allocation3 + $0x284] sm:$0xf]
        %v2514 = vld [vmem:[#allocation3 + $0x288] sm:$0xff]
        %v2515 = vld [vmem:[#allocation3 + $0x290] sm:$0xff]
        %v2516 = vld [vmem:[#allocation3 + $0x298] sm:$0xff]
        %v2517 = vld [vmem:[#allocation3 + $0x2a0] sm:$0xff]
        %v2518 = vld [vmem:[#allocation3 + $0x2a8] sm:$0xf]
        %v2519 = vld [vmem:[#allocation3 + $0x2ac] sm:$0xff]
        %v2520 = vld [vmem:[#allocation3 + $0x2b4] sm:$0xff]
        %v2521 = vld [vmem:[#allocation3 + $0x2bc] sm:$0xff]
        %v2522 = vld [vmem:[#allocation3 + $0x2c4] sm:$0xff]
        %v2523 = vld [vmem:[#allocation3 + $0x2cc] sm:$0xf]
        %v2524 = vld [vmem:[#allocation7] sm:$0xf]
        %v2525 = vld [vmem:[#allocation7 + $0x4] sm:$0xf]
        %v2526 = vld [vmem:[#allocation7 + $0x8] sm:$0xf]
        %v2527 = vld [vmem:[#allocation7 + $0xc] sm:$0xf]
        %v2528 = vld [vmem:[#allocation7 + $0x10] sm:$0xf]
        %v2529 = vld [vmem:[#allocation7 + $0x14] sm:$0xf]
        %v2530 = vld [vmem:[#allocation7 + $0x18] sm:$0xf]
        %v2531 = vld [vmem:[#allocation7 + $0x1c] sm:$0xf]
        %v2532 = vld [vmem:[#allocation7 + $0x20] sm:$0xf]
        %v2533 = vld [vmem:[#allocation7 + $0x24] sm:$0xf]
        %v2534 = vld [vmem:[#allocation7 + $0x28] sm:$0xf]
        %v2535 = vld [vmem:[#allocation7 + $0x2c] sm:$0xf]
        %v2536 = vld [vmem:[#allocation7 + $0x30] sm:$0xf]
        %v2537 = vld [vmem:[#allocation7 + $0x34] sm:$0xf]
        %v2538 = vld [vmem:[#allocation7 + $0x38] sm:$0xf]
        %v2539 = vld [vmem:[#allocation7 + $0x3c] sm:$0xf]
        %v2540 = vld [vmem:[#allocation7 + $0x40] sm:$0xf]
        %v2541 = vld [vmem:[#allocation7 + $0x44] sm:$0xf]
        %v2542 = vld [vmem:[#allocation7 + $0x48] sm:$0xf]
        %v2543 = vld [vmem:[#allocation7 + $0x4c] sm:$0xf]
        %v2544 = vld [vmem:[#allocation7 + $0x50] sm:$0xf]
        %v2545 = vld [vmem:[#allocation7 + $0x54] sm:$0xf]
        %v2546 = vld [vmem:[#allocation7 + $0x58] sm:$0xf]
        %v2547 = vld [vmem:[#allocation7 + $0x5c] sm:$0xf]
        %v2548 = vld [vmem:[#allocation7 + $0x60] sm:$0xf]
        %v2549 = vld [vmem:[#allocation7 + $0x64] sm:$0xf]
        %v2550 = vld [vmem:[#allocation7 + $0x68] sm:$0xf]
        %v2551 = vld [vmem:[#allocation7 + $0x6c] sm:$0xf]
        %v2552 = vld [vmem:[#allocation7 + $0x70] sm:$0xf]
        %v2553 = vld [vmem:[#allocation7 + $0x74] sm:$0xf]
        %v2554 = vld [vmem:[#allocation7 + $0x78] sm:$0xf]
        %v2555 = vld [vmem:[#allocation7 + $0x7c] sm:$0xf]
        %v2556 = vld [vmem:[#allocation7 + $0x80] sm:$0xf]
        %v2557 = vld [vmem:[#allocation7 + $0x84] sm:$0xf]
        %v2558 = vld [vmem:[#allocation7 + $0x88] sm:$0xf]
        %v2559 = vld [vmem:[#allocation7 + $0x8c] sm:$0xf]
        %v2560 = vld [vmem:[#allocation7 + $0x90] sm:$0xf]
        %v2561 = vld [vmem:[#allocation7 + $0x94] sm:$0xf]
        %v2562 = vld [vmem:[#allocation7 + $0x98] sm:$0xf]
        %v2563 = vld [vmem:[#allocation7 + $0x9c] sm:$0xf]
        %v2564 = vld [vmem:[#allocation7 + $0xa0] sm:$0xf]
        %v2565 = vld [vmem:[#allocation7 + $0xa4] sm:$0xf]
        %v2566 = vld [vmem:[#allocation7 + $0xa8] sm:$0xf]
        %v2567 = vld [vmem:[#allocation7 + $0xac] sm:$0xf]
        %v2568 = vld [vmem:[#allocation7 + $0xb0] sm:$0xf]
        %v2569 = vld [vmem:[#allocation7 + $0xb4] sm:$0xf]
        %v2570 = vld [vmem:[#allocation7 + $0xb8] sm:$0xf]
        %v2571 = vld [vmem:[#allocation7 + $0xbc] sm:$0xf]
        %v2572 = vld [vmem:[#allocation7 + $0xc0] sm:$0xf]
        %v2573 = vld [vmem:[#allocation7 + $0xc4] sm:$0xf]
        %v2574 = vld [vmem:[#allocation7 + $0xc8] sm:$0xf]
        %v2575 = vld [vmem:[#allocation7 + $0xcc] sm:$0xf]
        %v2576 = vld [vmem:[#allocation7 + $0xd0] sm:$0xf]
        %v2577 = vld [vmem:[#allocation7 + $0xd4] sm:$0xf]
        %v2578 = vld [vmem:[#allocation7 + $0xd8] sm:$0xf]
        %v2579 = vld [vmem:[#allocation7 + $0xdc] sm:$0xf]
        %v2580 = vld [vmem:[#allocation7 + $0xe0] sm:$0xf]
        %v2581 = vld [vmem:[#allocation7 + $0xe4] sm:$0xf]
        %v2582 = vld [vmem:[#allocation7 + $0xe8] sm:$0xf]
        %v2583 = vld [vmem:[#allocation7 + $0xec] sm:$0xf]
        %v2584 = vld [vmem:[#allocation7 + $0xf0] sm:$0xf]
        %v2585 = vld [vmem:[#allocation7 + $0xf4] sm:$0xf]
        %v2586 = vld [vmem:[#allocation7 + $0xf8] sm:$0xf]
        %v2587 = vld [vmem:[#allocation7 + $0xfc] sm:$0xf]
        %v2588 = vld [vmem:[#allocation7 + $0x100] sm:$0xf]
        %v2589 = vld [vmem:[#allocation7 + $0x104] sm:$0xf]
        %v2590 = vld [vmem:[#allocation7 + $0x108] sm:$0xf]
        %v2591 = vld [vmem:[#allocation7 + $0x10c] sm:$0xf]
        %v2592 = vld [vmem:[#allocation7 + $0x110] sm:$0xf]
        %v2593 = vld [vmem:[#allocation7 + $0x114] sm:$0xf]
        %v2594 = vld [vmem:[#allocation7 + $0x118] sm:$0xf]
        %v2595 = vld [vmem:[#allocation7 + $0x11c] sm:$0xf]
        %v2596 = vld [vmem:[#allocation7 + $0x120] sm:$0xf]
        %v2597 = vld [vmem:[#allocation7 + $0x124] sm:$0xf]
        %v2598 = vld [vmem:[#allocation7 + $0x128] sm:$0xf]
        %v2599 = vld [vmem:[#allocation7 + $0x12c] sm:$0xf]
        %v2600 = vld [vmem:[#allocation7 + $0x130] sm:$0xf]
        %v2601 = vld [vmem:[#allocation7 + $0x134] sm:$0xf]
        %v2602 = vld [vmem:[#allocation7 + $0x138] sm:$0xf]
        %v2603 = vld [vmem:[#allocation7 + $0x13c] sm:$0xf]
        %v2604 = vld [vmem:[#allocation7 + $0x140] sm:$0xf]
        %v2605 = vld [vmem:[#allocation7 + $0x144] sm:$0xf]
        %v2606 = vld [vmem:[#allocation7 + $0x148] sm:$0xf]
        %v2607 = vld [vmem:[#allocation7 + $0x14c] sm:$0xf]
        %v2608 = vld [vmem:[#allocation7 + $0x150] sm:$0xf]
        %v2609 = vld [vmem:[#allocation7 + $0x154] sm:$0xf]
        %v2610 = vld [vmem:[#allocation7 + $0x158] sm:$0xf]
        %v2611 = vld [vmem:[#allocation7 + $0x15c] sm:$0xf]
        %v2612 = vld [vmem:[#allocation7 + $0x160] sm:$0xf]
        %v2613 = vld [vmem:[#allocation7 + $0x164] sm:$0xf]
        %v2614 = vld [vmem:[#allocation7 + $0x168] sm:$0xf]
        %v2615 = vld [vmem:[#allocation7 + $0x16c] sm:$0xf]
        %v2616 = vld [vmem:[#allocation7 + $0x170] sm:$0xf]
        %v2617 = vld [vmem:[#allocation7 + $0x174] sm:$0xf]
        %v2618 = vld [vmem:[#allocation7 + $0x178] sm:$0xf]
        %v2619 = vld [vmem:[#allocation7 + $0x17c] sm:$0xf]
        %v2620 = vld [vmem:[#allocation7 + $0x180] sm:$0xf]
        %v2621 = vld [vmem:[#allocation7 + $0x184] sm:$0xf]
        %v2622 = vld [vmem:[#allocation7 + $0x188] sm:$0xf]
        %v2623 = vld [vmem:[#allocation7 + $0x18c] sm:$0xf]
        %v2624 = vld [vmem:[#allocation7 + $0x190] sm:$0xf]
        %v2625 = vld [vmem:[#allocation7 + $0x194] sm:$0xf]
        %v2626 = vld [vmem:[#allocation7 + $0x198] sm:$0xf]
        %v2627 = vld [vmem:[#allocation7 + $0x19c] sm:$0xf]
        %v2628 = vld [vmem:[#allocation7 + $0x1a0] sm:$0xf]
        %v2629 = vld [vmem:[#allocation7 + $0x1a4] sm:$0xf]
        %v2630 = vld [vmem:[#allocation7 + $0x1a8] sm:$0xf]
        %v2631 = vld [vmem:[#allocation7 + $0x1ac] sm:$0xf]
        %v2632 = vld [vmem:[#allocation7 + $0x1b0] sm:$0xf]
        %v2633 = vld [vmem:[#allocation7 + $0x1b4] sm:$0xf]
        %v2634 = vld [vmem:[#allocation7 + $0x1b8] sm:$0xf]
        %v2635 = vld [vmem:[#allocation7 + $0x1bc] sm:$0xf]
        %v2636 = vld [vmem:[#allocation7 + $0x1c0] sm:$0xf]
        %v2637 = vld [vmem:[#allocation7 + $0x1c4] sm:$0xf]
        %v2638 = vld [vmem:[#allocation7 + $0x1c8] sm:$0xf]
        %v2639 = vld [vmem:[#allocation7 + $0x1cc] sm:$0xf]
        %v2640 = vld [vmem:[#allocation7 + $0x1d0] sm:$0xf]
        %v2641 = vld [vmem:[#allocation7 + $0x1d4] sm:$0xf]
        %v2642 = vld [vmem:[#allocation7 + $0x1d8] sm:$0xf]
        %v2643 = vld [vmem:[#allocation7 + $0x1dc] sm:$0xf]
        %v2644 = vld [vmem:[#allocation7 + $0x1e0] sm:$0xf]
        %v2645 = vld [vmem:[#allocation7 + $0x1e4] sm:$0xf]
        %v2646 = vld [vmem:[#allocation7 + $0x1e8] sm:$0xf]
        %v2647 = vld [vmem:[#allocation7 + $0x1ec] sm:$0xf]
        %v2648 = vld [vmem:[#allocation7 + $0x1f0] sm:$0xf]
        %v2649 = vld [vmem:[#allocation7 + $0x1f4] sm:$0xf]
        %v2650 = vld [vmem:[#allocation7 + $0x1f8] sm:$0xf]
        %v2651 = vld [vmem:[#allocation7 + $0x1fc] sm:$0xf]
        %v2652 = vld [vmem:[#allocation7 + $0x200] sm:$0xf]
        %v2653 = vld [vmem:[#allocation7 + $0x204] sm:$0xf]
        %v2654 = vld [vmem:[#allocation7 + $0x208] sm:$0xf]
        %v2655 = vld [vmem:[#allocation7 + $0x20c] sm:$0xf]
        %v2656 = vld [vmem:[#allocation7 + $0x210] sm:$0xf]
        %v2657 = vld [vmem:[#allocation7 + $0x214] sm:$0xf]
        %v2658 = vld [vmem:[#allocation7 + $0x218] sm:$0xf]
        %v2659 = vld [vmem:[#allocation7 + $0x21c] sm:$0xf]
        %v2660 = vld [vmem:[#allocation7 + $0x220] sm:$0xf]
        %v2661 = vld [vmem:[#allocation7 + $0x224] sm:$0xf]
        %v2662 = vld [vmem:[#allocation7 + $0x228] sm:$0xf]
        %v2663 = vld [vmem:[#allocation7 + $0x22c] sm:$0xf]
        %v2664 = vld [vmem:[#allocation7 + $0x230] sm:$0xf]
        %v2665 = vld [vmem:[#allocation7 + $0x234] sm:$0xf]
        %v2666 = vld [vmem:[#allocation7 + $0x238] sm:$0xf]
        %v2667 = vld [vmem:[#allocation7 + $0x23c] sm:$0xf]
        %v2768 = vunpack.c.l.b16 %v2424
        %v2769 = vunpack.c.h.b16 %v2424
        %v2770 = vunpack.c.l.b16 %v2425
        %v2771 = vunpack.c.h.b16 %v2425
        %v2772 = vunpack.c.l.b16 %v2426
        %v2773 = vunpack.c.h.b16 %v2426
        %v2774 = vunpack.c.l.b16 %v2427
        %v2775 = vunpack.c.h.b16 %v2427
        %v2776 = vunpack.c.l.b16 %v2428
        %v2777 = vunpack.c.l.b16 %v2429
        %v2778 = vunpack.c.h.b16 %v2429
        %v2779 = vunpack.c.l.b16 %v2430
        %v2780 = vunpack.c.h.b16 %v2430
        %v2781 = vunpack.c.l.b16 %v2431
        %v2782 = vunpack.c.h.b16 %v2431
        %v2783 = vunpack.c.l.b16 %v2432
        %v2784 = vunpack.c.h.b16 %v2432
        %v2785 = vunpack.c.l.b16 %v2433
        %v2786 = vunpack.c.l.b16 %v2434
        %v2787 = vunpack.c.h.b16 %v2434
        %v2788 = vunpack.c.l.b16 %v2435
        %v2789 = vunpack.c.h.b16 %v2435
        %v2790 = vunpack.c.l.b16 %v2436
        %v2791 = vunpack.c.h.b16 %v2436
        %v2792 = vunpack.c.l.b16 %v2437
        %v2793 = vunpack.c.h.b16 %v2437
        %v2794 = vunpack.c.l.b16 %v2438
        %v2795 = vunpack.c.l.b16 %v2439
        %v2796 = vunpack.c.h.b16 %v2439
        %v2797 = vunpack.c.l.b16 %v2440
        %v2798 = vunpack.c.h.b16 %v2440
        %v2799 = vunpack.c.l.b16 %v2441
        %v2800 = vunpack.c.h.b16 %v2441
        %v2801 = vunpack.c.l.b16 %v2442
        %v2802 = vunpack.c.h.b16 %v2442
        %v2803 = vunpack.c.l.b16 %v2443
        %v2804 = vunpack.c.l.b16 %v2444
        %v2805 = vunpack.c.h.b16 %v2444
        %v2806 = vunpack.c.l.b16 %v2445
        %v2807 = vunpack.c.h.b16 %v2445
        %v2808 = vunpack.c.l.b16 %v2446
        %v2809 = vunpack.c.h.b16 %v2446
        %v2810 = vunpack.c.l.b16 %v2447
        %v2811 = vunpack.c.h.b16 %v2447
        %v2812 = vunpack.c.l.b16 %v2448
        %v2813 = vunpack.c.l.b16 %v2449
        %v2814 = vunpack.c.h.b16 %v2449
        %v2815 = vunpack.c.l.b16 %v2450
        %v2816 = vunpack.c.h.b16 %v2450
        %v2817 = vunpack.c.l.b16 %v2451
        %v2818 = vunpack.c.h.b16 %v2451
        %v2819 = vunpack.c.l.b16 %v2452
        %v2820 = vunpack.c.h.b16 %v2452
        %v2821 = vunpack.c.l.b16 %v2453
        %v2822 = vunpack.c.l.b16 %v2454
        %v2823 = vunpack.c.h.b16 %v2454
        %v2824 = vunpack.c.l.b16 %v2455
        %v2825 = vunpack.c.h.b16 %v2455
        %v2826 = vunpack.c.l.b16 %v2456
        %v2827 = vunpack.c.h.b16 %v2456
        %v2828 = vunpack.c.l.b16 %v2457
        %v2829 = vunpack.c.h.b16 %v2457
        %v2830 = vunpack.c.l.b16 %v2458
        %v2831 = vunpack.c.l.b16 %v2459
        %v2832 = vunpack.c.h.b16 %v2459
        %v2833 = vunpack.c.l.b16 %v2460
        %v2834 = vunpack.c.h.b16 %v2460
        %v2835 = vunpack.c.l.b16 %v2461
        %v2836 = vunpack.c.h.b16 %v2461
        %v2837 = vunpack.c.l.b16 %v2462
        %v2838 = vunpack.c.h.b16 %v2462
        %v2839 = vunpack.c.l.b16 %v2463
        %v2840 = vunpack.c.l.b16 %v2464
        %v2841 = vunpack.c.h.b16 %v2464
        %v2842 = vunpack.c.l.b16 %v2465
        %v2843 = vunpack.c.h.b16 %v2465
        %v2844 = vunpack.c.l.b16 %v2466
        %v2845 = vunpack.c.h.b16 %v2466
        %v2846 = vunpack.c.l.b16 %v2467
        %v2847 = vunpack.c.h.b16 %v2467
        %v2848 = vunpack.c.l.b16 %v2468
        %v2849 = vunpack.c.l.b16 %v2469
        %v2850 = vunpack.c.h.b16 %v2469
        %v2851 = vunpack.c.l.b16 %v2470
        %v2852 = vunpack.c.h.b16 %v2470
        %v2853 = vunpack.c.l.b16 %v2471
        %v2854 = vunpack.c.h.b16 %v2471
        %v2855 = vunpack.c.l.b16 %v2472
        %v2856 = vunpack.c.h.b16 %v2472
        %v2857 = vunpack.c.l.b16 %v2473
        %v2858 = vunpack.c.l.b16 %v2474
        %v2859 = vunpack.c.h.b16 %v2474
        %v2860 = vunpack.c.l.b16 %v2475
        %v2861 = vunpack.c.h.b16 %v2475
        %v2862 = vunpack.c.l.b16 %v2476
        %v2863 = vunpack.c.h.b16 %v2476
        %v2864 = vunpack.c.l.b16 %v2477
        %v2865 = vunpack.c.h.b16 %v2477
        %v2866 = vunpack.c.l.b16 %v2478
        %v2867 = vunpack.c.l.b16 %v2479
        %v2868 = vunpack.c.h.b16 %v2479
        %v2869 = vunpack.c.l.b16 %v2480
        %v2870 = vunpack.c.h.b16 %v2480
        %v2871 = vunpack.c.l.b16 %v2481
        %v2872 = vunpack.c.h.b16 %v2481
        %v2873 = vunpack.c.l.b16 %v2482
        %v2874 = vunpack.c.h.b16 %v2482
        %v2875 = vunpack.c.l.b16 %v2483
        %v2876 = vunpack.c.l.b16 %v2484
        %v2877 = vunpack.c.h.b16 %v2484
        %v2878 = vunpack.c.l.b16 %v2485
        %v2879 = vunpack.c.h.b16 %v2485
        %v2880 = vunpack.c.l.b16 %v2486
        %v2881 = vunpack.c.h.b16 %v2486
        %v2882 = vunpack.c.l.b16 %v2487
        %v2883 = vunpack.c.h.b16 %v2487
        %v2884 = vunpack.c.l.b16 %v2488
        %v2885 = vunpack.c.l.b16 %v2489
        %v2886 = vunpack.c.h.b16 %v2489
        %v2887 = vunpack.c.l.b16 %v2490
        %v2888 = vunpack.c.h.b16 %v2490
        %v2889 = vunpack.c.l.b16 %v2491
        %v2890 = vunpack.c.h.b16 %v2491
        %v2891 = vunpack.c.l.b16 %v2492
        %v2892 = vunpack.c.h.b16 %v2492
        %v2893 = vunpack.c.l.b16 %v2493
        %v2894 = vunpack.c.l.b16 %v2494
        %v2895 = vunpack.c.h.b16 %v2494
        %v2896 = vunpack.c.l.b16 %v2495
        %v2897 = vunpack.c.h.b16 %v2495
        %v2898 = vunpack.c.l.b16 %v2496
        %v2899 = vunpack.c.h.b16 %v2496
        %v2900 = vunpack.c.l.b16 %v2497
        %v2901 = vunpack.c.h.b16 %v2497
        %v2902 = vunpack.c.l.b16 %v2498
        %v2903 = vunpack.c.l.b16 %v2499
        %v2904 = vunpack.c.h.b16 %v2499
        %v2905 = vunpack.c.l.b16 %v2500
        %v2906 = vunpack.c.h.b16 %v2500
        %v2907 = vunpack.c.l.b16 %v2501
        %v2908 = vunpack.c.h.b16 %v2501
        %v2909 = vunpack.c.l.b16 %v2502
        %v2910 = vunpack.c.h.b16 %v2502
        %v2911 = vunpack.c.l.b16 %v2503
        %v2912 = vunpack.c.l.b16 %v2504
        %v2913 = vunpack.c.h.b16 %v2504
        %v2914 = vunpack.c.l.b16 %v2505
        %v2915 = vunpack.c.h.b16 %v2505
        %v2916 = vunpack.c.l.b16 %v2506
        %v2917 = vunpack.c.h.b16 %v2506
        %v2918 = vunpack.c.l.b16 %v2507
        %v2919 = vunpack.c.h.b16 %v2507
        %v2920 = vunpack.c.l.b16 %v2508
        %v2921 = vunpack.c.l.b16 %v2509
        %v2922 = vunpack.c.h.b16 %v2509
        %v2923 = vunpack.c.l.b16 %v2510
        %v2924 = vunpack.c.h.b16 %v2510
        %v2925 = vunpack.c.l.b16 %v2511
        %v2926 = vunpack.c.h.b16 %v2511
        %v2927 = vunpack.c.l.b16 %v2512
        %v2928 = vunpack.c.h.b16 %v2512
        %v2929 = vunpack.c.l.b16 %v2513
        %v2930 = vunpack.c.l.b16 %v2514
        %v2931 = vunpack.c.h.b16 %v2514
        %v2932 = vunpack.c.l.b16 %v2515
        %v2933 = vunpack.c.h.b16 %v2515
        %v2934 = vunpack.c.l.b16 %v2516
        %v2935 = vunpack.c.h.b16 %v2516
        %v2936 = vunpack.c.l.b16 %v2517
        %v2937 = vunpack.c.h.b16 %v2517
        %v2938 = vunpack.c.l.b16 %v2518
        %v2939 = vunpack.c.l.b16 %v2519
        %v2940 = vunpack.c.h.b16 %v2519
        %v2941 = vunpack.c.l.b16 %v2520
        %v2942 = vunpack.c.h.b16 %v2520
        %v2943 = vunpack.c.l.b16 %v2521
        %v2944 = vunpack.c.h.b16 %v2521
        %v2945 = vunpack.c.l.b16 %v2522
        %v2946 = vunpack.c.h.b16 %v2522
        %v2947 = vunpack.c.l.b16 %v2523
        %v2948 = vpack.c.b16 %v2777, %v2768
        %v2949 = vpack.c.b16 %v2778, %v2769
        %v2950 = vpack.c.b16 %v2779, %v2770
        %v2951 = vpack.c.b16 %v2780, %v2771
        %v2952 = vpack.c.b16 %v2781, %v2772
        %v2953 = vpack.c.b16 %v2782, %v2773
        %v2954 = vpack.c.b16 %v2783, %v2774
        %v2955 = vpack.c.b16 %v2784, %v2775
        %v2956 = vpack.c.b16 %v2785, %v2776
        %v2957 = vpack.c.b16 %v2795, %v2786
        %v2958 = vpack.c.b16 %v2796, %v2787
        %v2959 = vpack.c.b16 %v2797, %v2788
        %v2960 = vpack.c.b16 %v2798, %v2789
        %v2961 = vpack.c.b16 %v2799, %v2790
        %v2962 = vpack.c.b16 %v2800, %v2791
        %v2963 = vpack.c.b16 %v2801, %v2792
        %v2964 = vpack.c.b16 %v2802, %v2793
        %v2965 = vpack.c.b16 %v2803, %v2794
        %v2966 = vpack.c.b16 %v2813, %v2804
        %v2967 = vpack.c.b16 %v2814, %v2805
        %v2968 = vpack.c.b16 %v2815, %v2806
        %v2969 = vpack.c.b16 %v2816, %v2807
        %v2970 = vpack.c.b16 %v2817, %v2808
        %v2971 = vpack.c.b16 %v2818, %v2809
        %v2972 = vpack.c.b16 %v2819, %v2810
        %v2973 = vpack.c.b16 %v2820, %v2811
        %v2974 = vpack.c.b16 %v2821, %v2812
        %v2975 = vpack.c.b16 %v2831, %v2822
        %v2976 = vpack.c.b16 %v2832, %v2823
        %v2977 = vpack.c.b16 %v2833, %v2824
        %v2978 = vpack.c.b16 %v2834, %v2825
        %v2979 = vpack.c.b16 %v2835, %v2826
        %v2980 = vpack.c.b16 %v2836, %v2827
        %v2981 = vpack.c.b16 %v2837, %v2828
        %v2982 = vpack.c.b16 %v2838, %v2829
        %v2983 = vpack.c.b16 %v2839, %v2830
        %v2984 = vpack.c.b16 %v2849, %v2840
        %v2985 = vpack.c.b16 %v2850, %v2841
        %v2986 = vpack.c.b16 %v2851, %v2842
        %v2987 = vpack.c.b16 %v2852, %v2843
        %v2988 = vpack.c.b16 %v2853, %v2844
        %v2989 = vpack.c.b16 %v2854, %v2845
        %v2990 = vpack.c.b16 %v2855, %v2846
        %v2991 = vpack.c.b16 %v2856, %v2847
        %v2992 = vpack.c.b16 %v2857, %v2848
        %v2993 = vpack.c.b16 %v2867, %v2858
        %v2994 = vpack.c.b16 %v2868, %v2859
        %v2995 = vpack.c.b16 %v2869, %v2860
        %v2996 = vpack.c.b16 %v2870, %v2861
        %v2997 = vpack.c.b16 %v2871, %v2862
        %v2998 = vpack.c.b16 %v2872, %v2863
        %v2999 = vpack.c.b16 %v2873, %v2864
        %v3000 = vpack.c.b16 %v2874, %v2865
        %v3001 = vpack.c.b16 %v2875, %v2866
        %v3002 = vpack.c.b16 %v2885, %v2876
        %v3003 = vpack.c.b16 %v2886, %v2877
        %v3004 = vpack.c.b16 %v2887, %v2878
        %v3005 = vpack.c.b16 %v2888, %v2879
        %v3006 = vpack.c.b16 %v2889, %v2880
        %v3007 = vpack.c.b16 %v2890, %v2881
        %v3008 = vpack.c.b16 %v2891, %v2882
        %v3009 = vpack.c.b16 %v2892, %v2883
        %v3010 = vpack.c.b16 %v2893, %v2884
        %v3011 = vpack.c.b16 %v2903, %v2894
        %v3012 = vpack.c.b16 %v2904, %v2895
        %v3013 = vpack.c.b16 %v2905, %v2896
        %v3014 = vpack.c.b16 %v2906, %v2897
        %v3015 = vpack.c.b16 %v2907, %v2898
        %v3016 = vpack.c.b16 %v2908, %v2899
        %v3017 = vpack.c.b16 %v2909, %v2900
        %v3018 = vpack.c.b16 %v2910, %v2901
        %v3019 = vpack.c.b16 %v2911, %v2902
        %v3020 = vpack.c.b16 %v2921, %v2912
        %v3021 = vpack.c.b16 %v2922, %v2913
        %v3022 = vpack.c.b16 %v2923, %v2914
        %v3023 = vpack.c.b16 %v2924, %v2915
        %v3024 = vpack.c.b16 %v2925, %v2916
        %v3025 = vpack.c.b16 %v2926, %v2917
        %v3026 = vpack.c.b16 %v2927, %v2918
        %v3027 = vpack.c.b16 %v2928, %v2919
        %v3028 = vpack.c.b16 %v2929, %v2920
        %v3029 = vpack.c.b16 %v2939, %v2930
        %v3030 = vpack.c.b16 %v2940, %v2931
        %v3031 = vpack.c.b16 %v2941, %v2932
        %v3032 = vpack.c.b16 %v2942, %v2933
        %v3033 = vpack.c.b16 %v2943, %v2934
        %v3034 = vpack.c.b16 %v2944, %v2935
        %v3035 = vpack.c.b16 %v2945, %v2936
        %v3036 = vpack.c.b16 %v2946, %v2937
        %v3037 = vpack.c.b16 %v2947, %v2938
        %v3272 = vunpack.c.l.b16 %v2524
        %v3273 = vunpack.c.l.b16 %v2525
        %v3274 = vunpack.c.l.b16 %v2526
        %v3275 = vunpack.c.l.b16 %v2527
        %v3276 = vunpack.c.l.b16 %v2528
        %v3277 = vunpack.c.l.b16 %v2529
        %v3278 = vunpack.c.l.b16 %v2530
        %v3279 = vunpack.c.l.b16 %v2531
        %v3280 = vunpack.c.l.b16 %v2532
        %v3281 = vunpack.c.l.b16 %v2533
        %v3282 = vunpack.c.l.b16 %v2534
        %v3283 = vunpack.c.l.b16 %v2535
        %v3284 = vunpack.c.l.b16 %v2536
        %v3285 = vunpack.c.l.b16 %v2537
        %v3286 = vunpack.c.l.b16 %v2538
        %v3287 = vunpack.c.l.b16 %v2539
        %v3288 = vunpack.c.l.b16 %v2540
        %v3289 = vunpack.c.l.b16 %v2541
        %v3290 = vunpack.c.l.b16 %v2542
        %v3291 = vunpack.c.l.b16 %v2543
        %v3292 = vunpack.c.l.b16 %v2544
        %v3293 = vunpack.c.l.b16 %v2545
        %v3294 = vunpack.c.l.b16 %v2546
        %v3295 = vunpack.c.l.b16 %v2547
        %v3296 = vunpack.c.l.b16 %v2548
        %v3297 = vunpack.c.l.b16 %v2549
        %v3298 = vunpack.c.l.b16 %v2550
        %v3299 = vunpack.c.l.b16 %v2551
        %v3300 = vunpack.c.l.b16 %v2552
        %v3301 = vunpack.c.l.b16 %v2553
        %v3302 = vunpack.c.l.b16 %v2554
        %v3303 = vunpack.c.l.b16 %v2555
        %v3304 = vunpack.c.l.b16 %v2556
        %v3305 = vunpack.c.l.b16 %v2557
        %v3306 = vunpack.c.l.b16 %v2558
        %v3307 = vunpack.c.l.b16 %v2559
        %v3308 = vunpack.c.l.b16 %v2560
        %v3309 = vunpack.c.l.b16 %v2561
        %v3310 = vunpack.c.l.b16 %v2562
        %v3311 = vunpack.c.l.b16 %v2563
        %v3312 = vunpack.c.l.b16 %v2564
        %v3313 = vunpack.c.l.b16 %v2565
        %v3314 = vunpack.c.l.b16 %v2566
        %v3315 = vunpack.c.l.b16 %v2567
        %v3316 = vunpack.c.l.b16 %v2568
        %v3317 = vunpack.c.l.b16 %v2569
        %v3318 = vunpack.c.l.b16 %v2570
        %v3319 = vunpack.c.l.b16 %v2571
        %v3320 = vunpack.c.l.b16 %v2572
        %v3321 = vunpack.c.l.b16 %v2573
        %v3322 = vunpack.c.l.b16 %v2574
        %v3323 = vunpack.c.l.b16 %v2575
        %v3324 = vunpack.c.l.b16 %v2576
        %v3325 = vunpack.c.l.b16 %v2577
        %v3326 = vunpack.c.l.b16 %v2578
        %v3327 = vunpack.c.l.b16 %v2579
        %v3328 = vunpack.c.l.b16 %v2580
        %v3329 = vunpack.c.l.b16 %v2581
        %v3330 = vunpack.c.l.b16 %v2582
        %v3331 = vunpack.c.l.b16 %v2583
        %v3332 = vunpack.c.l.b16 %v2584
        %v3333 = vunpack.c.l.b16 %v2585
        %v3334 = vunpack.c.l.b16 %v2586
        %v3335 = vunpack.c.l.b16 %v2587
        %v3336 = vunpack.c.l.b16 %v2588
        %v3337 = vunpack.c.l.b16 %v2589
        %v3338 = vunpack.c.l.b16 %v2590
        %v3339 = vunpack.c.l.b16 %v2591
        %v3340 = vunpack.c.l.b16 %v2592
        %v3341 = vunpack.c.l.b16 %v2593
        %v3342 = vunpack.c.l.b16 %v2594
        %v3343 = vunpack.c.l.b16 %v2595
        %v3344 = vunpack.c.l.b16 %v2596
        %v3345 = vunpack.c.l.b16 %v2597
        %v3346 = vunpack.c.l.b16 %v2598
        %v3347 = vunpack.c.l.b16 %v2599
        %v3348 = vunpack.c.l.b16 %v2600
        %v3349 = vunpack.c.l.b16 %v2601
        %v3350 = vunpack.c.l.b16 %v2602
        %v3351 = vunpack.c.l.b16 %v2603
        %v3352 = vunpack.c.l.b16 %v2604
        %v3353 = vunpack.c.l.b16 %v2605
        %v3354 = vunpack.c.l.b16 %v2606
        %v3355 = vunpack.c.l.b16 %v2607
        %v3356 = vunpack.c.l.b16 %v2608
        %v3357 = vunpack.c.l.b16 %v2609
        %v3358 = vunpack.c.l.b16 %v2610
        %v3359 = vunpack.c.l.b16 %v2611
        %v3360 = vunpack.c.l.b16 %v2612
        %v3361 = vunpack.c.l.b16 %v2613
        %v3362 = vunpack.c.l.b16 %v2614
        %v3363 = vunpack.c.l.b16 %v2615
        %v3364 = vunpack.c.l.b16 %v2616
        %v3365 = vunpack.c.l.b16 %v2617
        %v3366 = vunpack.c.l.b16 %v2618
        %v3367 = vunpack.c.l.b16 %v2619
        %v3368 = vunpack.c.l.b16 %v2620
        %v3369 = vunpack.c.l.b16 %v2621
        %v3370 = vunpack.c.l.b16 %v2622
        %v3371 = vunpack.c.l.b16 %v2623
        %v3372 = vunpack.c.l.b16 %v2624
        %v3373 = vunpack.c.l.b16 %v2625
        %v3374 = vunpack.c.l.b16 %v2626
        %v3375 = vunpack.c.l.b16 %v2627
        %v3376 = vunpack.c.l.b16 %v2628
        %v3377 = vunpack.c.l.b16 %v2629
        %v3378 = vunpack.c.l.b16 %v2630
        %v3379 = vunpack.c.l.b16 %v2631
        %v3380 = vunpack.c.l.b16 %v2632
        %v3381 = vunpack.c.l.b16 %v2633
        %v3382 = vunpack.c.l.b16 %v2634
        %v3383 = vunpack.c.l.b16 %v2635
        %v3384 = vunpack.c.l.b16 %v2636
        %v3385 = vunpack.c.l.b16 %v2637
        %v3386 = vunpack.c.l.b16 %v2638
        %v3387 = vunpack.c.l.b16 %v2639
        %v3388 = vunpack.c.l.b16 %v2640
        %v3389 = vunpack.c.l.b16 %v2641
        %v3390 = vunpack.c.l.b16 %v2642
        %v3391 = vunpack.c.l.b16 %v2643
        %v3392 = vunpack.c.l.b16 %v2644
        %v3393 = vunpack.c.l.b16 %v2645
        %v3394 = vunpack.c.l.b16 %v2646
        %v3395 = vunpack.c.l.b16 %v2647
        %v3396 = vunpack.c.l.b16 %v2648
        %v3397 = vunpack.c.l.b16 %v2649
        %v3398 = vunpack.c.l.b16 %v2650
        %v3399 = vunpack.c.l.b16 %v2651
        %v3400 = vunpack.c.l.b16 %v2652
        %v3401 = vunpack.c.l.b16 %v2653
        %v3402 = vunpack.c.l.b16 %v2654
        %v3403 = vunpack.c.l.b16 %v2655
        %v3404 = vunpack.c.l.b16 %v2656
        %v3405 = vunpack.c.l.b16 %v2657
        %v3406 = vunpack.c.l.b16 %v2658
        %v3407 = vunpack.c.l.b16 %v2659
        %v3408 = vunpack.c.l.b16 %v2660
        %v3409 = vunpack.c.l.b16 %v2661
        %v3410 = vunpack.c.l.b16 %v2662
        %v3411 = vunpack.c.l.b16 %v2663
        %v3412 = vunpack.c.l.b16 %v2664
        %v3413 = vunpack.c.l.b16 %v2665
        %v3414 = vunpack.c.l.b16 %v2666
        %v3415 = vunpack.c.l.b16 %v2667
        %v3416 = vpack.c.b16 %v3273, %v3272
        %v3417 = vpack.c.b16 %v3275, %v3274
        %v3418 = vpack.c.b16 %v3277, %v3276
        %v3419 = vpack.c.b16 %v3279, %v3278
        %v3420 = vpack.c.b16 %v3281, %v3280
        %v3421 = vpack.c.b16 %v3283, %v3282
        %v3422 = vpack.c.b16 %v3285, %v3284
        %v3423 = vpack.c.b16 %v3287, %v3286
        %v3424 = vpack.c.b16 %v3289, %v3288
        %v3425 = vpack.c.b16 %v3291, %v3290
        %v3426 = vpack.c.b16 %v3293, %v3292
        %v3427 = vpack.c.b16 %v3295, %v3294
        %v3428 = vpack.c.b16 %v3297, %v3296
        %v3429 = vpack.c.b16 %v3299, %v3298
        %v3430 = vpack.c.b16 %v3301, %v3300
        %v3431 = vpack.c.b16 %v3303, %v3302
        %v3432 = vpack.c.b16 %v3305, %v3304
        %v3433 = vpack.c.b16 %v3307, %v3306
        %v3434 = vpack.c.b16 %v3309, %v3308
        %v3435 = vpack.c.b16 %v3311, %v3310
        %v3436 = vpack.c.b16 %v3313, %v3312
        %v3437 = vpack.c.b16 %v3315, %v3314
        %v3438 = vpack.c.b16 %v3317, %v3316
        %v3439 = vpack.c.b16 %v3319, %v3318
        %v3440 = vpack.c.b16 %v3321, %v3320
        %v3441 = vpack.c.b16 %v3323, %v3322
        %v3442 = vpack.c.b16 %v3325, %v3324
        %v3443 = vpack.c.b16 %v3327, %v3326
        %v3444 = vpack.c.b16 %v3329, %v3328
        %v3445 = vpack.c.b16 %v3331, %v3330
        %v3446 = vpack.c.b16 %v3333, %v3332
        %v3447 = vpack.c.b16 %v3335, %v3334
        %v3448 = vpack.c.b16 %v3337, %v3336
        %v3449 = vpack.c.b16 %v3339, %v3338
        %v3450 = vpack.c.b16 %v3341, %v3340
        %v3451 = vpack.c.b16 %v3343, %v3342
        %v3452 = vpack.c.b16 %v3345, %v3344
        %v3453 = vpack.c.b16 %v3347, %v3346
        %v3454 = vpack.c.b16 %v3349, %v3348
        %v3455 = vpack.c.b16 %v3351, %v3350
        %v3456 = vpack.c.b16 %v3353, %v3352
        %v3457 = vpack.c.b16 %v3355, %v3354
        %v3458 = vpack.c.b16 %v3357, %v3356
        %v3459 = vpack.c.b16 %v3359, %v3358
        %v3460 = vpack.c.b16 %v3361, %v3360
        %v3461 = vpack.c.b16 %v3363, %v3362
        %v3462 = vpack.c.b16 %v3365, %v3364
        %v3463 = vpack.c.b16 %v3367, %v3366
        %v3464 = vpack.c.b16 %v3369, %v3368
        %v3465 = vpack.c.b16 %v3371, %v3370
        %v3466 = vpack.c.b16 %v3373, %v3372
        %v3467 = vpack.c.b16 %v3375, %v3374
        %v3468 = vpack.c.b16 %v3377, %v3376
        %v3469 = vpack.c.b16 %v3379, %v3378
        %v3470 = vpack.c.b16 %v3381, %v3380
        %v3471 = vpack.c.b16 %v3383, %v3382
        %v3472 = vpack.c.b16 %v3385, %v3384
        %v3473 = vpack.c.b16 %v3387, %v3386
        %v3474 = vpack.c.b16 %v3389, %v3388
        %v3475 = vpack.c.b16 %v3391, %v3390
        %v3476 = vpack.c.b16 %v3393, %v3392
        %v3477 = vpack.c.b16 %v3395, %v3394
        %v3478 = vpack.c.b16 %v3397, %v3396
        %v3479 = vpack.c.b16 %v3399, %v3398
        %v3480 = vpack.c.b16 %v3401, %v3400
        %v3481 = vpack.c.b16 %v3403, %v3402
        %v3482 = vpack.c.b16 %v3405, %v3404
        %v3483 = vpack.c.b16 %v3407, %v3406
        %v3484 = vpack.c.b16 %v3409, %v3408
        %v3485 = vpack.c.b16 %v3411, %v3410
        %v3486 = vpack.c.b16 %v3413, %v3412
        %v3487 = vpack.c.b16 %v3415, %v3414
        %3560 = vmatpush.bf16.msra.mxu0 %v3423
        %3561 = vmatpush.bf16.msra.mxu0 %v3422
        %3562 = vmatpush.bf16.msra.mxu0 %v3421
        %3563 = vmatpush.bf16.msra.mxu0 %v3420
        %3564 = vmatpush.bf16.msra.mxu0 %v3419
        %3565 = vmatpush.bf16.msra.mxu0 %v3418
        %3566 = vmatpush.bf16.msra.mxu0 %v3417
        %3567 = vmatpush.bf16.msra.mxu0 %v3416
        %3568 = vmatmul.bf16.gmra.mxu0 %v2948
        %v3569 = vpop.f32.mrf.mxu0
        %v3570 = vadd.f32 0.0, %v3569
        %v3571 = vpop.f32.mrf.mxu0
        %v3572 = vadd.f32 0.0, %v3571
        %3573 = vmatmul.bf16.gmra.mxu0 %v2957
        %v3574 = vpop.f32.mrf.mxu0
        %v3575 = vadd.f32 0.0, %v3574
        %v3576 = vpop.f32.mrf.mxu0
        %v3577 = vadd.f32 0.0, %v3576
        %3578 = vmatmul.bf16.gmra.mxu0 %v2966
        %v3579 = vpop.f32.mrf.mxu0
        %v3580 = vadd.f32 0.0, %v3579
        %v3581 = vpop.f32.mrf.mxu0
        %v3582 = vadd.f32 0.0, %v3581
        %3583 = vmatmul.bf16.gmra.mxu0 %v2975
        %v3584 = vpop.f32.mrf.mxu0
        %v3585 = vadd.f32 0.0, %v3584
        %v3586 = vpop.f32.mrf.mxu0
        %v3587 = vadd.f32 0.0, %v3586
        %3588 = vmatmul.bf16.gmra.mxu0 %v2984
        %v3589 = vpop.f32.mrf.mxu0
        %v3590 = vadd.f32 0.0, %v3589
        %v3591 = vpop.f32.mrf.mxu0
        %v3592 = vadd.f32 0.0, %v3591
        %3593 = vmatmul.bf16.gmra.mxu0 %v2993
        %v3594 = vpop.f32.mrf.mxu0
        %v3595 = vadd.f32 0.0, %v3594
        %v3596 = vpop.f32.mrf.mxu0
        %v3597 = vadd.f32 0.0, %v3596
        %3598 = vmatmul.bf16.gmra.mxu0 %v3002
        %v3599 = vpop.f32.mrf.mxu0
        %v3600 = vadd.f32 0.0, %v3599
        %v3601 = vpop.f32.mrf.mxu0
        %v3602 = vadd.f32 0.0, %v3601
        %3603 = vmatmul.bf16.gmra.mxu0 %v3011
        %v3604 = vpop.f32.mrf.mxu0
        %v3605 = vadd.f32 0.0, %v3604
        %v3606 = vpop.f32.mrf.mxu0
        %v3607 = vadd.f32 0.0, %v3606
        %3608 = vmatmul.bf16.gmra.mxu0 %v3020
        %v3609 = vpop.f32.mrf.mxu0
        %v3610 = vadd.f32 0.0, %v3609
        %v3611 = vpop.f32.mrf.mxu0
        %v3612 = vadd.f32 0.0, %v3611
        %3613 = vmatmul.bf16.gmra.mxu0 %v3029
        %v3614 = vpop.f32.mrf.mxu0
        %v3615 = vadd.f32 0.0, %v3614
        %v3616 = vpop.f32.mrf.mxu0
        %v3617 = vadd.f32 0.0, %v3616
        %3618 = vdwg.mxu0
        %3619 = vmatpush.bf16.msra.mxu0 %v3431
        %3620 = vmatpush.bf16.msra.mxu0 %v3430
        %3621 = vmatpush.bf16.msra.mxu0 %v3429
        %3622 = vmatpush.bf16.msra.mxu0 %v3428
        %3623 = vmatpush.bf16.msra.mxu0 %v3427
        %3624 = vmatpush.bf16.msra.mxu0 %v3426
        %3625 = vmatpush.bf16.msra.mxu0 %v3425
        %3626 = vmatpush.bf16.msra.mxu0 %v3424
        %3627 = vmatmul.bf16.gmra.mxu0 %v2949
        %v3628 = vpop.f32.mrf.mxu0
        %v3629 = vadd.f32 %v3570, %v3628
        %v3630 = vpop.f32.mrf.mxu0
        %v3631 = vadd.f32 %v3572, %v3630
        %3632 = vmatmul.bf16.gmra.mxu0 %v2958
        %v3633 = vpop.f32.mrf.mxu0
        %v3634 = vadd.f32 %v3575, %v3633
        %v3635 = vpop.f32.mrf.mxu0
        %v3636 = vadd.f32 %v3577, %v3635
        %3637 = vmatmul.bf16.gmra.mxu0 %v2967
        %v3638 = vpop.f32.mrf.mxu0
        %v3639 = vadd.f32 %v3580, %v3638
        %v3640 = vpop.f32.mrf.mxu0
        %v3641 = vadd.f32 %v3582, %v3640
        %3642 = vmatmul.bf16.gmra.mxu0 %v2976
        %v3643 = vpop.f32.mrf.mxu0
        %v3644 = vadd.f32 %v3585, %v3643
        %v3645 = vpop.f32.mrf.mxu0
        %v3646 = vadd.f32 %v3587, %v3645
        %3647 = vmatmul.bf16.gmra.mxu0 %v2985
        %v3648 = vpop.f32.mrf.mxu0
        %v3649 = vadd.f32 %v3590, %v3648
        %v3650 = vpop.f32.mrf.mxu0
        %v3651 = vadd.f32 %v3592, %v3650
        %3652 = vmatmul.bf16.gmra.mxu0 %v2994
        %v3653 = vpop.f32.mrf.mxu0
        %v3654 = vadd.f32 %v3595, %v3653
        %v3655 = vpop.f32.mrf.mxu0
        %v3656 = vadd.f32 %v3597, %v3655
        %3657 = vmatmul.bf16.gmra.mxu0 %v3003
        %v3658 = vpop.f32.mrf.mxu0
        %v3659 = vadd.f32 %v3600, %v3658
        %v3660 = vpop.f32.mrf.mxu0
        %v3661 = vadd.f32 %v3602, %v3660
        %3662 = vmatmul.bf16.gmra.mxu0 %v3012
        %v3663 = vpop.f32.mrf.mxu0
        %v3664 = vadd.f32 %v3605, %v3663
        %v3665 = vpop.f32.mrf.mxu0
        %v3666 = vadd.f32 %v3607, %v3665
        %3667 = vmatmul.bf16.gmra.mxu0 %v3021
        %v3668 = vpop.f32.mrf.mxu0
        %v3669 = vadd.f32 %v3610, %v3668
        %v3670 = vpop.f32.mrf.mxu0
        %v3671 = vadd.f32 %v3612, %v3670
        %3672 = vmatmul.bf16.gmra.mxu0 %v3030
        %v3673 = vpop.f32.mrf.mxu0
        %v3674 = vadd.f32 %v3615, %v3673
        %v3675 = vpop.f32.mrf.mxu0
        %v3676 = vadd.f32 %v3617, %v3675
        %3677 = vdwg.mxu0
        %3678 = vmatpush.bf16.msra.mxu0 %v3439
        %3679 = vmatpush.bf16.msra.mxu0 %v3438
        %3680 = vmatpush.bf16.msra.mxu0 %v3437
        %3681 = vmatpush.bf16.msra.mxu0 %v3436
        %3682 = vmatpush.bf16.msra.mxu0 %v3435
        %3683 = vmatpush.bf16.msra.mxu0 %v3434
        %3684 = vmatpush.bf16.msra.mxu0 %v3433
        %3685 = vmatpush.bf16.msra.mxu0 %v3432
        %3686 = vmatmul.bf16.gmra.mxu0 %v2950
        %v3687 = vpop.f32.mrf.mxu0
        %v3688 = vadd.f32 %v3629, %v3687
        %v3689 = vpop.f32.mrf.mxu0
        %v3690 = vadd.f32 %v3631, %v3689
        %3691 = vmatmul.bf16.gmra.mxu0 %v2959
        %v3692 = vpop.f32.mrf.mxu0
        %v3693 = vadd.f32 %v3634, %v3692
        %v3694 = vpop.f32.mrf.mxu0
        %v3695 = vadd.f32 %v3636, %v3694
        %3696 = vmatmul.bf16.gmra.mxu0 %v2968
        %v3697 = vpop.f32.mrf.mxu0
        %v3698 = vadd.f32 %v3639, %v3697
        %v3699 = vpop.f32.mrf.mxu0
        %v3700 = vadd.f32 %v3641, %v3699
        %3701 = vmatmul.bf16.gmra.mxu0 %v2977
        %v3702 = vpop.f32.mrf.mxu0
        %v3703 = vadd.f32 %v3644, %v3702
        %v3704 = vpop.f32.mrf.mxu0
        %v3705 = vadd.f32 %v3646, %v3704
        %3706 = vmatmul.bf16.gmra.mxu0 %v2986
        %v3707 = vpop.f32.mrf.mxu0
        %v3708 = vadd.f32 %v3649, %v3707
        %v3709 = vpop.f32.mrf.mxu0
        %v3710 = vadd.f32 %v3651, %v3709
        %3711 = vmatmul.bf16.gmra.mxu0 %v2995
        %v3712 = vpop.f32.mrf.mxu0
        %v3713 = vadd.f32 %v3654, %v3712
        %v3714 = vpop.f32.mrf.mxu0
        %v3715 = vadd.f32 %v3656, %v3714
        %3716 = vmatmul.bf16.gmra.mxu0 %v3004
        %v3717 = vpop.f32.mrf.mxu0
        %v3718 = vadd.f32 %v3659, %v3717
        %v3719 = vpop.f32.mrf.mxu0
        %v3720 = vadd.f32 %v3661, %v3719
        %3721 = vmatmul.bf16.gmra.mxu0 %v3013
        %v3722 = vpop.f32.mrf.mxu0
        %v3723 = vadd.f32 %v3664, %v3722
        %v3724 = vpop.f32.mrf.mxu0
        %v3725 = vadd.f32 %v3666, %v3724
        %3726 = vmatmul.bf16.gmra.mxu0 %v3022
        %v3727 = vpop.f32.mrf.mxu0
        %v3728 = vadd.f32 %v3669, %v3727
        %v3729 = vpop.f32.mrf.mxu0
        %v3730 = vadd.f32 %v3671, %v3729
        %3731 = vmatmul.bf16.gmra.mxu0 %v3031
        %v3732 = vpop.f32.mrf.mxu0
        %v3733 = vadd.f32 %v3674, %v3732
        %v3734 = vpop.f32.mrf.mxu0
        %v3735 = vadd.f32 %v3676, %v3734
        %3736 = vdwg.mxu0
        %3737 = vmatpush.bf16.msra.mxu0 %v3447
        %3738 = vmatpush.bf16.msra.mxu0 %v3446
        %3739 = vmatpush.bf16.msra.mxu0 %v3445
        %3740 = vmatpush.bf16.msra.mxu0 %v3444
        %3741 = vmatpush.bf16.msra.mxu0 %v3443
        %3742 = vmatpush.bf16.msra.mxu0 %v3442
        %3743 = vmatpush.bf16.msra.mxu0 %v3441
        %3744 = vmatpush.bf16.msra.mxu0 %v3440
        %3745 = vmatmul.bf16.gmra.mxu0 %v2951
        %v3746 = vpop.f32.mrf.mxu0
        %v3747 = vadd.f32 %v3688, %v3746
        %v3748 = vpop.f32.mrf.mxu0
        %v3749 = vadd.f32 %v3690, %v3748
        %3750 = vmatmul.bf16.gmra.mxu0 %v2960
        %v3751 = vpop.f32.mrf.mxu0
        %v3752 = vadd.f32 %v3693, %v3751
        %v3753 = vpop.f32.mrf.mxu0
        %v3754 = vadd.f32 %v3695, %v3753
        %3755 = vmatmul.bf16.gmra.mxu0 %v2969
        %v3756 = vpop.f32.mrf.mxu0
        %v3757 = vadd.f32 %v3698, %v3756
        %v3758 = vpop.f32.mrf.mxu0
        %v3759 = vadd.f32 %v3700, %v3758
        %3760 = vmatmul.bf16.gmra.mxu0 %v2978
        %v3761 = vpop.f32.mrf.mxu0
        %v3762 = vadd.f32 %v3703, %v3761
        %v3763 = vpop.f32.mrf.mxu0
        %v3764 = vadd.f32 %v3705, %v3763
        %3765 = vmatmul.bf16.gmra.mxu0 %v2987
        %v3766 = vpop.f32.mrf.mxu0
        %v3767 = vadd.f32 %v3708, %v3766
        %v3768 = vpop.f32.mrf.mxu0
        %v3769 = vadd.f32 %v3710, %v3768
        %3770 = vmatmul.bf16.gmra.mxu0 %v2996
        %v3771 = vpop.f32.mrf.mxu0
        %v3772 = vadd.f32 %v3713, %v3771
        %v3773 = vpop.f32.mrf.mxu0
        %v3774 = vadd.f32 %v3715, %v3773
        %3775 = vmatmul.bf16.gmra.mxu0 %v3005
        %v3776 = vpop.f32.mrf.mxu0
        %v3777 = vadd.f32 %v3718, %v3776
        %v3778 = vpop.f32.mrf.mxu0
        %v3779 = vadd.f32 %v3720, %v3778
        %3780 = vmatmul.bf16.gmra.mxu0 %v3014
        %v3781 = vpop.f32.mrf.mxu0
        %v3782 = vadd.f32 %v3723, %v3781
        %v3783 = vpop.f32.mrf.mxu0
        %v3784 = vadd.f32 %v3725, %v3783
        %3785 = vmatmul.bf16.gmra.mxu0 %v3023
        %v3786 = vpop.f32.mrf.mxu0
        %v3787 = vadd.f32 %v3728, %v3786
        %v3788 = vpop.f32.mrf.mxu0
        %v3789 = vadd.f32 %v3730, %v3788
        %3790 = vmatmul.bf16.gmra.mxu0 %v3032
        %v3791 = vpop.f32.mrf.mxu0
        %v3792 = vadd.f32 %v3733, %v3791
        %v3793 = vpop.f32.mrf.mxu0
        %v3794 = vadd.f32 %v3735, %v3793
        %3795 = vdwg.mxu0
        %3796 = vmatpush.bf16.msra.mxu0 %v3455
        %3797 = vmatpush.bf16.msra.mxu0 %v3454
        %3798 = vmatpush.bf16.msra.mxu0 %v3453
        %3799 = vmatpush.bf16.msra.mxu0 %v3452
        %3800 = vmatpush.bf16.msra.mxu0 %v3451
        %3801 = vmatpush.bf16.msra.mxu0 %v3450
        %3802 = vmatpush.bf16.msra.mxu0 %v3449
        %3803 = vmatpush.bf16.msra.mxu0 %v3448
        %3804 = vmatmul.bf16.gmra.mxu0 %v2952
        %v3805 = vpop.f32.mrf.mxu0
        %v3806 = vadd.f32 %v3747, %v3805
        %v3807 = vpop.f32.mrf.mxu0
        %v3808 = vadd.f32 %v3749, %v3807
        %3809 = vmatmul.bf16.gmra.mxu0 %v2961
        %v3810 = vpop.f32.mrf.mxu0
        %v3811 = vadd.f32 %v3752, %v3810
        %v3812 = vpop.f32.mrf.mxu0
        %v3813 = vadd.f32 %v3754, %v3812
        %3814 = vmatmul.bf16.gmra.mxu0 %v2970
        %v3815 = vpop.f32.mrf.mxu0
        %v3816 = vadd.f32 %v3757, %v3815
        %v3817 = vpop.f32.mrf.mxu0
        %v3818 = vadd.f32 %v3759, %v3817
        %3819 = vmatmul.bf16.gmra.mxu0 %v2979
        %v3820 = vpop.f32.mrf.mxu0
        %v3821 = vadd.f32 %v3762, %v3820
        %v3822 = vpop.f32.mrf.mxu0
        %v3823 = vadd.f32 %v3764, %v3822
        %3824 = vmatmul.bf16.gmra.mxu0 %v2988
        %v3825 = vpop.f32.mrf.mxu0
        %v3826 = vadd.f32 %v3767, %v3825
        %v3827 = vpop.f32.mrf.mxu0
        %v3828 = vadd.f32 %v3769, %v3827
        %3829 = vmatmul.bf16.gmra.mxu0 %v2997
        %v3830 = vpop.f32.mrf.mxu0
        %v3831 = vadd.f32 %v3772, %v3830
        %v3832 = vpop.f32.mrf.mxu0
        %v3833 = vadd.f32 %v3774, %v3832
        %3834 = vmatmul.bf16.gmra.mxu0 %v3006
        %v3835 = vpop.f32.mrf.mxu0
        %v3836 = vadd.f32 %v3777, %v3835
        %v3837 = vpop.f32.mrf.mxu0
        %v3838 = vadd.f32 %v3779, %v3837
        %3839 = vmatmul.bf16.gmra.mxu0 %v3015
        %v3840 = vpop.f32.mrf.mxu0
        %v3841 = vadd.f32 %v3782, %v3840
        %v3842 = vpop.f32.mrf.mxu0
        %v3843 = vadd.f32 %v3784, %v3842
        %3844 = vmatmul.bf16.gmra.mxu0 %v3024
        %v3845 = vpop.f32.mrf.mxu0
        %v3846 = vadd.f32 %v3787, %v3845
        %v3847 = vpop.f32.mrf.mxu0
        %v3848 = vadd.f32 %v3789, %v3847
        %3849 = vmatmul.bf16.gmra.mxu0 %v3033
        %v3850 = vpop.f32.mrf.mxu0
        %v3851 = vadd.f32 %v3792, %v3850
        %v3852 = vpop.f32.mrf.mxu0
        %v3853 = vadd.f32 %v3794, %v3852
        %3854 = vdwg.mxu0
        %3855 = vmatpush.bf16.msra.mxu0 %v3463
        %3856 = vmatpush.bf16.msra.mxu0 %v3462
        %3857 = vmatpush.bf16.msra.mxu0 %v3461
        %3858 = vmatpush.bf16.msra.mxu0 %v3460
        %3859 = vmatpush.bf16.msra.mxu0 %v3459
        %3860 = vmatpush.bf16.msra.mxu0 %v3458
        %3861 = vmatpush.bf16.msra.mxu0 %v3457
        %3862 = vmatpush.bf16.msra.mxu0 %v3456
        %3863 = vmatmul.bf16.gmra.mxu0 %v2953
        %v3864 = vpop.f32.mrf.mxu0
        %v3865 = vadd.f32 %v3806, %v3864
        %v3866 = vpop.f32.mrf.mxu0
        %v3867 = vadd.f32 %v3808, %v3866
        %3868 = vmatmul.bf16.gmra.mxu0 %v2962
        %v3869 = vpop.f32.mrf.mxu0
        %v3870 = vadd.f32 %v3811, %v3869
        %v3871 = vpop.f32.mrf.mxu0
        %v3872 = vadd.f32 %v3813, %v3871
        %3873 = vmatmul.bf16.gmra.mxu0 %v2971
        %v3874 = vpop.f32.mrf.mxu0
        %v3875 = vadd.f32 %v3816, %v3874
        %v3876 = vpop.f32.mrf.mxu0
        %v3877 = vadd.f32 %v3818, %v3876
        %3878 = vmatmul.bf16.gmra.mxu0 %v2980
        %v3879 = vpop.f32.mrf.mxu0
        %v3880 = vadd.f32 %v3821, %v3879
        %v3881 = vpop.f32.mrf.mxu0
        %v3882 = vadd.f32 %v3823, %v3881
        %3883 = vmatmul.bf16.gmra.mxu0 %v2989
        %v3884 = vpop.f32.mrf.mxu0
        %v3885 = vadd.f32 %v3826, %v3884
        %v3886 = vpop.f32.mrf.mxu0
        %v3887 = vadd.f32 %v3828, %v3886
        %3888 = vmatmul.bf16.gmra.mxu0 %v2998
        %v3889 = vpop.f32.mrf.mxu0
        %v3890 = vadd.f32 %v3831, %v3889
        %v3891 = vpop.f32.mrf.mxu0
        %v3892 = vadd.f32 %v3833, %v3891
        %3893 = vmatmul.bf16.gmra.mxu0 %v3007
        %v3894 = vpop.f32.mrf.mxu0
        %v3895 = vadd.f32 %v3836, %v3894
        %v3896 = vpop.f32.mrf.mxu0
        %v3897 = vadd.f32 %v3838, %v3896
        %3898 = vmatmul.bf16.gmra.mxu0 %v3016
        %v3899 = vpop.f32.mrf.mxu0
        %v3900 = vadd.f32 %v3841, %v3899
        %v3901 = vpop.f32.mrf.mxu0
        %v3902 = vadd.f32 %v3843, %v3901
        %3903 = vmatmul.bf16.gmra.mxu0 %v3025
        %v3904 = vpop.f32.mrf.mxu0
        %v3905 = vadd.f32 %v3846, %v3904
        %v3906 = vpop.f32.mrf.mxu0
        %v3907 = vadd.f32 %v3848, %v3906
        %3908 = vmatmul.bf16.gmra.mxu0 %v3034
        %v3909 = vpop.f32.mrf.mxu0
        %v3910 = vadd.f32 %v3851, %v3909
        %v3911 = vpop.f32.mrf.mxu0
        %v3912 = vadd.f32 %v3853, %v3911
        %3913 = vdwg.mxu0
        %3914 = vmatpush.bf16.msra.mxu0 %v3471
        %3915 = vmatpush.bf16.msra.mxu0 %v3470
        %3916 = vmatpush.bf16.msra.mxu0 %v3469
        %3917 = vmatpush.bf16.msra.mxu0 %v3468
        %3918 = vmatpush.bf16.msra.mxu0 %v3467
        %3919 = vmatpush.bf16.msra.mxu0 %v3466
        %3920 = vmatpush.bf16.msra.mxu0 %v3465
        %3921 = vmatpush.bf16.msra.mxu0 %v3464
        %3922 = vmatmul.bf16.gmra.mxu0 %v2954
        %v3923 = vpop.f32.mrf.mxu0
        %v3924 = vadd.f32 %v3865, %v3923
        %v3925 = vpop.f32.mrf.mxu0
        %v3926 = vadd.f32 %v3867, %v3925
        %3927 = vmatmul.bf16.gmra.mxu0 %v2963
        %v3928 = vpop.f32.mrf.mxu0
        %v3929 = vadd.f32 %v3870, %v3928
        %v3930 = vpop.f32.mrf.mxu0
        %v3931 = vadd.f32 %v3872, %v3930
        %3932 = vmatmul.bf16.gmra.mxu0 %v2972
        %v3933 = vpop.f32.mrf.mxu0
        %v3934 = vadd.f32 %v3875, %v3933
        %v3935 = vpop.f32.mrf.mxu0
        %v3936 = vadd.f32 %v3877, %v3935
        %3937 = vmatmul.bf16.gmra.mxu0 %v2981
        %v3938 = vpop.f32.mrf.mxu0
        %v3939 = vadd.f32 %v3880, %v3938
        %v3940 = vpop.f32.mrf.mxu0
        %v3941 = vadd.f32 %v3882, %v3940
        %3942 = vmatmul.bf16.gmra.mxu0 %v2990
        %v3943 = vpop.f32.mrf.mxu0
        %v3944 = vadd.f32 %v3885, %v3943
        %v3945 = vpop.f32.mrf.mxu0
        %v3946 = vadd.f32 %v3887, %v3945
        %3947 = vmatmul.bf16.gmra.mxu0 %v2999
        %v3948 = vpop.f32.mrf.mxu0
        %v3949 = vadd.f32 %v3890, %v3948
        %v3950 = vpop.f32.mrf.mxu0
        %v3951 = vadd.f32 %v3892, %v3950
        %3952 = vmatmul.bf16.gmra.mxu0 %v3008
        %v3953 = vpop.f32.mrf.mxu0
        %v3954 = vadd.f32 %v3895, %v3953
        %v3955 = vpop.f32.mrf.mxu0
        %v3956 = vadd.f32 %v3897, %v3955
        %3957 = vmatmul.bf16.gmra.mxu0 %v3017
        %v3958 = vpop.f32.mrf.mxu0
        %v3959 = vadd.f32 %v3900, %v3958
        %v3960 = vpop.f32.mrf.mxu0
        %v3961 = vadd.f32 %v3902, %v3960
        %3962 = vmatmul.bf16.gmra.mxu0 %v3026
        %v3963 = vpop.f32.mrf.mxu0
        %v3964 = vadd.f32 %v3905, %v3963
        %v3965 = vpop.f32.mrf.mxu0
        %v3966 = vadd.f32 %v3907, %v3965
        %3967 = vmatmul.bf16.gmra.mxu0 %v3035
        %v3968 = vpop.f32.mrf.mxu0
        %v3969 = vadd.f32 %v3910, %v3968
        %v3970 = vpop.f32.mrf.mxu0
        %v3971 = vadd.f32 %v3912, %v3970
        %3972 = vdwg.mxu0
        %3973 = vmatpush.bf16.msra.mxu0 %v3479
        %3974 = vmatpush.bf16.msra.mxu0 %v3478
        %3975 = vmatpush.bf16.msra.mxu0 %v3477
        %3976 = vmatpush.bf16.msra.mxu0 %v3476
        %3977 = vmatpush.bf16.msra.mxu0 %v3475
        %3978 = vmatpush.bf16.msra.mxu0 %v3474
        %3979 = vmatpush.bf16.msra.mxu0 %v3473
        %3980 = vmatpush.bf16.msra.mxu0 %v3472
        %3981 = vmatmul.bf16.gmra.mxu0 %v2955
        %v3982 = vpop.f32.mrf.mxu0
        %v3983 = vadd.f32 %v3924, %v3982
        %v3984 = vpop.f32.mrf.mxu0
        %v3985 = vadd.f32 %v3926, %v3984
        %3986 = vmatmul.bf16.gmra.mxu0 %v2964
        %v3987 = vpop.f32.mrf.mxu0
        %v3988 = vadd.f32 %v3929, %v3987
        %v3989 = vpop.f32.mrf.mxu0
        %v3990 = vadd.f32 %v3931, %v3989
        %3991 = vmatmul.bf16.gmra.mxu0 %v2973
        %v3992 = vpop.f32.mrf.mxu0
        %v3993 = vadd.f32 %v3934, %v3992
        %v3994 = vpop.f32.mrf.mxu0
        %v3995 = vadd.f32 %v3936, %v3994
        %3996 = vmatmul.bf16.gmra.mxu0 %v2982
        %v3997 = vpop.f32.mrf.mxu0
        %v3998 = vadd.f32 %v3939, %v3997
        %v3999 = vpop.f32.mrf.mxu0
        %v4000 = vadd.f32 %v3941, %v3999
        %4001 = vmatmul.bf16.gmra.mxu0 %v2991
        %v4002 = vpop.f32.mrf.mxu0
        %v4003 = vadd.f32 %v3944, %v4002
        %v4004 = vpop.f32.mrf.mxu0
        %v4005 = vadd.f32 %v3946, %v4004
        %4006 = vmatmul.bf16.gmra.mxu0 %v3000
        %v4007 = vpop.f32.mrf.mxu0
        %v4008 = vadd.f32 %v3949, %v4007
        %v4009 = vpop.f32.mrf.mxu0
        %v4010 = vadd.f32 %v3951, %v4009
        %4011 = vmatmul.bf16.gmra.mxu0 %v3009
        %v4012 = vpop.f32.mrf.mxu0
        %v4013 = vadd.f32 %v3954, %v4012
        %v4014 = vpop.f32.mrf.mxu0
        %v4015 = vadd.f32 %v3956, %v4014
        %4016 = vmatmul.bf16.gmra.mxu0 %v3018
        %v4017 = vpop.f32.mrf.mxu0
        %v4018 = vadd.f32 %v3959, %v4017
        %v4019 = vpop.f32.mrf.mxu0
        %v4020 = vadd.f32 %v3961, %v4019
        %4021 = vmatmul.bf16.gmra.mxu0 %v3027
        %v4022 = vpop.f32.mrf.mxu0
        %v4023 = vadd.f32 %v3964, %v4022
        %v4024 = vpop.f32.mrf.mxu0
        %v4025 = vadd.f32 %v3966, %v4024
        %4026 = vmatmul.bf16.gmra.mxu0 %v3036
        %v4027 = vpop.f32.mrf.mxu0
        %v4028 = vadd.f32 %v3969, %v4027
        %v4029 = vpop.f32.mrf.mxu0
        %v4030 = vadd.f32 %v3971, %v4029
        %4031 = vdwg.mxu0
        %4032 = vmatpush.bf16.msra.mxu0 %v3487
        %4033 = vmatpush.bf16.msra.mxu0 %v3486
        %4034 = vmatpush.bf16.msra.mxu0 %v3485
        %4035 = vmatpush.bf16.msra.mxu0 %v3484
        %4036 = vmatpush.bf16.msra.mxu0 %v3483
        %4037 = vmatpush.bf16.msra.mxu0 %v3482
        %4038 = vmatpush.bf16.msra.mxu0 %v3481
        %4039 = vmatpush.bf16.msra.mxu0 %v3480
        %4040 = vmatmul.bf16.gmra.mxu0 %v2956
        %v4041 = vpop.f32.mrf.mxu0
        %v4042 = vadd.f32 %v3983, %v4041
        %v4043 = vpop.f32.mrf.mxu0
        %v4044 = vadd.f32 %v3985, %v4043
        %4045 = vmatmul.bf16.gmra.mxu0 %v2965
        %v4046 = vpop.f32.mrf.mxu0
        %v4047 = vadd.f32 %v3988, %v4046
        %v4048 = vpop.f32.mrf.mxu0
        %v4049 = vadd.f32 %v3990, %v4048
        %4050 = vmatmul.bf16.gmra.mxu0 %v2974
        %v4051 = vpop.f32.mrf.mxu0
        %v4052 = vadd.f32 %v3993, %v4051
        %v4053 = vpop.f32.mrf.mxu0
        %v4054 = vadd.f32 %v3995, %v4053
        %4055 = vmatmul.bf16.gmra.mxu0 %v2983
        %v4056 = vpop.f32.mrf.mxu0
        %v4057 = vadd.f32 %v3998, %v4056
        %v4058 = vpop.f32.mrf.mxu0
        %v4059 = vadd.f32 %v4000, %v4058
        %4060 = vmatmul.bf16.gmra.mxu0 %v2992
        %v4061 = vpop.f32.mrf.mxu0
        %v4062 = vadd.f32 %v4003, %v4061
        %v4063 = vpop.f32.mrf.mxu0
        %v4064 = vadd.f32 %v4005, %v4063
        %4065 = vmatmul.bf16.gmra.mxu0 %v3001
        %v4066 = vpop.f32.mrf.mxu0
        %v4067 = vadd.f32 %v4008, %v4066
        %v4068 = vpop.f32.mrf.mxu0
        %v4069 = vadd.f32 %v4010, %v4068
        %4070 = vmatmul.bf16.gmra.mxu0 %v3010
        %v4071 = vpop.f32.mrf.mxu0
        %v4072 = vadd.f32 %v4013, %v4071
        %v4073 = vpop.f32.mrf.mxu0
        %v4074 = vadd.f32 %v4015, %v4073
        %4075 = vmatmul.bf16.gmra.mxu0 %v3019
        %v4076 = vpop.f32.mrf.mxu0
        %v4077 = vadd.f32 %v4018, %v4076
        %v4078 = vpop.f32.mrf.mxu0
        %v4079 = vadd.f32 %v4020, %v4078
        %4080 = vmatmul.bf16.gmra.mxu0 %v3028
        %v4081 = vpop.f32.mrf.mxu0
        %v4082 = vadd.f32 %v4023, %v4081
        %v4083 = vpop.f32.mrf.mxu0
        %v4084 = vadd.f32 %v4025, %v4083
        %4085 = vmatmul.bf16.gmra.mxu0 %v3037
        %v4086 = vpop.f32.mrf.mxu0
        %v4087 = vadd.f32 %v4028, %v4086
        %v4088 = vpop.f32.mrf.mxu0
        %v4089 = vadd.f32 %v4030, %v4088
        %4090 = vdwg.mxu0
        %v4091 = vld [vmem:[%s3] sm:$0x1]
        %v4093 = vperm.slane %v4091, 0
        %v4095 = vmul.f32 %v4042, %v4093
        %v4096 = vmul.f32 %v4044, %v4093
        %v4097 = vmul.f32 %v4047, %v4093
        %v4098 = vmul.f32 %v4049, %v4093
        %v4099 = vmul.f32 %v4052, %v4093
        %v4100 = vmul.f32 %v4054, %v4093
        %v4101 = vmul.f32 %v4057, %v4093
        %v4102 = vmul.f32 %v4059, %v4093
        %v4103 = vmul.f32 %v4062, %v4093
        %v4104 = vmul.f32 %v4064, %v4093
        %v4105 = vmul.f32 %v4067, %v4093
        %v4106 = vmul.f32 %v4069, %v4093
        %v4107 = vmul.f32 %v4072, %v4093
        %v4108 = vmul.f32 %v4074, %v4093
        %v4109 = vmul.f32 %v4077, %v4093
        %v4110 = vmul.f32 %v4079, %v4093
        %v4111 = vmul.f32 %v4082, %v4093
        %v4112 = vmul.f32 %v4084, %v4093
        %v4113 = vmul.f32 %v4087, %v4093
        %v4114 = vmul.f32 %v4089, %v4093
        %v4115 = vld [vmem:[%s4] sm:$0x1]
        %v4117 = vperm.slane %v4115, 0
        %v4119 = vadd.f32 %v4095, %v4117
        %v4120 = vadd.f32 %v4096, %v4117
        %v4121 = vadd.f32 %v4097, %v4117
        %v4122 = vadd.f32 %v4098, %v4117
        %v4123 = vadd.f32 %v4099, %v4117
        %v4124 = vadd.f32 %v4100, %v4117
        %v4125 = vadd.f32 %v4101, %v4117
        %v4126 = vadd.f32 %v4102, %v4117
        %v4127 = vadd.f32 %v4103, %v4117
        %v4128 = vadd.f32 %v4104, %v4117
        %v4129 = vadd.f32 %v4105, %v4117
        %v4130 = vadd.f32 %v4106, %v4117
        %v4131 = vadd.f32 %v4107, %v4117
        %v4132 = vadd.f32 %v4108, %v4117
        %v4133 = vadd.f32 %v4109, %v4117
        %v4134 = vadd.f32 %v4110, %v4117
        %v4135 = vadd.f32 %v4111, %v4117
        %v4136 = vadd.f32 %v4112, %v4117
        %v4137 = vadd.f32 %v4113, %v4117
        %v4138 = vadd.f32 %v4114, %v4117
        %v4139 = vmax.f32 %v4119, 0.0
        %v4140 = vmax.f32 %v4120, 0.0
        %v4141 = vmax.f32 %v4121, 0.0
        %v4142 = vmax.f32 %v4122, 0.0
        %v4143 = vmax.f32 %v4123, 0.0
        %v4144 = vmax.f32 %v4124, 0.0
        %v4145 = vmax.f32 %v4125, 0.0
        %v4146 = vmax.f32 %v4126, 0.0
        %v4147 = vmax.f32 %v4127, 0.0
        %v4148 = vmax.f32 %v4128, 0.0
        %v4149 = vmax.f32 %v4129, 0.0
        %v4150 = vmax.f32 %v4130, 0.0
        %v4151 = vmax.f32 %v4131, 0.0
        %v4152 = vmax.f32 %v4132, 0.0
        %v4153 = vmax.f32 %v4133, 0.0
        %v4154 = vmax.f32 %v4134, 0.0
        %v4155 = vmax.f32 %v4135, 0.0
        %v4156 = vmax.f32 %v4136, 0.0
        %v4157 = vmax.f32 %v4137, 0.0
        %v4158 = vmax.f32 %v4138, 0.0
        %v4159 = vpack.c.bf16 %v4139, %v4139
        %v4160 = vpack.c.bf16 %v4140, %v4140
        %v4161 = vpack.c.bf16 %v4141, %v4141
        %v4162 = vpack.c.bf16 %v4142, %v4142
        %v4163 = vpack.c.bf16 %v4143, %v4143
        %v4164 = vpack.c.bf16 %v4144, %v4144
        %v4165 = vpack.c.bf16 %v4145, %v4145
        %v4166 = vpack.c.bf16 %v4146, %v4146
        %v4167 = vpack.c.bf16 %v4147, %v4147
        %v4168 = vpack.c.bf16 %v4148, %v4148
        %v4169 = vpack.c.bf16 %v4149, %v4149
        %v4170 = vpack.c.bf16 %v4150, %v4150
        %v4171 = vpack.c.bf16 %v4151, %v4151
        %v4172 = vpack.c.bf16 %v4152, %v4152
        %v4173 = vpack.c.bf16 %v4153, %v4153
        %v4174 = vpack.c.bf16 %v4154, %v4154
        %v4175 = vpack.c.bf16 %v4155, %v4155
        %v4176 = vpack.c.bf16 %v4156, %v4156
        %v4177 = vpack.c.bf16 %v4157, %v4157
        %v4178 = vpack.c.bf16 %v4158, %v4158
        %v4180 = vshrl.u32 %v4159, 16
        %v4182 = vrot.slane %v4180, 7
        %v4183 = vshll.u32 %v4159, 16
        %v4185 = vor.u32 %v4182, %v4183
        %v4186 = vrot.slane %v4182, 4
        %v4188 = vshrl.u32 %v4160, 16
        %v4190 = vrot.slane %v4188, 7
        %v4191 = vshll.u32 %v4160, 16
        %v4193 = vor.u32 %v4190, %v4191
        %v4194 = vsel %vm461, %v4186, %v4193
        %v4195 = vrot.slane %v4190, 4
        %v4197 = vshrl.u32 %v4161, 16
        %v4199 = vrot.slane %v4197, 7
        %v4200 = vshll.u32 %v4161, 16
        %v4202 = vor.u32 %v4199, %v4200
        %v4203 = vrot.slane %v4199, 4
        %v4205 = vshrl.u32 %v4162, 16
        %v4207 = vrot.slane %v4205, 7
        %v4208 = vshll.u32 %v4162, 16
        %v4210 = vor.u32 %v4207, %v4208
        %v4211 = vsel %vm461, %v4203, %v4210
        %v4212 = vrot.slane %v4207, 4
        %v4214 = vshrl.u32 %v4163, 16
        %v4216 = vrot.slane %v4214, 7
        %v4217 = vshll.u32 %v4163, 16
        %v4219 = vor.u32 %v4216, %v4217
        %v4220 = vrot.slane %v4216, 4
        %v4222 = vshrl.u32 %v4164, 16
        %v4224 = vrot.slane %v4222, 7
        %v4225 = vshll.u32 %v4164, 16
        %v4227 = vor.u32 %v4224, %v4225
        %v4228 = vsel %vm461, %v4220, %v4227
        %v4229 = vrot.slane %v4224, 4
        %v4231 = vshrl.u32 %v4165, 16
        %v4233 = vrot.slane %v4231, 7
        %v4234 = vshll.u32 %v4165, 16
        %v4236 = vor.u32 %v4233, %v4234
        %v4237 = vrot.slane %v4233, 4
        %v4239 = vshrl.u32 %v4166, 16
        %v4241 = vrot.slane %v4239, 7
        %v4242 = vshll.u32 %v4166, 16
        %v4244 = vor.u32 %v4241, %v4242
        %v4245 = vsel %vm461, %v4237, %v4244
        %v4246 = vrot.slane %v4241, 4
        %v4248 = vshrl.u32 %v4167, 16
        %v4250 = vrot.slane %v4248, 7
        %v4251 = vshll.u32 %v4167, 16
        %v4253 = vor.u32 %v4250, %v4251
        %v4254 = vrot.slane %v4250, 4
        %v4256 = vshrl.u32 %v4168, 16
        %v4258 = vrot.slane %v4256, 7
        %v4259 = vshll.u32 %v4168, 16
        %v4261 = vor.u32 %v4258, %v4259
        %v4262 = vsel %vm461, %v4254, %v4261
        %v4263 = vrot.slane %v4258, 4
        %v4265 = vshrl.u32 %v4169, 16
        %v4267 = vrot.slane %v4265, 7
        %v4268 = vshll.u32 %v4169, 16
        %v4270 = vor.u32 %v4267, %v4268
        %v4271 = vrot.slane %v4267, 4
        %v4273 = vshrl.u32 %v4170, 16
        %v4275 = vrot.slane %v4273, 7
        %v4276 = vshll.u32 %v4170, 16
        %v4278 = vor.u32 %v4275, %v4276
        %v4279 = vsel %vm461, %v4271, %v4278
        %v4280 = vrot.slane %v4275, 4
        %v4282 = vshrl.u32 %v4171, 16
        %v4284 = vrot.slane %v4282, 7
        %v4285 = vshll.u32 %v4171, 16
        %v4287 = vor.u32 %v4284, %v4285
        %v4288 = vrot.slane %v4284, 4
        %v4290 = vshrl.u32 %v4172, 16
        %v4292 = vrot.slane %v4290, 7
        %v4293 = vshll.u32 %v4172, 16
        %v4295 = vor.u32 %v4292, %v4293
        %v4296 = vsel %vm461, %v4288, %v4295
        %v4297 = vrot.slane %v4292, 4
        %v4299 = vshrl.u32 %v4173, 16
        %v4301 = vrot.slane %v4299, 7
        %v4302 = vshll.u32 %v4173, 16
        %v4304 = vor.u32 %v4301, %v4302
        %v4305 = vrot.slane %v4301, 4
        %v4307 = vshrl.u32 %v4174, 16
        %v4309 = vrot.slane %v4307, 7
        %v4310 = vshll.u32 %v4174, 16
        %v4312 = vor.u32 %v4309, %v4310
        %v4313 = vsel %vm461, %v4305, %v4312
        %v4314 = vrot.slane %v4309, 4
        %v4316 = vshrl.u32 %v4175, 16
        %v4318 = vrot.slane %v4316, 7
        %v4319 = vshll.u32 %v4175, 16
        %v4321 = vor.u32 %v4318, %v4319
        %v4322 = vrot.slane %v4318, 4
        %v4324 = vshrl.u32 %v4176, 16
        %v4326 = vrot.slane %v4324, 7
        %v4327 = vshll.u32 %v4176, 16
        %v4329 = vor.u32 %v4326, %v4327
        %v4330 = vsel %vm461, %v4322, %v4329
        %v4331 = vrot.slane %v4326, 4
        %v4333 = vshrl.u32 %v4177, 16
        %v4335 = vrot.slane %v4333, 7
        %v4336 = vshll.u32 %v4177, 16
        %v4338 = vor.u32 %v4335, %v4336
        %v4339 = vrot.slane %v4335, 4
        %v4341 = vshrl.u32 %v4178, 16
        %v4343 = vrot.slane %v4341, 7
        %v4344 = vshll.u32 %v4178, 16
        %v4346 = vor.u32 %v4343, %v4344
        %v4347 = vsel %vm461, %v4339, %v4346
        %v4348 = vrot.slane %v4343, 4
        %v4379 = vld [vmem:[#allocation2] sm:$0xf]
        %v4380 = vsel %vm624, %v4185, %v4379
        %4381 = vst [vmem:[#allocation2] sm:$0xf] %v4380
        %4382 = vst [vmem:[#allocation2 + $0x4] sm:$0xf] %v4194
        %v4383 = vld [vmem:[#allocation2 + $0x8] sm:$0x1]
        %v4384 = vsel %vm351, %v4195, %v4383
        %4385 = vst [vmem:[#allocation2 + $0x8] sm:$0x1] %v4384
        %v4386 = vld [vmem:[#allocation2 + $0xc] sm:$0xf]
        %v4387 = vsel %vm624, %v4202, %v4386
        %4388 = vst [vmem:[#allocation2 + $0xc] sm:$0xf] %v4387
        %4389 = vst [vmem:[#allocation2 + $0x10] sm:$0xf] %v4211
        %v4390 = vld [vmem:[#allocation2 + $0x14] sm:$0x1]
        %v4391 = vsel %vm351, %v4212, %v4390
        %4392 = vst [vmem:[#allocation2 + $0x14] sm:$0x1] %v4391
        %v4393 = vld [vmem:[#allocation2 + $0x18] sm:$0xf]
        %v4394 = vsel %vm624, %v4219, %v4393
        %4395 = vst [vmem:[#allocation2 + $0x18] sm:$0xf] %v4394
        %4396 = vst [vmem:[#allocation2 + $0x1c] sm:$0xf] %v4228
        %v4397 = vld [vmem:[#allocation2 + $0x20] sm:$0x1]
        %v4398 = vsel %vm351, %v4229, %v4397
        %4399 = vst [vmem:[#allocation2 + $0x20] sm:$0x1] %v4398
        %v4400 = vld [vmem:[#allocation2 + $0x24] sm:$0xf]
        %v4401 = vsel %vm624, %v4236, %v4400
        %4402 = vst [vmem:[#allocation2 + $0x24] sm:$0xf] %v4401
        %4403 = vst [vmem:[#allocation2 + $0x28] sm:$0xf] %v4245
        %v4404 = vld [vmem:[#allocation2 + $0x2c] sm:$0x1]
        %v4405 = vsel %vm351, %v4246, %v4404
        %4406 = vst [vmem:[#allocation2 + $0x2c] sm:$0x1] %v4405
        %v4407 = vld [vmem:[#allocation2 + $0x30] sm:$0xf]
        %v4408 = vsel %vm624, %v4253, %v4407
        %4409 = vst [vmem:[#allocation2 + $0x30] sm:$0xf] %v4408
        %4410 = vst [vmem:[#allocation2 + $0x34] sm:$0xf] %v4262
        %v4411 = vld [vmem:[#allocation2 + $0x38] sm:$0x1]
        %v4412 = vsel %vm351, %v4263, %v4411
        %4413 = vst [vmem:[#allocation2 + $0x38] sm:$0x1] %v4412
        %v4414 = vld [vmem:[#allocation2 + $0x3c] sm:$0xf]
        %v4415 = vsel %vm624, %v4270, %v4414
        %4416 = vst [vmem:[#allocation2 + $0x3c] sm:$0xf] %v4415
        %4417 = vst [vmem:[#allocation2 + $0x40] sm:$0xf] %v4279
        %v4418 = vld [vmem:[#allocation2 + $0x44] sm:$0x1]
        %v4419 = vsel %vm351, %v4280, %v4418
        %4420 = vst [vmem:[#allocation2 + $0x44] sm:$0x1] %v4419
        %v4421 = vld [vmem:[#allocation2 + $0x48] sm:$0xf]
        %v4422 = vsel %vm624, %v4287, %v4421
        %4423 = vst [vmem:[#allocation2 + $0x48] sm:$0xf] %v4422
        %4424 = vst [vmem:[#allocation2 + $0x4c] sm:$0xf] %v4296
        %v4425 = vld [vmem:[#allocation2 + $0x50] sm:$0x1]
        %v4426 = vsel %vm351, %v4297, %v4425
        %4427 = vst [vmem:[#allocation2 + $0x50] sm:$0x1] %v4426
        %v4428 = vld [vmem:[#allocation2 + $0x54] sm:$0xf]
        %v4429 = vsel %vm624, %v4304, %v4428
        %4430 = vst [vmem:[#allocation2 + $0x54] sm:$0xf] %v4429
        %4431 = vst [vmem:[#allocation2 + $0x58] sm:$0xf] %v4313
        %v4432 = vld [vmem:[#allocation2 + $0x5c] sm:$0x1]
        %v4433 = vsel %vm351, %v4314, %v4432
        %4434 = vst [vmem:[#allocation2 + $0x5c] sm:$0x1] %v4433
        %v4435 = vld [vmem:[#allocation2 + $0x60] sm:$0xf]
        %v4436 = vsel %vm624, %v4321, %v4435
        %4437 = vst [vmem:[#allocation2 + $0x60] sm:$0xf] %v4436
        %4438 = vst [vmem:[#allocation2 + $0x64] sm:$0xf] %v4330
        %v4439 = vld [vmem:[#allocation2 + $0x68] sm:$0x1]
        %v4440 = vsel %vm351, %v4331, %v4439
        %4441 = vst [vmem:[#allocation2 + $0x68] sm:$0x1] %v4440
        %v4442 = vld [vmem:[#allocation2 + $0x6c] sm:$0xf]
        %v4443 = vsel %vm624, %v4338, %v4442
        %4444 = vst [vmem:[#allocation2 + $0x6c] sm:$0xf] %v4443
        %4445 = vst [vmem:[#allocation2 + $0x70] sm:$0xf] %v4347
        %v4446 = vld [vmem:[#allocation2 + $0x74] sm:$0x1]
        %v4447 = vsel %vm351, %v4348, %v4446
        %4448 = vst [vmem:[#allocation2 + $0x74] sm:$0x1] %v4447
        // Predicated region
        $region77: #{tpu_custom_call.1} parent=47 // pred_check
          %p4449 = pneg %p750
        $region78: #{tpu_custom_call.1} parent=47 // pred_check_branch
          %4451 = sbr.rel (%p4449) target = $region80
        $region79: #{tpu_custom_call.1} parent=47 // pred_region
          %v4452 = vld [vmem:[#allocation2] sm:$0xf]
          %v4453 = vsel %vm624, 0, %v4452
          %4454 = vst [vmem:[#allocation2] sm:$0xf] %v4453
          %4455 = vst [vmem:[#allocation2 + $0x4] sm:$0xf] 0
          %v4456 = vld [vmem:[#allocation2 + $0x8] sm:$0x1]
          %v4457 = vsel %vm351, 0, %v4456
          %4458 = vst [vmem:[#allocation2 + $0x8] sm:$0x1] %v4457
        $region80: #{tpu_custom_call.1} parent=47 // pred_fallthru
          _
        // Predicated region
        $region81: #{tpu_custom_call.1} parent=47 // pred_check
          %p4459 = pneg %p838
        $region82: #{tpu_custom_call.1} parent=47 // pred_check_branch
          %4461 = sbr.rel (%p4459) target = $region84
        $region83: #{tpu_custom_call.1} parent=47 // pred_region
          %s4462 = scalar_lea.vmem [#allocation2], 108
          %v4463 = vld [vmem:[%s4462] sm:$0xf]
          %v4464 = vsel %vm624, 0, %v4463
          %4465 = vst [vmem:[%s4462] sm:$0xf] %v4464
          %4466 = vst [vmem:[%s4462 + $0x4] sm:$0xf] 0
          %v4467 = vld [vmem:[%s4462 + $0x8] sm:$0x1]
          %v4468 = vsel %vm351, 0, %v4467
          %4469 = vst [vmem:[%s4462 + $0x8] sm:$0x1] %v4468
        $region84: #{tpu_custom_call.1} parent=47 // pred_fallthru
          _
        %v4470 = vld [vmem:[#allocation2] sm:$0xf]
        %v4471 = vld [vmem:[#allocation2 + $0x4] sm:$0xf]
        %v4472 = vld [vmem:[#allocation2 + $0xc] sm:$0xf]
        %v4473 = vld [vmem:[#allocation2 + $0x10] sm:$0xf]
        %v4474 = vld [vmem:[#allocation2 + $0x18] sm:$0xf]
        %v4475 = vld [vmem:[#allocation2 + $0x1c] sm:$0xf]
        %v4476 = vld [vmem:[#allocation2 + $0x24] sm:$0xf]
        %v4477 = vld [vmem:[#allocation2 + $0x28] sm:$0xf]
        %v4478 = vld [vmem:[#allocation2 + $0x30] sm:$0xf]
        %v4479 = vld [vmem:[#allocation2 + $0x34] sm:$0xf]
        %v4480 = vld [vmem:[#allocation2 + $0x3c] sm:$0xf]
        %v4481 = vld [vmem:[#allocation2 + $0x40] sm:$0xf]
        %v4482 = vld [vmem:[#allocation2 + $0x48] sm:$0xf]
        %v4483 = vld [vmem:[#allocation2 + $0x4c] sm:$0xf]
        %v4484 = vld [vmem:[#allocation2 + $0x54] sm:$0xf]
        %v4485 = vld [vmem:[#allocation2 + $0x58] sm:$0xf]
        %4486 = vst [vmem:[#allocation3] sm:$0xf] %v4470
        %4487 = vst [vmem:[#allocation3 + $0x24] sm:$0xf] %v4471
        %4488 = vst [vmem:[#allocation3 + $0x48] sm:$0xf] %v4472
        %4489 = vst [vmem:[#allocation3 + $0x6c] sm:$0xf] %v4473
        %4490 = vst [vmem:[#allocation3 + $0x90] sm:$0xf] %v4474
        %4491 = vst [vmem:[#allocation3 + $0xb4] sm:$0xf] %v4475
        %4492 = vst [vmem:[#allocation3 + $0xd8] sm:$0xf] %v4476
        %4493 = vst [vmem:[#allocation3 + $0xfc] sm:$0xf] %v4477
        %4494 = vst [vmem:[#allocation3 + $0x120] sm:$0xf] %v4478
        %4495 = vst [vmem:[#allocation3 + $0x144] sm:$0xf] %v4479
        %4496 = vst [vmem:[#allocation3 + $0x168] sm:$0xf] %v4480
        %4497 = vst [vmem:[#allocation3 + $0x18c] sm:$0xf] %v4481
        %4498 = vst [vmem:[#allocation3 + $0x1b0] sm:$0xf] %v4482
        %4499 = vst [vmem:[#allocation3 + $0x1d4] sm:$0xf] %v4483
        %4500 = vst [vmem:[#allocation3 + $0x1f8] sm:$0xf] %v4484
        %4501 = vst [vmem:[#allocation3 + $0x21c] sm:$0xf] %v4485
        %v4502 = vld [vmem:[#allocation2] sm:$0xf]
        %v4503 = vld [vmem:[#allocation2 + $0x4] sm:$0xf]
        %v4504 = vld [vmem:[#allocation2 + $0x8] sm:$0x1]
        %v4505 = vld [vmem:[#allocation2 + $0xc] sm:$0xf]
        %v4506 = vld [vmem:[#allocation2 + $0x10] sm:$0xf]
        %v4507 = vld [vmem:[#allocation2 + $0x14] sm:$0x1]
        %v4508 = vld [vmem:[#allocation2 + $0x18] sm:$0xf]
        %v4509 = vld [vmem:[#allocation2 + $0x1c] sm:$0xf]
        %v4510 = vld [vmem:[#allocation2 + $0x20] sm:$0x1]
        %v4511 = vld [vmem:[#allocation2 + $0x24] sm:$0xf]
        %v4512 = vld [vmem:[#allocation2 + $0x28] sm:$0xf]
        %v4513 = vld [vmem:[#allocation2 + $0x2c] sm:$0x1]
        %v4514 = vld [vmem:[#allocation2 + $0x30] sm:$0xf]
        %v4515 = vld [vmem:[#allocation2 + $0x34] sm:$0xf]
        %v4516 = vld [vmem:[#allocation2 + $0x38] sm:$0x1]
        %v4517 = vld [vmem:[#allocation2 + $0x3c] sm:$0xf]
        %v4518 = vld [vmem:[#allocation2 + $0x40] sm:$0xf]
        %v4519 = vld [vmem:[#allocation2 + $0x44] sm:$0x1]
        %v4520 = vld [vmem:[#allocation2 + $0x48] sm:$0xf]
        %v4521 = vld [vmem:[#allocation2 + $0x4c] sm:$0xf]
        %v4522 = vld [vmem:[#allocation2 + $0x50] sm:$0x1]
        %v4523 = vld [vmem:[#allocation2 + $0x54] sm:$0xf]
        %v4524 = vld [vmem:[#allocation2 + $0x58] sm:$0xf]
        %v4525 = vld [vmem:[#allocation2 + $0x5c] sm:$0x1]
        %v4527 = vshrl.u32 %v4502, 16
        %v4529 = vrot.slane %v4527, 4
        %v4530 = vshll.u32 %v4502, 16
        %v4532 = vrot.slane %v4530, 5
        %v4533 = vor.u32 %v4529, %v4532
        %v4534 = vrot.slane %v4533, 4
        %v4536 = vshll.u32 %v4503, 16
        %v4538 = vrot.slane %v4536, 5
        %v4539 = vsel %vm929, %v4534, %v4538
        %v4540 = vshrl.u32 %v4503, 16
        %v4542 = vrot.slane %v4540, 4
        %v4543 = vor.u32 %v4542, %v4538
        %v4544 = vrot.slane %v4543, 4
        %v4546 = vshll.u32 %v4504, 16
        %v4548 = vrot.slane %v4546, 5
        %v4549 = vsel %vm929, %v4544, %v4548
        %v4551 = vshrl.u32 %v4505, 16
        %v4553 = vrot.slane %v4551, 4
        %v4554 = vshll.u32 %v4505, 16
        %v4556 = vrot.slane %v4554, 5
        %v4557 = vor.u32 %v4553, %v4556
        %v4558 = vrot.slane %v4557, 4
        %v4560 = vshll.u32 %v4506, 16
        %v4562 = vrot.slane %v4560, 5
        %v4563 = vsel %vm929, %v4558, %v4562
        %v4564 = vshrl.u32 %v4506, 16
        %v4566 = vrot.slane %v4564, 4
        %v4567 = vor.u32 %v4566, %v4562
        %v4568 = vrot.slane %v4567, 4
        %v4570 = vshll.u32 %v4507, 16
        %v4572 = vrot.slane %v4570, 5
        %v4573 = vsel %vm929, %v4568, %v4572
        %v4575 = vshrl.u32 %v4508, 16
        %v4577 = vrot.slane %v4575, 4
        %v4578 = vshll.u32 %v4508, 16
        %v4580 = vrot.slane %v4578, 5
        %v4581 = vor.u32 %v4577, %v4580
        %v4582 = vrot.slane %v4581, 4
        %v4584 = vshll.u32 %v4509, 16
        %v4586 = vrot.slane %v4584, 5
        %v4587 = vsel %vm929, %v4582, %v4586
        %v4588 = vshrl.u32 %v4509, 16
        %v4590 = vrot.slane %v4588, 4
        %v4591 = vor.u32 %v4590, %v4586
        %v4592 = vrot.slane %v4591, 4
        %v4594 = vshll.u32 %v4510, 16
        %v4596 = vrot.slane %v4594, 5
        %v4597 = vsel %vm929, %v4592, %v4596
        %v4599 = vshrl.u32 %v4511, 16
        %v4601 = vrot.slane %v4599, 4
        %v4602 = vshll.u32 %v4511, 16
        %v4604 = vrot.slane %v4602, 5
        %v4605 = vor.u32 %v4601, %v4604
        %v4606 = vrot.slane %v4605, 4
        %v4608 = vshll.u32 %v4512, 16
        %v4610 = vrot.slane %v4608, 5
        %v4611 = vsel %vm929, %v4606, %v4610
        %v4612 = vshrl.u32 %v4512, 16
        %v4614 = vrot.slane %v4612, 4
        %v4615 = vor.u32 %v4614, %v4610
        %v4616 = vrot.slane %v4615, 4
        %v4618 = vshll.u32 %v4513, 16
        %v4620 = vrot.slane %v4618, 5
        %v4621 = vsel %vm929, %v4616, %v4620
        %v4623 = vshrl.u32 %v4514, 16
        %v4625 = vrot.slane %v4623, 4
        %v4626 = vshll.u32 %v4514, 16
        %v4628 = vrot.slane %v4626, 5
        %v4629 = vor.u32 %v4625, %v4628
        %v4630 = vrot.slane %v4629, 4
        %v4632 = vshll.u32 %v4515, 16
        %v4634 = vrot.slane %v4632, 5
        %v4635 = vsel %vm929, %v4630, %v4634
        %v4636 = vshrl.u32 %v4515, 16
        %v4638 = vrot.slane %v4636, 4
        %v4639 = vor.u32 %v4638, %v4634
        %v4640 = vrot.slane %v4639, 4
        %v4642 = vshll.u32 %v4516, 16
        %v4644 = vrot.slane %v4642, 5
        %v4645 = vsel %vm929, %v4640, %v4644
        %v4647 = vshrl.u32 %v4517, 16
        %v4649 = vrot.slane %v4647, 4
        %v4650 = vshll.u32 %v4517, 16
        %v4652 = vrot.slane %v4650, 5
        %v4653 = vor.u32 %v4649, %v4652
        %v4654 = vrot.slane %v4653, 4
        %v4656 = vshll.u32 %v4518, 16
        %v4658 = vrot.slane %v4656, 5
        %v4659 = vsel %vm929, %v4654, %v4658
        %v4660 = vshrl.u32 %v4518, 16
        %v4662 = vrot.slane %v4660, 4
        %v4663 = vor.u32 %v4662, %v4658
        %v4664 = vrot.slane %v4663, 4
        %v4666 = vshll.u32 %v4519, 16
        %v4668 = vrot.slane %v4666, 5
        %v4669 = vsel %vm929, %v4664, %v4668
        %v4671 = vshrl.u32 %v4520, 16
        %v4673 = vrot.slane %v4671, 4
        %v4674 = vshll.u32 %v4520, 16
        %v4676 = vrot.slane %v4674, 5
        %v4677 = vor.u32 %v4673, %v4676
        %v4678 = vrot.slane %v4677, 4
        %v4680 = vshll.u32 %v4521, 16
        %v4682 = vrot.slane %v4680, 5
        %v4683 = vsel %vm929, %v4678, %v4682
        %v4684 = vshrl.u32 %v4521, 16
        %v4686 = vrot.slane %v4684, 4
        %v4687 = vor.u32 %v4686, %v4682
        %v4688 = vrot.slane %v4687, 4
        %v4690 = vshll.u32 %v4522, 16
        %v4692 = vrot.slane %v4690, 5
        %v4693 = vsel %vm929, %v4688, %v4692
        %v4695 = vshrl.u32 %v4523, 16
        %v4697 = vrot.slane %v4695, 4
        %v4698 = vshll.u32 %v4523, 16
        %v4700 = vrot.slane %v4698, 5
        %v4701 = vor.u32 %v4697, %v4700
        %v4702 = vrot.slane %v4701, 4
        %v4704 = vshll.u32 %v4524, 16
        %v4706 = vrot.slane %v4704, 5
        %v4707 = vsel %vm929, %v4702, %v4706
        %v4708 = vshrl.u32 %v4524, 16
        %v4710 = vrot.slane %v4708, 4
        %v4711 = vor.u32 %v4710, %v4706
        %v4712 = vrot.slane %v4711, 4
        %v4714 = vshll.u32 %v4525, 16
        %v4716 = vrot.slane %v4714, 5
        %v4717 = vsel %vm929, %v4712, %v4716
        %4734 = vst [vmem:[#allocation3 + $0x4] sm:$0xf] %v4539
        %4735 = vst [vmem:[#allocation3 + $0x28] sm:$0xf] %v4549
        %4736 = vst [vmem:[#allocation3 + $0x4c] sm:$0xf] %v4563
        %4737 = vst [vmem:[#allocation3 + $0x70] sm:$0xf] %v4573
        %4738 = vst [vmem:[#allocation3 + $0x94] sm:$0xf] %v4587
        %4739 = vst [vmem:[#allocation3 + $0xb8] sm:$0xf] %v4597
        %4740 = vst [vmem:[#allocation3 + $0xdc] sm:$0xf] %v4611
        %4741 = vst [vmem:[#allocation3 + $0x100] sm:$0xf] %v4621
        %4742 = vst [vmem:[#allocation3 + $0x124] sm:$0xf] %v4635
        %4743 = vst [vmem:[#allocation3 + $0x148] sm:$0xf] %v4645
        %4744 = vst [vmem:[#allocation3 + $0x16c] sm:$0xf] %v4659
        %4745 = vst [vmem:[#allocation3 + $0x190] sm:$0xf] %v4669
        %4746 = vst [vmem:[#allocation3 + $0x1b4] sm:$0xf] %v4683
        %4747 = vst [vmem:[#allocation3 + $0x1d8] sm:$0xf] %v4693
        %4748 = vst [vmem:[#allocation3 + $0x1fc] sm:$0xf] %v4707
        %4749 = vst [vmem:[#allocation3 + $0x220] sm:$0xf] %v4717
        %v4750 = vld [vmem:[#allocation2] sm:$0xe]
        %v4751 = vld [vmem:[#allocation2 + $0x4] sm:$0xf]
        %v4752 = vld [vmem:[#allocation2 + $0x8] sm:$0x1]
        %v4753 = vld [vmem:[#allocation2 + $0xc] sm:$0xe]
        %v4754 = vld [vmem:[#allocation2 + $0x10] sm:$0xf]
        %v4755 = vld [vmem:[#allocation2 + $0x14] sm:$0x1]
        %v4756 = vld [vmem:[#allocation2 + $0x18] sm:$0xe]
        %v4757 = vld [vmem:[#allocation2 + $0x1c] sm:$0xf]
        %v4758 = vld [vmem:[#allocation2 + $0x20] sm:$0x1]
        %v4759 = vld [vmem:[#allocation2 + $0x24] sm:$0xe]
        %v4760 = vld [vmem:[#allocation2 + $0x28] sm:$0xf]
        %v4761 = vld [vmem:[#allocation2 + $0x2c] sm:$0x1]
        %v4762 = vld [vmem:[#allocation2 + $0x30] sm:$0xe]
        %v4763 = vld [vmem:[#allocation2 + $0x34] sm:$0xf]
        %v4764 = vld [vmem:[#allocation2 + $0x38] sm:$0x1]
        %v4765 = vld [vmem:[#allocation2 + $0x3c] sm:$0xe]
        %v4766 = vld [vmem:[#allocation2 + $0x40] sm:$0xf]
        %v4767 = vld [vmem:[#allocation2 + $0x44] sm:$0x1]
        %v4768 = vld [vmem:[#allocation2 + $0x48] sm:$0xe]
        %v4769 = vld [vmem:[#allocation2 + $0x4c] sm:$0xf]
        %v4770 = vld [vmem:[#allocation2 + $0x50] sm:$0x1]
        %v4771 = vld [vmem:[#allocation2 + $0x54] sm:$0xe]
        %v4772 = vld [vmem:[#allocation2 + $0x58] sm:$0xf]
        %v4773 = vld [vmem:[#allocation2 + $0x5c] sm:$0x1]
        %v4798 = vrot.slane %v4750, 5
        %v4799 = vrot.slane %v4798, 4
        %v4800 = vrot.slane %v4751, 5
        %v4801 = vsel %vm1272, %v4799, %v4800
        %v4802 = vrot.slane %v4800, 4
        %v4803 = vrot.slane %v4752, 5
        %v4804 = vsel %vm1272, %v4802, %v4803
        %v4805 = vrot.slane %v4753, 5
        %v4806 = vrot.slane %v4805, 4
        %v4807 = vrot.slane %v4754, 5
        %v4808 = vsel %vm1272, %v4806, %v4807
        %v4809 = vrot.slane %v4807, 4
        %v4810 = vrot.slane %v4755, 5
        %v4811 = vsel %vm1272, %v4809, %v4810
        %v4812 = vrot.slane %v4756, 5
        %v4813 = vrot.slane %v4812, 4
        %v4814 = vrot.slane %v4757, 5
        %v4815 = vsel %vm1272, %v4813, %v4814
        %v4816 = vrot.slane %v4814, 4
        %v4817 = vrot.slane %v4758, 5
        %v4818 = vsel %vm1272, %v4816, %v4817
        %v4819 = vrot.slane %v4759, 5
        %v4820 = vrot.slane %v4819, 4
        %v4821 = vrot.slane %v4760, 5
        %v4822 = vsel %vm1272, %v4820, %v4821
        %v4823 = vrot.slane %v4821, 4
        %v4824 = vrot.slane %v4761, 5
        %v4825 = vsel %vm1272, %v4823, %v4824
        %v4826 = vrot.slane %v4762, 5
        %v4827 = vrot.slane %v4826, 4
        %v4828 = vrot.slane %v4763, 5
        %v4829 = vsel %vm1272, %v4827, %v4828
        %v4830 = vrot.slane %v4828, 4
        %v4831 = vrot.slane %v4764, 5
        %v4832 = vsel %vm1272, %v4830, %v4831
        %v4833 = vrot.slane %v4765, 5
        %v4834 = vrot.slane %v4833, 4
        %v4835 = vrot.slane %v4766, 5
        %v4836 = vsel %vm1272, %v4834, %v4835
        %v4837 = vrot.slane %v4835, 4
        %v4838 = vrot.slane %v4767, 5
        %v4839 = vsel %vm1272, %v4837, %v4838
        %v4840 = vrot.slane %v4768, 5
        %v4841 = vrot.slane %v4840, 4
        %v4842 = vrot.slane %v4769, 5
        %v4843 = vsel %vm1272, %v4841, %v4842
        %v4844 = vrot.slane %v4842, 4
        %v4845 = vrot.slane %v4770, 5
        %v4846 = vsel %vm1272, %v4844, %v4845
        %v4847 = vrot.slane %v4771, 5
        %v4848 = vrot.slane %v4847, 4
        %v4849 = vrot.slane %v4772, 5
        %v4850 = vsel %vm1272, %v4848, %v4849
        %v4851 = vrot.slane %v4849, 4
        %v4852 = vrot.slane %v4773, 5
        %v4853 = vsel %vm1272, %v4851, %v4852
        %4870 = vst [vmem:[#allocation3 + $0x8] sm:$0xf] %v4801
        %4871 = vst [vmem:[#allocation3 + $0x2c] sm:$0xf] %v4804
        %4872 = vst [vmem:[#allocation3 + $0x50] sm:$0xf] %v4808
        %4873 = vst [vmem:[#allocation3 + $0x74] sm:$0xf] %v4811
        %4874 = vst [vmem:[#allocation3 + $0x98] sm:$0xf] %v4815
        %4875 = vst [vmem:[#allocation3 + $0xbc] sm:$0xf] %v4818
        %4876 = vst [vmem:[#allocation3 + $0xe0] sm:$0xf] %v4822
        %4877 = vst [vmem:[#allocation3 + $0x104] sm:$0xf] %v4825
        %4878 = vst [vmem:[#allocation3 + $0x128] sm:$0xf] %v4829
        %4879 = vst [vmem:[#allocation3 + $0x14c] sm:$0xf] %v4832
        %4880 = vst [vmem:[#allocation3 + $0x170] sm:$0xf] %v4836
        %4881 = vst [vmem:[#allocation3 + $0x194] sm:$0xf] %v4839
        %4882 = vst [vmem:[#allocation3 + $0x1b8] sm:$0xf] %v4843
        %4883 = vst [vmem:[#allocation3 + $0x1dc] sm:$0xf] %v4846
        %4884 = vst [vmem:[#allocation3 + $0x200] sm:$0xf] %v4850
        %4885 = vst [vmem:[#allocation3 + $0x224] sm:$0xf] %v4853
        %v4886 = vld [vmem:[%s1383] sm:$0xf]
        %v4887 = vld [vmem:[%s1383 + $0x4] sm:$0xf]
        %v4888 = vld [vmem:[%s1383 + $0xc] sm:$0xf]
        %v4889 = vld [vmem:[%s1383 + $0x10] sm:$0xf]
        %v4890 = vld [vmem:[%s1383 + $0x18] sm:$0xf]
        %v4891 = vld [vmem:[%s1383 + $0x1c] sm:$0xf]
        %v4892 = vld [vmem:[%s1383 + $0x24] sm:$0xf]
        %v4893 = vld [vmem:[%s1383 + $0x28] sm:$0xf]
        %v4894 = vld [vmem:[%s1383 + $0x30] sm:$0xf]
        %v4895 = vld [vmem:[%s1383 + $0x34] sm:$0xf]
        %v4896 = vld [vmem:[%s1383 + $0x3c] sm:$0xf]
        %v4897 = vld [vmem:[%s1383 + $0x40] sm:$0xf]
        %v4898 = vld [vmem:[%s1383 + $0x48] sm:$0xf]
        %v4899 = vld [vmem:[%s1383 + $0x4c] sm:$0xf]
        %v4900 = vld [vmem:[%s1383 + $0x54] sm:$0xf]
        %v4901 = vld [vmem:[%s1383 + $0x58] sm:$0xf]
        %4902 = vst [vmem:[#allocation3 + $0xc] sm:$0xf] %v4886
        %4903 = vst [vmem:[#allocation3 + $0x30] sm:$0xf] %v4887
        %4904 = vst [vmem:[#allocation3 + $0x54] sm:$0xf] %v4888
        %4905 = vst [vmem:[#allocation3 + $0x78] sm:$0xf] %v4889
        %4906 = vst [vmem:[#allocation3 + $0x9c] sm:$0xf] %v4890
        %4907 = vst [vmem:[#allocation3 + $0xc0] sm:$0xf] %v4891
        %4908 = vst [vmem:[#allocation3 + $0xe4] sm:$0xf] %v4892
        %4909 = vst [vmem:[#allocation3 + $0x108] sm:$0xf] %v4893
        %4910 = vst [vmem:[#allocation3 + $0x12c] sm:$0xf] %v4894
        %4911 = vst [vmem:[#allocation3 + $0x150] sm:$0xf] %v4895
        %4912 = vst [vmem:[#allocation3 + $0x174] sm:$0xf] %v4896
        %4913 = vst [vmem:[#allocation3 + $0x198] sm:$0xf] %v4897
        %4914 = vst [vmem:[#allocation3 + $0x1bc] sm:$0xf] %v4898
        %4915 = vst [vmem:[#allocation3 + $0x1e0] sm:$0xf] %v4899
        %4916 = vst [vmem:[#allocation3 + $0x204] sm:$0xf] %v4900
        %4917 = vst [vmem:[#allocation3 + $0x228] sm:$0xf] %v4901
        %v4918 = vld [vmem:[%s1383] sm:$0xf]
        %v4919 = vld [vmem:[%s1383 + $0x4] sm:$0xf]
        %v4920 = vld [vmem:[%s1383 + $0x8] sm:$0x1]
        %v4921 = vld [vmem:[%s1383 + $0xc] sm:$0xf]
        %v4922 = vld [vmem:[%s1383 + $0x10] sm:$0xf]
        %v4923 = vld [vmem:[%s1383 + $0x14] sm:$0x1]
        %v4924 = vld [vmem:[%s1383 + $0x18] sm:$0xf]
        %v4925 = vld [vmem:[%s1383 + $0x1c] sm:$0xf]
        %v4926 = vld [vmem:[%s1383 + $0x20] sm:$0x1]
        %v4927 = vld [vmem:[%s1383 + $0x24] sm:$0xf]
        %v4928 = vld [vmem:[%s1383 + $0x28] sm:$0xf]
        %v4929 = vld [vmem:[%s1383 + $0x2c] sm:$0x1]
        %v4930 = vld [vmem:[%s1383 + $0x30] sm:$0xf]
        %v4931 = vld [vmem:[%s1383 + $0x34] sm:$0xf]
        %v4932 = vld [vmem:[%s1383 + $0x38] sm:$0x1]
        %v4933 = vld [vmem:[%s1383 + $0x3c] sm:$0xf]
        %v4934 = vld [vmem:[%s1383 + $0x40] sm:$0xf]
        %v4935 = vld [vmem:[%s1383 + $0x44] sm:$0x1]
        %v4936 = vld [vmem:[%s1383 + $0x48] sm:$0xf]
        %v4937 = vld [vmem:[%s1383 + $0x4c] sm:$0xf]
        %v4938 = vld [vmem:[%s1383 + $0x50] sm:$0x1]
        %v4939 = vld [vmem:[%s1383 + $0x54] sm:$0xf]
        %v4940 = vld [vmem:[%s1383 + $0x58] sm:$0xf]
        %v4941 = vld [vmem:[%s1383 + $0x5c] sm:$0x1]
        %v4943 = vshrl.u32 %v4918, 16
        %v4945 = vrot.slane %v4943, 4
        %v4946 = vshll.u32 %v4918, 16
        %v4948 = vrot.slane %v4946, 5
        %v4949 = vor.u32 %v4945, %v4948
        %v4950 = vrot.slane %v4949, 4
        %v4952 = vshll.u32 %v4919, 16
        %v4954 = vrot.slane %v4952, 5
        %v4955 = vsel %vm929, %v4950, %v4954
        %v4956 = vshrl.u32 %v4919, 16
        %v4958 = vrot.slane %v4956, 4
        %v4959 = vor.u32 %v4958, %v4954
        %v4960 = vrot.slane %v4959, 4
        %v4962 = vshll.u32 %v4920, 16
        %v4964 = vrot.slane %v4962, 5
        %v4965 = vsel %vm929, %v4960, %v4964
        %v4967 = vshrl.u32 %v4921, 16
        %v4969 = vrot.slane %v4967, 4
        %v4970 = vshll.u32 %v4921, 16
        %v4972 = vrot.slane %v4970, 5
        %v4973 = vor.u32 %v4969, %v4972
        %v4974 = vrot.slane %v4973, 4
        %v4976 = vshll.u32 %v4922, 16
        %v4978 = vrot.slane %v4976, 5
        %v4979 = vsel %vm929, %v4974, %v4978
        %v4980 = vshrl.u32 %v4922, 16
        %v4982 = vrot.slane %v4980, 4
        %v4983 = vor.u32 %v4982, %v4978
        %v4984 = vrot.slane %v4983, 4
        %v4986 = vshll.u32 %v4923, 16
        %v4988 = vrot.slane %v4986, 5
        %v4989 = vsel %vm929, %v4984, %v4988
        %v4991 = vshrl.u32 %v4924, 16
        %v4993 = vrot.slane %v4991, 4
        %v4994 = vshll.u32 %v4924, 16
        %v4996 = vrot.slane %v4994, 5
        %v4997 = vor.u32 %v4993, %v4996
        %v4998 = vrot.slane %v4997, 4
        %v5000 = vshll.u32 %v4925, 16
        %v5002 = vrot.slane %v5000, 5
        %v5003 = vsel %vm929, %v4998, %v5002
        %v5004 = vshrl.u32 %v4925, 16
        %v5006 = vrot.slane %v5004, 4
        %v5007 = vor.u32 %v5006, %v5002
        %v5008 = vrot.slane %v5007, 4
        %v5010 = vshll.u32 %v4926, 16
        %v5012 = vrot.slane %v5010, 5
        %v5013 = vsel %vm929, %v5008, %v5012
        %v5015 = vshrl.u32 %v4927, 16
        %v5017 = vrot.slane %v5015, 4
        %v5018 = vshll.u32 %v4927, 16
        %v5020 = vrot.slane %v5018, 5
        %v5021 = vor.u32 %v5017, %v5020
        %v5022 = vrot.slane %v5021, 4
        %v5024 = vshll.u32 %v4928, 16
        %v5026 = vrot.slane %v5024, 5
        %v5027 = vsel %vm929, %v5022, %v5026
        %v5028 = vshrl.u32 %v4928, 16
        %v5030 = vrot.slane %v5028, 4
        %v5031 = vor.u32 %v5030, %v5026
        %v5032 = vrot.slane %v5031, 4
        %v5034 = vshll.u32 %v4929, 16
        %v5036 = vrot.slane %v5034, 5
        %v5037 = vsel %vm929, %v5032, %v5036
        %v5039 = vshrl.u32 %v4930, 16
        %v5041 = vrot.slane %v5039, 4
        %v5042 = vshll.u32 %v4930, 16
        %v5044 = vrot.slane %v5042, 5
        %v5045 = vor.u32 %v5041, %v5044
        %v5046 = vrot.slane %v5045, 4
        %v5048 = vshll.u32 %v4931, 16
        %v5050 = vrot.slane %v5048, 5
        %v5051 = vsel %vm929, %v5046, %v5050
        %v5052 = vshrl.u32 %v4931, 16
        %v5054 = vrot.slane %v5052, 4
        %v5055 = vor.u32 %v5054, %v5050
        %v5056 = vrot.slane %v5055, 4
        %v5058 = vshll.u32 %v4932, 16
        %v5060 = vrot.slane %v5058, 5
        %v5061 = vsel %vm929, %v5056, %v5060
        %v5063 = vshrl.u32 %v4933, 16
        %v5065 = vrot.slane %v5063, 4
        %v5066 = vshll.u32 %v4933, 16
        %v5068 = vrot.slane %v5066, 5
        %v5069 = vor.u32 %v5065, %v5068
        %v5070 = vrot.slane %v5069, 4
        %v5072 = vshll.u32 %v4934, 16
        %v5074 = vrot.slane %v5072, 5
        %v5075 = vsel %vm929, %v5070, %v5074
        %v5076 = vshrl.u32 %v4934, 16
        %v5078 = vrot.slane %v5076, 4
        %v5079 = vor.u32 %v5078, %v5074
        %v5080 = vrot.slane %v5079, 4
        %v5082 = vshll.u32 %v4935, 16
        %v5084 = vrot.slane %v5082, 5
        %v5085 = vsel %vm929, %v5080, %v5084
        %v5087 = vshrl.u32 %v4936, 16
        %v5089 = vrot.slane %v5087, 4
        %v5090 = vshll.u32 %v4936, 16
        %v5092 = vrot.slane %v5090, 5
        %v5093 = vor.u32 %v5089, %v5092
        %v5094 = vrot.slane %v5093, 4
        %v5096 = vshll.u32 %v4937, 16
        %v5098 = vrot.slane %v5096, 5
        %v5099 = vsel %vm929, %v5094, %v5098
        %v5100 = vshrl.u32 %v4937, 16
        %v5102 = vrot.slane %v5100, 4
        %v5103 = vor.u32 %v5102, %v5098
        %v5104 = vrot.slane %v5103, 4
        %v5106 = vshll.u32 %v4938, 16
        %v5108 = vrot.slane %v5106, 5
        %v5109 = vsel %vm929, %v5104, %v5108
        %v5111 = vshrl.u32 %v4939, 16
        %v5113 = vrot.slane %v5111, 4
        %v5114 = vshll.u32 %v4939, 16
        %v5116 = vrot.slane %v5114, 5
        %v5117 = vor.u32 %v5113, %v5116
        %v5118 = vrot.slane %v5117, 4
        %v5120 = vshll.u32 %v4940, 16
        %v5122 = vrot.slane %v5120, 5
        %v5123 = vsel %vm929, %v5118, %v5122
        %v5124 = vshrl.u32 %v4940, 16
        %v5126 = vrot.slane %v5124, 4
        %v5127 = vor.u32 %v5126, %v5122
        %v5128 = vrot.slane %v5127, 4
        %v5130 = vshll.u32 %v4941, 16
        %v5132 = vrot.slane %v5130, 5
        %v5133 = vsel %vm929, %v5128, %v5132
        %5150 = vst [vmem:[#allocation3 + $0x10] sm:$0xf] %v4955
        %5151 = vst [vmem:[#allocation3 + $0x34] sm:$0xf] %v4965
        %5152 = vst [vmem:[#allocation3 + $0x58] sm:$0xf] %v4979
        %5153 = vst [vmem:[#allocation3 + $0x7c] sm:$0xf] %v4989
        %5154 = vst [vmem:[#allocation3 + $0xa0] sm:$0xf] %v5003
        %5155 = vst [vmem:[#allocation3 + $0xc4] sm:$0xf] %v5013
        %5156 = vst [vmem:[#allocation3 + $0xe8] sm:$0xf] %v5027
        %5157 = vst [vmem:[#allocation3 + $0x10c] sm:$0xf] %v5037
        %5158 = vst [vmem:[#allocation3 + $0x130] sm:$0xf] %v5051
        %5159 = vst [vmem:[#allocation3 + $0x154] sm:$0xf] %v5061
        %5160 = vst [vmem:[#allocation3 + $0x178] sm:$0xf] %v5075
        %5161 = vst [vmem:[#allocation3 + $0x19c] sm:$0xf] %v5085
        %5162 = vst [vmem:[#allocation3 + $0x1c0] sm:$0xf] %v5099
        %5163 = vst [vmem:[#allocation3 + $0x1e4] sm:$0xf] %v5109
        %5164 = vst [vmem:[#allocation3 + $0x208] sm:$0xf] %v5123
        %5165 = vst [vmem:[#allocation3 + $0x22c] sm:$0xf] %v5133
        %v5166 = vld [vmem:[%s1383] sm:$0xe]
        %v5167 = vld [vmem:[%s1383 + $0x4] sm:$0xf]
        %v5168 = vld [vmem:[%s1383 + $0x8] sm:$0x1]
        %v5169 = vld [vmem:[%s1383 + $0xc] sm:$0xe]
        %v5170 = vld [vmem:[%s1383 + $0x10] sm:$0xf]
        %v5171 = vld [vmem:[%s1383 + $0x14] sm:$0x1]
        %v5172 = vld [vmem:[%s1383 + $0x18] sm:$0xe]
        %v5173 = vld [vmem:[%s1383 + $0x1c] sm:$0xf]
        %v5174 = vld [vmem:[%s1383 + $0x20] sm:$0x1]
        %v5175 = vld [vmem:[%s1383 + $0x24] sm:$0xe]
        %v5176 = vld [vmem:[%s1383 + $0x28] sm:$0xf]
        %v5177 = vld [vmem:[%s1383 + $0x2c] sm:$0x1]
        %v5178 = vld [vmem:[%s1383 + $0x30] sm:$0xe]
        %v5179 = vld [vmem:[%s1383 + $0x34] sm:$0xf]
        %v5180 = vld [vmem:[%s1383 + $0x38] sm:$0x1]
        %v5181 = vld [vmem:[%s1383 + $0x3c] sm:$0xe]
        %v5182 = vld [vmem:[%s1383 + $0x40] sm:$0xf]
        %v5183 = vld [vmem:[%s1383 + $0x44] sm:$0x1]
        %v5184 = vld [vmem:[%s1383 + $0x48] sm:$0xe]
        %v5185 = vld [vmem:[%s1383 + $0x4c] sm:$0xf]
        %v5186 = vld [vmem:[%s1383 + $0x50] sm:$0x1]
        %v5187 = vld [vmem:[%s1383 + $0x54] sm:$0xe]
        %v5188 = vld [vmem:[%s1383 + $0x58] sm:$0xf]
        %v5189 = vld [vmem:[%s1383 + $0x5c] sm:$0x1]
        %v5214 = vrot.slane %v5166, 5
        %v5215 = vrot.slane %v5214, 4
        %v5216 = vrot.slane %v5167, 5
        %v5217 = vsel %vm1272, %v5215, %v5216
        %v5218 = vrot.slane %v5216, 4
        %v5219 = vrot.slane %v5168, 5
        %v5220 = vsel %vm1272, %v5218, %v5219
        %v5221 = vrot.slane %v5169, 5
        %v5222 = vrot.slane %v5221, 4
        %v5223 = vrot.slane %v5170, 5
        %v5224 = vsel %vm1272, %v5222, %v5223
        %v5225 = vrot.slane %v5223, 4
        %v5226 = vrot.slane %v5171, 5
        %v5227 = vsel %vm1272, %v5225, %v5226
        %v5228 = vrot.slane %v5172, 5
        %v5229 = vrot.slane %v5228, 4
        %v5230 = vrot.slane %v5173, 5
        %v5231 = vsel %vm1272, %v5229, %v5230
        %v5232 = vrot.slane %v5230, 4
        %v5233 = vrot.slane %v5174, 5
        %v5234 = vsel %vm1272, %v5232, %v5233
        %v5235 = vrot.slane %v5175, 5
        %v5236 = vrot.slane %v5235, 4
        %v5237 = vrot.slane %v5176, 5
        %v5238 = vsel %vm1272, %v5236, %v5237
        %v5239 = vrot.slane %v5237, 4
        %v5240 = vrot.slane %v5177, 5
        %v5241 = vsel %vm1272, %v5239, %v5240
        %v5242 = vrot.slane %v5178, 5
        %v5243 = vrot.slane %v5242, 4
        %v5244 = vrot.slane %v5179, 5
        %v5245 = vsel %vm1272, %v5243, %v5244
        %v5246 = vrot.slane %v5244, 4
        %v5247 = vrot.slane %v5180, 5
        %v5248 = vsel %vm1272, %v5246, %v5247
        %v5249 = vrot.slane %v5181, 5
        %v5250 = vrot.slane %v5249, 4
        %v5251 = vrot.slane %v5182, 5
        %v5252 = vsel %vm1272, %v5250, %v5251
        %v5253 = vrot.slane %v5251, 4
        %v5254 = vrot.slane %v5183, 5
        %v5255 = vsel %vm1272, %v5253, %v5254
        %v5256 = vrot.slane %v5184, 5
        %v5257 = vrot.slane %v5256, 4
        %v5258 = vrot.slane %v5185, 5
        %v5259 = vsel %vm1272, %v5257, %v5258
        %v5260 = vrot.slane %v5258, 4
        %v5261 = vrot.slane %v5186, 5
        %v5262 = vsel %vm1272, %v5260, %v5261
        %v5263 = vrot.slane %v5187, 5
        %v5264 = vrot.slane %v5263, 4
        %v5265 = vrot.slane %v5188, 5
        %v5266 = vsel %vm1272, %v5264, %v5265
        %v5267 = vrot.slane %v5265, 4
        %v5268 = vrot.slane %v5189, 5
        %v5269 = vsel %vm1272, %v5267, %v5268
        %5286 = vst [vmem:[#allocation3 + $0x14] sm:$0xf] %v5217
        %5287 = vst [vmem:[#allocation3 + $0x38] sm:$0xf] %v5220
        %5288 = vst [vmem:[#allocation3 + $0x5c] sm:$0xf] %v5224
        %5289 = vst [vmem:[#allocation3 + $0x80] sm:$0xf] %v5227
        %5290 = vst [vmem:[#allocation3 + $0xa4] sm:$0xf] %v5231
        %5291 = vst [vmem:[#allocation3 + $0xc8] sm:$0xf] %v5234
        %5292 = vst [vmem:[#allocation3 + $0xec] sm:$0xf] %v5238
        %5293 = vst [vmem:[#allocation3 + $0x110] sm:$0xf] %v5241
        %5294 = vst [vmem:[#allocation3 + $0x134] sm:$0xf] %v5245
        %5295 = vst [vmem:[#allocation3 + $0x158] sm:$0xf] %v5248
        %5296 = vst [vmem:[#allocation3 + $0x17c] sm:$0xf] %v5252
        %5297 = vst [vmem:[#allocation3 + $0x1a0] sm:$0xf] %v5255
        %5298 = vst [vmem:[#allocation3 + $0x1c4] sm:$0xf] %v5259
        %5299 = vst [vmem:[#allocation3 + $0x1e8] sm:$0xf] %v5262
        %5300 = vst [vmem:[#allocation3 + $0x20c] sm:$0xf] %v5266
        %5301 = vst [vmem:[#allocation3 + $0x230] sm:$0xf] %v5269
        %v5302 = vld [vmem:[%s622] sm:$0xf]
        %v5303 = vld [vmem:[%s622 + $0x4] sm:$0xf]
        %v5304 = vld [vmem:[%s622 + $0xc] sm:$0xf]
        %v5305 = vld [vmem:[%s622 + $0x10] sm:$0xf]
        %v5306 = vld [vmem:[%s622 + $0x18] sm:$0xf]
        %v5307 = vld [vmem:[%s622 + $0x1c] sm:$0xf]
        %v5308 = vld [vmem:[%s622 + $0x24] sm:$0xf]
        %v5309 = vld [vmem:[%s622 + $0x28] sm:$0xf]
        %v5310 = vld [vmem:[%s622 + $0x30] sm:$0xf]
        %v5311 = vld [vmem:[%s622 + $0x34] sm:$0xf]
        %v5312 = vld [vmem:[%s622 + $0x3c] sm:$0xf]
        %v5313 = vld [vmem:[%s622 + $0x40] sm:$0xf]
        %v5314 = vld [vmem:[%s622 + $0x48] sm:$0xf]
        %v5315 = vld [vmem:[%s622 + $0x4c] sm:$0xf]
        %v5316 = vld [vmem:[%s622 + $0x54] sm:$0xf]
        %v5317 = vld [vmem:[%s622 + $0x58] sm:$0xf]
        %5318 = vst [vmem:[#allocation3 + $0x18] sm:$0xf] %v5302
        %5319 = vst [vmem:[#allocation3 + $0x3c] sm:$0xf] %v5303
        %5320 = vst [vmem:[#allocation3 + $0x60] sm:$0xf] %v5304
        %5321 = vst [vmem:[#allocation3 + $0x84] sm:$0xf] %v5305
        %5322 = vst [vmem:[#allocation3 + $0xa8] sm:$0xf] %v5306
        %5323 = vst [vmem:[#allocation3 + $0xcc] sm:$0xf] %v5307
        %5324 = vst [vmem:[#allocation3 + $0xf0] sm:$0xf] %v5308
        %5325 = vst [vmem:[#allocation3 + $0x114] sm:$0xf] %v5309
        %5326 = vst [vmem:[#allocation3 + $0x138] sm:$0xf] %v5310
        %5327 = vst [vmem:[#allocation3 + $0x15c] sm:$0xf] %v5311
        %5328 = vst [vmem:[#allocation3 + $0x180] sm:$0xf] %v5312
        %5329 = vst [vmem:[#allocation3 + $0x1a4] sm:$0xf] %v5313
        %5330 = vst [vmem:[#allocation3 + $0x1c8] sm:$0xf] %v5314
        %5331 = vst [vmem:[#allocation3 + $0x1ec] sm:$0xf] %v5315
        %5332 = vst [vmem:[#allocation3 + $0x210] sm:$0xf] %v5316
        %5333 = vst [vmem:[#allocation3 + $0x234] sm:$0xf] %v5317
        %v5334 = vld [vmem:[%s622] sm:$0xf]
        %v5335 = vld [vmem:[%s622 + $0x4] sm:$0xf]
        %v5336 = vld [vmem:[%s622 + $0x8] sm:$0x1]
        %v5337 = vld [vmem:[%s622 + $0xc] sm:$0xf]
        %v5338 = vld [vmem:[%s622 + $0x10] sm:$0xf]
        %v5339 = vld [vmem:[%s622 + $0x14] sm:$0x1]
        %v5340 = vld [vmem:[%s622 + $0x18] sm:$0xf]
        %v5341 = vld [vmem:[%s622 + $0x1c] sm:$0xf]
        %v5342 = vld [vmem:[%s622 + $0x20] sm:$0x1]
        %v5343 = vld [vmem:[%s622 + $0x24] sm:$0xf]
        %v5344 = vld [vmem:[%s622 + $0x28] sm:$0xf]
        %v5345 = vld [vmem:[%s622 + $0x2c] sm:$0x1]
        %v5346 = vld [vmem:[%s622 + $0x30] sm:$0xf]
        %v5347 = vld [vmem:[%s622 + $0x34] sm:$0xf]
        %v5348 = vld [vmem:[%s622 + $0x38] sm:$0x1]
        %v5349 = vld [vmem:[%s622 + $0x3c] sm:$0xf]
        %v5350 = vld [vmem:[%s622 + $0x40] sm:$0xf]
        %v5351 = vld [vmem:[%s622 + $0x44] sm:$0x1]
        %v5352 = vld [vmem:[%s622 + $0x48] sm:$0xf]
        %v5353 = vld [vmem:[%s622 + $0x4c] sm:$0xf]
        %v5354 = vld [vmem:[%s622 + $0x50] sm:$0x1]
        %v5355 = vld [vmem:[%s622 + $0x54] sm:$0xf]
        %v5356 = vld [vmem:[%s622 + $0x58] sm:$0xf]
        %v5357 = vld [vmem:[%s622 + $0x5c] sm:$0x1]
        %v5359 = vshrl.u32 %v5334, 16
        %v5361 = vrot.slane %v5359, 4
        %v5362 = vshll.u32 %v5334, 16
        %v5364 = vrot.slane %v5362, 5
        %v5365 = vor.u32 %v5361, %v5364
        %v5366 = vrot.slane %v5365, 4
        %v5368 = vshll.u32 %v5335, 16
        %v5370 = vrot.slane %v5368, 5
        %v5371 = vsel %vm929, %v5366, %v5370
        %v5372 = vshrl.u32 %v5335, 16
        %v5374 = vrot.slane %v5372, 4
        %v5375 = vor.u32 %v5374, %v5370
        %v5376 = vrot.slane %v5375, 4
        %v5378 = vshll.u32 %v5336, 16
        %v5380 = vrot.slane %v5378, 5
        %v5381 = vsel %vm929, %v5376, %v5380
        %v5383 = vshrl.u32 %v5337, 16
        %v5385 = vrot.slane %v5383, 4
        %v5386 = vshll.u32 %v5337, 16
        %v5388 = vrot.slane %v5386, 5
        %v5389 = vor.u32 %v5385, %v5388
        %v5390 = vrot.slane %v5389, 4
        %v5392 = vshll.u32 %v5338, 16
        %v5394 = vrot.slane %v5392, 5
        %v5395 = vsel %vm929, %v5390, %v5394
        %v5396 = vshrl.u32 %v5338, 16
        %v5398 = vrot.slane %v5396, 4
        %v5399 = vor.u32 %v5398, %v5394
        %v5400 = vrot.slane %v5399, 4
        %v5402 = vshll.u32 %v5339, 16
        %v5404 = vrot.slane %v5402, 5
        %v5405 = vsel %vm929, %v5400, %v5404
        %v5407 = vshrl.u32 %v5340, 16
        %v5409 = vrot.slane %v5407, 4
        %v5410 = vshll.u32 %v5340, 16
        %v5412 = vrot.slane %v5410, 5
        %v5413 = vor.u32 %v5409, %v5412
        %v5414 = vrot.slane %v5413, 4
        %v5416 = vshll.u32 %v5341, 16
        %v5418 = vrot.slane %v5416, 5
        %v5419 = vsel %vm929, %v5414, %v5418
        %v5420 = vshrl.u32 %v5341, 16
        %v5422 = vrot.slane %v5420, 4
        %v5423 = vor.u32 %v5422, %v5418
        %v5424 = vrot.slane %v5423, 4
        %v5426 = vshll.u32 %v5342, 16
        %v5428 = vrot.slane %v5426, 5
        %v5429 = vsel %vm929, %v5424, %v5428
        %v5431 = vshrl.u32 %v5343, 16
        %v5433 = vrot.slane %v5431, 4
        %v5434 = vshll.u32 %v5343, 16
        %v5436 = vrot.slane %v5434, 5
        %v5437 = vor.u32 %v5433, %v5436
        %v5438 = vrot.slane %v5437, 4
        %v5440 = vshll.u32 %v5344, 16
        %v5442 = vrot.slane %v5440, 5
        %v5443 = vsel %vm929, %v5438, %v5442
        %v5444 = vshrl.u32 %v5344, 16
        %v5446 = vrot.slane %v5444, 4
        %v5447 = vor.u32 %v5446, %v5442
        %v5448 = vrot.slane %v5447, 4
        %v5450 = vshll.u32 %v5345, 16
        %v5452 = vrot.slane %v5450, 5
        %v5453 = vsel %vm929, %v5448, %v5452
        %v5455 = vshrl.u32 %v5346, 16
        %v5457 = vrot.slane %v5455, 4
        %v5458 = vshll.u32 %v5346, 16
        %v5460 = vrot.slane %v5458, 5
        %v5461 = vor.u32 %v5457, %v5460
        %v5462 = vrot.slane %v5461, 4
        %v5464 = vshll.u32 %v5347, 16
        %v5466 = vrot.slane %v5464, 5
        %v5467 = vsel %vm929, %v5462, %v5466
        %v5468 = vshrl.u32 %v5347, 16
        %v5470 = vrot.slane %v5468, 4
        %v5471 = vor.u32 %v5470, %v5466
        %v5472 = vrot.slane %v5471, 4
        %v5474 = vshll.u32 %v5348, 16
        %v5476 = vrot.slane %v5474, 5
        %v5477 = vsel %vm929, %v5472, %v5476
        %v5479 = vshrl.u32 %v5349, 16
        %v5481 = vrot.slane %v5479, 4
        %v5482 = vshll.u32 %v5349, 16
        %v5484 = vrot.slane %v5482, 5
        %v5485 = vor.u32 %v5481, %v5484
        %v5486 = vrot.slane %v5485, 4
        %v5488 = vshll.u32 %v5350, 16
        %v5490 = vrot.slane %v5488, 5
        %v5491 = vsel %vm929, %v5486, %v5490
        %v5492 = vshrl.u32 %v5350, 16
        %v5494 = vrot.slane %v5492, 4
        %v5495 = vor.u32 %v5494, %v5490
        %v5496 = vrot.slane %v5495, 4
        %v5498 = vshll.u32 %v5351, 16
        %v5500 = vrot.slane %v5498, 5
        %v5501 = vsel %vm929, %v5496, %v5500
        %v5503 = vshrl.u32 %v5352, 16
        %v5505 = vrot.slane %v5503, 4
        %v5506 = vshll.u32 %v5352, 16
        %v5508 = vrot.slane %v5506, 5
        %v5509 = vor.u32 %v5505, %v5508
        %v5510 = vrot.slane %v5509, 4
        %v5512 = vshll.u32 %v5353, 16
        %v5514 = vrot.slane %v5512, 5
        %v5515 = vsel %vm929, %v5510, %v5514
        %v5516 = vshrl.u32 %v5353, 16
        %v5518 = vrot.slane %v5516, 4
        %v5519 = vor.u32 %v5518, %v5514
        %v5520 = vrot.slane %v5519, 4
        %v5522 = vshll.u32 %v5354, 16
        %v5524 = vrot.slane %v5522, 5
        %v5525 = vsel %vm929, %v5520, %v5524
        %v5527 = vshrl.u32 %v5355, 16
        %v5529 = vrot.slane %v5527, 4
        %v5530 = vshll.u32 %v5355, 16
        %v5532 = vrot.slane %v5530, 5
        %v5533 = vor.u32 %v5529, %v5532
        %v5534 = vrot.slane %v5533, 4
        %v5536 = vshll.u32 %v5356, 16
        %v5538 = vrot.slane %v5536, 5
        %v5539 = vsel %vm929, %v5534, %v5538
        %v5540 = vshrl.u32 %v5356, 16
        %v5542 = vrot.slane %v5540, 4
        %v5543 = vor.u32 %v5542, %v5538
        %v5544 = vrot.slane %v5543, 4
        %v5546 = vshll.u32 %v5357, 16
        %v5548 = vrot.slane %v5546, 5
        %v5549 = vsel %vm929, %v5544, %v5548
        %5566 = vst [vmem:[#allocation3 + $0x1c] sm:$0xf] %v5371
        %5567 = vst [vmem:[#allocation3 + $0x40] sm:$0xf] %v5381
        %5568 = vst [vmem:[#allocation3 + $0x64] sm:$0xf] %v5395
        %5569 = vst [vmem:[#allocation3 + $0x88] sm:$0xf] %v5405
        %5570 = vst [vmem:[#allocation3 + $0xac] sm:$0xf] %v5419
        %5571 = vst [vmem:[#allocation3 + $0xd0] sm:$0xf] %v5429
        %5572 = vst [vmem:[#allocation3 + $0xf4] sm:$0xf] %v5443
        %5573 = vst [vmem:[#allocation3 + $0x118] sm:$0xf] %v5453
        %5574 = vst [vmem:[#allocation3 + $0x13c] sm:$0xf] %v5467
        %5575 = vst [vmem:[#allocation3 + $0x160] sm:$0xf] %v5477
        %5576 = vst [vmem:[#allocation3 + $0x184] sm:$0xf] %v5491
        %5577 = vst [vmem:[#allocation3 + $0x1a8] sm:$0xf] %v5501
        %5578 = vst [vmem:[#allocation3 + $0x1cc] sm:$0xf] %v5515
        %5579 = vst [vmem:[#allocation3 + $0x1f0] sm:$0xf] %v5525
        %5580 = vst [vmem:[#allocation3 + $0x214] sm:$0xf] %v5539
        %5581 = vst [vmem:[#allocation3 + $0x238] sm:$0xf] %v5549
        %v5582 = vld [vmem:[%s622] sm:$0xe]
        %v5583 = vld [vmem:[%s622 + $0x4] sm:$0xf]
        %v5584 = vld [vmem:[%s622 + $0x8] sm:$0x1]
        %v5585 = vld [vmem:[%s622 + $0xc] sm:$0xe]
        %v5586 = vld [vmem:[%s622 + $0x10] sm:$0xf]
        %v5587 = vld [vmem:[%s622 + $0x14] sm:$0x1]
        %v5588 = vld [vmem:[%s622 + $0x18] sm:$0xe]
        %v5589 = vld [vmem:[%s622 + $0x1c] sm:$0xf]
        %v5590 = vld [vmem:[%s622 + $0x20] sm:$0x1]
        %v5591 = vld [vmem:[%s622 + $0x24] sm:$0xe]
        %v5592 = vld [vmem:[%s622 + $0x28] sm:$0xf]
        %v5593 = vld [vmem:[%s622 + $0x2c] sm:$0x1]
        %v5594 = vld [vmem:[%s622 + $0x30] sm:$0xe]
        %v5595 = vld [vmem:[%s622 + $0x34] sm:$0xf]
        %v5596 = vld [vmem:[%s622 + $0x38] sm:$0x1]
        %v5597 = vld [vmem:[%s622 + $0x3c] sm:$0xe]
        %v5598 = vld [vmem:[%s622 + $0x40] sm:$0xf]
        %v5599 = vld [vmem:[%s622 + $0x44] sm:$0x1]
        %v5600 = vld [vmem:[%s622 + $0x48] sm:$0xe]
        %v5601 = vld [vmem:[%s622 + $0x4c] sm:$0xf]
        %v5602 = vld [vmem:[%s622 + $0x50] sm:$0x1]
        %v5603 = vld [vmem:[%s622 + $0x54] sm:$0xe]
        %v5604 = vld [vmem:[%s622 + $0x58] sm:$0xf]
        %v5605 = vld [vmem:[%s622 + $0x5c] sm:$0x1]
        %v5630 = vrot.slane %v5582, 5
        %v5631 = vrot.slane %v5630, 4
        %v5632 = vrot.slane %v5583, 5
        %v5633 = vsel %vm1272, %v5631, %v5632
        %v5634 = vrot.slane %v5632, 4
        %v5635 = vrot.slane %v5584, 5
        %v5636 = vsel %vm1272, %v5634, %v5635
        %v5637 = vrot.slane %v5585, 5
        %v5638 = vrot.slane %v5637, 4
        %v5639 = vrot.slane %v5586, 5
        %v5640 = vsel %vm1272, %v5638, %v5639
        %v5641 = vrot.slane %v5639, 4
        %v5642 = vrot.slane %v5587, 5
        %v5643 = vsel %vm1272, %v5641, %v5642
        %v5644 = vrot.slane %v5588, 5
        %v5645 = vrot.slane %v5644, 4
        %v5646 = vrot.slane %v5589, 5
        %v5647 = vsel %vm1272, %v5645, %v5646
        %v5648 = vrot.slane %v5646, 4
        %v5649 = vrot.slane %v5590, 5
        %v5650 = vsel %vm1272, %v5648, %v5649
        %v5651 = vrot.slane %v5591, 5
        %v5652 = vrot.slane %v5651, 4
        %v5653 = vrot.slane %v5592, 5
        %v5654 = vsel %vm1272, %v5652, %v5653
        %v5655 = vrot.slane %v5653, 4
        %v5656 = vrot.slane %v5593, 5
        %v5657 = vsel %vm1272, %v5655, %v5656
        %v5658 = vrot.slane %v5594, 5
        %v5659 = vrot.slane %v5658, 4
        %v5660 = vrot.slane %v5595, 5
        %v5661 = vsel %vm1272, %v5659, %v5660
        %v5662 = vrot.slane %v5660, 4
        %v5663 = vrot.slane %v5596, 5
        %v5664 = vsel %vm1272, %v5662, %v5663
        %v5665 = vrot.slane %v5597, 5
        %v5666 = vrot.slane %v5665, 4
        %v5667 = vrot.slane %v5598, 5
        %v5668 = vsel %vm1272, %v5666, %v5667
        %v5669 = vrot.slane %v5667, 4
        %v5670 = vrot.slane %v5599, 5
        %v5671 = vsel %vm1272, %v5669, %v5670
        %v5672 = vrot.slane %v5600, 5
        %v5673 = vrot.slane %v5672, 4
        %v5674 = vrot.slane %v5601, 5
        %v5675 = vsel %vm1272, %v5673, %v5674
        %v5676 = vrot.slane %v5674, 4
        %v5677 = vrot.slane %v5602, 5
        %v5678 = vsel %vm1272, %v5676, %v5677
        %v5679 = vrot.slane %v5603, 5
        %v5680 = vrot.slane %v5679, 4
        %v5681 = vrot.slane %v5604, 5
        %v5682 = vsel %vm1272, %v5680, %v5681
        %v5683 = vrot.slane %v5681, 4
        %v5684 = vrot.slane %v5605, 5
        %v5685 = vsel %vm1272, %v5683, %v5684
        %5702 = vst [vmem:[#allocation3 + $0x20] sm:$0xf] %v5633
        %5703 = vst [vmem:[#allocation3 + $0x44] sm:$0xf] %v5636
        %5704 = vst [vmem:[#allocation3 + $0x68] sm:$0xf] %v5640
        %5705 = vst [vmem:[#allocation3 + $0x8c] sm:$0xf] %v5643
        %5706 = vst [vmem:[#allocation3 + $0xb0] sm:$0xf] %v5647
        %5707 = vst [vmem:[#allocation3 + $0xd4] sm:$0xf] %v5650
        %5708 = vst [vmem:[#allocation3 + $0xf8] sm:$0xf] %v5654
        %5709 = vst [vmem:[#allocation3 + $0x11c] sm:$0xf] %v5657
        %5710 = vst [vmem:[#allocation3 + $0x140] sm:$0xf] %v5661
        %5711 = vst [vmem:[#allocation3 + $0x164] sm:$0xf] %v5664
        %5712 = vst [vmem:[#allocation3 + $0x188] sm:$0xf] %v5668
        %5713 = vst [vmem:[#allocation3 + $0x1ac] sm:$0xf] %v5671
        %5714 = vst [vmem:[#allocation3 + $0x1d0] sm:$0xf] %v5675
        %5715 = vst [vmem:[#allocation3 + $0x1f4] sm:$0xf] %v5678
        %5716 = vst [vmem:[#allocation3 + $0x218] sm:$0xf] %v5682
        %5717 = vst [vmem:[#allocation3 + $0x23c] sm:$0xf] %v5685
        %v5718 = vld [vmem:[#allocation3] sm:$0xff]
        %v5719 = vld [vmem:[#allocation3 + $0x8] sm:$0xff]
        %v5720 = vld [vmem:[#allocation3 + $0x10] sm:$0xff]
        %v5721 = vld [vmem:[#allocation3 + $0x18] sm:$0xff]
        %v5722 = vld [vmem:[#allocation3 + $0x20] sm:$0xf]
        %v5723 = vld [vmem:[#allocation3 + $0x24] sm:$0xff]
        %v5724 = vld [vmem:[#allocation3 + $0x2c] sm:$0xff]
        %v5725 = vld [vmem:[#allocation3 + $0x34] sm:$0xff]
        %v5726 = vld [vmem:[#allocation3 + $0x3c] sm:$0xff]
        %v5727 = vld [vmem:[#allocation3 + $0x44] sm:$0xf]
        %v5728 = vld [vmem:[#allocation3 + $0x48] sm:$0xff]
        %v5729 = vld [vmem:[#allocation3 + $0x50] sm:$0xff]
        %v5730 = vld [vmem:[#allocation3 + $0x58] sm:$0xff]
        %v5731 = vld [vmem:[#allocation3 + $0x60] sm:$0xff]
        %v5732 = vld [vmem:[#allocation3 + $0x68] sm:$0xf]
        %v5733 = vld [vmem:[#allocation3 + $0x6c] sm:$0xff]
        %v5734 = vld [vmem:[#allocation3 + $0x74] sm:$0xff]
        %v5735 = vld [vmem:[#allocation3 + $0x7c] sm:$0xff]
        %v5736 = vld [vmem:[#allocation3 + $0x84] sm:$0xff]
        %v5737 = vld [vmem:[#allocation3 + $0x8c] sm:$0xf]
        %v5738 = vld [vmem:[#allocation3 + $0x90] sm:$0xff]
        %v5739 = vld [vmem:[#allocation3 + $0x98] sm:$0xff]
        %v5740 = vld [vmem:[#allocation3 + $0xa0] sm:$0xff]
        %v5741 = vld [vmem:[#allocation3 + $0xa8] sm:$0xff]
        %v5742 = vld [vmem:[#allocation3 + $0xb0] sm:$0xf]
        %v5743 = vld [vmem:[#allocation3 + $0xb4] sm:$0xff]
        %v5744 = vld [vmem:[#allocation3 + $0xbc] sm:$0xff]
        %v5745 = vld [vmem:[#allocation3 + $0xc4] sm:$0xff]
        %v5746 = vld [vmem:[#allocation3 + $0xcc] sm:$0xff]
        %v5747 = vld [vmem:[#allocation3 + $0xd4] sm:$0xf]
        %v5748 = vld [vmem:[#allocation3 + $0xd8] sm:$0xff]
        %v5749 = vld [vmem:[#allocation3 + $0xe0] sm:$0xff]
        %v5750 = vld [vmem:[#allocation3 + $0xe8] sm:$0xff]
        %v5751 = vld [vmem:[#allocation3 + $0xf0] sm:$0xff]
        %v5752 = vld [vmem:[#allocation3 + $0xf8] sm:$0xf]
        %v5753 = vld [vmem:[#allocation3 + $0xfc] sm:$0xff]
        %v5754 = vld [vmem:[#allocation3 + $0x104] sm:$0xff]
        %v5755 = vld [vmem:[#allocation3 + $0x10c] sm:$0xff]
        %v5756 = vld [vmem:[#allocation3 + $0x114] sm:$0xff]
        %v5757 = vld [vmem:[#allocation3 + $0x11c] sm:$0xf]
        %v5758 = vld [vmem:[#allocation3 + $0x120] sm:$0xff]
        %v5759 = vld [vmem:[#allocation3 + $0x128] sm:$0xff]
        %v5760 = vld [vmem:[#allocation3 + $0x130] sm:$0xff]
        %v5761 = vld [vmem:[#allocation3 + $0x138] sm:$0xff]
        %v5762 = vld [vmem:[#allocation3 + $0x140] sm:$0xf]
        %v5763 = vld [vmem:[#allocation3 + $0x144] sm:$0xff]
        %v5764 = vld [vmem:[#allocation3 + $0x14c] sm:$0xff]
        %v5765 = vld [vmem:[#allocation3 + $0x154] sm:$0xff]
        %v5766 = vld [vmem:[#allocation3 + $0x15c] sm:$0xff]
        %v5767 = vld [vmem:[#allocation3 + $0x164] sm:$0xf]
        %v5768 = vld [vmem:[#allocation3 + $0x168] sm:$0xff]
        %v5769 = vld [vmem:[#allocation3 + $0x170] sm:$0xff]
        %v5770 = vld [vmem:[#allocation3 + $0x178] sm:$0xff]
        %v5771 = vld [vmem:[#allocation3 + $0x180] sm:$0xff]
        %v5772 = vld [vmem:[#allocation3 + $0x188] sm:$0xf]
        %v5773 = vld [vmem:[#allocation3 + $0x18c] sm:$0xff]
        %v5774 = vld [vmem:[#allocation3 + $0x194] sm:$0xff]
        %v5775 = vld [vmem:[#allocation3 + $0x19c] sm:$0xff]
        %v5776 = vld [vmem:[#allocation3 + $0x1a4] sm:$0xff]
        %v5777 = vld [vmem:[#allocation3 + $0x1ac] sm:$0xf]
        %v5778 = vld [vmem:[#allocation3 + $0x1b0] sm:$0xff]
        %v5779 = vld [vmem:[#allocation3 + $0x1b8] sm:$0xff]
        %v5780 = vld [vmem:[#allocation3 + $0x1c0] sm:$0xff]
        %v5781 = vld [vmem:[#allocation3 + $0x1c8] sm:$0xff]
        %v5782 = vld [vmem:[#allocation3 + $0x1d0] sm:$0xf]
        %v5783 = vld [vmem:[#allocation3 + $0x1d4] sm:$0xff]
        %v5784 = vld [vmem:[#allocation3 + $0x1dc] sm:$0xff]
        %v5785 = vld [vmem:[#allocation3 + $0x1e4] sm:$0xff]
        %v5786 = vld [vmem:[#allocation3 + $0x1ec] sm:$0xff]
        %v5787 = vld [vmem:[#allocation3 + $0x1f4] sm:$0xf]
        %v5788 = vld [vmem:[#allocation3 + $0x1f8] sm:$0xff]
        %v5789 = vld [vmem:[#allocation3 + $0x200] sm:$0xff]
        %v5790 = vld [vmem:[#allocation3 + $0x208] sm:$0xff]
        %v5791 = vld [vmem:[#allocation3 + $0x210] sm:$0xff]
        %v5792 = vld [vmem:[#allocation3 + $0x218] sm:$0xf]
        %v5793 = vld [vmem:[#allocation3 + $0x21c] sm:$0xff]
        %v5794 = vld [vmem:[#allocation3 + $0x224] sm:$0xff]
        %v5795 = vld [vmem:[#allocation3 + $0x22c] sm:$0xff]
        %v5796 = vld [vmem:[#allocation3 + $0x234] sm:$0xff]
        %v5797 = vld [vmem:[#allocation3 + $0x23c] sm:$0xf]
        %v5798 = vld [vmem:[#allocation9] sm:$0xf]
        %v5799 = vld [vmem:[#allocation9 + $0x4] sm:$0xf]
        %v5800 = vld [vmem:[#allocation9 + $0x8] sm:$0xf]
        %v5801 = vld [vmem:[#allocation9 + $0xc] sm:$0xf]
        %v5802 = vld [vmem:[#allocation9 + $0x10] sm:$0xf]
        %v5803 = vld [vmem:[#allocation9 + $0x14] sm:$0xf]
        %v5804 = vld [vmem:[#allocation9 + $0x18] sm:$0xf]
        %v5805 = vld [vmem:[#allocation9 + $0x1c] sm:$0xf]
        %v5806 = vld [vmem:[#allocation9 + $0x20] sm:$0xf]
        %v5807 = vld [vmem:[#allocation9 + $0x24] sm:$0xf]
        %v5808 = vld [vmem:[#allocation9 + $0x28] sm:$0xf]
        %v5809 = vld [vmem:[#allocation9 + $0x2c] sm:$0xf]
        %v5810 = vld [vmem:[#allocation9 + $0x30] sm:$0xf]
        %v5811 = vld [vmem:[#allocation9 + $0x34] sm:$0xf]
        %v5812 = vld [vmem:[#allocation9 + $0x38] sm:$0xf]
        %v5813 = vld [vmem:[#allocation9 + $0x3c] sm:$0xf]
        %v5814 = vld [vmem:[#allocation9 + $0x40] sm:$0xf]
        %v5815 = vld [vmem:[#allocation9 + $0x44] sm:$0xf]
        %v5816 = vld [vmem:[#allocation9 + $0x48] sm:$0xf]
        %v5817 = vld [vmem:[#allocation9 + $0x4c] sm:$0xf]
        %v5818 = vld [vmem:[#allocation9 + $0x50] sm:$0xf]
        %v5819 = vld [vmem:[#allocation9 + $0x54] sm:$0xf]
        %v5820 = vld [vmem:[#allocation9 + $0x58] sm:$0xf]
        %v5821 = vld [vmem:[#allocation9 + $0x5c] sm:$0xf]
        %v5822 = vld [vmem:[#allocation9 + $0x60] sm:$0xf]
        %v5823 = vld [vmem:[#allocation9 + $0x64] sm:$0xf]
        %v5824 = vld [vmem:[#allocation9 + $0x68] sm:$0xf]
        %v5825 = vld [vmem:[#allocation9 + $0x6c] sm:$0xf]
        %v5826 = vld [vmem:[#allocation9 + $0x70] sm:$0xf]
        %v5827 = vld [vmem:[#allocation9 + $0x74] sm:$0xf]
        %v5828 = vld [vmem:[#allocation9 + $0x78] sm:$0xf]
        %v5829 = vld [vmem:[#allocation9 + $0x7c] sm:$0xf]
        %v5830 = vld [vmem:[#allocation9 + $0x80] sm:$0xf]
        %v5831 = vld [vmem:[#allocation9 + $0x84] sm:$0xf]
        %v5832 = vld [vmem:[#allocation9 + $0x88] sm:$0xf]
        %v5833 = vld [vmem:[#allocation9 + $0x8c] sm:$0xf]
        %v5834 = vld [vmem:[#allocation9 + $0x90] sm:$0xf]
        %v5835 = vld [vmem:[#allocation9 + $0x94] sm:$0xf]
        %v5836 = vld [vmem:[#allocation9 + $0x98] sm:$0xf]
        %v5837 = vld [vmem:[#allocation9 + $0x9c] sm:$0xf]
        %v5838 = vld [vmem:[#allocation9 + $0xa0] sm:$0xf]
        %v5839 = vld [vmem:[#allocation9 + $0xa4] sm:$0xf]
        %v5840 = vld [vmem:[#allocation9 + $0xa8] sm:$0xf]
        %v5841 = vld [vmem:[#allocation9 + $0xac] sm:$0xf]
        %v5842 = vld [vmem:[#allocation9 + $0xb0] sm:$0xf]
        %v5843 = vld [vmem:[#allocation9 + $0xb4] sm:$0xf]
        %v5844 = vld [vmem:[#allocation9 + $0xb8] sm:$0xf]
        %v5845 = vld [vmem:[#allocation9 + $0xbc] sm:$0xf]
        %v5846 = vld [vmem:[#allocation9 + $0xc0] sm:$0xf]
        %v5847 = vld [vmem:[#allocation9 + $0xc4] sm:$0xf]
        %v5848 = vld [vmem:[#allocation9 + $0xc8] sm:$0xf]
        %v5849 = vld [vmem:[#allocation9 + $0xcc] sm:$0xf]
        %v5850 = vld [vmem:[#allocation9 + $0xd0] sm:$0xf]
        %v5851 = vld [vmem:[#allocation9 + $0xd4] sm:$0xf]
        %v5852 = vld [vmem:[#allocation9 + $0xd8] sm:$0xf]
        %v5853 = vld [vmem:[#allocation9 + $0xdc] sm:$0xf]
        %v5854 = vld [vmem:[#allocation9 + $0xe0] sm:$0xf]
        %v5855 = vld [vmem:[#allocation9 + $0xe4] sm:$0xf]
        %v5856 = vld [vmem:[#allocation9 + $0xe8] sm:$0xf]
        %v5857 = vld [vmem:[#allocation9 + $0xec] sm:$0xf]
        %v5858 = vld [vmem:[#allocation9 + $0xf0] sm:$0xf]
        %v5859 = vld [vmem:[#allocation9 + $0xf4] sm:$0xf]
        %v5860 = vld [vmem:[#allocation9 + $0xf8] sm:$0xf]
        %v5861 = vld [vmem:[#allocation9 + $0xfc] sm:$0xf]
        %v5862 = vld [vmem:[#allocation9 + $0x100] sm:$0xf]
        %v5863 = vld [vmem:[#allocation9 + $0x104] sm:$0xf]
        %v5864 = vld [vmem:[#allocation9 + $0x108] sm:$0xf]
        %v5865 = vld [vmem:[#allocation9 + $0x10c] sm:$0xf]
        %v5866 = vld [vmem:[#allocation9 + $0x110] sm:$0xf]
        %v5867 = vld [vmem:[#allocation9 + $0x114] sm:$0xf]
        %v5868 = vld [vmem:[#allocation9 + $0x118] sm:$0xf]
        %v5869 = vld [vmem:[#allocation9 + $0x11c] sm:$0xf]
        %v5870 = vld [vmem:[#allocation9 + $0x120] sm:$0xf]
        %v5871 = vld [vmem:[#allocation9 + $0x124] sm:$0xf]
        %v5872 = vld [vmem:[#allocation9 + $0x128] sm:$0xf]
        %v5873 = vld [vmem:[#allocation9 + $0x12c] sm:$0xf]
        %v5874 = vld [vmem:[#allocation9 + $0x130] sm:$0xf]
        %v5875 = vld [vmem:[#allocation9 + $0x134] sm:$0xf]
        %v5876 = vld [vmem:[#allocation9 + $0x138] sm:$0xf]
        %v5877 = vld [vmem:[#allocation9 + $0x13c] sm:$0xf]
        %v5878 = vld [vmem:[#allocation9 + $0x140] sm:$0xf]
        %v5879 = vld [vmem:[#allocation9 + $0x144] sm:$0xf]
        %v5880 = vld [vmem:[#allocation9 + $0x148] sm:$0xf]
        %v5881 = vld [vmem:[#allocation9 + $0x14c] sm:$0xf]
        %v5882 = vld [vmem:[#allocation9 + $0x150] sm:$0xf]
        %v5883 = vld [vmem:[#allocation9 + $0x154] sm:$0xf]
        %v5884 = vld [vmem:[#allocation9 + $0x158] sm:$0xf]
        %v5885 = vld [vmem:[#allocation9 + $0x15c] sm:$0xf]
        %v5886 = vld [vmem:[#allocation9 + $0x160] sm:$0xf]
        %v5887 = vld [vmem:[#allocation9 + $0x164] sm:$0xf]
        %v5888 = vld [vmem:[#allocation9 + $0x168] sm:$0xf]
        %v5889 = vld [vmem:[#allocation9 + $0x16c] sm:$0xf]
        %v5890 = vld [vmem:[#allocation9 + $0x170] sm:$0xf]
        %v5891 = vld [vmem:[#allocation9 + $0x174] sm:$0xf]
        %v5892 = vld [vmem:[#allocation9 + $0x178] sm:$0xf]
        %v5893 = vld [vmem:[#allocation9 + $0x17c] sm:$0xf]
        %v5894 = vld [vmem:[#allocation9 + $0x180] sm:$0xf]
        %v5895 = vld [vmem:[#allocation9 + $0x184] sm:$0xf]
        %v5896 = vld [vmem:[#allocation9 + $0x188] sm:$0xf]
        %v5897 = vld [vmem:[#allocation9 + $0x18c] sm:$0xf]
        %v5898 = vld [vmem:[#allocation9 + $0x190] sm:$0xf]
        %v5899 = vld [vmem:[#allocation9 + $0x194] sm:$0xf]
        %v5900 = vld [vmem:[#allocation9 + $0x198] sm:$0xf]
        %v5901 = vld [vmem:[#allocation9 + $0x19c] sm:$0xf]
        %v5902 = vld [vmem:[#allocation9 + $0x1a0] sm:$0xf]
        %v5903 = vld [vmem:[#allocation9 + $0x1a4] sm:$0xf]
        %v5904 = vld [vmem:[#allocation9 + $0x1a8] sm:$0xf]
        %v5905 = vld [vmem:[#allocation9 + $0x1ac] sm:$0xf]
        %v5906 = vld [vmem:[#allocation9 + $0x1b0] sm:$0xf]
        %v5907 = vld [vmem:[#allocation9 + $0x1b4] sm:$0xf]
        %v5908 = vld [vmem:[#allocation9 + $0x1b8] sm:$0xf]
        %v5909 = vld [vmem:[#allocation9 + $0x1bc] sm:$0xf]
        %v5910 = vld [vmem:[#allocation9 + $0x1c0] sm:$0xf]
        %v5911 = vld [vmem:[#allocation9 + $0x1c4] sm:$0xf]
        %v5912 = vld [vmem:[#allocation9 + $0x1c8] sm:$0xf]
        %v5913 = vld [vmem:[#allocation9 + $0x1cc] sm:$0xf]
        %v5914 = vld [vmem:[#allocation9 + $0x1d0] sm:$0xf]
        %v5915 = vld [vmem:[#allocation9 + $0x1d4] sm:$0xf]
        %v5916 = vld [vmem:[#allocation9 + $0x1d8] sm:$0xf]
        %v5917 = vld [vmem:[#allocation9 + $0x1dc] sm:$0xf]
        %v5918 = vld [vmem:[#allocation9 + $0x1e0] sm:$0xf]
        %v5919 = vld [vmem:[#allocation9 + $0x1e4] sm:$0xf]
        %v5920 = vld [vmem:[#allocation9 + $0x1e8] sm:$0xf]
        %v5921 = vld [vmem:[#allocation9 + $0x1ec] sm:$0xf]
        %v5922 = vld [vmem:[#allocation9 + $0x1f0] sm:$0xf]
        %v5923 = vld [vmem:[#allocation9 + $0x1f4] sm:$0xf]
        %v5924 = vld [vmem:[#allocation9 + $0x1f8] sm:$0xf]
        %v5925 = vld [vmem:[#allocation9 + $0x1fc] sm:$0xf]
        %v5926 = vld [vmem:[#allocation9 + $0x200] sm:$0xf]
        %v5927 = vld [vmem:[#allocation9 + $0x204] sm:$0xf]
        %v5928 = vld [vmem:[#allocation9 + $0x208] sm:$0xf]
        %v5929 = vld [vmem:[#allocation9 + $0x20c] sm:$0xf]
        %v5930 = vld [vmem:[#allocation9 + $0x210] sm:$0xf]
        %v5931 = vld [vmem:[#allocation9 + $0x214] sm:$0xf]
        %v5932 = vld [vmem:[#allocation9 + $0x218] sm:$0xf]
        %v5933 = vld [vmem:[#allocation9 + $0x21c] sm:$0xf]
        %v5934 = vld [vmem:[#allocation9 + $0x220] sm:$0xf]
        %v5935 = vld [vmem:[#allocation9 + $0x224] sm:$0xf]
        %v5936 = vld [vmem:[#allocation9 + $0x228] sm:$0xf]
        %v5937 = vld [vmem:[#allocation9 + $0x22c] sm:$0xf]
        %v5938 = vld [vmem:[#allocation9 + $0x230] sm:$0xf]
        %v5939 = vld [vmem:[#allocation9 + $0x234] sm:$0xf]
        %v5940 = vld [vmem:[#allocation9 + $0x238] sm:$0xf]
        %v5941 = vld [vmem:[#allocation9 + $0x23c] sm:$0xf]
        %v6022 = vunpack.c.l.b16 %v5718
        %v6023 = vunpack.c.h.b16 %v5718
        %v6024 = vunpack.c.l.b16 %v5719
        %v6025 = vunpack.c.h.b16 %v5719
        %v6026 = vunpack.c.l.b16 %v5720
        %v6027 = vunpack.c.h.b16 %v5720
        %v6028 = vunpack.c.l.b16 %v5721
        %v6029 = vunpack.c.h.b16 %v5721
        %v6030 = vunpack.c.l.b16 %v5722
        %v6031 = vunpack.c.l.b16 %v5723
        %v6032 = vunpack.c.h.b16 %v5723
        %v6033 = vunpack.c.l.b16 %v5724
        %v6034 = vunpack.c.h.b16 %v5724
        %v6035 = vunpack.c.l.b16 %v5725
        %v6036 = vunpack.c.h.b16 %v5725
        %v6037 = vunpack.c.l.b16 %v5726
        %v6038 = vunpack.c.h.b16 %v5726
        %v6039 = vunpack.c.l.b16 %v5727
        %v6040 = vunpack.c.l.b16 %v5728
        %v6041 = vunpack.c.h.b16 %v5728
        %v6042 = vunpack.c.l.b16 %v5729
        %v6043 = vunpack.c.h.b16 %v5729
        %v6044 = vunpack.c.l.b16 %v5730
        %v6045 = vunpack.c.h.b16 %v5730
        %v6046 = vunpack.c.l.b16 %v5731
        %v6047 = vunpack.c.h.b16 %v5731
        %v6048 = vunpack.c.l.b16 %v5732
        %v6049 = vunpack.c.l.b16 %v5733
        %v6050 = vunpack.c.h.b16 %v5733
        %v6051 = vunpack.c.l.b16 %v5734
        %v6052 = vunpack.c.h.b16 %v5734
        %v6053 = vunpack.c.l.b16 %v5735
        %v6054 = vunpack.c.h.b16 %v5735
        %v6055 = vunpack.c.l.b16 %v5736
        %v6056 = vunpack.c.h.b16 %v5736
        %v6057 = vunpack.c.l.b16 %v5737
        %v6058 = vunpack.c.l.b16 %v5738
        %v6059 = vunpack.c.h.b16 %v5738
        %v6060 = vunpack.c.l.b16 %v5739
        %v6061 = vunpack.c.h.b16 %v5739
        %v6062 = vunpack.c.l.b16 %v5740
        %v6063 = vunpack.c.h.b16 %v5740
        %v6064 = vunpack.c.l.b16 %v5741
        %v6065 = vunpack.c.h.b16 %v5741
        %v6066 = vunpack.c.l.b16 %v5742
        %v6067 = vunpack.c.l.b16 %v5743
        %v6068 = vunpack.c.h.b16 %v5743
        %v6069 = vunpack.c.l.b16 %v5744
        %v6070 = vunpack.c.h.b16 %v5744
        %v6071 = vunpack.c.l.b16 %v5745
        %v6072 = vunpack.c.h.b16 %v5745
        %v6073 = vunpack.c.l.b16 %v5746
        %v6074 = vunpack.c.h.b16 %v5746
        %v6075 = vunpack.c.l.b16 %v5747
        %v6076 = vunpack.c.l.b16 %v5748
        %v6077 = vunpack.c.h.b16 %v5748
        %v6078 = vunpack.c.l.b16 %v5749
        %v6079 = vunpack.c.h.b16 %v5749
        %v6080 = vunpack.c.l.b16 %v5750
        %v6081 = vunpack.c.h.b16 %v5750
        %v6082 = vunpack.c.l.b16 %v5751
        %v6083 = vunpack.c.h.b16 %v5751
        %v6084 = vunpack.c.l.b16 %v5752
        %v6085 = vunpack.c.l.b16 %v5753
        %v6086 = vunpack.c.h.b16 %v5753
        %v6087 = vunpack.c.l.b16 %v5754
        %v6088 = vunpack.c.h.b16 %v5754
        %v6089 = vunpack.c.l.b16 %v5755
        %v6090 = vunpack.c.h.b16 %v5755
        %v6091 = vunpack.c.l.b16 %v5756
        %v6092 = vunpack.c.h.b16 %v5756
        %v6093 = vunpack.c.l.b16 %v5757
        %v6094 = vunpack.c.l.b16 %v5758
        %v6095 = vunpack.c.h.b16 %v5758
        %v6096 = vunpack.c.l.b16 %v5759
        %v6097 = vunpack.c.h.b16 %v5759
        %v6098 = vunpack.c.l.b16 %v5760
        %v6099 = vunpack.c.h.b16 %v5760
        %v6100 = vunpack.c.l.b16 %v5761
        %v6101 = vunpack.c.h.b16 %v5761
        %v6102 = vunpack.c.l.b16 %v5762
        %v6103 = vunpack.c.l.b16 %v5763
        %v6104 = vunpack.c.h.b16 %v5763
        %v6105 = vunpack.c.l.b16 %v5764
        %v6106 = vunpack.c.h.b16 %v5764
        %v6107 = vunpack.c.l.b16 %v5765
        %v6108 = vunpack.c.h.b16 %v5765
        %v6109 = vunpack.c.l.b16 %v5766
        %v6110 = vunpack.c.h.b16 %v5766
        %v6111 = vunpack.c.l.b16 %v5767
        %v6112 = vunpack.c.l.b16 %v5768
        %v6113 = vunpack.c.h.b16 %v5768
        %v6114 = vunpack.c.l.b16 %v5769
        %v6115 = vunpack.c.h.b16 %v5769
        %v6116 = vunpack.c.l.b16 %v5770
        %v6117 = vunpack.c.h.b16 %v5770
        %v6118 = vunpack.c.l.b16 %v5771
        %v6119 = vunpack.c.h.b16 %v5771
        %v6120 = vunpack.c.l.b16 %v5772
        %v6121 = vunpack.c.l.b16 %v5773
        %v6122 = vunpack.c.h.b16 %v5773
        %v6123 = vunpack.c.l.b16 %v5774
        %v6124 = vunpack.c.h.b16 %v5774
        %v6125 = vunpack.c.l.b16 %v5775
        %v6126 = vunpack.c.h.b16 %v5775
        %v6127 = vunpack.c.l.b16 %v5776
        %v6128 = vunpack.c.h.b16 %v5776
        %v6129 = vunpack.c.l.b16 %v5777
        %v6130 = vunpack.c.l.b16 %v5778
        %v6131 = vunpack.c.h.b16 %v5778
        %v6132 = vunpack.c.l.b16 %v5779
        %v6133 = vunpack.c.h.b16 %v5779
        %v6134 = vunpack.c.l.b16 %v5780
        %v6135 = vunpack.c.h.b16 %v5780
        %v6136 = vunpack.c.l.b16 %v5781
        %v6137 = vunpack.c.h.b16 %v5781
        %v6138 = vunpack.c.l.b16 %v5782
        %v6139 = vunpack.c.l.b16 %v5783
        %v6140 = vunpack.c.h.b16 %v5783
        %v6141 = vunpack.c.l.b16 %v5784
        %v6142 = vunpack.c.h.b16 %v5784
        %v6143 = vunpack.c.l.b16 %v5785
        %v6144 = vunpack.c.h.b16 %v5785
        %v6145 = vunpack.c.l.b16 %v5786
        %v6146 = vunpack.c.h.b16 %v5786
        %v6147 = vunpack.c.l.b16 %v5787
        %v6148 = vunpack.c.l.b16 %v5788
        %v6149 = vunpack.c.h.b16 %v5788
        %v6150 = vunpack.c.l.b16 %v5789
        %v6151 = vunpack.c.h.b16 %v5789
        %v6152 = vunpack.c.l.b16 %v5790
        %v6153 = vunpack.c.h.b16 %v5790
        %v6154 = vunpack.c.l.b16 %v5791
        %v6155 = vunpack.c.h.b16 %v5791
        %v6156 = vunpack.c.l.b16 %v5792
        %v6157 = vunpack.c.l.b16 %v5793
        %v6158 = vunpack.c.h.b16 %v5793
        %v6159 = vunpack.c.l.b16 %v5794
        %v6160 = vunpack.c.h.b16 %v5794
        %v6161 = vunpack.c.l.b16 %v5795
        %v6162 = vunpack.c.h.b16 %v5795
        %v6163 = vunpack.c.l.b16 %v5796
        %v6164 = vunpack.c.h.b16 %v5796
        %v6165 = vunpack.c.l.b16 %v5797
        %v6166 = vpack.c.b16 %v6031, %v6022
        %v6167 = vpack.c.b16 %v6032, %v6023
        %v6168 = vpack.c.b16 %v6033, %v6024
        %v6169 = vpack.c.b16 %v6034, %v6025
        %v6170 = vpack.c.b16 %v6035, %v6026
        %v6171 = vpack.c.b16 %v6036, %v6027
        %v6172 = vpack.c.b16 %v6037, %v6028
        %v6173 = vpack.c.b16 %v6038, %v6029
        %v6174 = vpack.c.b16 %v6039, %v6030
        %v6175 = vpack.c.b16 %v6049, %v6040
        %v6176 = vpack.c.b16 %v6050, %v6041
        %v6177 = vpack.c.b16 %v6051, %v6042
        %v6178 = vpack.c.b16 %v6052, %v6043
        %v6179 = vpack.c.b16 %v6053, %v6044
        %v6180 = vpack.c.b16 %v6054, %v6045
        %v6181 = vpack.c.b16 %v6055, %v6046
        %v6182 = vpack.c.b16 %v6056, %v6047
        %v6183 = vpack.c.b16 %v6057, %v6048
        %v6184 = vpack.c.b16 %v6067, %v6058
        %v6185 = vpack.c.b16 %v6068, %v6059
        %v6186 = vpack.c.b16 %v6069, %v6060
        %v6187 = vpack.c.b16 %v6070, %v6061
        %v6188 = vpack.c.b16 %v6071, %v6062
        %v6189 = vpack.c.b16 %v6072, %v6063
        %v6190 = vpack.c.b16 %v6073, %v6064
        %v6191 = vpack.c.b16 %v6074, %v6065
        %v6192 = vpack.c.b16 %v6075, %v6066
        %v6193 = vpack.c.b16 %v6085, %v6076
        %v6194 = vpack.c.b16 %v6086, %v6077
        %v6195 = vpack.c.b16 %v6087, %v6078
        %v6196 = vpack.c.b16 %v6088, %v6079
        %v6197 = vpack.c.b16 %v6089, %v6080
        %v6198 = vpack.c.b16 %v6090, %v6081
        %v6199 = vpack.c.b16 %v6091, %v6082
        %v6200 = vpack.c.b16 %v6092, %v6083
        %v6201 = vpack.c.b16 %v6093, %v6084
        %v6202 = vpack.c.b16 %v6103, %v6094
        %v6203 = vpack.c.b16 %v6104, %v6095
        %v6204 = vpack.c.b16 %v6105, %v6096
        %v6205 = vpack.c.b16 %v6106, %v6097
        %v6206 = vpack.c.b16 %v6107, %v6098
        %v6207 = vpack.c.b16 %v6108, %v6099
        %v6208 = vpack.c.b16 %v6109, %v6100
        %v6209 = vpack.c.b16 %v6110, %v6101
        %v6210 = vpack.c.b16 %v6111, %v6102
        %v6211 = vpack.c.b16 %v6121, %v6112
        %v6212 = vpack.c.b16 %v6122, %v6113
        %v6213 = vpack.c.b16 %v6123, %v6114
        %v6214 = vpack.c.b16 %v6124, %v6115
        %v6215 = vpack.c.b16 %v6125, %v6116
        %v6216 = vpack.c.b16 %v6126, %v6117
        %v6217 = vpack.c.b16 %v6127, %v6118
        %v6218 = vpack.c.b16 %v6128, %v6119
        %v6219 = vpack.c.b16 %v6129, %v6120
        %v6220 = vpack.c.b16 %v6139, %v6130
        %v6221 = vpack.c.b16 %v6140, %v6131
        %v6222 = vpack.c.b16 %v6141, %v6132
        %v6223 = vpack.c.b16 %v6142, %v6133
        %v6224 = vpack.c.b16 %v6143, %v6134
        %v6225 = vpack.c.b16 %v6144, %v6135
        %v6226 = vpack.c.b16 %v6145, %v6136
        %v6227 = vpack.c.b16 %v6146, %v6137
        %v6228 = vpack.c.b16 %v6147, %v6138
        %v6229 = vpack.c.b16 %v6157, %v6148
        %v6230 = vpack.c.b16 %v6158, %v6149
        %v6231 = vpack.c.b16 %v6159, %v6150
        %v6232 = vpack.c.b16 %v6160, %v6151
        %v6233 = vpack.c.b16 %v6161, %v6152
        %v6234 = vpack.c.b16 %v6162, %v6153
        %v6235 = vpack.c.b16 %v6163, %v6154
        %v6236 = vpack.c.b16 %v6164, %v6155
        %v6237 = vpack.c.b16 %v6165, %v6156
        %v6454 = vunpack.c.l.b16 %v5798
        %v6455 = vunpack.c.l.b16 %v5799
        %v6456 = vunpack.c.l.b16 %v5800
        %v6457 = vunpack.c.l.b16 %v5801
        %v6458 = vunpack.c.l.b16 %v5802
        %v6459 = vunpack.c.l.b16 %v5803
        %v6460 = vunpack.c.l.b16 %v5804
        %v6461 = vunpack.c.l.b16 %v5805
        %v6462 = vunpack.c.l.b16 %v5806
        %v6463 = vunpack.c.l.b16 %v5807
        %v6464 = vunpack.c.l.b16 %v5808
        %v6465 = vunpack.c.l.b16 %v5809
        %v6466 = vunpack.c.l.b16 %v5810
        %v6467 = vunpack.c.l.b16 %v5811
        %v6468 = vunpack.c.l.b16 %v5812
        %v6469 = vunpack.c.l.b16 %v5813
        %v6470 = vunpack.c.l.b16 %v5814
        %v6471 = vunpack.c.l.b16 %v5815
        %v6472 = vunpack.c.l.b16 %v5816
        %v6473 = vunpack.c.l.b16 %v5817
        %v6474 = vunpack.c.l.b16 %v5818
        %v6475 = vunpack.c.l.b16 %v5819
        %v6476 = vunpack.c.l.b16 %v5820
        %v6477 = vunpack.c.l.b16 %v5821
        %v6478 = vunpack.c.l.b16 %v5822
        %v6479 = vunpack.c.l.b16 %v5823
        %v6480 = vunpack.c.l.b16 %v5824
        %v6481 = vunpack.c.l.b16 %v5825
        %v6482 = vunpack.c.l.b16 %v5826
        %v6483 = vunpack.c.l.b16 %v5827
        %v6484 = vunpack.c.l.b16 %v5828
        %v6485 = vunpack.c.l.b16 %v5829
        %v6486 = vunpack.c.l.b16 %v5830
        %v6487 = vunpack.c.l.b16 %v5831
        %v6488 = vunpack.c.l.b16 %v5832
        %v6489 = vunpack.c.l.b16 %v5833
        %v6490 = vunpack.c.l.b16 %v5834
        %v6491 = vunpack.c.l.b16 %v5835
        %v6492 = vunpack.c.l.b16 %v5836
        %v6493 = vunpack.c.l.b16 %v5837
        %v6494 = vunpack.c.l.b16 %v5838
        %v6495 = vunpack.c.l.b16 %v5839
        %v6496 = vunpack.c.l.b16 %v5840
        %v6497 = vunpack.c.l.b16 %v5841
        %v6498 = vunpack.c.l.b16 %v5842
        %v6499 = vunpack.c.l.b16 %v5843
        %v6500 = vunpack.c.l.b16 %v5844
        %v6501 = vunpack.c.l.b16 %v5845
        %v6502 = vunpack.c.l.b16 %v5846
        %v6503 = vunpack.c.l.b16 %v5847
        %v6504 = vunpack.c.l.b16 %v5848
        %v6505 = vunpack.c.l.b16 %v5849
        %v6506 = vunpack.c.l.b16 %v5850
        %v6507 = vunpack.c.l.b16 %v5851
        %v6508 = vunpack.c.l.b16 %v5852
        %v6509 = vunpack.c.l.b16 %v5853
        %v6510 = vunpack.c.l.b16 %v5854
        %v6511 = vunpack.c.l.b16 %v5855
        %v6512 = vunpack.c.l.b16 %v5856
        %v6513 = vunpack.c.l.b16 %v5857
        %v6514 = vunpack.c.l.b16 %v5858
        %v6515 = vunpack.c.l.b16 %v5859
        %v6516 = vunpack.c.l.b16 %v5860
        %v6517 = vunpack.c.l.b16 %v5861
        %v6518 = vunpack.c.l.b16 %v5862
        %v6519 = vunpack.c.l.b16 %v5863
        %v6520 = vunpack.c.l.b16 %v5864
        %v6521 = vunpack.c.l.b16 %v5865
        %v6522 = vunpack.c.l.b16 %v5866
        %v6523 = vunpack.c.l.b16 %v5867
        %v6524 = vunpack.c.l.b16 %v5868
        %v6525 = vunpack.c.l.b16 %v5869
        %v6526 = vunpack.c.l.b16 %v5870
        %v6527 = vunpack.c.l.b16 %v5871
        %v6528 = vunpack.c.l.b16 %v5872
        %v6529 = vunpack.c.l.b16 %v5873
        %v6530 = vunpack.c.l.b16 %v5874
        %v6531 = vunpack.c.l.b16 %v5875
        %v6532 = vunpack.c.l.b16 %v5876
        %v6533 = vunpack.c.l.b16 %v5877
        %v6534 = vunpack.c.l.b16 %v5878
        %v6535 = vunpack.c.l.b16 %v5879
        %v6536 = vunpack.c.l.b16 %v5880
        %v6537 = vunpack.c.l.b16 %v5881
        %v6538 = vunpack.c.l.b16 %v5882
        %v6539 = vunpack.c.l.b16 %v5883
        %v6540 = vunpack.c.l.b16 %v5884
        %v6541 = vunpack.c.l.b16 %v5885
        %v6542 = vunpack.c.l.b16 %v5886
        %v6543 = vunpack.c.l.b16 %v5887
        %v6544 = vunpack.c.l.b16 %v5888
        %v6545 = vunpack.c.l.b16 %v5889
        %v6546 = vunpack.c.l.b16 %v5890
        %v6547 = vunpack.c.l.b16 %v5891
        %v6548 = vunpack.c.l.b16 %v5892
        %v6549 = vunpack.c.l.b16 %v5893
        %v6550 = vunpack.c.l.b16 %v5894
        %v6551 = vunpack.c.l.b16 %v5895
        %v6552 = vunpack.c.l.b16 %v5896
        %v6553 = vunpack.c.l.b16 %v5897
        %v6554 = vunpack.c.l.b16 %v5898
        %v6555 = vunpack.c.l.b16 %v5899
        %v6556 = vunpack.c.l.b16 %v5900
        %v6557 = vunpack.c.l.b16 %v5901
        %v6558 = vunpack.c.l.b16 %v5902
        %v6559 = vunpack.c.l.b16 %v5903
        %v6560 = vunpack.c.l.b16 %v5904
        %v6561 = vunpack.c.l.b16 %v5905
        %v6562 = vunpack.c.l.b16 %v5906
        %v6563 = vunpack.c.l.b16 %v5907
        %v6564 = vunpack.c.l.b16 %v5908
        %v6565 = vunpack.c.l.b16 %v5909
        %v6566 = vunpack.c.l.b16 %v5910
        %v6567 = vunpack.c.l.b16 %v5911
        %v6568 = vunpack.c.l.b16 %v5912
        %v6569 = vunpack.c.l.b16 %v5913
        %v6570 = vunpack.c.l.b16 %v5914
        %v6571 = vunpack.c.l.b16 %v5915
        %v6572 = vunpack.c.l.b16 %v5916
        %v6573 = vunpack.c.l.b16 %v5917
        %v6574 = vunpack.c.l.b16 %v5918
        %v6575 = vunpack.c.l.b16 %v5919
        %v6576 = vunpack.c.l.b16 %v5920
        %v6577 = vunpack.c.l.b16 %v5921
        %v6578 = vunpack.c.l.b16 %v5922
        %v6579 = vunpack.c.l.b16 %v5923
        %v6580 = vunpack.c.l.b16 %v5924
        %v6581 = vunpack.c.l.b16 %v5925
        %v6582 = vunpack.c.l.b16 %v5926
        %v6583 = vunpack.c.l.b16 %v5927
        %v6584 = vunpack.c.l.b16 %v5928
        %v6585 = vunpack.c.l.b16 %v5929
        %v6586 = vunpack.c.l.b16 %v5930
        %v6587 = vunpack.c.l.b16 %v5931
        %v6588 = vunpack.c.l.b16 %v5932
        %v6589 = vunpack.c.l.b16 %v5933
        %v6590 = vunpack.c.l.b16 %v5934
        %v6591 = vunpack.c.l.b16 %v5935
        %v6592 = vunpack.c.l.b16 %v5936
        %v6593 = vunpack.c.l.b16 %v5937
        %v6594 = vunpack.c.l.b16 %v5938
        %v6595 = vunpack.c.l.b16 %v5939
        %v6596 = vunpack.c.l.b16 %v5940
        %v6597 = vunpack.c.l.b16 %v5941
        %v6598 = vpack.c.b16 %v6455, %v6454
        %v6599 = vpack.c.b16 %v6457, %v6456
        %v6600 = vpack.c.b16 %v6459, %v6458
        %v6601 = vpack.c.b16 %v6461, %v6460
        %v6602 = vpack.c.b16 %v6463, %v6462
        %v6603 = vpack.c.b16 %v6465, %v6464
        %v6604 = vpack.c.b16 %v6467, %v6466
        %v6605 = vpack.c.b16 %v6469, %v6468
        %v6606 = vpack.c.b16 %v6471, %v6470
        %v6607 = vpack.c.b16 %v6473, %v6472
        %v6608 = vpack.c.b16 %v6475, %v6474
        %v6609 = vpack.c.b16 %v6477, %v6476
        %v6610 = vpack.c.b16 %v6479, %v6478
        %v6611 = vpack.c.b16 %v6481, %v6480
        %v6612 = vpack.c.b16 %v6483, %v6482
        %v6613 = vpack.c.b16 %v6485, %v6484
        %v6614 = vpack.c.b16 %v6487, %v6486
        %v6615 = vpack.c.b16 %v6489, %v6488
        %v6616 = vpack.c.b16 %v6491, %v6490
        %v6617 = vpack.c.b16 %v6493, %v6492
        %v6618 = vpack.c.b16 %v6495, %v6494
        %v6619 = vpack.c.b16 %v6497, %v6496
        %v6620 = vpack.c.b16 %v6499, %v6498
        %v6621 = vpack.c.b16 %v6501, %v6500
        %v6622 = vpack.c.b16 %v6503, %v6502
        %v6623 = vpack.c.b16 %v6505, %v6504
        %v6624 = vpack.c.b16 %v6507, %v6506
        %v6625 = vpack.c.b16 %v6509, %v6508
        %v6626 = vpack.c.b16 %v6511, %v6510
        %v6627 = vpack.c.b16 %v6513, %v6512
        %v6628 = vpack.c.b16 %v6515, %v6514
        %v6629 = vpack.c.b16 %v6517, %v6516
        %v6630 = vpack.c.b16 %v6519, %v6518
        %v6631 = vpack.c.b16 %v6521, %v6520
        %v6632 = vpack.c.b16 %v6523, %v6522
        %v6633 = vpack.c.b16 %v6525, %v6524
        %v6634 = vpack.c.b16 %v6527, %v6526
        %v6635 = vpack.c.b16 %v6529, %v6528
        %v6636 = vpack.c.b16 %v6531, %v6530
        %v6637 = vpack.c.b16 %v6533, %v6532
        %v6638 = vpack.c.b16 %v6535, %v6534
        %v6639 = vpack.c.b16 %v6537, %v6536
        %v6640 = vpack.c.b16 %v6539, %v6538
        %v6641 = vpack.c.b16 %v6541, %v6540
        %v6642 = vpack.c.b16 %v6543, %v6542
        %v6643 = vpack.c.b16 %v6545, %v6544
        %v6644 = vpack.c.b16 %v6547, %v6546
        %v6645 = vpack.c.b16 %v6549, %v6548
        %v6646 = vpack.c.b16 %v6551, %v6550
        %v6647 = vpack.c.b16 %v6553, %v6552
        %v6648 = vpack.c.b16 %v6555, %v6554
        %v6649 = vpack.c.b16 %v6557, %v6556
        %v6650 = vpack.c.b16 %v6559, %v6558
        %v6651 = vpack.c.b16 %v6561, %v6560
        %v6652 = vpack.c.b16 %v6563, %v6562
        %v6653 = vpack.c.b16 %v6565, %v6564
        %v6654 = vpack.c.b16 %v6567, %v6566
        %v6655 = vpack.c.b16 %v6569, %v6568
        %v6656 = vpack.c.b16 %v6571, %v6570
        %v6657 = vpack.c.b16 %v6573, %v6572
        %v6658 = vpack.c.b16 %v6575, %v6574
        %v6659 = vpack.c.b16 %v6577, %v6576
        %v6660 = vpack.c.b16 %v6579, %v6578
        %v6661 = vpack.c.b16 %v6581, %v6580
        %v6662 = vpack.c.b16 %v6583, %v6582
        %v6663 = vpack.c.b16 %v6585, %v6584
        %v6664 = vpack.c.b16 %v6587, %v6586
        %v6665 = vpack.c.b16 %v6589, %v6588
        %v6666 = vpack.c.b16 %v6591, %v6590
        %v6667 = vpack.c.b16 %v6593, %v6592
        %v6668 = vpack.c.b16 %v6595, %v6594
        %v6669 = vpack.c.b16 %v6597, %v6596
        %6742 = vmatpush.bf16.msra.mxu0 %v6605
        %6743 = vmatpush.bf16.msra.mxu0 %v6604
        %6744 = vmatpush.bf16.msra.mxu0 %v6603
        %6745 = vmatpush.bf16.msra.mxu0 %v6602
        %6746 = vmatpush.bf16.msra.mxu0 %v6601
        %6747 = vmatpush.bf16.msra.mxu0 %v6600
        %6748 = vmatpush.bf16.msra.mxu0 %v6599
        %6749 = vmatpush.bf16.msra.mxu0 %v6598
        %6750 = vmatmul.bf16.gmra.mxu0 %v6166
        %v6751 = vpop.f32.mrf.mxu0
        %v6752 = vadd.f32 0.0, %v6751
        %v6753 = vpop.f32.mrf.mxu0
        %v6754 = vadd.f32 0.0, %v6753
        %6755 = vmatmul.bf16.gmra.mxu0 %v6175
        %v6756 = vpop.f32.mrf.mxu0
        %v6757 = vadd.f32 0.0, %v6756
        %v6758 = vpop.f32.mrf.mxu0
        %v6759 = vadd.f32 0.0, %v6758
        %6760 = vmatmul.bf16.gmra.mxu0 %v6184
        %v6761 = vpop.f32.mrf.mxu0
        %v6762 = vadd.f32 0.0, %v6761
        %v6763 = vpop.f32.mrf.mxu0
        %v6764 = vadd.f32 0.0, %v6763
        %6765 = vmatmul.bf16.gmra.mxu0 %v6193
        %v6766 = vpop.f32.mrf.mxu0
        %v6767 = vadd.f32 0.0, %v6766
        %v6768 = vpop.f32.mrf.mxu0
        %v6769 = vadd.f32 0.0, %v6768
        %6770 = vmatmul.bf16.gmra.mxu0 %v6202
        %v6771 = vpop.f32.mrf.mxu0
        %v6772 = vadd.f32 0.0, %v6771
        %v6773 = vpop.f32.mrf.mxu0
        %v6774 = vadd.f32 0.0, %v6773
        %6775 = vmatmul.bf16.gmra.mxu0 %v6211
        %v6776 = vpop.f32.mrf.mxu0
        %v6777 = vadd.f32 0.0, %v6776
        %v6778 = vpop.f32.mrf.mxu0
        %v6779 = vadd.f32 0.0, %v6778
        %6780 = vmatmul.bf16.gmra.mxu0 %v6220
        %v6781 = vpop.f32.mrf.mxu0
        %v6782 = vadd.f32 0.0, %v6781
        %v6783 = vpop.f32.mrf.mxu0
        %v6784 = vadd.f32 0.0, %v6783
        %6785 = vmatmul.bf16.gmra.mxu0 %v6229
        %v6786 = vpop.f32.mrf.mxu0
        %v6787 = vadd.f32 0.0, %v6786
        %v6788 = vpop.f32.mrf.mxu0
        %v6789 = vadd.f32 0.0, %v6788
        %6790 = vdwg.mxu0
        %6791 = vmatpush.bf16.msra.mxu0 %v6613
        %6792 = vmatpush.bf16.msra.mxu0 %v6612
        %6793 = vmatpush.bf16.msra.mxu0 %v6611
        %6794 = vmatpush.bf16.msra.mxu0 %v6610
        %6795 = vmatpush.bf16.msra.mxu0 %v6609
        %6796 = vmatpush.bf16.msra.mxu0 %v6608
        %6797 = vmatpush.bf16.msra.mxu0 %v6607
        %6798 = vmatpush.bf16.msra.mxu0 %v6606
        %6799 = vmatmul.bf16.gmra.mxu0 %v6167
        %v6800 = vpop.f32.mrf.mxu0
        %v6801 = vadd.f32 %v6752, %v6800
        %v6802 = vpop.f32.mrf.mxu0
        %v6803 = vadd.f32 %v6754, %v6802
        %6804 = vmatmul.bf16.gmra.mxu0 %v6176
        %v6805 = vpop.f32.mrf.mxu0
        %v6806 = vadd.f32 %v6757, %v6805
        %v6807 = vpop.f32.mrf.mxu0
        %v6808 = vadd.f32 %v6759, %v6807
        %6809 = vmatmul.bf16.gmra.mxu0 %v6185
        %v6810 = vpop.f32.mrf.mxu0
        %v6811 = vadd.f32 %v6762, %v6810
        %v6812 = vpop.f32.mrf.mxu0
        %v6813 = vadd.f32 %v6764, %v6812
        %6814 = vmatmul.bf16.gmra.mxu0 %v6194
        %v6815 = vpop.f32.mrf.mxu0
        %v6816 = vadd.f32 %v6767, %v6815
        %v6817 = vpop.f32.mrf.mxu0
        %v6818 = vadd.f32 %v6769, %v6817
        %6819 = vmatmul.bf16.gmra.mxu0 %v6203
        %v6820 = vpop.f32.mrf.mxu0
        %v6821 = vadd.f32 %v6772, %v6820
        %v6822 = vpop.f32.mrf.mxu0
        %v6823 = vadd.f32 %v6774, %v6822
        %6824 = vmatmul.bf16.gmra.mxu0 %v6212
        %v6825 = vpop.f32.mrf.mxu0
        %v6826 = vadd.f32 %v6777, %v6825
        %v6827 = vpop.f32.mrf.mxu0
        %v6828 = vadd.f32 %v6779, %v6827
        %6829 = vmatmul.bf16.gmra.mxu0 %v6221
        %v6830 = vpop.f32.mrf.mxu0
        %v6831 = vadd.f32 %v6782, %v6830
        %v6832 = vpop.f32.mrf.mxu0
        %v6833 = vadd.f32 %v6784, %v6832
        %6834 = vmatmul.bf16.gmra.mxu0 %v6230
        %v6835 = vpop.f32.mrf.mxu0
        %v6836 = vadd.f32 %v6787, %v6835
        %v6837 = vpop.f32.mrf.mxu0
        %v6838 = vadd.f32 %v6789, %v6837
        %6839 = vdwg.mxu0
        %6840 = vmatpush.bf16.msra.mxu0 %v6621
        %6841 = vmatpush.bf16.msra.mxu0 %v6620
        %6842 = vmatpush.bf16.msra.mxu0 %v6619
        %6843 = vmatpush.bf16.msra.mxu0 %v6618
        %6844 = vmatpush.bf16.msra.mxu0 %v6617
        %6845 = vmatpush.bf16.msra.mxu0 %v6616
        %6846 = vmatpush.bf16.msra.mxu0 %v6615
        %6847 = vmatpush.bf16.msra.mxu0 %v6614
        %6848 = vmatmul.bf16.gmra.mxu0 %v6168
        %v6849 = vpop.f32.mrf.mxu0
        %v6850 = vadd.f32 %v6801, %v6849
        %v6851 = vpop.f32.mrf.mxu0
        %v6852 = vadd.f32 %v6803, %v6851
        %6853 = vmatmul.bf16.gmra.mxu0 %v6177
        %v6854 = vpop.f32.mrf.mxu0
        %v6855 = vadd.f32 %v6806, %v6854
        %v6856 = vpop.f32.mrf.mxu0
        %v6857 = vadd.f32 %v6808, %v6856
        %6858 = vmatmul.bf16.gmra.mxu0 %v6186
        %v6859 = vpop.f32.mrf.mxu0
        %v6860 = vadd.f32 %v6811, %v6859
        %v6861 = vpop.f32.mrf.mxu0
        %v6862 = vadd.f32 %v6813, %v6861
        %6863 = vmatmul.bf16.gmra.mxu0 %v6195
        %v6864 = vpop.f32.mrf.mxu0
        %v6865 = vadd.f32 %v6816, %v6864
        %v6866 = vpop.f32.mrf.mxu0
        %v6867 = vadd.f32 %v6818, %v6866
        %6868 = vmatmul.bf16.gmra.mxu0 %v6204
        %v6869 = vpop.f32.mrf.mxu0
        %v6870 = vadd.f32 %v6821, %v6869
        %v6871 = vpop.f32.mrf.mxu0
        %v6872 = vadd.f32 %v6823, %v6871
        %6873 = vmatmul.bf16.gmra.mxu0 %v6213
        %v6874 = vpop.f32.mrf.mxu0
        %v6875 = vadd.f32 %v6826, %v6874
        %v6876 = vpop.f32.mrf.mxu0
        %v6877 = vadd.f32 %v6828, %v6876
        %6878 = vmatmul.bf16.gmra.mxu0 %v6222
        %v6879 = vpop.f32.mrf.mxu0
        %v6880 = vadd.f32 %v6831, %v6879
        %v6881 = vpop.f32.mrf.mxu0
        %v6882 = vadd.f32 %v6833, %v6881
        %6883 = vmatmul.bf16.gmra.mxu0 %v6231
        %v6884 = vpop.f32.mrf.mxu0
        %v6885 = vadd.f32 %v6836, %v6884
        %v6886 = vpop.f32.mrf.mxu0
        %v6887 = vadd.f32 %v6838, %v6886
        %6888 = vdwg.mxu0
        %6889 = vmatpush.bf16.msra.mxu0 %v6629
        %6890 = vmatpush.bf16.msra.mxu0 %v6628
        %6891 = vmatpush.bf16.msra.mxu0 %v6627
        %6892 = vmatpush.bf16.msra.mxu0 %v6626
        %6893 = vmatpush.bf16.msra.mxu0 %v6625
        %6894 = vmatpush.bf16.msra.mxu0 %v6624
        %6895 = vmatpush.bf16.msra.mxu0 %v6623
        %6896 = vmatpush.bf16.msra.mxu0 %v6622
        %6897 = vmatmul.bf16.gmra.mxu0 %v6169
        %v6898 = vpop.f32.mrf.mxu0
        %v6899 = vadd.f32 %v6850, %v6898
        %v6900 = vpop.f32.mrf.mxu0
        %v6901 = vadd.f32 %v6852, %v6900
        %6902 = vmatmul.bf16.gmra.mxu0 %v6178
        %v6903 = vpop.f32.mrf.mxu0
        %v6904 = vadd.f32 %v6855, %v6903
        %v6905 = vpop.f32.mrf.mxu0
        %v6906 = vadd.f32 %v6857, %v6905
        %6907 = vmatmul.bf16.gmra.mxu0 %v6187
        %v6908 = vpop.f32.mrf.mxu0
        %v6909 = vadd.f32 %v6860, %v6908
        %v6910 = vpop.f32.mrf.mxu0
        %v6911 = vadd.f32 %v6862, %v6910
        %6912 = vmatmul.bf16.gmra.mxu0 %v6196
        %v6913 = vpop.f32.mrf.mxu0
        %v6914 = vadd.f32 %v6865, %v6913
        %v6915 = vpop.f32.mrf.mxu0
        %v6916 = vadd.f32 %v6867, %v6915
        %6917 = vmatmul.bf16.gmra.mxu0 %v6205
        %v6918 = vpop.f32.mrf.mxu0
        %v6919 = vadd.f32 %v6870, %v6918
        %v6920 = vpop.f32.mrf.mxu0
        %v6921 = vadd.f32 %v6872, %v6920
        %6922 = vmatmul.bf16.gmra.mxu0 %v6214
        %v6923 = vpop.f32.mrf.mxu0
        %v6924 = vadd.f32 %v6875, %v6923
        %v6925 = vpop.f32.mrf.mxu0
        %v6926 = vadd.f32 %v6877, %v6925
        %6927 = vmatmul.bf16.gmra.mxu0 %v6223
        %v6928 = vpop.f32.mrf.mxu0
        %v6929 = vadd.f32 %v6880, %v6928
        %v6930 = vpop.f32.mrf.mxu0
        %v6931 = vadd.f32 %v6882, %v6930
        %6932 = vmatmul.bf16.gmra.mxu0 %v6232
        %v6933 = vpop.f32.mrf.mxu0
        %v6934 = vadd.f32 %v6885, %v6933
        %v6935 = vpop.f32.mrf.mxu0
        %v6936 = vadd.f32 %v6887, %v6935
        %6937 = vdwg.mxu0
        %6938 = vmatpush.bf16.msra.mxu0 %v6637
        %6939 = vmatpush.bf16.msra.mxu0 %v6636
        %6940 = vmatpush.bf16.msra.mxu0 %v6635
        %6941 = vmatpush.bf16.msra.mxu0 %v6634
        %6942 = vmatpush.bf16.msra.mxu0 %v6633
        %6943 = vmatpush.bf16.msra.mxu0 %v6632
        %6944 = vmatpush.bf16.msra.mxu0 %v6631
        %6945 = vmatpush.bf16.msra.mxu0 %v6630
        %6946 = vmatmul.bf16.gmra.mxu0 %v6170
        %v6947 = vpop.f32.mrf.mxu0
        %v6948 = vadd.f32 %v6899, %v6947
        %v6949 = vpop.f32.mrf.mxu0
        %v6950 = vadd.f32 %v6901, %v6949
        %6951 = vmatmul.bf16.gmra.mxu0 %v6179
        %v6952 = vpop.f32.mrf.mxu0
        %v6953 = vadd.f32 %v6904, %v6952
        %v6954 = vpop.f32.mrf.mxu0
        %v6955 = vadd.f32 %v6906, %v6954
        %6956 = vmatmul.bf16.gmra.mxu0 %v6188
        %v6957 = vpop.f32.mrf.mxu0
        %v6958 = vadd.f32 %v6909, %v6957
        %v6959 = vpop.f32.mrf.mxu0
        %v6960 = vadd.f32 %v6911, %v6959
        %6961 = vmatmul.bf16.gmra.mxu0 %v6197
        %v6962 = vpop.f32.mrf.mxu0
        %v6963 = vadd.f32 %v6914, %v6962
        %v6964 = vpop.f32.mrf.mxu0
        %v6965 = vadd.f32 %v6916, %v6964
        %6966 = vmatmul.bf16.gmra.mxu0 %v6206
        %v6967 = vpop.f32.mrf.mxu0
        %v6968 = vadd.f32 %v6919, %v6967
        %v6969 = vpop.f32.mrf.mxu0
        %v6970 = vadd.f32 %v6921, %v6969
        %6971 = vmatmul.bf16.gmra.mxu0 %v6215
        %v6972 = vpop.f32.mrf.mxu0
        %v6973 = vadd.f32 %v6924, %v6972
        %v6974 = vpop.f32.mrf.mxu0
        %v6975 = vadd.f32 %v6926, %v6974
        %6976 = vmatmul.bf16.gmra.mxu0 %v6224
        %v6977 = vpop.f32.mrf.mxu0
        %v6978 = vadd.f32 %v6929, %v6977
        %v6979 = vpop.f32.mrf.mxu0
        %v6980 = vadd.f32 %v6931, %v6979
        %6981 = vmatmul.bf16.gmra.mxu0 %v6233
        %v6982 = vpop.f32.mrf.mxu0
        %v6983 = vadd.f32 %v6934, %v6982
        %v6984 = vpop.f32.mrf.mxu0
        %v6985 = vadd.f32 %v6936, %v6984
        %6986 = vdwg.mxu0
        %6987 = vmatpush.bf16.msra.mxu0 %v6645
        %6988 = vmatpush.bf16.msra.mxu0 %v6644
        %6989 = vmatpush.bf16.msra.mxu0 %v6643
        %6990 = vmatpush.bf16.msra.mxu0 %v6642
        %6991 = vmatpush.bf16.msra.mxu0 %v6641
        %6992 = vmatpush.bf16.msra.mxu0 %v6640
        %6993 = vmatpush.bf16.msra.mxu0 %v6639
        %6994 = vmatpush.bf16.msra.mxu0 %v6638
        %6995 = vmatmul.bf16.gmra.mxu0 %v6171
        %v6996 = vpop.f32.mrf.mxu0
        %v6997 = vadd.f32 %v6948, %v6996
        %v6998 = vpop.f32.mrf.mxu0
        %v6999 = vadd.f32 %v6950, %v6998
        %7000 = vmatmul.bf16.gmra.mxu0 %v6180
        %v7001 = vpop.f32.mrf.mxu0
        %v7002 = vadd.f32 %v6953, %v7001
        %v7003 = vpop.f32.mrf.mxu0
        %v7004 = vadd.f32 %v6955, %v7003
        %7005 = vmatmul.bf16.gmra.mxu0 %v6189
        %v7006 = vpop.f32.mrf.mxu0
        %v7007 = vadd.f32 %v6958, %v7006
        %v7008 = vpop.f32.mrf.mxu0
        %v7009 = vadd.f32 %v6960, %v7008
        %7010 = vmatmul.bf16.gmra.mxu0 %v6198
        %v7011 = vpop.f32.mrf.mxu0
        %v7012 = vadd.f32 %v6963, %v7011
        %v7013 = vpop.f32.mrf.mxu0
        %v7014 = vadd.f32 %v6965, %v7013
        %7015 = vmatmul.bf16.gmra.mxu0 %v6207
        %v7016 = vpop.f32.mrf.mxu0
        %v7017 = vadd.f32 %v6968, %v7016
        %v7018 = vpop.f32.mrf.mxu0
        %v7019 = vadd.f32 %v6970, %v7018
        %7020 = vmatmul.bf16.gmra.mxu0 %v6216
        %v7021 = vpop.f32.mrf.mxu0
        %v7022 = vadd.f32 %v6973, %v7021
        %v7023 = vpop.f32.mrf.mxu0
        %v7024 = vadd.f32 %v6975, %v7023
        %7025 = vmatmul.bf16.gmra.mxu0 %v6225
        %v7026 = vpop.f32.mrf.mxu0
        %v7027 = vadd.f32 %v6978, %v7026
        %v7028 = vpop.f32.mrf.mxu0
        %v7029 = vadd.f32 %v6980, %v7028
        %7030 = vmatmul.bf16.gmra.mxu0 %v6234
        %v7031 = vpop.f32.mrf.mxu0
        %v7032 = vadd.f32 %v6983, %v7031
        %v7033 = vpop.f32.mrf.mxu0
        %v7034 = vadd.f32 %v6985, %v7033
        %7035 = vdwg.mxu0
        %7036 = vmatpush.bf16.msra.mxu0 %v6653
        %7037 = vmatpush.bf16.msra.mxu0 %v6652
        %7038 = vmatpush.bf16.msra.mxu0 %v6651
        %7039 = vmatpush.bf16.msra.mxu0 %v6650
        %7040 = vmatpush.bf16.msra.mxu0 %v6649
        %7041 = vmatpush.bf16.msra.mxu0 %v6648
        %7042 = vmatpush.bf16.msra.mxu0 %v6647
        %7043 = vmatpush.bf16.msra.mxu0 %v6646
        %7044 = vmatmul.bf16.gmra.mxu0 %v6172
        %v7045 = vpop.f32.mrf.mxu0
        %v7046 = vadd.f32 %v6997, %v7045
        %v7047 = vpop.f32.mrf.mxu0
        %v7048 = vadd.f32 %v6999, %v7047
        %7049 = vmatmul.bf16.gmra.mxu0 %v6181
        %v7050 = vpop.f32.mrf.mxu0
        %v7051 = vadd.f32 %v7002, %v7050
        %v7052 = vpop.f32.mrf.mxu0
        %v7053 = vadd.f32 %v7004, %v7052
        %7054 = vmatmul.bf16.gmra.mxu0 %v6190
        %v7055 = vpop.f32.mrf.mxu0
        %v7056 = vadd.f32 %v7007, %v7055
        %v7057 = vpop.f32.mrf.mxu0
        %v7058 = vadd.f32 %v7009, %v7057
        %7059 = vmatmul.bf16.gmra.mxu0 %v6199
        %v7060 = vpop.f32.mrf.mxu0
        %v7061 = vadd.f32 %v7012, %v7060
        %v7062 = vpop.f32.mrf.mxu0
        %v7063 = vadd.f32 %v7014, %v7062
        %7064 = vmatmul.bf16.gmra.mxu0 %v6208
        %v7065 = vpop.f32.mrf.mxu0
        %v7066 = vadd.f32 %v7017, %v7065
        %v7067 = vpop.f32.mrf.mxu0
        %v7068 = vadd.f32 %v7019, %v7067
        %7069 = vmatmul.bf16.gmra.mxu0 %v6217
        %v7070 = vpop.f32.mrf.mxu0
        %v7071 = vadd.f32 %v7022, %v7070
        %v7072 = vpop.f32.mrf.mxu0
        %v7073 = vadd.f32 %v7024, %v7072
        %7074 = vmatmul.bf16.gmra.mxu0 %v6226
        %v7075 = vpop.f32.mrf.mxu0
        %v7076 = vadd.f32 %v7027, %v7075
        %v7077 = vpop.f32.mrf.mxu0
        %v7078 = vadd.f32 %v7029, %v7077
        %7079 = vmatmul.bf16.gmra.mxu0 %v6235
        %v7080 = vpop.f32.mrf.mxu0
        %v7081 = vadd.f32 %v7032, %v7080
        %v7082 = vpop.f32.mrf.mxu0
        %v7083 = vadd.f32 %v7034, %v7082
        %7084 = vdwg.mxu0
        %7085 = vmatpush.bf16.msra.mxu0 %v6661
        %7086 = vmatpush.bf16.msra.mxu0 %v6660
        %7087 = vmatpush.bf16.msra.mxu0 %v6659
        %7088 = vmatpush.bf16.msra.mxu0 %v6658
        %7089 = vmatpush.bf16.msra.mxu0 %v6657
        %7090 = vmatpush.bf16.msra.mxu0 %v6656
        %7091 = vmatpush.bf16.msra.mxu0 %v6655
        %7092 = vmatpush.bf16.msra.mxu0 %v6654
        %7093 = vmatmul.bf16.gmra.mxu0 %v6173
        %v7094 = vpop.f32.mrf.mxu0
        %v7095 = vadd.f32 %v7046, %v7094
        %v7096 = vpop.f32.mrf.mxu0
        %v7097 = vadd.f32 %v7048, %v7096
        %7098 = vmatmul.bf16.gmra.mxu0 %v6182
        %v7099 = vpop.f32.mrf.mxu0
        %v7100 = vadd.f32 %v7051, %v7099
        %v7101 = vpop.f32.mrf.mxu0
        %v7102 = vadd.f32 %v7053, %v7101
        %7103 = vmatmul.bf16.gmra.mxu0 %v6191
        %v7104 = vpop.f32.mrf.mxu0
        %v7105 = vadd.f32 %v7056, %v7104
        %v7106 = vpop.f32.mrf.mxu0
        %v7107 = vadd.f32 %v7058, %v7106
        %7108 = vmatmul.bf16.gmra.mxu0 %v6200
        %v7109 = vpop.f32.mrf.mxu0
        %v7110 = vadd.f32 %v7061, %v7109
        %v7111 = vpop.f32.mrf.mxu0
        %v7112 = vadd.f32 %v7063, %v7111
        %7113 = vmatmul.bf16.gmra.mxu0 %v6209
        %v7114 = vpop.f32.mrf.mxu0
        %v7115 = vadd.f32 %v7066, %v7114
        %v7116 = vpop.f32.mrf.mxu0
        %v7117 = vadd.f32 %v7068, %v7116
        %7118 = vmatmul.bf16.gmra.mxu0 %v6218
        %v7119 = vpop.f32.mrf.mxu0
        %v7120 = vadd.f32 %v7071, %v7119
        %v7121 = vpop.f32.mrf.mxu0
        %v7122 = vadd.f32 %v7073, %v7121
        %7123 = vmatmul.bf16.gmra.mxu0 %v6227
        %v7124 = vpop.f32.mrf.mxu0
        %v7125 = vadd.f32 %v7076, %v7124
        %v7126 = vpop.f32.mrf.mxu0
        %v7127 = vadd.f32 %v7078, %v7126
        %7128 = vmatmul.bf16.gmra.mxu0 %v6236
        %v7129 = vpop.f32.mrf.mxu0
        %v7130 = vadd.f32 %v7081, %v7129
        %v7131 = vpop.f32.mrf.mxu0
        %v7132 = vadd.f32 %v7083, %v7131
        %7133 = vdwg.mxu0
        %7134 = vmatpush.bf16.msra.mxu0 %v6669
        %7135 = vmatpush.bf16.msra.mxu0 %v6668
        %7136 = vmatpush.bf16.msra.mxu0 %v6667
        %7137 = vmatpush.bf16.msra.mxu0 %v6666
        %7138 = vmatpush.bf16.msra.mxu0 %v6665
        %7139 = vmatpush.bf16.msra.mxu0 %v6664
        %7140 = vmatpush.bf16.msra.mxu0 %v6663
        %7141 = vmatpush.bf16.msra.mxu0 %v6662
        %7142 = vmatmul.bf16.gmra.mxu0 %v6174
        %v7143 = vpop.f32.mrf.mxu0
        %v7144 = vadd.f32 %v7095, %v7143
        %v7145 = vpop.f32.mrf.mxu0
        %v7146 = vadd.f32 %v7097, %v7145
        %7147 = vmatmul.bf16.gmra.mxu0 %v6183
        %v7148 = vpop.f32.mrf.mxu0
        %v7149 = vadd.f32 %v7100, %v7148
        %v7150 = vpop.f32.mrf.mxu0
        %v7151 = vadd.f32 %v7102, %v7150
        %7152 = vmatmul.bf16.gmra.mxu0 %v6192
        %v7153 = vpop.f32.mrf.mxu0
        %v7154 = vadd.f32 %v7105, %v7153
        %v7155 = vpop.f32.mrf.mxu0
        %v7156 = vadd.f32 %v7107, %v7155
        %7157 = vmatmul.bf16.gmra.mxu0 %v6201
        %v7158 = vpop.f32.mrf.mxu0
        %v7159 = vadd.f32 %v7110, %v7158
        %v7160 = vpop.f32.mrf.mxu0
        %v7161 = vadd.f32 %v7112, %v7160
        %7162 = vmatmul.bf16.gmra.mxu0 %v6210
        %v7163 = vpop.f32.mrf.mxu0
        %v7164 = vadd.f32 %v7115, %v7163
        %v7165 = vpop.f32.mrf.mxu0
        %v7166 = vadd.f32 %v7117, %v7165
        %7167 = vmatmul.bf16.gmra.mxu0 %v6219
        %v7168 = vpop.f32.mrf.mxu0
        %v7169 = vadd.f32 %v7120, %v7168
        %v7170 = vpop.f32.mrf.mxu0
        %v7171 = vadd.f32 %v7122, %v7170
        %7172 = vmatmul.bf16.gmra.mxu0 %v6228
        %v7173 = vpop.f32.mrf.mxu0
        %v7174 = vadd.f32 %v7125, %v7173
        %v7175 = vpop.f32.mrf.mxu0
        %v7176 = vadd.f32 %v7127, %v7175
        %7177 = vmatmul.bf16.gmra.mxu0 %v6237
        %v7178 = vpop.f32.mrf.mxu0
        %v7179 = vadd.f32 %v7130, %v7178
        %v7180 = vpop.f32.mrf.mxu0
        %v7181 = vadd.f32 %v7132, %v7180
        %7182 = vdwg.mxu0
        %v7183 = vld [vmem:[%s5] sm:$0x1]
        %v7185 = vperm.slane %v7183, 0
        %v7187 = vmul.f32 %v7144, %v7185
        %v7188 = vmul.f32 %v7146, %v7185
        %v7189 = vmul.f32 %v7149, %v7185
        %v7190 = vmul.f32 %v7151, %v7185
        %v7191 = vmul.f32 %v7154, %v7185
        %v7192 = vmul.f32 %v7156, %v7185
        %v7193 = vmul.f32 %v7159, %v7185
        %v7194 = vmul.f32 %v7161, %v7185
        %v7195 = vmul.f32 %v7164, %v7185
        %v7196 = vmul.f32 %v7166, %v7185
        %v7197 = vmul.f32 %v7169, %v7185
        %v7198 = vmul.f32 %v7171, %v7185
        %v7199 = vmul.f32 %v7174, %v7185
        %v7200 = vmul.f32 %v7176, %v7185
        %v7201 = vmul.f32 %v7179, %v7185
        %v7202 = vmul.f32 %v7181, %v7185
        %v7203 = vld [vmem:[%s6] sm:$0x1]
        %v7205 = vperm.slane %v7203, 0
        %v7207 = vadd.f32 %v7187, %v7205
        %v7208 = vadd.f32 %v7188, %v7205
        %v7209 = vadd.f32 %v7189, %v7205
        %v7210 = vadd.f32 %v7190, %v7205
        %v7211 = vadd.f32 %v7191, %v7205
        %v7212 = vadd.f32 %v7192, %v7205
        %v7213 = vadd.f32 %v7193, %v7205
        %v7214 = vadd.f32 %v7194, %v7205
        %v7215 = vadd.f32 %v7195, %v7205
        %v7216 = vadd.f32 %v7196, %v7205
        %v7217 = vadd.f32 %v7197, %v7205
        %v7218 = vadd.f32 %v7198, %v7205
        %v7219 = vadd.f32 %v7199, %v7205
        %v7220 = vadd.f32 %v7200, %v7205
        %v7221 = vadd.f32 %v7201, %v7205
        %v7222 = vadd.f32 %v7202, %v7205
        %v7223 = vld [vmem:[%s427] sm:$0xff]
        %v7224 = vld [vmem:[%s427 + $0x8] sm:$0xff]
        %v7225 = vld [vmem:[%s427 + $0x10] sm:$0xff]
        %v7226 = vld [vmem:[%s427 + $0x18] sm:$0xff]
        %v7227 = vld [vmem:[%s427 + $0x20] sm:$0xff]
        %v7228 = vld [vmem:[%s427 + $0x28] sm:$0xff]
        %v7229 = vld [vmem:[%s427 + $0x30] sm:$0xff]
        %v7230 = vld [vmem:[%s427 + $0x38] sm:$0xff]
        %v7231 = vld [vmem:[%s427 + $0x40] sm:$0xff]
        %v7232 = vld [vmem:[%s427 + $0x48] sm:$0xff]
        %v7233 = vld [vmem:[%s427 + $0x50] sm:$0xff]
        %v7234 = vld [vmem:[%s427 + $0x58] sm:$0xff]
        %v7235 = vld [vmem:[%s427 + $0x60] sm:$0xff]
        %v7236 = vld [vmem:[%s427 + $0x68] sm:$0xff]
        %v7237 = vld [vmem:[%s427 + $0x70] sm:$0xff]
        %v7238 = vld [vmem:[%s427 + $0x78] sm:$0xff]
        %v7239 = vadd.f32 %v7207, %v7223
        %v7240 = vadd.f32 %v7208, %v7224
        %v7241 = vadd.f32 %v7209, %v7225
        %v7242 = vadd.f32 %v7210, %v7226
        %v7243 = vadd.f32 %v7211, %v7227
        %v7244 = vadd.f32 %v7212, %v7228
        %v7245 = vadd.f32 %v7213, %v7229
        %v7246 = vadd.f32 %v7214, %v7230
        %v7247 = vadd.f32 %v7215, %v7231
        %v7248 = vadd.f32 %v7216, %v7232
        %v7249 = vadd.f32 %v7217, %v7233
        %v7250 = vadd.f32 %v7218, %v7234
        %v7251 = vadd.f32 %v7219, %v7235
        %v7252 = vadd.f32 %v7220, %v7236
        %v7253 = vadd.f32 %v7221, %v7237
        %v7254 = vadd.f32 %v7222, %v7238
        %v7255 = vmax.f32 %v7239, 0.0
        %v7256 = vmax.f32 %v7240, 0.0
        %v7257 = vmax.f32 %v7241, 0.0
        %v7258 = vmax.f32 %v7242, 0.0
        %v7259 = vmax.f32 %v7243, 0.0
        %v7260 = vmax.f32 %v7244, 0.0
        %v7261 = vmax.f32 %v7245, 0.0
        %v7262 = vmax.f32 %v7246, 0.0
        %v7263 = vmax.f32 %v7247, 0.0
        %v7264 = vmax.f32 %v7248, 0.0
        %v7265 = vmax.f32 %v7249, 0.0
        %v7266 = vmax.f32 %v7250, 0.0
        %v7267 = vmax.f32 %v7251, 0.0
        %v7268 = vmax.f32 %v7252, 0.0
        %v7269 = vmax.f32 %v7253, 0.0
        %v7270 = vmax.f32 %v7254, 0.0
        %7271 = vst [vmem:[%s345] sm:$0xff] %v7255
        %7272 = vst [vmem:[%s345 + $0x8] sm:$0xff] %v7256
        %7273 = vst [vmem:[%s345 + $0x10] sm:$0xff] %v7257
        %7274 = vst [vmem:[%s345 + $0x18] sm:$0xff] %v7258
        %7275 = vst [vmem:[%s345 + $0x20] sm:$0xff] %v7259
        %7276 = vst [vmem:[%s345 + $0x28] sm:$0xff] %v7260
        %7277 = vst [vmem:[%s345 + $0x30] sm:$0xff] %v7261
        %7278 = vst [vmem:[%s345 + $0x38] sm:$0xff] %v7262
        %7279 = vst [vmem:[%s345 + $0x40] sm:$0xff] %v7263
        %7280 = vst [vmem:[%s345 + $0x48] sm:$0xff] %v7264
        %7281 = vst [vmem:[%s345 + $0x50] sm:$0xff] %v7265
        %7282 = vst [vmem:[%s345 + $0x58] sm:$0xff] %v7266
        %7283 = vst [vmem:[%s345 + $0x60] sm:$0xff] %v7267
        %7284 = vst [vmem:[%s345 + $0x68] sm:$0xff] %v7268
        %7285 = vst [vmem:[%s345 + $0x70] sm:$0xff] %v7269
        %7286 = vst [vmem:[%s345 + $0x78] sm:$0xff] %v7270
        %s7287 = sand.u32 %s199, 1
        %s7288 = scalar_lea.sflag [#allocation6], %s7287
        %s7289 = sand.u32 %s199, 1
        %s7290 = smul.addr %s7289, 128
        %s7291 = scalar_lea.vmem [#allocation10], %s7290
        // Predicated region
        $region85: #{tpu_custom_call.1} parent=47 // pred_check
          %p7292 = pneg %p209
        $region86: #{tpu_custom_call.1} parent=47 // pred_check_branch
          %7294 = sbr.rel (%p7292) target = $region88
        $region87: #{tpu_custom_call.1} parent=47 // pred_region
          %s7295 = smul.u32 8, %s30
          %7297 = vsyncadd %s7288, 0
          %s7298 = smul.addr %s7295, 2
          %s7299 = smul.addr %s29, 32
          %s7300 = sadd.s32 %s7298, %s7299
          %s7301 = smul.addr %s7300, 8
          %s7302 = scalar_lea.hbm %s7, %s7301
          %s7303 = sshll.u32 %s7291, 4
          %s7304 = int_to_ptr.vmem [resolvable:$true] %s7303
          %s7305 = sshll.u32 %s7302, 4
          %s7306 = int_to_ptr.hbm [resolvable:$true] %s7305
          %7311 = dma.vmem_to_hbm [thread:$0]  %s7304, 2048, %s7306, %s7288, 128, 128, 8
        $region88: #{tpu_custom_call.1} parent=47 // pred_fallthru
          _
      $region48: #{tpu_custom_call.1} parent=5 // pred_fallthru
        _
      %p7312 = scmp.le.s32.totalorder 2, %s20
      // Predicated region
      $region89: #{tpu_custom_call.1} parent=5 // pred_check
        %p7313 = pneg %p7312
      $region90: #{tpu_custom_call.1} parent=5 // pred_check_branch
        %7315 = sbr.rel (%p7313) target = $region92
      $region91: #{tpu_custom_call.1} parent=5 // pred_region
        %s7316 = ssub.s32 %s20, 2
        // Predicated region
        $region93: #{tpu_custom_call.1} parent=91 // pred_check
          %p7317 = pneg %p215
        $region94: #{tpu_custom_call.1} parent=91 // pred_check_branch
          %7319 = sbr.rel (%p7317) target = $region96
        $region95: #{tpu_custom_call.1} parent=91 // pred_region
          %s7320 = sand.u32 %s200, 1
          %s7321 = scalar_lea.sflag [#allocation6], %s7320
          %s7322 = sand.u32 %s200, 1
          %s7323 = smul.addr %s7322, 128
          %s7324 = scalar_lea.vmem [#allocation10], %s7323
          %7326 = dma.done %s7321, 2048
        $region96: #{tpu_custom_call.1} parent=91 // pred_fallthru
          _
      $region92: #{tpu_custom_call.1} parent=5 // pred_fallthru
        _
    $region6: #{tpu_custom_call.1} parent=1 // loop_footer
      %s24 = sadd.s32 1, %s20
    $region7: #{tpu_custom_call.1} parent=1 // loop_footer_branch
      %19 = sbr.rel target = $region3
    $region8: #{tpu_custom_call.1} parent=1 // loop_exit
      _
    %7327 = vsyncpa [#allocation5], 1
    %s7328 = scalar_lea.sflag [#allocation5], 1
    %7329 = vsyncpa %s7328, 1
    %7330 = vsyncpa [#allocation8], 1
    %7331 = vsyncpa [#allocation6], 1
    %s7332 = scalar_lea.sflag [#allocation6], 1
    %7333 = vsyncpa %s7332, 1

</llo_original>
